<compile_context>
chip_gen: v7x
topology: tpu7x:2x2x1
jax: 0.10.0
libtpu: 0.0.40
codegen_flags: <defaults>
</compile_context>

<pallas_src>
from functools import partial

import jax
import jax.numpy as jnp
from jax import lax
from jax.experimental import pallas as pl
from jax.experimental.pallas import tpu as pltpu

NEG_BIG = -1e30

# Static per-layer (heads, F_out) config, in kernel argument order:
#   conv1_img, conv2_img, conv3_img, conv1_text, conv2_text, conv3_text, conv4
_LAYER_CFG = ((3, 512), (1, 512), (1, 20), (3, 110), (1, 110), (1, 20), (2, 20))


# ----------------------------------------------------------------------------
# Pallas kernel 1: fully fused GAT trunk (7 GATConv layers, all heads).
# ----------------------------------------------------------------------------
def _trunk_kernel(x_img_ref, x_text_ref, adj_ref, *refs):
    """refs = 7 x (w_big[bf16], q_src[bf16], bias[f32]) followed by out_ref."""
    out_ref = refs[-1]
    w_refs = refs[:-1]
    adj_mask = adj_ref[...] > 0.0          # [N, N] bool, shared by every layer

    def gat_layer(x, li):
        heads, fout = _LAYER_CFG[li]
        w_big = w_refs[3 * li][...]        # [Fin, H*Fout + H]  (bf16)
        q_src = w_refs[3 * li + 1][...]    # [H, Fin]           (bf16)
        bias = w_refs[3 * li + 2][...]     # [1, H*Fout]        (f32)
        xb = x.astype(jnp.bfloat16)

        # One wide matmul: per-head features + folded dst attention scores.
        z = jnp.dot(xb, w_big, preferred_element_type=jnp.float32)  # [N, H*F+H]
        # src attention scores for all heads at once, already in row layout.
        s_src = lax.dot_general(q_src, xb, (((1,), (1,)), ((), ())),
                                preferred_element_type=jnp.float32)  # [H, N]
        c0 = heads * fout
        outs = []
        for h in range(heads):                                   # static unroll
            hh = z[:, h * fout:(h + 1) * fout]                   # [N, F]
            e = z[:, c0 + h:c0 + h + 1] + s_src[h:h + 1, :]      # [N, N]
            e = jnp.where(e > 0, e, 0.2 * e)                     # LeakyReLU(0.2)
            e = jnp.where(adj_mask, e, NEG_BIG)                  # mask non-edges
            m = jnp.max(e, axis=1, keepdims=True)
            p = jnp.exp(e - m)
            inv = pl.reciprocal(jnp.sum(p, axis=1, keepdims=True), approx=True)
            attn = (p * inv).astype(jnp.bfloat16)
            outs.append(jnp.dot(attn, hh.astype(jnp.bfloat16),
                                preferred_element_type=jnp.float32))
        o = outs[0] if heads == 1 else jnp.concatenate(outs, axis=1)
        return jnp.maximum(o + bias, 0.0)                        # bias + F.relu

    xi = gat_layer(x_img_ref[...], 0)      # [N, 1536]
    xi = gat_layer(xi, 1)                  # [N, 512]
    xi = gat_layer(xi, 2)                  # [N, 20]
    xt = gat_layer(x_text_ref[...], 3)     # [N, 330]
    xt = gat_layer(xt, 4)                  # [N, 110]
    xt = gat_layer(xt, 5)                  # [N, 20]
    x = jnp.concatenate([xi, xt], axis=1)  # [N, 40]
    out_ref[...] = gat_layer(x, 6)         # [N, 40] (2 heads x 20, concat)


def fgat_trunk(layers, x_img, x_text, adj):
    n = x_img.shape[0]
    w_args = []
    for w_big, q_src, bias in layers:
        w_args += [w_big, q_src, bias]
    vmem = pl.BlockSpec(memory_space=pltpu.MemorySpace.VMEM)
    return pl.pallas_call(
        _trunk_kernel,
        out_shape=jax.ShapeDtypeStruct((n, 40), jnp.float32),
        in_specs=[vmem] * (3 + len(w_args)),
        out_specs=vmem,
        compiler_params=pltpu.CompilerParams(vmem_limit_bytes=32 * 1024 * 1024),
    )(x_img, x_text, adj, *w_args)


# ----------------------------------------------------------------------------
# Pallas kernel 2: EdgePooling greedy matching (scalar loop over SMEM).
# ----------------------------------------------------------------------------
def _edge_match_kernel(src_ref, dst_ref, order_ref, score_ref,
                       matched_ref, partner_ref, nscore_ref):
    num_nodes = partner_ref.shape[0]
    num_edges = order_ref.shape[0]

    @pl.loop(0, num_nodes)
    def _init(i):
        matched_ref[i] = jnp.int32(0)
        partner_ref[i] = i
        nscore_ref[i] = jnp.float32(1.0)

    @pl.loop(0, num_edges)
    def _greedy(k):
        e = order_ref[k]
        se = src_ref[e]
        de = dst_ref[e]
        sc = score_ref[e]
        ok = jnp.logical_and(
            jnp.logical_and(matched_ref[se] == 0, matched_ref[de] == 0),
            se != de)
        matched_ref[se] = jnp.where(ok, 1, matched_ref[se])
        matched_ref[de] = jnp.where(ok, 1, matched_ref[de])
        partner_ref[se] = jnp.where(ok, de, partner_ref[se])
        partner_ref[de] = jnp.where(ok, se, partner_ref[de])
        nscore_ref[se] = jnp.where(ok, sc, nscore_ref[se])
        nscore_ref[de] = jnp.where(ok, sc, nscore_ref[de])


def _edge_match(src, dst, order, score, n):
    smem = pl.BlockSpec(memory_space=pltpu.MemorySpace.SMEM)
    return pl.pallas_call(
        _edge_match_kernel,
        out_shape=(jax.ShapeDtypeStruct((n,), jnp.int32),
                   jax.ShapeDtypeStruct((n,), jnp.int32),
                   jax.ShapeDtypeStruct((n,), jnp.float32)),
        in_specs=[smem] * 4,
        out_specs=(smem, smem, smem),
    )(src, dst, order, score)


def edge_pool(x, edge_index, pool_params):
    """torch_geometric EdgePooling (eval): score = softmax-by-target(lin([x_src||x_dst])) + 0.5;
    greedily merge highest-scoring edges; merged feature = (x_i + x_j)*score, singletons x*1."""
    w_pool, b_pool = pool_params                      # [2F, 1], [1]
    src, dst = edge_index[0], edge_index[1]
    n = x.shape[0]
    # TODO(synk): per-edge gather + segment softmax + argsort stay in plain JAX
    # (data-dependent gather/sort); only the sequential greedy matching is a kernel.
    feat = jnp.concatenate([x[src], x[dst]], axis=1)
    raw = (feat @ w_pool)[:, 0] + b_pool[0]
    m = jax.ops.segment_max(raw, dst, num_segments=n)
    p = jnp.exp(raw - m[dst])
    s = jax.ops.segment_sum(p, dst, num_segments=n)
    score = (p / s[dst] + 0.5).astype(jnp.float32)
    order = jnp.argsort(-score).astype(jnp.int32)

    matched, partner, nscore = _edge_match(src, dst, order, score, n)

    node_ids = jnp.arange(n, dtype=jnp.int32)
    is_rep = node_ids <= partner                      # representative of each cluster
    x_other = jnp.where((matched > 0)[:, None], x[partner], 0.0)
    x_new = (x + x_other) * nscore[:, None]
    return x_new, is_rep


# ----------------------------------------------------------------------------
# Pallas kernel 3: global_max_pool (per graph) + lin1/ReLU + lin2 + softmax.
# ----------------------------------------------------------------------------
def _head_kernel(x_ref, mask_ref, w1_ref, b1_ref, w2_ref, b2_ref,
                 out_ref, pooled_ref):
    """x:[N,Fh]  mask:[N,G] (1 = valid cluster node of that graph)  out:[G,2]."""
    x = x_ref[...]
    mask = mask_ref[...]                              # [N, G]
    num_graphs = pooled_ref.shape[0]
    for g in range(num_graphs):                       # static unroll over graphs
        valid = mask[:, g:g + 1] > 0                  # [N, 1]
        pooled_ref[g:g + 1, :] = jnp.max(jnp.where(valid, x, NEG_BIG),
                                         axis=0, keepdims=True)
    pooled = pooled_ref[...]                          # [G, Fh]
    h1 = jnp.maximum(
        jnp.dot(pooled, w1_ref[...], preferred_element_type=jnp.float32) + b1_ref[...],
        0.0)
    logits = jnp.dot(h1, w2_ref[...], preferred_element_type=jnp.float32) + b2_ref[...]
    m = jnp.max(logits, axis=1, keepdims=True)
    p = jnp.exp(logits - m)
    # exact divide here: final probabilities must sum to 1 to f32 precision
    out_ref[...] = p / jnp.sum(p, axis=1, keepdims=True)


def head_forward(x_new, mask_ng, lin_params):
    w1, b1, w2, b2 = lin_params
    g = mask_ng.shape[1]
    f = x_new.shape[1]
    vmem = pl.BlockSpec(memory_space=pltpu.MemorySpace.VMEM)
    return pl.pallas_call(
        _head_kernel,
        out_shape=jax.ShapeDtypeStruct((g, 2), jnp.float32),
        in_specs=[vmem] * 6,
        out_specs=vmem,
        scratch_shapes=[pltpu.VMEM((g, f), jnp.float32)],
    )(x_new, mask_ng, w1, b1, w2, b2)


# ----------------------------------------------------------------------------
# Parameter initialization (deterministic, synthetic) + packing for the kernel.
# ----------------------------------------------------------------------------
def _init_gat_raw(key, fin, fout, heads):
    k1, k2, k3 = jax.random.split(key, 3)
    scale = 1.0 / jnp.sqrt(jnp.float32(fin))
    w = jax.random.normal(k1, (heads, fin, fout), jnp.float32) * scale
    a_src = jax.random.normal(k2, (heads, 1, fout), jnp.float32) * 0.1
    a_dst = jax.random.normal(k3, (heads, 1, fout), jnp.float32) * 0.1
    bias = jnp.zeros((heads, 1, fout), jnp.float32)
    return w, a_src, a_dst, bias


def _pack_gat(raw):
    """Pack one GATConv: [W_h blocks | W_h @ a_dst_h] as bf16, q_src = W_h @ a_src_h rows."""
    w, a_src, a_dst, bias = raw
    heads, fin, fout = w.shape
    w_flat = jnp.transpose(w, (1, 0, 2)).reshape(fin, heads * fout)      # [Fin, H*F]
    p_dst = jnp.einsum('hif,hf->ih', w, a_dst[:, 0, :])                  # [Fin, H]
    w_big = jnp.concatenate([w_flat, p_dst], axis=1).astype(jnp.bfloat16)
    q_src = jnp.einsum('hif,hf->hi', w, a_src[:, 0, :]).astype(jnp.bfloat16)  # [H, Fin]
    bias_flat = jnp.transpose(bias, (1, 0, 2)).reshape(1, heads * fout)  # [1, H*F]
    return w_big, q_src, bias_flat


def init_params(key, num_features, text_feature_size=220):
    ks = jax.random.split(key, 12)
    t2 = text_feature_size // 2                        # 110
    layer_defs = [                                     # order matches _LAYER_CFG
        (ks[0], num_features, 512, 3),                 # conv1_img
        (ks[2], 512 * 3, 512, 1),                      # conv2_img
        (ks[4], 512, 20, 1),                           # conv3_img
        (ks[1], text_feature_size, t2, 3),             # conv1_text
        (ks[3], t2 * 3, t2, 1),                        # conv2_text
        (ks[5], t2, 20, 1),                            # conv3_text
        (ks[6], 40, 20, 2),                            # conv4
    ]
    layers = [_pack_gat(_init_gat_raw(k, fin, fout, h))
              for (k, fin, fout, h) in layer_defs]
    params = {
        "layers": layers,
        "pool": (jax.random.normal(ks[7], (80, 1), jnp.float32) * 0.1,
                 jnp.zeros((1,), jnp.float32)),
        "lin": (jax.random.normal(ks[8], (40, 20), jnp.float32) * (1.0 / jnp.sqrt(40.0)),
                jnp.zeros((1, 20), jnp.float32),
                jax.random.normal(ks[9], (20, 2), jnp.float32) * (1.0 / jnp.sqrt(20.0)),
                jnp.zeros((1, 2), jnp.float32)),
    }
    return params


# ----------------------------------------------------------------------------
# Full FGAT forward (eval mode).
# ----------------------------------------------------------------------------
def _fgat_forward_impl(params, x_img, x_text, adj, edge_index, batch, num_graphs):
    # F.dropout / GAT attention dropout are identity in eval mode.
    x = fgat_trunk(params["layers"], x_img, x_text, adj)        # [N, 40]
    x_new, is_rep = edge_pool(x, edge_index, params["pool"])
    mask_ng = jnp.logical_and(
        batch[:, None] == jnp.arange(num_graphs, dtype=jnp.int32)[None, :],
        is_rep[:, None]).astype(jnp.float32)                    # [N, G]
    return head_forward(x_new, mask_ng, params["lin"])          # [G, 2] softmax probs


fgat_forward = jax.jit(_fgat_forward_impl, static_argnums=(6,))


# ----------------------------------------------------------------------------
if __name__ == "__main__":
    key = jax.random.PRNGKey(0)
    N, G = 16, 2
    NUM_FEATURES, TEXT_FEATURES = 128, 220

    k_p, k_img, k_txt = jax.random.split(key, 3)
    params = init_params(k_p, NUM_FEATURES, TEXT_FEATURES)

    x_img = jax.random.normal(k_img, (N, NUM_FEATURES), jnp.float32)
    x_text = jax.random.normal(k_txt, (N, TEXT_FEATURES), jnp.float32)
    batch = jnp.array([0] * 8 + [1] * 8, dtype=jnp.int32)

    # bidirectional chain inside each of the two graphs (no self loops in data)
    edges = []
    for g in range(G):
        base = g * 8
        for i in range(7):
            edges.append((base + i, base + i + 1))
            edges.append((base + i + 1, base + i))
    edge_index = jnp.array(edges, dtype=jnp.int32).T      # [2, 28]

    # dense adjacency for the GAT kernels: adj[dst, src] = 1, plus self loops
    adj = jnp.zeros((N, N), jnp.float32)
    adj = adj.at[edge_index[1], edge_index[0]].set(1.0)
    adj = adj.at[jnp.arange(N), jnp.arange(N)].set(1.0)

    out = fgat_forward(params, x_img, x_text, adj, edge_index, batch, G)
    out = jax.block_until_ready(out)

    assert out.shape == (G, 2)
    assert bool(jnp.all(jnp.isfinite(out)))
    assert bool(jnp.all(jnp.abs(jnp.sum(out, axis=1) - 1.0) < 1e-4))
    print("KERNEL_OK")
</pallas_src>

<mosaic_0001>
module attributes {stable_mosaic.version = 11 : i64} {
  func.func @_trunk_kernel(%arg0: memref<16x128xf32, #tpu.memory_space<vmem>>, %arg1: memref<16x220xf32, #tpu.memory_space<vmem>>, %arg2: memref<16x16xf32, #tpu.memory_space<vmem>>, %arg3: memref<128x1539xbf16, #tpu.memory_space<vmem>>, %arg4: memref<3x128xbf16, #tpu.memory_space<vmem>>, %arg5: memref<1x1536xf32, #tpu.memory_space<vmem>>, %arg6: memref<1536x513xbf16, #tpu.memory_space<vmem>>, %arg7: memref<1x1536xbf16, #tpu.memory_space<vmem>>, %arg8: memref<1x512xf32, #tpu.memory_space<vmem>>, %arg9: memref<512x21xbf16, #tpu.memory_space<vmem>>, %arg10: memref<1x512xbf16, #tpu.memory_space<vmem>>, %arg11: memref<1x20xf32, #tpu.memory_space<vmem>>, %arg12: memref<220x333xbf16, #tpu.memory_space<vmem>>, %arg13: memref<3x220xbf16, #tpu.memory_space<vmem>>, %arg14: memref<1x330xf32, #tpu.memory_space<vmem>>, %arg15: memref<330x111xbf16, #tpu.memory_space<vmem>>, %arg16: memref<1x330xbf16, #tpu.memory_space<vmem>>, %arg17: memref<1x110xf32, #tpu.memory_space<vmem>>, %arg18: memref<110x21xbf16, #tpu.memory_space<vmem>>, %arg19: memref<1x110xbf16, #tpu.memory_space<vmem>>, %arg20: memref<1x20xf32, #tpu.memory_space<vmem>>, %arg21: memref<40x42xbf16, #tpu.memory_space<vmem>>, %arg22: memref<2x40xbf16, #tpu.memory_space<vmem>>, %arg23: memref<1x40xf32, #tpu.memory_space<vmem>>, %arg24: memref<16x40xf32, #tpu.memory_space<vmem>>) attributes {dimension_semantics = [], scalar_prefetch = 0 : i64, scratch_operands = 0 : i64, tpu.core_type = #tpu.core_type<tc>} {
    %c0 = arith.constant 0 : index
    %c0_0 = arith.constant 0 : index
    %0 = vector.load %arg2[%c0, %c0_0] : memref<16x16xf32, #tpu.memory_space<vmem>>, vector<16x16xf32>
    %cst = arith.constant 0.000000e+00 : f32
    %1 = vector.broadcast %cst : f32 to vector<16x16xf32>
    %2 = arith.cmpf ogt, %0, %1 : vector<16x16xf32>
    %c0_1 = arith.constant 0 : index
    %c0_2 = arith.constant 0 : index
    %3 = vector.load %arg0[%c0_1, %c0_2] : memref<16x128xf32, #tpu.memory_space<vmem>>, vector<16x128xf32>
    %c0_3 = arith.constant 0 : index
    %c0_4 = arith.constant 0 : index
    %4 = vector.load %arg3[%c0_3, %c0_4] : memref<128x1539xbf16, #tpu.memory_space<vmem>>, vector<128x1539xbf16>
    %c0_5 = arith.constant 0 : index
    %c0_6 = arith.constant 0 : index
    %5 = vector.load %arg4[%c0_5, %c0_6] : memref<3x128xbf16, #tpu.memory_space<vmem>>, vector<3x128xbf16>
    %c0_7 = arith.constant 0 : index
    %c0_8 = arith.constant 0 : index
    %6 = vector.load %arg5[%c0_7, %c0_8] : memref<1x1536xf32, #tpu.memory_space<vmem>>, vector<1x1536xf32>
    %7 = arith.truncf %3 : vector<16x128xf32> to vector<16x128xbf16>
    %cst_9 = arith.constant dense<0.000000e+00> : vector<16x1539xf32>
    %8 = tpu.matmul %7, %4, %cst_9 {dimension_numbers = #tpu.dot_dimension_numbers<[1], [0], [0], [1], [0, 0, 1, 1], [], []>} : vector<16x128xbf16>, vector<128x1539xbf16>, vector<16x1539xf32> -> vector<16x1539xf32>
    %cst_10 = arith.constant dense<0.000000e+00> : vector<3x16xf32>
    %9 = tpu.matmul %5, %7, %cst_10 {dimension_numbers = #tpu.dot_dimension_numbers<[1], [1], [0], [0], [0, 0, 1, 0], [], []>} : vector<3x128xbf16>, vector<16x128xbf16>, vector<3x16xf32> -> vector<3x16xf32>
    %10 = vector.extract_strided_slice %8 {offsets = [0, 0], sizes = [16, 512], strides = [1, 1]} : vector<16x1539xf32> to vector<16x512xf32>
    %11 = vector.extract_strided_slice %8 {offsets = [0, 1536], sizes = [16, 1], strides = [1, 1]} : vector<16x1539xf32> to vector<16x1xf32>
    %12 = vector.extract_strided_slice %9 {offsets = [0, 0], sizes = [1, 16], strides = [1, 1]} : vector<3x16xf32> to vector<1x16xf32>
    %13 = vector.broadcast %11 : vector<16x1xf32> to vector<16x16xf32>
    %14 = vector.broadcast %12 : vector<1x16xf32> to vector<16x16xf32>
    %15 = arith.addf %13, %14 : vector<16x16xf32>
    %cst_11 = arith.constant 0.000000e+00 : f32
    %16 = vector.broadcast %cst_11 : f32 to vector<16x16xf32>
    %17 = arith.cmpf ogt, %15, %16 : vector<16x16xf32>
    %cst_12 = arith.constant 2.000000e-01 : f32
    %18 = vector.broadcast %cst_12 : f32 to vector<16x16xf32>
    %19 = arith.mulf %18, %15 : vector<16x16xf32>
    %20 = arith.select %17, %15, %19 : vector<16x16xi1>, vector<16x16xf32>
    %cst_13 = arith.constant -1.000000e+30 : f32
    %21 = vector.broadcast %cst_13 : f32 to vector<16x16xf32>
    %22 = arith.select %2, %20, %21 : vector<16x16xi1>, vector<16x16xf32>
    %cst_14 = arith.constant dense<0xFF800000> : vector<16xf32>
    %23 = vector.multi_reduction <maximumf>, %22, %cst_14 [1] : vector<16x16xf32> to vector<16xf32>
    %24 = vector.shape_cast %23 : vector<16xf32> to vector<16x1xf32>
    %25 = vector.broadcast %24 : vector<16x1xf32> to vector<16x16xf32>
    %26 = arith.subf %22, %25 : vector<16x16xf32>
    %27 = math.exp %26 : vector<16x16xf32>
    %cst_15 = arith.constant dense<0.000000e+00> : vector<16xf32>
    %28 = vector.multi_reduction <add>, %27, %cst_15 [1] : vector<16x16xf32> to vector<16xf32>
    %29 = vector.shape_cast %28 : vector<16xf32> to vector<16x1xf32>
    %30 = tpu.reciprocal %29 {approx = true} : vector<16x1xf32> -> vector<16x1xf32>
    %31 = vector.broadcast %30 : vector<16x1xf32> to vector<16x16xf32>
    %32 = arith.mulf %27, %31 : vector<16x16xf32>
    %33 = arith.truncf %32 : vector<16x16xf32> to vector<16x16xbf16>
    %34 = arith.truncf %10 : vector<16x512xf32> to vector<16x512xbf16>
    %cst_16 = arith.constant dense<0.000000e+00> : vector<16x512xf32>
    %35 = tpu.matmul %33, %34, %cst_16 {dimension_numbers = #tpu.dot_dimension_numbers<[1], [0], [0], [1], [0, 0, 1, 1], [], []>} : vector<16x16xbf16>, vector<16x512xbf16>, vector<16x512xf32> -> vector<16x512xf32>
    %36 = vector.extract_strided_slice %8 {offsets = [0, 512], sizes = [16, 512], strides = [1, 1]} : vector<16x1539xf32> to vector<16x512xf32>
    %37 = vector.extract_strided_slice %8 {offsets = [0, 1537], sizes = [16, 1], strides = [1, 1]} : vector<16x1539xf32> to vector<16x1xf32>
    %38 = vector.extract_strided_slice %9 {offsets = [1, 0], sizes = [1, 16], strides = [1, 1]} : vector<3x16xf32> to vector<1x16xf32>
    %39 = vector.broadcast %37 : vector<16x1xf32> to vector<16x16xf32>
    %40 = vector.broadcast %38 : vector<1x16xf32> to vector<16x16xf32>
    %41 = arith.addf %39, %40 : vector<16x16xf32>
    %cst_17 = arith.constant 0.000000e+00 : f32
    %42 = vector.broadcast %cst_17 : f32 to vector<16x16xf32>
    %43 = arith.cmpf ogt, %41, %42 : vector<16x16xf32>
    %cst_18 = arith.constant 2.000000e-01 : f32
    %44 = vector.broadcast %cst_18 : f32 to vector<16x16xf32>
    %45 = arith.mulf %44, %41 : vector<16x16xf32>
    %46 = arith.select %43, %41, %45 : vector<16x16xi1>, vector<16x16xf32>
    %cst_19 = arith.constant -1.000000e+30 : f32
    %47 = vector.broadcast %cst_19 : f32 to vector<16x16xf32>
    %48 = arith.select %2, %46, %47 : vector<16x16xi1>, vector<16x16xf32>
    %cst_20 = arith.constant dense<0xFF800000> : vector<16xf32>
    %49 = vector.multi_reduction <maximumf>, %48, %cst_20 [1] : vector<16x16xf32> to vector<16xf32>
    %50 = vector.shape_cast %49 : vector<16xf32> to vector<16x1xf32>
    %51 = vector.broadcast %50 : vector<16x1xf32> to vector<16x16xf32>
    %52 = arith.subf %48, %51 : vector<16x16xf32>
    %53 = math.exp %52 : vector<16x16xf32>
    %cst_21 = arith.constant dense<0.000000e+00> : vector<16xf32>
    %54 = vector.multi_reduction <add>, %53, %cst_21 [1] : vector<16x16xf32> to vector<16xf32>
    %55 = vector.shape_cast %54 : vector<16xf32> to vector<16x1xf32>
    %56 = tpu.reciprocal %55 {approx = true} : vector<16x1xf32> -> vector<16x1xf32>
    %57 = vector.broadcast %56 : vector<16x1xf32> to vector<16x16xf32>
    %58 = arith.mulf %53, %57 : vector<16x16xf32>
    %59 = arith.truncf %58 : vector<16x16xf32> to vector<16x16xbf16>
    %60 = arith.truncf %36 : vector<16x512xf32> to vector<16x512xbf16>
    %cst_22 = arith.constant dense<0.000000e+00> : vector<16x512xf32>
    %61 = tpu.matmul %59, %60, %cst_22 {dimension_numbers = #tpu.dot_dimension_numbers<[1], [0], [0], [1], [0, 0, 1, 1], [], []>} : vector<16x16xbf16>, vector<16x512xbf16>, vector<16x512xf32> -> vector<16x512xf32>
    %62 = vector.extract_strided_slice %8 {offsets = [0, 1024], sizes = [16, 512], strides = [1, 1]} : vector<16x1539xf32> to vector<16x512xf32>
    %63 = vector.extract_strided_slice %8 {offsets = [0, 1538], sizes = [16, 1], strides = [1, 1]} : vector<16x1539xf32> to vector<16x1xf32>
    %64 = vector.extract_strided_slice %9 {offsets = [2, 0], sizes = [1, 16], strides = [1, 1]} : vector<3x16xf32> to vector<1x16xf32>
    %65 = vector.broadcast %63 : vector<16x1xf32> to vector<16x16xf32>
    %66 = vector.broadcast %64 : vector<1x16xf32> to vector<16x16xf32>
    %67 = arith.addf %65, %66 : vector<16x16xf32>
    %cst_23 = arith.constant 0.000000e+00 : f32
    %68 = vector.broadcast %cst_23 : f32 to vector<16x16xf32>
    %69 = arith.cmpf ogt, %67, %68 : vector<16x16xf32>
    %cst_24 = arith.constant 2.000000e-01 : f32
    %70 = vector.broadcast %cst_24 : f32 to vector<16x16xf32>
    %71 = arith.mulf %70, %67 : vector<16x16xf32>
    %72 = arith.select %69, %67, %71 : vector<16x16xi1>, vector<16x16xf32>
    %cst_25 = arith.constant -1.000000e+30 : f32
    %73 = vector.broadcast %cst_25 : f32 to vector<16x16xf32>
    %74 = arith.select %2, %72, %73 : vector<16x16xi1>, vector<16x16xf32>
    %cst_26 = arith.constant dense<0xFF800000> : vector<16xf32>
    %75 = vector.multi_reduction <maximumf>, %74, %cst_26 [1] : vector<16x16xf32> to vector<16xf32>
    %76 = vector.shape_cast %75 : vector<16xf32> to vector<16x1xf32>
    %77 = vector.broadcast %76 : vector<16x1xf32> to vector<16x16xf32>
    %78 = arith.subf %74, %77 : vector<16x16xf32>
    %79 = math.exp %78 : vector<16x16xf32>
    %cst_27 = arith.constant dense<0.000000e+00> : vector<16xf32>
    %80 = vector.multi_reduction <add>, %79, %cst_27 [1] : vector<16x16xf32> to vector<16xf32>
    %81 = vector.shape_cast %80 : vector<16xf32> to vector<16x1xf32>
    %82 = tpu.reciprocal %81 {approx = true} : vector<16x1xf32> -> vector<16x1xf32>
    %83 = vector.broadcast %82 : vector<16x1xf32> to vector<16x16xf32>
    %84 = arith.mulf %79, %83 : vector<16x16xf32>
    %85 = arith.truncf %84 : vector<16x16xf32> to vector<16x16xbf16>
    %86 = arith.truncf %62 : vector<16x512xf32> to vector<16x512xbf16>
    %cst_28 = arith.constant dense<0.000000e+00> : vector<16x512xf32>
    %87 = tpu.matmul %85, %86, %cst_28 {dimension_numbers = #tpu.dot_dimension_numbers<[1], [0], [0], [1], [0, 0, 1, 1], [], []>} : vector<16x16xbf16>, vector<16x512xbf16>, vector<16x512xf32> -> vector<16x512xf32>
    %88 = tpu.concatenate %35, %61, %87 in 1 : vector<16x512xf32>, vector<16x512xf32>, vector<16x512xf32> -> vector<16x1536xf32>
    %89 = vector.broadcast %6 : vector<1x1536xf32> to vector<16x1536xf32>
    %90 = arith.addf %88, %89 : vector<16x1536xf32>
    %cst_29 = arith.constant 0.000000e+00 : f32
    %91 = vector.broadcast %cst_29 : f32 to vector<16x1536xf32>
    %92 = arith.maximumf %90, %91 : vector<16x1536xf32>
    %c0_30 = arith.constant 0 : index
    %c0_31 = arith.constant 0 : index
    %93 = vector.load %arg6[%c0_30, %c0_31] : memref<1536x513xbf16, #tpu.memory_space<vmem>>, vector<1536x513xbf16>
    %c0_32 = arith.constant 0 : index
    %c0_33 = arith.constant 0 : index
    %94 = vector.load %arg7[%c0_32, %c0_33] : memref<1x1536xbf16, #tpu.memory_space<vmem>>, vector<1x1536xbf16>
    %c0_34 = arith.constant 0 : index
    %c0_35 = arith.constant 0 : index
    %95 = vector.load %arg8[%c0_34, %c0_35] : memref<1x512xf32, #tpu.memory_space<vmem>>, vector<1x512xf32>
    %96 = arith.truncf %92 : vector<16x1536xf32> to vector<16x1536xbf16>
    %cst_36 = arith.constant dense<0.000000e+00> : vector<16x513xf32>
    %97 = tpu.matmul %96, %93, %cst_36 {dimension_numbers = #tpu.dot_dimension_numbers<[1], [0], [0], [1], [0, 0, 1, 1], [], []>} : vector<16x1536xbf16>, vector<1536x513xbf16>, vector<16x513xf32> -> vector<16x513xf32>
    %cst_37 = arith.constant dense<0.000000e+00> : vector<1x16xf32>
    %98 = tpu.matmul %94, %96, %cst_37 {dimension_numbers = #tpu.dot_dimension_numbers<[1], [1], [0], [0], [0, 0, 1, 0], [], []>} : vector<1x1536xbf16>, vector<16x1536xbf16>, vector<1x16xf32> -> vector<1x16xf32>
    %99 = vector.extract_strided_slice %97 {offsets = [0, 0], sizes = [16, 512], strides = [1, 1]} : vector<16x513xf32> to vector<16x512xf32>
    %100 = vector.extract_strided_slice %97 {offsets = [0, 512], sizes = [16, 1], strides = [1, 1]} : vector<16x513xf32> to vector<16x1xf32>
    %101 = vector.broadcast %100 : vector<16x1xf32> to vector<16x16xf32>
    %102 = vector.broadcast %98 : vector<1x16xf32> to vector<16x16xf32>
    %103 = arith.addf %101, %102 : vector<16x16xf32>
    %cst_38 = arith.constant 0.000000e+00 : f32
    %104 = vector.broadcast %cst_38 : f32 to vector<16x16xf32>
    %105 = arith.cmpf ogt, %103, %104 : vector<16x16xf32>
    %cst_39 = arith.constant 2.000000e-01 : f32
    %106 = vector.broadcast %cst_39 : f32 to vector<16x16xf32>
    %107 = arith.mulf %106, %103 : vector<16x16xf32>
    %108 = arith.select %105, %103, %107 : vector<16x16xi1>, vector<16x16xf32>
    %cst_40 = arith.constant -1.000000e+30 : f32
    %109 = vector.broadcast %cst_40 : f32 to vector<16x16xf32>
    %110 = arith.select %2, %108, %109 : vector<16x16xi1>, vector<16x16xf32>
    %cst_41 = arith.constant dense<0xFF800000> : vector<16xf32>
    %111 = vector.multi_reduction <maximumf>, %110, %cst_41 [1] : vector<16x16xf32> to vector<16xf32>
    %112 = vector.shape_cast %111 : vector<16xf32> to vector<16x1xf32>
    %113 = vector.broadcast %112 : vector<16x1xf32> to vector<16x16xf32>
    %114 = arith.subf %110, %113 : vector<16x16xf32>
    %115 = math.exp %114 : vector<16x16xf32>
    %cst_42 = arith.constant dense<0.000000e+00> : vector<16xf32>
    %116 = vector.multi_reduction <add>, %115, %cst_42 [1] : vector<16x16xf32> to vector<16xf32>
    %117 = vector.shape_cast %116 : vector<16xf32> to vector<16x1xf32>
    %118 = tpu.reciprocal %117 {approx = true} : vector<16x1xf32> -> vector<16x1xf32>
    %119 = vector.broadcast %118 : vector<16x1xf32> to vector<16x16xf32>
    %120 = arith.mulf %115, %119 : vector<16x16xf32>
    %121 = arith.truncf %120 : vector<16x16xf32> to vector<16x16xbf16>
    %122 = arith.truncf %99 : vector<16x512xf32> to vector<16x512xbf16>
    %cst_43 = arith.constant dense<0.000000e+00> : vector<16x512xf32>
    %123 = tpu.matmul %121, %122, %cst_43 {dimension_numbers = #tpu.dot_dimension_numbers<[1], [0], [0], [1], [0, 0, 1, 1], [], []>} : vector<16x16xbf16>, vector<16x512xbf16>, vector<16x512xf32> -> vector<16x512xf32>
    %124 = vector.broadcast %95 : vector<1x512xf32> to vector<16x512xf32>
    %125 = arith.addf %123, %124 : vector<16x512xf32>
    %cst_44 = arith.constant 0.000000e+00 : f32
    %126 = vector.broadcast %cst_44 : f32 to vector<16x512xf32>
    %127 = arith.maximumf %125, %126 : vector<16x512xf32>
    %c0_45 = arith.constant 0 : index
    %c0_46 = arith.constant 0 : index
    %128 = vector.load %arg9[%c0_45, %c0_46] : memref<512x21xbf16, #tpu.memory_space<vmem>>, vector<512x21xbf16>
    %c0_47 = arith.constant 0 : index
    %c0_48 = arith.constant 0 : index
    %129 = vector.load %arg10[%c0_47, %c0_48] : memref<1x512xbf16, #tpu.memory_space<vmem>>, vector<1x512xbf16>
    %c0_49 = arith.constant 0 : index
    %c0_50 = arith.constant 0 : index
    %130 = vector.load %arg11[%c0_49, %c0_50] : memref<1x20xf32, #tpu.memory_space<vmem>>, vector<1x20xf32>
    %131 = arith.truncf %127 : vector<16x512xf32> to vector<16x512xbf16>
    %cst_51 = arith.constant dense<0.000000e+00> : vector<16x21xf32>
    %132 = tpu.matmul %131, %128, %cst_51 {dimension_numbers = #tpu.dot_dimension_numbers<[1], [0], [0], [1], [0, 0, 1, 1], [], []>} : vector<16x512xbf16>, vector<512x21xbf16>, vector<16x21xf32> -> vector<16x21xf32>
    %cst_52 = arith.constant dense<0.000000e+00> : vector<1x16xf32>
    %133 = tpu.matmul %129, %131, %cst_52 {dimension_numbers = #tpu.dot_dimension_numbers<[1], [1], [0], [0], [0, 0, 1, 0], [], []>} : vector<1x512xbf16>, vector<16x512xbf16>, vector<1x16xf32> -> vector<1x16xf32>
    %134 = vector.extract_strided_slice %132 {offsets = [0, 0], sizes = [16, 20], strides = [1, 1]} : vector<16x21xf32> to vector<16x20xf32>
    %135 = vector.extract_strided_slice %132 {offsets = [0, 20], sizes = [16, 1], strides = [1, 1]} : vector<16x21xf32> to vector<16x1xf32>
    %136 = vector.broadcast %135 : vector<16x1xf32> to vector<16x16xf32>
    %137 = vector.broadcast %133 : vector<1x16xf32> to vector<16x16xf32>
    %138 = arith.addf %136, %137 : vector<16x16xf32>
    %cst_53 = arith.constant 0.000000e+00 : f32
    %139 = vector.broadcast %cst_53 : f32 to vector<16x16xf32>
    %140 = arith.cmpf ogt, %138, %139 : vector<16x16xf32>
    %cst_54 = arith.constant 2.000000e-01 : f32
    %141 = vector.broadcast %cst_54 : f32 to vector<16x16xf32>
    %142 = arith.mulf %141, %138 : vector<16x16xf32>
    %143 = arith.select %140, %138, %142 : vector<16x16xi1>, vector<16x16xf32>
    %cst_55 = arith.constant -1.000000e+30 : f32
    %144 = vector.broadcast %cst_55 : f32 to vector<16x16xf32>
    %145 = arith.select %2, %143, %144 : vector<16x16xi1>, vector<16x16xf32>
    %cst_56 = arith.constant dense<0xFF800000> : vector<16xf32>
    %146 = vector.multi_reduction <maximumf>, %145, %cst_56 [1] : vector<16x16xf32> to vector<16xf32>
    %147 = vector.shape_cast %146 : vector<16xf32> to vector<16x1xf32>
    %148 = vector.broadcast %147 : vector<16x1xf32> to vector<16x16xf32>
    %149 = arith.subf %145, %148 : vector<16x16xf32>
    %150 = math.exp %149 : vector<16x16xf32>
    %cst_57 = arith.constant dense<0.000000e+00> : vector<16xf32>
    %151 = vector.multi_reduction <add>, %150, %cst_57 [1] : vector<16x16xf32> to vector<16xf32>
    %152 = vector.shape_cast %151 : vector<16xf32> to vector<16x1xf32>
    %153 = tpu.reciprocal %152 {approx = true} : vector<16x1xf32> -> vector<16x1xf32>
    %154 = vector.broadcast %153 : vector<16x1xf32> to vector<16x16xf32>
    %155 = arith.mulf %150, %154 : vector<16x16xf32>
    %156 = arith.truncf %155 : vector<16x16xf32> to vector<16x16xbf16>
    %157 = arith.truncf %134 : vector<16x20xf32> to vector<16x20xbf16>
    %cst_58 = arith.constant dense<0.000000e+00> : vector<16x20xf32>
    %158 = tpu.matmul %156, %157, %cst_58 {dimension_numbers = #tpu.dot_dimension_numbers<[1], [0], [0], [1], [0, 0, 1, 1], [], []>} : vector<16x16xbf16>, vector<16x20xbf16>, vector<16x20xf32> -> vector<16x20xf32>
    %159 = vector.broadcast %130 : vector<1x20xf32> to vector<16x20xf32>
    %160 = arith.addf %158, %159 : vector<16x20xf32>
    %cst_59 = arith.constant 0.000000e+00 : f32
    %161 = vector.broadcast %cst_59 : f32 to vector<16x20xf32>
    %162 = arith.maximumf %160, %161 : vector<16x20xf32>
    %c0_60 = arith.constant 0 : index
    %c0_61 = arith.constant 0 : index
    %163 = vector.load %arg1[%c0_60, %c0_61] : memref<16x220xf32, #tpu.memory_space<vmem>>, vector<16x220xf32>
    %c0_62 = arith.constant 0 : index
    %c0_63 = arith.constant 0 : index
    %164 = vector.load %arg12[%c0_62, %c0_63] : memref<220x333xbf16, #tpu.memory_space<vmem>>, vector<220x333xbf16>
    %c0_64 = arith.constant 0 : index
    %c0_65 = arith.constant 0 : index
    %165 = vector.load %arg13[%c0_64, %c0_65] : memref<3x220xbf16, #tpu.memory_space<vmem>>, vector<3x220xbf16>
    %c0_66 = arith.constant 0 : index
    %c0_67 = arith.constant 0 : index
    %166 = vector.load %arg14[%c0_66, %c0_67] : memref<1x330xf32, #tpu.memory_space<vmem>>, vector<1x330xf32>
    %167 = arith.truncf %163 : vector<16x220xf32> to vector<16x220xbf16>
    %cst_68 = arith.constant dense<0.000000e+00> : vector<16x333xf32>
    %168 = tpu.matmul %167, %164, %cst_68 {dimension_numbers = #tpu.dot_dimension_numbers<[1], [0], [0], [1], [0, 0, 1, 1], [], []>} : vector<16x220xbf16>, vector<220x333xbf16>, vector<16x333xf32> -> vector<16x333xf32>
    %cst_69 = arith.constant dense<0.000000e+00> : vector<3x16xf32>
    %169 = tpu.matmul %165, %167, %cst_69 {dimension_numbers = #tpu.dot_dimension_numbers<[1], [1], [0], [0], [0, 0, 1, 0], [], []>} : vector<3x220xbf16>, vector<16x220xbf16>, vector<3x16xf32> -> vector<3x16xf32>
    %170 = vector.extract_strided_slice %168 {offsets = [0, 0], sizes = [16, 110], strides = [1, 1]} : vector<16x333xf32> to vector<16x110xf32>
    %171 = vector.extract_strided_slice %168 {offsets = [0, 330], sizes = [16, 1], strides = [1, 1]} : vector<16x333xf32> to vector<16x1xf32>
    %172 = vector.extract_strided_slice %169 {offsets = [0, 0], sizes = [1, 16], strides = [1, 1]} : vector<3x16xf32> to vector<1x16xf32>
    %173 = vector.broadcast %171 : vector<16x1xf32> to vector<16x16xf32>
    %174 = vector.broadcast %172 : vector<1x16xf32> to vector<16x16xf32>
    %175 = arith.addf %173, %174 : vector<16x16xf32>
    %cst_70 = arith.constant 0.000000e+00 : f32
    %176 = vector.broadcast %cst_70 : f32 to vector<16x16xf32>
    %177 = arith.cmpf ogt, %175, %176 : vector<16x16xf32>
    %cst_71 = arith.constant 2.000000e-01 : f32
    %178 = vector.broadcast %cst_71 : f32 to vector<16x16xf32>
    %179 = arith.mulf %178, %175 : vector<16x16xf32>
    %180 = arith.select %177, %175, %179 : vector<16x16xi1>, vector<16x16xf32>
    %cst_72 = arith.constant -1.000000e+30 : f32
    %181 = vector.broadcast %cst_72 : f32 to vector<16x16xf32>
    %182 = arith.select %2, %180, %181 : vector<16x16xi1>, vector<16x16xf32>
    %cst_73 = arith.constant dense<0xFF800000> : vector<16xf32>
    %183 = vector.multi_reduction <maximumf>, %182, %cst_73 [1] : vector<16x16xf32> to vector<16xf32>
    %184 = vector.shape_cast %183 : vector<16xf32> to vector<16x1xf32>
    %185 = vector.broadcast %184 : vector<16x1xf32> to vector<16x16xf32>
    %186 = arith.subf %182, %185 : vector<16x16xf32>
    %187 = math.exp %186 : vector<16x16xf32>
    %cst_74 = arith.constant dense<0.000000e+00> : vector<16xf32>
    %188 = vector.multi_reduction <add>, %187, %cst_74 [1] : vector<16x16xf32> to vector<16xf32>
    %189 = vector.shape_cast %188 : vector<16xf32> to vector<16x1xf32>
    %190 = tpu.reciprocal %189 {approx = true} : vector<16x1xf32> -> vector<16x1xf32>
    %191 = vector.broadcast %190 : vector<16x1xf32> to vector<16x16xf32>
    %192 = arith.mulf %187, %191 : vector<16x16xf32>
    %193 = arith.truncf %192 : vector<16x16xf32> to vector<16x16xbf16>
    %194 = arith.truncf %170 : vector<16x110xf32> to vector<16x110xbf16>
    %cst_75 = arith.constant dense<0.000000e+00> : vector<16x110xf32>
    %195 = tpu.matmul %193, %194, %cst_75 {dimension_numbers = #tpu.dot_dimension_numbers<[1], [0], [0], [1], [0, 0, 1, 1], [], []>} : vector<16x16xbf16>, vector<16x110xbf16>, vector<16x110xf32> -> vector<16x110xf32>
    %196 = vector.extract_strided_slice %168 {offsets = [0, 110], sizes = [16, 110], strides = [1, 1]} : vector<16x333xf32> to vector<16x110xf32>
    %197 = vector.extract_strided_slice %168 {offsets = [0, 331], sizes = [16, 1], strides = [1, 1]} : vector<16x333xf32> to vector<16x1xf32>
    %198 = vector.extract_strided_slice %169 {offsets = [1, 0], sizes = [1, 16], strides = [1, 1]} : vector<3x16xf32> to vector<1x16xf32>
    %199 = vector.broadcast %197 : vector<16x1xf32> to vector<16x16xf32>
    %200 = vector.broadcast %198 : vector<1x16xf32> to vector<16x16xf32>
    %201 = arith.addf %199, %200 : vector<16x16xf32>
    %cst_76 = arith.constant 0.000000e+00 : f32
    %202 = vector.broadcast %cst_76 : f32 to vector<16x16xf32>
    %203 = arith.cmpf ogt, %201, %202 : vector<16x16xf32>
    %cst_77 = arith.constant 2.000000e-01 : f32
    %204 = vector.broadcast %cst_77 : f32 to vector<16x16xf32>
    %205 = arith.mulf %204, %201 : vector<16x16xf32>
    %206 = arith.select %203, %201, %205 : vector<16x16xi1>, vector<16x16xf32>
    %cst_78 = arith.constant -1.000000e+30 : f32
    %207 = vector.broadcast %cst_78 : f32 to vector<16x16xf32>
    %208 = arith.select %2, %206, %207 : vector<16x16xi1>, vector<16x16xf32>
    %cst_79 = arith.constant dense<0xFF800000> : vector<16xf32>
    %209 = vector.multi_reduction <maximumf>, %208, %cst_79 [1] : vector<16x16xf32> to vector<16xf32>
    %210 = vector.shape_cast %209 : vector<16xf32> to vector<16x1xf32>
    %211 = vector.broadcast %210 : vector<16x1xf32> to vector<16x16xf32>
    %212 = arith.subf %208, %211 : vector<16x16xf32>
    %213 = math.exp %212 : vector<16x16xf32>
    %cst_80 = arith.constant dense<0.000000e+00> : vector<16xf32>
    %214 = vector.multi_reduction <add>, %213, %cst_80 [1] : vector<16x16xf32> to vector<16xf32>
    %215 = vector.shape_cast %214 : vector<16xf32> to vector<16x1xf32>
    %216 = tpu.reciprocal %215 {approx = true} : vector<16x1xf32> -> vector<16x1xf32>
    %217 = vector.broadcast %216 : vector<16x1xf32> to vector<16x16xf32>
    %218 = arith.mulf %213, %217 : vector<16x16xf32>
    %219 = arith.truncf %218 : vector<16x16xf32> to vector<16x16xbf16>
    %220 = arith.truncf %196 : vector<16x110xf32> to vector<16x110xbf16>
    %cst_81 = arith.constant dense<0.000000e+00> : vector<16x110xf32>
    %221 = tpu.matmul %219, %220, %cst_81 {dimension_numbers = #tpu.dot_dimension_numbers<[1], [0], [0], [1], [0, 0, 1, 1], [], []>} : vector<16x16xbf16>, vector<16x110xbf16>, vector<16x110xf32> -> vector<16x110xf32>
    %222 = vector.extract_strided_slice %168 {offsets = [0, 220], sizes = [16, 110], strides = [1, 1]} : vector<16x333xf32> to vector<16x110xf32>
    %223 = vector.extract_strided_slice %168 {offsets = [0, 332], sizes = [16, 1], strides = [1, 1]} : vector<16x333xf32> to vector<16x1xf32>
    %224 = vector.extract_strided_slice %169 {offsets = [2, 0], sizes = [1, 16], strides = [1, 1]} : vector<3x16xf32> to vector<1x16xf32>
    %225 = vector.broadcast %223 : vector<16x1xf32> to vector<16x16xf32>
    %226 = vector.broadcast %224 : vector<1x16xf32> to vector<16x16xf32>
    %227 = arith.addf %225, %226 : vector<16x16xf32>
    %cst_82 = arith.constant 0.000000e+00 : f32
    %228 = vector.broadcast %cst_82 : f32 to vector<16x16xf32>
    %229 = arith.cmpf ogt, %227, %228 : vector<16x16xf32>
    %cst_83 = arith.constant 2.000000e-01 : f32
    %230 = vector.broadcast %cst_83 : f32 to vector<16x16xf32>
    %231 = arith.mulf %230, %227 : vector<16x16xf32>
    %232 = arith.select %229, %227, %231 : vector<16x16xi1>, vector<16x16xf32>
    %cst_84 = arith.constant -1.000000e+30 : f32
    %233 = vector.broadcast %cst_84 : f32 to vector<16x16xf32>
    %234 = arith.select %2, %232, %233 : vector<16x16xi1>, vector<16x16xf32>
    %cst_85 = arith.constant dense<0xFF800000> : vector<16xf32>
    %235 = vector.multi_reduction <maximumf>, %234, %cst_85 [1] : vector<16x16xf32> to vector<16xf32>
    %236 = vector.shape_cast %235 : vector<16xf32> to vector<16x1xf32>
    %237 = vector.broadcast %236 : vector<16x1xf32> to vector<16x16xf32>
    %238 = arith.subf %234, %237 : vector<16x16xf32>
    %239 = math.exp %238 : vector<16x16xf32>
    %cst_86 = arith.constant dense<0.000000e+00> : vector<16xf32>
    %240 = vector.multi_reduction <add>, %239, %cst_86 [1] : vector<16x16xf32> to vector<16xf32>
    %241 = vector.shape_cast %240 : vector<16xf32> to vector<16x1xf32>
    %242 = tpu.reciprocal %241 {approx = true} : vector<16x1xf32> -> vector<16x1xf32>
    %243 = vector.broadcast %242 : vector<16x1xf32> to vector<16x16xf32>
    %244 = arith.mulf %239, %243 : vector<16x16xf32>
    %245 = arith.truncf %244 : vector<16x16xf32> to vector<16x16xbf16>
    %246 = arith.truncf %222 : vector<16x110xf32> to vector<16x110xbf16>
    %cst_87 = arith.constant dense<0.000000e+00> : vector<16x110xf32>
    %247 = tpu.matmul %245, %246, %cst_87 {dimension_numbers = #tpu.dot_dimension_numbers<[1], [0], [0], [1], [0, 0, 1, 1], [], []>} : vector<16x16xbf16>, vector<16x110xbf16>, vector<16x110xf32> -> vector<16x110xf32>
    %248 = tpu.concatenate %195, %221, %247 in 1 : vector<16x110xf32>, vector<16x110xf32>, vector<16x110xf32> -> vector<16x330xf32>
    %249 = vector.broadcast %166 : vector<1x330xf32> to vector<16x330xf32>
    %250 = arith.addf %248, %249 : vector<16x330xf32>
    %cst_88 = arith.constant 0.000000e+00 : f32
    %251 = vector.broadcast %cst_88 : f32 to vector<16x330xf32>
    %252 = arith.maximumf %250, %251 : vector<16x330xf32>
    %c0_89 = arith.constant 0 : index
    %c0_90 = arith.constant 0 : index
    %253 = vector.load %arg15[%c0_89, %c0_90] : memref<330x111xbf16, #tpu.memory_space<vmem>>, vector<330x111xbf16>
    %c0_91 = arith.constant 0 : index
    %c0_92 = arith.constant 0 : index
    %254 = vector.load %arg16[%c0_91, %c0_92] : memref<1x330xbf16, #tpu.memory_space<vmem>>, vector<1x330xbf16>
    %c0_93 = arith.constant 0 : index
    %c0_94 = arith.constant 0 : index
    %255 = vector.load %arg17[%c0_93, %c0_94] : memref<1x110xf32, #tpu.memory_space<vmem>>, vector<1x110xf32>
    %256 = arith.truncf %252 : vector<16x330xf32> to vector<16x330xbf16>
    %cst_95 = arith.constant dense<0.000000e+00> : vector<16x111xf32>
    %257 = tpu.matmul %256, %253, %cst_95 {dimension_numbers = #tpu.dot_dimension_numbers<[1], [0], [0], [1], [0, 0, 1, 1], [], []>} : vector<16x330xbf16>, vector<330x111xbf16>, vector<16x111xf32> -> vector<16x111xf32>
    %cst_96 = arith.constant dense<0.000000e+00> : vector<1x16xf32>
    %258 = tpu.matmul %254, %256, %cst_96 {dimension_numbers = #tpu.dot_dimension_numbers<[1], [1], [0], [0], [0, 0, 1, 0], [], []>} : vector<1x330xbf16>, vector<16x330xbf16>, vector<1x16xf32> -> vector<1x16xf32>
    %259 = vector.extract_strided_slice %257 {offsets = [0, 0], sizes = [16, 110], strides = [1, 1]} : vector<16x111xf32> to vector<16x110xf32>
    %260 = vector.extract_strided_slice %257 {offsets = [0, 110], sizes = [16, 1], strides = [1, 1]} : vector<16x111xf32> to vector<16x1xf32>
    %261 = vector.broadcast %260 : vector<16x1xf32> to vector<16x16xf32>
    %262 = vector.broadcast %258 : vector<1x16xf32> to vector<16x16xf32>
    %263 = arith.addf %261, %262 : vector<16x16xf32>
    %cst_97 = arith.constant 0.000000e+00 : f32
    %264 = vector.broadcast %cst_97 : f32 to vector<16x16xf32>
    %265 = arith.cmpf ogt, %263, %264 : vector<16x16xf32>
    %cst_98 = arith.constant 2.000000e-01 : f32
    %266 = vector.broadcast %cst_98 : f32 to vector<16x16xf32>
    %267 = arith.mulf %266, %263 : vector<16x16xf32>
    %268 = arith.select %265, %263, %267 : vector<16x16xi1>, vector<16x16xf32>
    %cst_99 = arith.constant -1.000000e+30 : f32
    %269 = vector.broadcast %cst_99 : f32 to vector<16x16xf32>
    %270 = arith.select %2, %268, %269 : vector<16x16xi1>, vector<16x16xf32>
    %cst_100 = arith.constant dense<0xFF800000> : vector<16xf32>
    %271 = vector.multi_reduction <maximumf>, %270, %cst_100 [1] : vector<16x16xf32> to vector<16xf32>
    %272 = vector.shape_cast %271 : vector<16xf32> to vector<16x1xf32>
    %273 = vector.broadcast %272 : vector<16x1xf32> to vector<16x16xf32>
    %274 = arith.subf %270, %273 : vector<16x16xf32>
    %275 = math.exp %274 : vector<16x16xf32>
    %cst_101 = arith.constant dense<0.000000e+00> : vector<16xf32>
    %276 = vector.multi_reduction <add>, %275, %cst_101 [1] : vector<16x16xf32> to vector<16xf32>
    %277 = vector.shape_cast %276 : vector<16xf32> to vector<16x1xf32>
    %278 = tpu.reciprocal %277 {approx = true} : vector<16x1xf32> -> vector<16x1xf32>
    %279 = vector.broadcast %278 : vector<16x1xf32> to vector<16x16xf32>
    %280 = arith.mulf %275, %279 : vector<16x16xf32>
    %281 = arith.truncf %280 : vector<16x16xf32> to vector<16x16xbf16>
    %282 = arith.truncf %259 : vector<16x110xf32> to vector<16x110xbf16>
    %cst_102 = arith.constant dense<0.000000e+00> : vector<16x110xf32>
    %283 = tpu.matmul %281, %282, %cst_102 {dimension_numbers = #tpu.dot_dimension_numbers<[1], [0], [0], [1], [0, 0, 1, 1], [], []>} : vector<16x16xbf16>, vector<16x110xbf16>, vector<16x110xf32> -> vector<16x110xf32>
    %284 = vector.broadcast %255 : vector<1x110xf32> to vector<16x110xf32>
    %285 = arith.addf %283, %284 : vector<16x110xf32>
    %cst_103 = arith.constant 0.000000e+00 : f32
    %286 = vector.broadcast %cst_103 : f32 to vector<16x110xf32>
    %287 = arith.maximumf %285, %286 : vector<16x110xf32>
    %c0_104 = arith.constant 0 : index
    %c0_105 = arith.constant 0 : index
    %288 = vector.load %arg18[%c0_104, %c0_105] : memref<110x21xbf16, #tpu.memory_space<vmem>>, vector<110x21xbf16>
    %c0_106 = arith.constant 0 : index
    %c0_107 = arith.constant 0 : index
    %289 = vector.load %arg19[%c0_106, %c0_107] : memref<1x110xbf16, #tpu.memory_space<vmem>>, vector<1x110xbf16>
    %c0_108 = arith.constant 0 : index
    %c0_109 = arith.constant 0 : index
    %290 = vector.load %arg20[%c0_108, %c0_109] : memref<1x20xf32, #tpu.memory_space<vmem>>, vector<1x20xf32>
    %291 = arith.truncf %287 : vector<16x110xf32> to vector<16x110xbf16>
    %cst_110 = arith.constant dense<0.000000e+00> : vector<16x21xf32>
    %292 = tpu.matmul %291, %288, %cst_110 {dimension_numbers = #tpu.dot_dimension_numbers<[1], [0], [0], [1], [0, 0, 1, 1], [], []>} : vector<16x110xbf16>, vector<110x21xbf16>, vector<16x21xf32> -> vector<16x21xf32>
    %cst_111 = arith.constant dense<0.000000e+00> : vector<1x16xf32>
    %293 = tpu.matmul %289, %291, %cst_111 {dimension_numbers = #tpu.dot_dimension_numbers<[1], [1], [0], [0], [0, 0, 1, 0], [], []>} : vector<1x110xbf16>, vector<16x110xbf16>, vector<1x16xf32> -> vector<1x16xf32>
    %294 = vector.extract_strided_slice %292 {offsets = [0, 0], sizes = [16, 20], strides = [1, 1]} : vector<16x21xf32> to vector<16x20xf32>
    %295 = vector.extract_strided_slice %292 {offsets = [0, 20], sizes = [16, 1], strides = [1, 1]} : vector<16x21xf32> to vector<16x1xf32>
    %296 = vector.broadcast %295 : vector<16x1xf32> to vector<16x16xf32>
    %297 = vector.broadcast %293 : vector<1x16xf32> to vector<16x16xf32>
    %298 = arith.addf %296, %297 : vector<16x16xf32>
    %cst_112 = arith.constant 0.000000e+00 : f32
    %299 = vector.broadcast %cst_112 : f32 to vector<16x16xf32>
    %300 = arith.cmpf ogt, %298, %299 : vector<16x16xf32>
    %cst_113 = arith.constant 2.000000e-01 : f32
    %301 = vector.broadcast %cst_113 : f32 to vector<16x16xf32>
    %302 = arith.mulf %301, %298 : vector<16x16xf32>
    %303 = arith.select %300, %298, %302 : vector<16x16xi1>, vector<16x16xf32>
    %cst_114 = arith.constant -1.000000e+30 : f32
    %304 = vector.broadcast %cst_114 : f32 to vector<16x16xf32>
    %305 = arith.select %2, %303, %304 : vector<16x16xi1>, vector<16x16xf32>
    %cst_115 = arith.constant dense<0xFF800000> : vector<16xf32>
    %306 = vector.multi_reduction <maximumf>, %305, %cst_115 [1] : vector<16x16xf32> to vector<16xf32>
    %307 = vector.shape_cast %306 : vector<16xf32> to vector<16x1xf32>
    %308 = vector.broadcast %307 : vector<16x1xf32> to vector<16x16xf32>
    %309 = arith.subf %305, %308 : vector<16x16xf32>
    %310 = math.exp %309 : vector<16x16xf32>
    %cst_116 = arith.constant dense<0.000000e+00> : vector<16xf32>
    %311 = vector.multi_reduction <add>, %310, %cst_116 [1] : vector<16x16xf32> to vector<16xf32>
    %312 = vector.shape_cast %311 : vector<16xf32> to vector<16x1xf32>
    %313 = tpu.reciprocal %312 {approx = true} : vector<16x1xf32> -> vector<16x1xf32>
    %314 = vector.broadcast %313 : vector<16x1xf32> to vector<16x16xf32>
    %315 = arith.mulf %310, %314 : vector<16x16xf32>
    %316 = arith.truncf %315 : vector<16x16xf32> to vector<16x16xbf16>
    %317 = arith.truncf %294 : vector<16x20xf32> to vector<16x20xbf16>
    %cst_117 = arith.constant dense<0.000000e+00> : vector<16x20xf32>
    %318 = tpu.matmul %316, %317, %cst_117 {dimension_numbers = #tpu.dot_dimension_numbers<[1], [0], [0], [1], [0, 0, 1, 1], [], []>} : vector<16x16xbf16>, vector<16x20xbf16>, vector<16x20xf32> -> vector<16x20xf32>
    %319 = vector.broadcast %290 : vector<1x20xf32> to vector<16x20xf32>
    %320 = arith.addf %318, %319 : vector<16x20xf32>
    %cst_118 = arith.constant 0.000000e+00 : f32
    %321 = vector.broadcast %cst_118 : f32 to vector<16x20xf32>
    %322 = arith.maximumf %320, %321 : vector<16x20xf32>
    %323 = tpu.concatenate %162, %322 in 1 : vector<16x20xf32>, vector<16x20xf32> -> vector<16x40xf32>
    %c0_119 = arith.constant 0 : index
    %c0_120 = arith.constant 0 : index
    %324 = vector.load %arg21[%c0_119, %c0_120] : memref<40x42xbf16, #tpu.memory_space<vmem>>, vector<40x42xbf16>
    %c0_121 = arith.constant 0 : index
    %c0_122 = arith.constant 0 : index
    %325 = vector.load %arg22[%c0_121, %c0_122] : memref<2x40xbf16, #tpu.memory_space<vmem>>, vector<2x40xbf16>
    %c0_123 = arith.constant 0 : index
    %c0_124 = arith.constant 0 : index
    %326 = vector.load %arg23[%c0_123, %c0_124] : memref<1x40xf32, #tpu.memory_space<vmem>>, vector<1x40xf32>
    %327 = arith.truncf %323 : vector<16x40xf32> to vector<16x40xbf16>
    %cst_125 = arith.constant dense<0.000000e+00> : vector<16x42xf32>
    %328 = tpu.matmul %327, %324, %cst_125 {dimension_numbers = #tpu.dot_dimension_numbers<[1], [0], [0], [1], [0, 0, 1, 1], [], []>} : vector<16x40xbf16>, vector<40x42xbf16>, vector<16x42xf32> -> vector<16x42xf32>
    %cst_126 = arith.constant dense<0.000000e+00> : vector<2x16xf32>
    %329 = tpu.matmul %325, %327, %cst_126 {dimension_numbers = #tpu.dot_dimension_numbers<[1], [1], [0], [0], [0, 0, 1, 0], [], []>} : vector<2x40xbf16>, vector<16x40xbf16>, vector<2x16xf32> -> vector<2x16xf32>
    %330 = vector.extract_strided_slice %328 {offsets = [0, 0], sizes = [16, 20], strides = [1, 1]} : vector<16x42xf32> to vector<16x20xf32>
    %331 = vector.extract_strided_slice %328 {offsets = [0, 40], sizes = [16, 1], strides = [1, 1]} : vector<16x42xf32> to vector<16x1xf32>
    %332 = vector.extract_strided_slice %329 {offsets = [0, 0], sizes = [1, 16], strides = [1, 1]} : vector<2x16xf32> to vector<1x16xf32>
    %333 = vector.broadcast %331 : vector<16x1xf32> to vector<16x16xf32>
    %334 = vector.broadcast %332 : vector<1x16xf32> to vector<16x16xf32>
    %335 = arith.addf %333, %334 : vector<16x16xf32>
    %cst_127 = arith.constant 0.000000e+00 : f32
    %336 = vector.broadcast %cst_127 : f32 to vector<16x16xf32>
    %337 = arith.cmpf ogt, %335, %336 : vector<16x16xf32>
    %cst_128 = arith.constant 2.000000e-01 : f32
    %338 = vector.broadcast %cst_128 : f32 to vector<16x16xf32>
    %339 = arith.mulf %338, %335 : vector<16x16xf32>
    %340 = arith.select %337, %335, %339 : vector<16x16xi1>, vector<16x16xf32>
    %cst_129 = arith.constant -1.000000e+30 : f32
    %341 = vector.broadcast %cst_129 : f32 to vector<16x16xf32>
    %342 = arith.select %2, %340, %341 : vector<16x16xi1>, vector<16x16xf32>
    %cst_130 = arith.constant dense<0xFF800000> : vector<16xf32>
    %343 = vector.multi_reduction <maximumf>, %342, %cst_130 [1] : vector<16x16xf32> to vector<16xf32>
    %344 = vector.shape_cast %343 : vector<16xf32> to vector<16x1xf32>
    %345 = vector.broadcast %344 : vector<16x1xf32> to vector<16x16xf32>
    %346 = arith.subf %342, %345 : vector<16x16xf32>
    %347 = math.exp %346 : vector<16x16xf32>
    %cst_131 = arith.constant dense<0.000000e+00> : vector<16xf32>
    %348 = vector.multi_reduction <add>, %347, %cst_131 [1] : vector<16x16xf32> to vector<16xf32>
    %349 = vector.shape_cast %348 : vector<16xf32> to vector<16x1xf32>
    %350 = tpu.reciprocal %349 {approx = true} : vector<16x1xf32> -> vector<16x1xf32>
    %351 = vector.broadcast %350 : vector<16x1xf32> to vector<16x16xf32>
    %352 = arith.mulf %347, %351 : vector<16x16xf32>
    %353 = arith.truncf %352 : vector<16x16xf32> to vector<16x16xbf16>
    %354 = arith.truncf %330 : vector<16x20xf32> to vector<16x20xbf16>
    %cst_132 = arith.constant dense<0.000000e+00> : vector<16x20xf32>
    %355 = tpu.matmul %353, %354, %cst_132 {dimension_numbers = #tpu.dot_dimension_numbers<[1], [0], [0], [1], [0, 0, 1, 1], [], []>} : vector<16x16xbf16>, vector<16x20xbf16>, vector<16x20xf32> -> vector<16x20xf32>
    %356 = vector.extract_strided_slice %328 {offsets = [0, 20], sizes = [16, 20], strides = [1, 1]} : vector<16x42xf32> to vector<16x20xf32>
    %357 = vector.extract_strided_slice %328 {offsets = [0, 41], sizes = [16, 1], strides = [1, 1]} : vector<16x42xf32> to vector<16x1xf32>
    %358 = vector.extract_strided_slice %329 {offsets = [1, 0], sizes = [1, 16], strides = [1, 1]} : vector<2x16xf32> to vector<1x16xf32>
    %359 = vector.broadcast %357 : vector<16x1xf32> to vector<16x16xf32>
    %360 = vector.broadcast %358 : vector<1x16xf32> to vector<16x16xf32>
    %361 = arith.addf %359, %360 : vector<16x16xf32>
    %cst_133 = arith.constant 0.000000e+00 : f32
    %362 = vector.broadcast %cst_133 : f32 to vector<16x16xf32>
    %363 = arith.cmpf ogt, %361, %362 : vector<16x16xf32>
    %cst_134 = arith.constant 2.000000e-01 : f32
    %364 = vector.broadcast %cst_134 : f32 to vector<16x16xf32>
    %365 = arith.mulf %364, %361 : vector<16x16xf32>
    %366 = arith.select %363, %361, %365 : vector<16x16xi1>, vector<16x16xf32>
    %cst_135 = arith.constant -1.000000e+30 : f32
    %367 = vector.broadcast %cst_135 : f32 to vector<16x16xf32>
    %368 = arith.select %2, %366, %367 : vector<16x16xi1>, vector<16x16xf32>
    %cst_136 = arith.constant dense<0xFF800000> : vector<16xf32>
    %369 = vector.multi_reduction <maximumf>, %368, %cst_136 [1] : vector<16x16xf32> to vector<16xf32>
    %370 = vector.shape_cast %369 : vector<16xf32> to vector<16x1xf32>
    %371 = vector.broadcast %370 : vector<16x1xf32> to vector<16x16xf32>
    %372 = arith.subf %368, %371 : vector<16x16xf32>
    %373 = math.exp %372 : vector<16x16xf32>
    %cst_137 = arith.constant dense<0.000000e+00> : vector<16xf32>
    %374 = vector.multi_reduction <add>, %373, %cst_137 [1] : vector<16x16xf32> to vector<16xf32>
    %375 = vector.shape_cast %374 : vector<16xf32> to vector<16x1xf32>
    %376 = tpu.reciprocal %375 {approx = true} : vector<16x1xf32> -> vector<16x1xf32>
    %377 = vector.broadcast %376 : vector<16x1xf32> to vector<16x16xf32>
    %378 = arith.mulf %373, %377 : vector<16x16xf32>
    %379 = arith.truncf %378 : vector<16x16xf32> to vector<16x16xbf16>
    %380 = arith.truncf %356 : vector<16x20xf32> to vector<16x20xbf16>
    %cst_138 = arith.constant dense<0.000000e+00> : vector<16x20xf32>
    %381 = tpu.matmul %379, %380, %cst_138 {dimension_numbers = #tpu.dot_dimension_numbers<[1], [0], [0], [1], [0, 0, 1, 1], [], []>} : vector<16x16xbf16>, vector<16x20xbf16>, vector<16x20xf32> -> vector<16x20xf32>
    %382 = tpu.concatenate %355, %381 in 1 : vector<16x20xf32>, vector<16x20xf32> -> vector<16x40xf32>
    %383 = vector.broadcast %326 : vector<1x40xf32> to vector<16x40xf32>
    %384 = arith.addf %382, %383 : vector<16x40xf32>
    %cst_139 = arith.constant 0.000000e+00 : f32
    %385 = vector.broadcast %cst_139 : f32 to vector<16x40xf32>
    %386 = arith.maximumf %384, %385 : vector<16x40xf32>
    %c0_140 = arith.constant 0 : index
    %c0_141 = arith.constant 0 : index
    %387 = vector.load %arg24[%c0_140, %c0_141] : memref<16x40xf32, #tpu.memory_space<vmem>>, vector<16x40xf32>
    tpu.vector_store %arg24[%c0_140, %c0_141], %386 {strides = array<i32>} : memref<16x40xf32, #tpu.memory_space<vmem>>, vector<16x40xf32>,
    return
  }
}

module attributes {stable_mosaic.version = 11 : i64} {
  func.func @_edge_match_kernel(%arg0: memref<28xi32, #tpu.memory_space<smem>>, %arg1: memref<28xi32, #tpu.memory_space<smem>>, %arg2: memref<28xi32, #tpu.memory_space<smem>>, %arg3: memref<28xf32, #tpu.memory_space<smem>>, %arg4: memref<16xi32, #tpu.memory_space<smem>>, %arg5: memref<16xi32, #tpu.memory_space<smem>>, %arg6: memref<16xf32, #tpu.memory_space<smem>>) attributes {dimension_semantics = [], scalar_prefetch = 0 : i64, scratch_operands = 0 : i64, tpu.core_type = #tpu.core_type<tc>} {
    %c0_i32 = arith.constant 0 : i32
    %c16_i32 = arith.constant 16 : i32
    %0 = arith.addi %c0_i32, %c16_i32 : i32
    %c1_i32 = arith.constant 1 : i32
    scf.for %arg7 = %c0_i32 to %0 step %c1_i32  : i32 {
      %c1_i32_4 = arith.constant 1 : i32
      %2 = arith.muli %arg7, %c1_i32_4 : i32
      %c0_i32_5 = arith.constant 0 : i32
      %3 = arith.addi %c0_i32_5, %2 : i32
      %c0_i32_6 = arith.constant 0 : i32
      %4 = arith.index_cast %3 : i32 to index
      %5 = memref.load %arg4[%4] : memref<16xi32, #tpu.memory_space<smem>>
      memref.store %c0_i32_6, %arg4[%4] : memref<16xi32, #tpu.memory_space<smem>>
      %6 = arith.index_cast %3 : i32 to index
      %7 = memref.load %arg5[%6] : memref<16xi32, #tpu.memory_space<smem>>
      memref.store %3, %arg5[%6] : memref<16xi32, #tpu.memory_space<smem>>
      %cst = arith.constant 1.000000e+00 : f32
      %8 = arith.index_cast %3 : i32 to index
      %9 = memref.load %arg6[%8] : memref<16xf32, #tpu.memory_space<smem>>
      memref.store %cst, %arg6[%8] : memref<16xf32, #tpu.memory_space<smem>>
    }
    %c16_i32_0 = arith.constant 16 : i32
    %c0_i32_1 = arith.constant 0 : i32
    %c28_i32 = arith.constant 28 : i32
    %1 = arith.addi %c0_i32_1, %c28_i32 : i32
    %c1_i32_2 = arith.constant 1 : i32
    scf.for %arg7 = %c0_i32_1 to %1 step %c1_i32_2  : i32 {
      %c1_i32_4 = arith.constant 1 : i32
      %2 = arith.muli %arg7, %c1_i32_4 : i32
      %c0_i32_5 = arith.constant 0 : i32
      %3 = arith.addi %c0_i32_5, %2 : i32
      %4 = arith.index_cast %3 : i32 to index
      %5 = memref.load %arg2[%4] : memref<28xi32, #tpu.memory_space<smem>>
      %6 = arith.index_cast %5 : i32 to index
      %7 = memref.load %arg0[%6] : memref<28xi32, #tpu.memory_space<smem>>
      %8 = arith.index_cast %5 : i32 to index
      %9 = memref.load %arg1[%8] : memref<28xi32, #tpu.memory_space<smem>>
      %10 = arith.index_cast %5 : i32 to index
      %11 = memref.load %arg3[%10] : memref<28xf32, #tpu.memory_space<smem>>
      %12 = arith.index_cast %7 : i32 to index
      %13 = memref.load %arg4[%12] : memref<16xi32, #tpu.memory_space<smem>>
      %c0_i32_6 = arith.constant 0 : i32
      %14 = arith.cmpi eq, %13, %c0_i32_6 : i32
      %15 = arith.index_cast %9 : i32 to index
      %16 = memref.load %arg4[%15] : memref<16xi32, #tpu.memory_space<smem>>
      %c0_i32_7 = arith.constant 0 : i32
      %17 = arith.cmpi eq, %16, %c0_i32_7 : i32
      %18 = arith.andi %14, %17 : i1
      %19 = arith.cmpi ne, %7, %9 : i32
      %20 = arith.andi %18, %19 : i1
      %21 = arith.index_cast %7 : i32 to index
      %22 = memref.load %arg4[%21] : memref<16xi32, #tpu.memory_space<smem>>
      %c1_i32_8 = arith.constant 1 : i32
      %23 = arith.select %20, %c1_i32_8, %22 : i32
      %24 = arith.index_cast %7 : i32 to index
      %25 = memref.load %arg4[%24] : memref<16xi32, #tpu.memory_space<smem>>
      memref.store %23, %arg4[%24] : memref<16xi32, #tpu.memory_space<smem>>
      %26 = arith.index_cast %9 : i32 to index
      %27 = memref.load %arg4[%26] : memref<16xi32, #tpu.memory_space<smem>>
      %c1_i32_9 = arith.constant 1 : i32
      %28 = arith.select %20, %c1_i32_9, %27 : i32
      %29 = arith.index_cast %9 : i32 to index
      %30 = memref.load %arg4[%29] : memref<16xi32, #tpu.memory_space<smem>>
      memref.store %28, %arg4[%29] : memref<16xi32, #tpu.memory_space<smem>>
      %31 = arith.index_cast %7 : i32 to index
      %32 = memref.load %arg5[%31] : memref<16xi32, #tpu.memory_space<smem>>
      %33 = arith.select %20, %9, %32 : i32
      %34 = arith.index_cast %7 : i32 to index
      %35 = memref.load %arg5[%34] : memref<16xi32, #tpu.memory_space<smem>>
      memref.store %33, %arg5[%34] : memref<16xi32, #tpu.memory_space<smem>>
      %36 = arith.index_cast %9 : i32 to index
      %37 = memref.load %arg5[%36] : memref<16xi32, #tpu.memory_space<smem>>
      %38 = arith.select %20, %7, %37 : i32
      %39 = arith.index_cast %9 : i32 to index
      %40 = memref.load %arg5[%39] : memref<16xi32, #tpu.memory_space<smem>>
      memref.store %38, %arg5[%39] : memref<16xi32, #tpu.memory_space<smem>>
      %41 = arith.index_cast %7 : i32 to index
      %42 = memref.load %arg6[%41] : memref<16xf32, #tpu.memory_space<smem>>
      %43 = arith.select %20, %11, %42 : f32
      %44 = arith.index_cast %7 : i32 to index
      %45 = memref.load %arg6[%44] : memref<16xf32, #tpu.memory_space<smem>>
      memref.store %43, %arg6[%44] : memref<16xf32, #tpu.memory_space<smem>>
      %46 = arith.index_cast %9 : i32 to index
      %47 = memref.load %arg6[%46] : memref<16xf32, #tpu.memory_space<smem>>
      %48 = arith.select %20, %11, %47 : f32
      %49 = arith.index_cast %9 : i32 to index
      %50 = memref.load %arg6[%49] : memref<16xf32, #tpu.memory_space<smem>>
      memref.store %48, %arg6[%49] : memref<16xf32, #tpu.memory_space<smem>>
    }
    %c28_i32_3 = arith.constant 28 : i32
    return
  }
}

module attributes {stable_mosaic.version = 11 : i64} {
  func.func @_head_kernel(%arg0: memref<16x40xf32, #tpu.memory_space<vmem>>, %arg1: memref<16x2xf32, #tpu.memory_space<vmem>>, %arg2: memref<40x20xf32, #tpu.memory_space<vmem>>, %arg3: memref<1x20xf32, #tpu.memory_space<vmem>>, %arg4: memref<20x2xf32, #tpu.memory_space<vmem>>, %arg5: memref<1x2xf32, #tpu.memory_space<vmem>>, %arg6: memref<2x2xf32, #tpu.memory_space<vmem>>, %arg7: memref<2x40xf32, #tpu.memory_space<vmem>>) attributes {dimension_semantics = [], scalar_prefetch = 0 : i64, scratch_operands = 1 : i64, tpu.core_type = #tpu.core_type<tc>} {
    %c0 = arith.constant 0 : index
    %c0_0 = arith.constant 0 : index
    %0 = vector.load %arg0[%c0, %c0_0] : memref<16x40xf32, #tpu.memory_space<vmem>>, vector<16x40xf32>
    %c0_1 = arith.constant 0 : index
    %c0_2 = arith.constant 0 : index
    %1 = vector.load %arg1[%c0_1, %c0_2] : memref<16x2xf32, #tpu.memory_space<vmem>>, vector<16x2xf32>
    %2 = vector.extract_strided_slice %1 {offsets = [0, 0], sizes = [16, 1], strides = [1, 1]} : vector<16x2xf32> to vector<16x1xf32>
    %cst = arith.constant 0.000000e+00 : f32
    %3 = vector.broadcast %cst : f32 to vector<16x1xf32>
    %4 = arith.cmpf ogt, %2, %3 : vector<16x1xf32>
    %cst_3 = arith.constant -1.000000e+30 : f32
    %5 = vector.shape_cast %4 : vector<16x1xi1> to vector<16x1xi1>
    %6 = vector.broadcast %5 : vector<16x1xi1> to vector<16x40xi1>
    %7 = vector.broadcast %cst_3 : f32 to vector<16x40xf32>
    %8 = arith.select %6, %0, %7 : vector<16x40xi1>, vector<16x40xf32>
    %cst_4 = arith.constant dense<0xFF800000> : vector<40xf32>
    %9 = vector.multi_reduction <maximumf>, %8, %cst_4 [0] : vector<16x40xf32> to vector<40xf32>
    %10 = vector.shape_cast %9 : vector<40xf32> to vector<1x40xf32>
    %c0_5 = arith.constant 0 : index
    %c0_6 = arith.constant 0 : index
    %11 = vector.load %arg7[%c0_5, %c0_6] : memref<2x40xf32, #tpu.memory_space<vmem>>, vector<1x40xf32>
    tpu.vector_store %arg7[%c0_5, %c0_6], %10 {strides = array<i32>} : memref<2x40xf32, #tpu.memory_space<vmem>>, vector<1x40xf32>,
    %12 = vector.extract_strided_slice %1 {offsets = [0, 1], sizes = [16, 1], strides = [1, 1]} : vector<16x2xf32> to vector<16x1xf32>
    %cst_7 = arith.constant 0.000000e+00 : f32
    %13 = vector.broadcast %cst_7 : f32 to vector<16x1xf32>
    %14 = arith.cmpf ogt, %12, %13 : vector<16x1xf32>
    %cst_8 = arith.constant -1.000000e+30 : f32
    %15 = vector.shape_cast %14 : vector<16x1xi1> to vector<16x1xi1>
    %16 = vector.broadcast %15 : vector<16x1xi1> to vector<16x40xi1>
    %17 = vector.broadcast %cst_8 : f32 to vector<16x40xf32>
    %18 = arith.select %16, %0, %17 : vector<16x40xi1>, vector<16x40xf32>
    %cst_9 = arith.constant dense<0xFF800000> : vector<40xf32>
    %19 = vector.multi_reduction <maximumf>, %18, %cst_9 [0] : vector<16x40xf32> to vector<40xf32>
    %20 = vector.shape_cast %19 : vector<40xf32> to vector<1x40xf32>
    %c1 = arith.constant 1 : index
    %c0_10 = arith.constant 0 : index
    %21 = vector.load %arg7[%c1, %c0_10] : memref<2x40xf32, #tpu.memory_space<vmem>>, vector<1x40xf32>
    tpu.vector_store %arg7[%c1, %c0_10], %20 {strides = array<i32>} : memref<2x40xf32, #tpu.memory_space<vmem>>, vector<1x40xf32>,
    %c0_11 = arith.constant 0 : index
    %c0_12 = arith.constant 0 : index
    %22 = vector.load %arg7[%c0_11, %c0_12] : memref<2x40xf32, #tpu.memory_space<vmem>>, vector<2x40xf32>
    %c0_13 = arith.constant 0 : index
    %c0_14 = arith.constant 0 : index
    %23 = vector.load %arg2[%c0_13, %c0_14] : memref<40x20xf32, #tpu.memory_space<vmem>>, vector<40x20xf32>
    %cst_15 = arith.constant dense<0.000000e+00> : vector<2x20xf32>
    %24 = tpu.matmul %22, %23, %cst_15 {dimension_numbers = #tpu.dot_dimension_numbers<[1], [0], [0], [1], [0, 0, 1, 1], [], []>} : vector<2x40xf32>, vector<40x20xf32>, vector<2x20xf32> -> vector<2x20xf32>
    %c0_16 = arith.constant 0 : index
    %c0_17 = arith.constant 0 : index
    %25 = vector.load %arg3[%c0_16, %c0_17] : memref<1x20xf32, #tpu.memory_space<vmem>>, vector<1x20xf32>
    %26 = vector.broadcast %25 : vector<1x20xf32> to vector<2x20xf32>
    %27 = arith.addf %24, %26 : vector<2x20xf32>
    %cst_18 = arith.constant 0.000000e+00 : f32
    %28 = vector.broadcast %cst_18 : f32 to vector<2x20xf32>
    %29 = arith.maximumf %27, %28 : vector<2x20xf32>
    %c0_19 = arith.constant 0 : index
    %c0_20 = arith.constant 0 : index
    %30 = vector.load %arg4[%c0_19, %c0_20] : memref<20x2xf32, #tpu.memory_space<vmem>>, vector<20x2xf32>
    %cst_21 = arith.constant dense<0.000000e+00> : vector<2x2xf32>
    %31 = tpu.matmul %29, %30, %cst_21 {dimension_numbers = #tpu.dot_dimension_numbers<[1], [0], [0], [1], [0, 0, 1, 1], [], []>} : vector<2x20xf32>, vector<20x2xf32>, vector<2x2xf32> -> vector<2x2xf32>
    %c0_22 = arith.constant 0 : index
    %c0_23 = arith.constant 0 : index
    %32 = vector.load %arg5[%c0_22, %c0_23] : memref<1x2xf32, #tpu.memory_space<vmem>>, vector<1x2xf32>
    %33 = vector.broadcast %32 : vector<1x2xf32> to vector<2x2xf32>
    %34 = arith.addf %31, %33 : vector<2x2xf32>
    %cst_24 = arith.constant dense<0xFF800000> : vector<2xf32>
    %35 = vector.multi_reduction <maximumf>, %34, %cst_24 [1] : vector<2x2xf32> to vector<2xf32>
    %36 = vector.shape_cast %35 : vector<2xf32> to vector<2x1xf32>
    %37 = vector.broadcast %36 : vector<2x1xf32> to vector<2x2xf32>
    %38 = arith.subf %34, %37 : vector<2x2xf32>
    %39 = math.exp %38 : vector<2x2xf32>
    %cst_25 = arith.constant dense<0.000000e+00> : vector<2xf32>
    %40 = vector.multi_reduction <add>, %39, %cst_25 [1] : vector<2x2xf32> to vector<2xf32>
    %41 = vector.shape_cast %40 : vector<2xf32> to vector<2x1xf32>
    %42 = vector.broadcast %41 : vector<2x1xf32> to vector<2x2xf32>
    %43 = arith.divf %39, %42 : vector<2x2xf32>
    %c0_26 = arith.constant 0 : index
    %c0_27 = arith.constant 0 : index
    %44 = vector.load %arg6[%c0_26, %c0_27] : memref<2x2xf32, #tpu.memory_space<vmem>>, vector<2x2xf32>
    tpu.vector_store %arg6[%c0_26, %c0_27], %43 {strides = array<i32>} : memref<2x2xf32, #tpu.memory_space<vmem>>, vector<2x2xf32>,
    return
  }
}

</mosaic_0001>

<llo_original>
// kernel: _fgat_forward_impl.4
$region0: #{_fgat_forward_impl.4}
  #allocation0 [shape = 'u32[]', space=smem, size = 0x4, offset = 0x4, fixed_abs, tag = 'smem constant byte address 0x4 - core index']
  #allocation1 [shape = 'u32[144,128]{1,0:T(1,128)}', space=vmem, size = 0x12000, scoped, tag = 'internal scratch']
  %s0 = inlined_call_operand.vmem [shape: s32[28], index: 0, kind: input, shape index: {}]
  %s1 = inlined_call_operand.vmem [shape: s32[28], index: 1, kind: input, shape index: {}]
  %s2 = inlined_call_operand.vmem [shape: s32[28], index: 2, kind: input, shape index: {}]
  %s3 = inlined_call_operand.vmem [shape: f32[28], index: 3, kind: input, shape index: {}]
  %s4 = inlined_call_operand.vmem [shape: s32[16], index: 4, kind: output, shape index: {0}]
  %s5 = inlined_call_operand.vmem [shape: s32[16], index: 5, kind: output, shape index: {1}]
  %s6 = inlined_call_operand.vmem [shape: f32[16], index: 6, kind: output, shape index: {2}]
  %7 = xla_tuple %s4, %s5, %s6
  %s8 = sld [smem:[#allocation0]]
  $region72: #{_fgat_forward_impl.4} parent=0
    _
  %s10 = ssub.s32 1, %s8
  %s11 = scalar_select 0, %s10, %s8
  $region1: #{_fgat_forward_impl.4} parent=0
    #allocation2 [shape = 'u8[512]{0}', space=smem, size = 0x200, scoped, tag = 'input window, operand 0, single buffered']
    #allocation3 [shape = 's32[1]{0}', space=sflag, size = 0x4, scoped, tag = 'scoped memory for _fgat_forward_impl.4']
    #allocation4 [shape = 's32[1]{0}', space=sflag, size = 0x4, scoped, tag = 'scoped memory for _fgat_forward_impl.4']
    #allocation5 [shape = 'u8[512]{0}', space=smem, size = 0x200, scoped, tag = 'input window, operand 1, single buffered']
    #allocation6 [shape = 's32[1]{0}', space=sflag, size = 0x4, scoped, tag = 'scoped memory for _fgat_forward_impl.4']
    #allocation7 [shape = 'u8[512]{0}', space=smem, size = 0x200, scoped, tag = 'input window, operand 2, single buffered']
    #allocation8 [shape = 'u8[512]{0}', space=smem, size = 0x200, scoped, tag = 'input window, operand 3, single buffered']
    #allocation9 [shape = 's32[1]{0}', space=sflag, size = 0x4, scoped, tag = 'scoped memory for _fgat_forward_impl.4']
    #allocation10 [shape = 'u8[512]{0}', space=smem, size = 0x200, scoped, tag = 'output window, operand 0, single buffered']
    #allocation11 [shape = 'u8[512]{0}', space=smem, size = 0x200, scoped, tag = 'output window, operand 1, single buffered']
    #allocation12 [shape = 's32[1]{0}', space=sflag, size = 0x4, scoped, tag = 'scoped memory for _fgat_forward_impl.4']
    #allocation13 [shape = 'u8[512]{0}', space=smem, size = 0x200, scoped, tag = 'output window, operand 2, single buffered']
    %12 = vsyncpa [#allocation3], 0
    %13 = vsyncpa [#allocation6], 0
    %14 = vsyncpa [#allocation9], 0
    %15 = vsyncpa [#allocation4], 0
    %16 = vsyncpa [#allocation12], 0
    // Predicated region
    $region2: #{_fgat_forward_impl.4} parent=1 // pred_check
      _
    $region3: #{_fgat_forward_impl.4} parent=1 // pred_check_branch
      %18 = sbr.rel (0) target = $region5
    $region4: #{_fgat_forward_impl.4} parent=1 // pred_region
      %s20 = ssub.s32 16, 16
      %21 = vsyncadd [#allocation3], %s20
      %s23 = sshll.u32 %s0, 4
      %s24 = int_to_ptr.vmem [resolvable:$true] %s23
      %26 = dma.vmem_to_smem %s24, 16, [#allocation2], [#allocation3]
    $region5: #{_fgat_forward_impl.4} parent=1 // pred_fallthru
      _
    // Predicated region
    $region6: #{_fgat_forward_impl.4} parent=1 // pred_check
      _
    $region7: #{_fgat_forward_impl.4} parent=1 // pred_check_branch
      %28 = sbr.rel (0) target = $region9
    $region8: #{_fgat_forward_impl.4} parent=1 // pred_region
      %s30 = ssub.s32 16, 16
      %31 = vsyncadd [#allocation6], %s30
      %s33 = sshll.u32 %s1, 4
      %s34 = int_to_ptr.vmem [resolvable:$true] %s33
      %36 = dma.vmem_to_smem %s34, 16, [#allocation5], [#allocation6]
    $region9: #{_fgat_forward_impl.4} parent=1 // pred_fallthru
      _
    // Predicated region
    $region10: #{_fgat_forward_impl.4} parent=1 // pred_check
      _
    $region11: #{_fgat_forward_impl.4} parent=1 // pred_check_branch
      %38 = sbr.rel (0) target = $region13
    $region12: #{_fgat_forward_impl.4} parent=1 // pred_region
      %s40 = ssub.s32 16, 16
      %41 = vsyncadd [#allocation6], %s40
      %s43 = sshll.u32 %s2, 4
      %s44 = int_to_ptr.vmem [resolvable:$true] %s43
      %46 = dma.vmem_to_smem %s44, 16, [#allocation7], [#allocation6]
    $region13: #{_fgat_forward_impl.4} parent=1 // pred_fallthru
      _
    // Predicated region
    $region14: #{_fgat_forward_impl.4} parent=1 // pred_check
      _
    $region15: #{_fgat_forward_impl.4} parent=1 // pred_check_branch
      %48 = sbr.rel (0) target = $region17
    $region16: #{_fgat_forward_impl.4} parent=1 // pred_region
      %s50 = ssub.s32 16, 16
      %51 = vsyncadd [#allocation9], %s50
      %s53 = sshll.u32 %s3, 4
      %s54 = int_to_ptr.vmem [resolvable:$true] %s53
      %56 = dma.vmem_to_smem %s54, 16, [#allocation8], [#allocation9]
    $region17: #{_fgat_forward_impl.4} parent=1 // pred_fallthru
      _
    // Predicated region
    $region18: #{_fgat_forward_impl.4} parent=1 // pred_check
      _
    $region19: #{_fgat_forward_impl.4} parent=1 // pred_check_branch
      %58 = sbr.rel (0) target = $region21
    $region20: #{_fgat_forward_impl.4} parent=1 // pred_region
      %59 = dma.done [#allocation3], 16
    $region21: #{_fgat_forward_impl.4} parent=1 // pred_fallthru
      _
    // Predicated region
    $region22: #{_fgat_forward_impl.4} parent=1 // pred_check
      _
    $region23: #{_fgat_forward_impl.4} parent=1 // pred_check_branch
      %61 = sbr.rel (0) target = $region25
    $region24: #{_fgat_forward_impl.4} parent=1 // pred_region
      %62 = dma.done [#allocation6], 16
    $region25: #{_fgat_forward_impl.4} parent=1 // pred_fallthru
      _
    // Predicated region
    $region26: #{_fgat_forward_impl.4} parent=1 // pred_check
      _
    $region27: #{_fgat_forward_impl.4} parent=1 // pred_check_branch
      %64 = sbr.rel (0) target = $region29
    $region28: #{_fgat_forward_impl.4} parent=1 // pred_region
      %65 = dma.done [#allocation6], 16
    $region29: #{_fgat_forward_impl.4} parent=1 // pred_fallthru
      _
    // Predicated region
    $region30: #{_fgat_forward_impl.4} parent=1 // pred_check
      _
    $region31: #{_fgat_forward_impl.4} parent=1 // pred_check_branch
      %67 = sbr.rel (0) target = $region33
    $region32: #{_fgat_forward_impl.4} parent=1 // pred_region
      %68 = dma.done [#allocation9], 16
    $region33: #{_fgat_forward_impl.4} parent=1 // pred_fallthru
      _
    %69 = sfence
    loop: start=0, step=1, limit=16
    $region34: #{_fgat_forward_impl.4} parent=1 // loop_pre_header
      _
    $region35: #{_fgat_forward_impl.4} parent=1 // loop_header
      %s71 = sphi 0, %s75
      %p72 = scmp.ge.s32.totalorder %s71, 16
    $region36: #{_fgat_forward_impl.4} parent=1 // loop_header_branch
      %74 = sbr.rel (%p72) target = $region40
    $region37: #{_fgat_forward_impl.4} parent=1 // loop_body
      %s76 = scalar_lea.smem [#allocation10], %s71
      %77 = sst [smem:[%s76]] 0
      %s78 = scalar_lea.smem [#allocation11], %s71
      %79 = sst [smem:[%s78]] %s71
      %s80 = scalar_lea.smem [#allocation13], %s71
      %81 = sst [smem:[%s80]] 1.0
    $region38: #{_fgat_forward_impl.4} parent=1 // loop_footer
      %s75 = sadd.s32 1, %s71
    $region39: #{_fgat_forward_impl.4} parent=1 // loop_footer_branch
      %70 = sbr.rel target = $region35
    $region40: #{_fgat_forward_impl.4} parent=1 // loop_exit
      _
    loop: start=0, step=1, limit=28
    $region41: #{_fgat_forward_impl.4} parent=1 // loop_pre_header
      _
    $region42: #{_fgat_forward_impl.4} parent=1 // loop_header
      %s83 = sphi 0, %s87
      %p84 = scmp.ge.s32.totalorder %s83, 28
    $region43: #{_fgat_forward_impl.4} parent=1 // loop_header_branch
      %86 = sbr.rel (%p84) target = $region47
    $region44: #{_fgat_forward_impl.4} parent=1 // loop_body
      %s88 = sld [smem:[#allocation7 + %s83]]
      %s89 = sld [smem:[#allocation2 + %s88]]
      %s90 = sld [smem:[#allocation5 + %s88]]
      %s91 = sld [smem:[#allocation8 + %s88]]
      %s92 = sld [smem:[#allocation10 + %s89]]
      %p93 = scmp.eq.s32.totalorder %s92, 0
      %s94 = sld [smem:[#allocation10 + %s90]]
      %p95 = scmp.eq.s32.totalorder %s94, 0
      %p96 = pnand %p93, %p95
      %p97 = pneg %p96
      %p98 = scmp.ne.s32.totalorder %s89, %s90
      %p99 = pnand %p97, %p98
      %p100 = pneg %p99
      %s101 = scalar_select %p100, 1, %s92
      %s102 = scalar_lea.smem [#allocation10], %s89
      %103 = sst [smem:[%s102]] %s101
      %s104 = sld [smem:[#allocation10 + %s90]]
      %s105 = scalar_select %p100, 1, %s104
      %s106 = scalar_lea.smem [#allocation10], %s90
      %107 = sst [smem:[%s106]] %s105
      %s108 = sld [smem:[#allocation11 + %s89]]
      %s109 = scalar_select %p100, %s90, %s108
      %s110 = scalar_lea.smem [#allocation11], %s89
      %111 = sst [smem:[%s110]] %s109
      %s112 = sld [smem:[#allocation11 + %s90]]
      %s113 = scalar_select %p100, %s89, %s112
      %s114 = scalar_lea.smem [#allocation11], %s90
      %115 = sst [smem:[%s114]] %s113
      %s116 = sld [smem:[#allocation13 + %s89]]
      %s117 = scalar_select %p100, %s91, %s116
      %s118 = scalar_lea.smem [#allocation13], %s89
      %119 = sst [smem:[%s118]] %s117
      %s120 = sld [smem:[#allocation13 + %s90]]
      %s121 = scalar_select %p100, %s91, %s120
      %s122 = scalar_lea.smem [#allocation13], %s90
      %123 = sst [smem:[%s122]] %s121
    $region45: #{_fgat_forward_impl.4} parent=1 // loop_footer
      %s87 = sadd.s32 1, %s83
    $region46: #{_fgat_forward_impl.4} parent=1 // loop_footer_branch
      %82 = sbr.rel target = $region42
    $region47: #{_fgat_forward_impl.4} parent=1 // loop_exit
      _
    // Predicated region
    $region48: #{_fgat_forward_impl.4} parent=1 // pred_check
      _
    $region49: #{_fgat_forward_impl.4} parent=1 // pred_check_branch
      %125 = sbr.rel (0) target = $region51
    $region50: #{_fgat_forward_impl.4} parent=1 // pred_region
      %s127 = ssub.s32 16, 16
      %128 = vsyncadd [#allocation4], %s127
      %s130 = sshll.u32 %s4, 4
      %s131 = int_to_ptr.vmem [resolvable:$true] %s130
      %133 = dma.smem_to_vmem [#allocation10], 16, %s131, [#allocation4]
    $region51: #{_fgat_forward_impl.4} parent=1 // pred_fallthru
      _
    // Predicated region
    $region52: #{_fgat_forward_impl.4} parent=1 // pred_check
      _
    $region53: #{_fgat_forward_impl.4} parent=1 // pred_check_branch
      %135 = sbr.rel (0) target = $region55
    $region54: #{_fgat_forward_impl.4} parent=1 // pred_region
      %s137 = ssub.s32 16, 16
      %138 = vsyncadd [#allocation12], %s137
      %s140 = sshll.u32 %s5, 4
      %s141 = int_to_ptr.vmem [resolvable:$true] %s140
      %143 = dma.smem_to_vmem [#allocation11], 16, %s141, [#allocation12]
    $region55: #{_fgat_forward_impl.4} parent=1 // pred_fallthru
      _
    // Predicated region
    $region56: #{_fgat_forward_impl.4} parent=1 // pred_check
      _
    $region57: #{_fgat_forward_impl.4} parent=1 // pred_check_branch
      %145 = sbr.rel (0) target = $region59
    $region58: #{_fgat_forward_impl.4} parent=1 // pred_region
      %s147 = ssub.s32 16, 16
      %148 = vsyncadd [#allocation12], %s147
      %s150 = sshll.u32 %s6, 4
      %s151 = int_to_ptr.vmem [resolvable:$true] %s150
      %153 = dma.smem_to_vmem [#allocation13], 16, %s151, [#allocation12]
    $region59: #{_fgat_forward_impl.4} parent=1 // pred_fallthru
      _
    // Predicated region
    $region60: #{_fgat_forward_impl.4} parent=1 // pred_check
      _
    $region61: #{_fgat_forward_impl.4} parent=1 // pred_check_branch
      %155 = sbr.rel (0) target = $region63
    $region62: #{_fgat_forward_impl.4} parent=1 // pred_region
      %156 = dma.done [#allocation4], 16
    $region63: #{_fgat_forward_impl.4} parent=1 // pred_fallthru
      _
    // Predicated region
    $region64: #{_fgat_forward_impl.4} parent=1 // pred_check
      _
    $region65: #{_fgat_forward_impl.4} parent=1 // pred_check_branch
      %158 = sbr.rel (0) target = $region67
    $region66: #{_fgat_forward_impl.4} parent=1 // pred_region
      %159 = dma.done [#allocation12], 16
    $region67: #{_fgat_forward_impl.4} parent=1 // pred_fallthru
      _
    // Predicated region
    $region68: #{_fgat_forward_impl.4} parent=1 // pred_check
      _
    $region69: #{_fgat_forward_impl.4} parent=1 // pred_check_branch
      %161 = sbr.rel (0) target = $region71
    $region70: #{_fgat_forward_impl.4} parent=1 // pred_region
      %162 = dma.done [#allocation12], 16
    $region71: #{_fgat_forward_impl.4} parent=1 // pred_fallthru
      _
    %163 = sfence
    %164 = vsyncpa [#allocation3], 1
    %165 = vsyncpa [#allocation6], 1
    %166 = vsyncpa [#allocation9], 1
    %167 = vsyncpa [#allocation4], 1
    %168 = vsyncpa [#allocation12], 1

// kernel: _fgat_forward_impl.5
$region0: #{_fgat_forward_impl.5}
  #allocation0 [shape = 'u32[]', space=smem, size = 0x4, offset = 0x4, fixed_abs, tag = 'smem constant byte address 0x4 - core index']
  #allocation1 [shape = 'u32[144,128]{1,0:T(1,128)}', space=vmem, size = 0x12000, scoped, tag = 'internal scratch']
  #allocation2 [shape = 'f32[2,40]{1,0:T(2,128)}', space=vmem, size = 0x400, scoped, tag = 'scratch operand']
  %s0 = inlined_call_operand.vmem [shape: f32[16,40], index: 0, kind: input, shape index: {}]
  %s1 = inlined_call_operand.vmem [shape: f32[16,2], index: 1, kind: input, shape index: {}]
  %s2 = inlined_call_operand.vmem [shape: f32[40,20], index: 2, kind: input, shape index: {}]
  %s3 = inlined_call_operand.vmem [shape: f32[1,20], index: 3, kind: input, shape index: {}]
  %s4 = inlined_call_operand.vmem [shape: f32[20,2], index: 4, kind: input, shape index: {}]
  %s5 = inlined_call_operand.vmem [shape: f32[1,2], index: 5, kind: input, shape index: {}]
  %s6 = inlined_call_operand.hbm [shape: f32[2,2], index: 6, kind: output, shape index: {}]
  %s7 = sld [smem:[#allocation0]]
  $region34: #{_fgat_forward_impl.5} parent=0
    _
  %s9 = ssub.s32 1, %s7
  %s10 = scalar_select 0, %s9, %s7
  $region1: #{_fgat_forward_impl.5} parent=0
    #allocation3 [shape = 'u8[1024]{0}', space=vmem, size = 0x400, scoped, tag = 'output window, operand 0, single buffered']
    #allocation4 [shape = 's32[1]{0}', space=sflag, size = 0x4, scoped, tag = 'scoped memory for _fgat_forward_impl.5']
    %11 = vsyncpa [#allocation4], 0
    // Predicated region
    $region2: #{_fgat_forward_impl.5} parent=1 // pred_check
      _
    $region3: #{_fgat_forward_impl.5} parent=1 // pred_check_branch
      %13 = sbr.rel (0) target = $region5
    $region4: #{_fgat_forward_impl.5} parent=1 // pred_region
      _
    $region5: #{_fgat_forward_impl.5} parent=1 // pred_fallthru
      _
    // Predicated region
    $region6: #{_fgat_forward_impl.5} parent=1 // pred_check
      _
    $region7: #{_fgat_forward_impl.5} parent=1 // pred_check_branch
      %15 = sbr.rel (0) target = $region9
    $region8: #{_fgat_forward_impl.5} parent=1 // pred_region
      _
    $region9: #{_fgat_forward_impl.5} parent=1 // pred_fallthru
      _
    // Predicated region
    $region10: #{_fgat_forward_impl.5} parent=1 // pred_check
      _
    $region11: #{_fgat_forward_impl.5} parent=1 // pred_check_branch
      %17 = sbr.rel (0) target = $region13
    $region12: #{_fgat_forward_impl.5} parent=1 // pred_region
      _
    $region13: #{_fgat_forward_impl.5} parent=1 // pred_fallthru
      _
    // Predicated region
    $region14: #{_fgat_forward_impl.5} parent=1 // pred_check
      _
    $region15: #{_fgat_forward_impl.5} parent=1 // pred_check_branch
      %19 = sbr.rel (0) target = $region17
    $region16: #{_fgat_forward_impl.5} parent=1 // pred_region
      _
    $region17: #{_fgat_forward_impl.5} parent=1 // pred_fallthru
      _
    // Predicated region
    $region18: #{_fgat_forward_impl.5} parent=1 // pred_check
      _
    $region19: #{_fgat_forward_impl.5} parent=1 // pred_check_branch
      %21 = sbr.rel (0) target = $region21
    $region20: #{_fgat_forward_impl.5} parent=1 // pred_region
      _
    $region21: #{_fgat_forward_impl.5} parent=1 // pred_fallthru
      _
    // Predicated region
    $region22: #{_fgat_forward_impl.5} parent=1 // pred_check
      _
    $region23: #{_fgat_forward_impl.5} parent=1 // pred_check_branch
      %23 = sbr.rel (0) target = $region25
    $region24: #{_fgat_forward_impl.5} parent=1 // pred_region
      _
    $region25: #{_fgat_forward_impl.5} parent=1 // pred_fallthru
      _
    %v24 = vld [vmem:[%s0] sm:$0xff]
    %v25 = vld [vmem:[%s0 + $0x8] sm:$0xff]
    %v26 = vld [vmem:[%s1] sm:$0xff]
    %v27 = vld [vmem:[%s1 + $0x8] sm:$0xff]
    %vm28 = vcmp.gt.f32.partialorder %v26, 0.0
    %vm29 = vcmp.gt.f32.partialorder %v27, 0.0
    %v30 = vsel %vm28, 1, 0
    %v31 = vsel %vm29, 1, 0
    %32 = vset.pattern.permute.xlu0 0
    %33 = vperm.xlu0 %32, %v30
    %v34 = vpop.permute.xlu0 %33
    %35 = vset.pattern.permute.xlu0 0
    %36 = vperm.xlu0 %35, %v31
    %v37 = vpop.permute.xlu0 %36
    %vm38 = vcmp.eq.s32.totalorder %v34, 1
    %vm39 = vcmp.eq.s32.totalorder %v37, 1
    %v40 = vsel %vm38, %v24, -1e+30
    %v41 = vsel %vm39, %v25, -1e+30
    %vm42 = vcmask 326656
    %v43 = vsel %vm42, %v40, -inf
    %v44 = vsel %vm42, %v41, -inf
    %v45 = vmax.f32 %v43, %v44
    %v46 = vrot.slane %v45, 4
    %v47 = vmax.f32 %v45, %v46
    %v48 = vrot.slane %v47, 2
    %v49 = vmax.f32 %v47, %v48
    %v50 = vrot.slane %v49, 1
    %v51 = vmax.f32 %v49, %v50
    %vm52 = vcmask 319488
    %53 = vst.msk [vmem:[#allocation2] sm:$0x1] %vm52, %v51
    %54 = vset.pattern.permute.xlu0 1
    %55 = vperm.xlu0 %54, %v30
    %v56 = vpop.permute.xlu0 %55
    %57 = vset.pattern.permute.xlu0 1
    %58 = vperm.xlu0 %57, %v31
    %v59 = vpop.permute.xlu0 %58
    %vm60 = vcmp.eq.s32.totalorder %v56, 1
    %vm61 = vcmp.eq.s32.totalorder %v59, 1
    %v62 = vsel %vm60, %v24, -1e+30
    %v63 = vsel %vm61, %v25, -1e+30
    %v64 = vsel %vm42, %v62, -inf
    %v65 = vsel %vm42, %v63, -inf
    %v66 = vmax.f32 %v64, %v65
    %v67 = vrot.slane %v66, 4
    %v68 = vmax.f32 %v66, %v67
    %v69 = vrot.slane %v68, 2
    %v70 = vmax.f32 %v68, %v69
    %v71 = vrot.slane %v70, 1
    %v72 = vmax.f32 %v70, %v71
    %73 = vst.msk [vmem:[#allocation2 + $0x1] sm:$0x1] %vm52, %v72
    %v74 = vld [vmem:[#allocation2] sm:$0x3]
    %v75 = vld [vmem:[%s2] sm:$0xff]
    %v76 = vld [vmem:[%s2 + $0x8] sm:$0xff]
    %v77 = vld [vmem:[%s2 + $0x10] sm:$0xff]
    %v78 = vld [vmem:[%s2 + $0x18] sm:$0xff]
    %v79 = vld [vmem:[%s2 + $0x20] sm:$0xff]
    %v80 = vld [vmem:[%s3] sm:$0x1]
    %v82 = vlaneseq
    %v83 = vshrl.u32 %v82, 7
    %v84 = vsub.s32 0, %v83
    %v85 = vrot.slane %v80, %v84
    %v88 = vsel %vm42, %v74, 0
    %90 = vmatprep.subr.mxu0 0.0
    %91 = vmatpush1.msra.mxu0 %v75
    %92 = vmatprep.subr.mxu0 0.0
    %93 = vmatpush1.msra.mxu0 %v76
    %94 = vmatprep.subr.mxu0 0.0
    %95 = vmatpush1.msra.mxu0 %v77
    %96 = vmatprep.subr.mxu0 0.0
    %97 = vmatpush1.msra.mxu0 %v78
    %98 = vmatprep.subr.mxu0 0.0
    %99 = vmatpush1.msra.mxu0 %v79
    %100 = vmatprep.subr.mxu0 0.0
    %101 = vmatpush1.msra.mxu0 0.0
    %102 = vmatprep.subr.mxu0 0.0
    %103 = vmatpush1.msra.mxu0 0.0
    %104 = vmatprep.subr.mxu0 0.0
    %105 = vmatpush1.msra.mxu0 0.0
    %106 = vmatprep.subr.mxu0 0.0
    %107 = vmatpush1.msra.mxu0 0.0
    %108 = vmatprep.subr.mxu0 0.0
    %109 = vmatpush1.msra.mxu0 0.0
    %110 = vmatprep.subr.mxu0 0.0
    %111 = vmatpush1.msra.mxu0 0.0
    %112 = vmatprep.subr.mxu0 0.0
    %113 = vmatpush1.msra.mxu0 0.0
    %114 = vmatprep.subr.mxu0 0.0
    %115 = vmatpush1.msra.mxu0 0.0
    %116 = vmatprep.subr.mxu0 0.0
    %117 = vmatpush1.msra.mxu0 0.0
    %118 = vmatprep.subr.mxu0 0.0
    %119 = vmatpush1.msra.mxu0 0.0
    %120 = vmatprep.subr.mxu0 0.0
    %121 = vmatpush1.msra.mxu0 0.0
    %122 = vmatprep.subr.mxu0 0.0
    %123 = vmatpush1.msra.mxu0 0.0
    %124 = vmatprep.subr.mxu0 0.0
    %125 = vmatpush1.msra.mxu0 0.0
    %126 = vmatprep.subr.mxu0 0.0
    %127 = vmatpush1.msra.mxu0 0.0
    %128 = vmatprep.subr.mxu0 0.0
    %129 = vmatpush1.msra.mxu0 0.0
    %130 = vmatprep.subr.mxu0 0.0
    %131 = vmatpush1.msra.mxu0 0.0
    %132 = vmatprep.subr.mxu0 0.0
    %133 = vmatpush1.msra.mxu0 0.0
    %134 = vmatprep.subr.mxu0 0.0
    %135 = vmatpush1.msra.mxu0 0.0
    %136 = vmatprep.subr.mxu0 0.0
    %137 = vmatpush1.msra.mxu0 0.0
    %138 = vmatprep.subr.mxu0 0.0
    %139 = vmatpush1.msra.mxu0 0.0
    %140 = vmatprep.subr.mxu0 0.0
    %141 = vmatpush1.msra.mxu0 0.0
    %142 = vmatprep.subr.mxu0 0.0
    %143 = vmatpush1.msra.mxu0 0.0
    %144 = vmatprep.subr.mxu0 0.0
    %145 = vmatpush1.msra.mxu0 0.0
    %146 = vmatprep.subr.mxu0 0.0
    %147 = vmatpush1.msra.mxu0 0.0
    %148 = vmatprep.subr.mxu0 0.0
    %149 = vmatpush1.msra.mxu0 0.0
    %150 = vmatprep.subr.mxu0 0.0
    %151 = vmatpush1.msra.mxu0 0.0
    %152 = vmatprep.subr.mxu0 0.0
    %153 = vmatpush1.msra.mxu0 0.0
    %154 = vmatprep.mubr.f32.mxu0 0.0
    %155 = vmatmul.mubr.f32.gmra.mrb[0].mxu0 %v88
    %v156 = vpop.f32.mrb[0].mxu0
    %v157 = vadd.f32 %v85, %v156
    %v158 = vpop.f32.mrb[0].mxu0
    %159 = vdwg.mxu0
    %v160 = vmax.f32 %v157, 0.0
    %v161 = vld [vmem:[%s4] sm:$0xff]
    %v162 = vld [vmem:[%s4 + $0x8] sm:$0xff]
    %v163 = vld [vmem:[%s4 + $0x10] sm:$0xf]
    %v164 = vld [vmem:[%s5] sm:$0x1]
    %v166 = vlaneseq
    %v167 = vshrl.u32 %v166, 7
    %v168 = vsub.s32 0, %v167
    %v169 = vrot.slane %v164, %v168
    %vm171 = vcmask 162816
    %v173 = vsel %vm171, %v160, 0
    %vm175 = vcmask 1043456
    %v177 = vsel %vm175, %v163, 0
    %179 = vmatprep.subr.mxu0 0.0
    %180 = vmatpush1.msra.mxu0 %v161
    %181 = vmatprep.subr.mxu0 0.0
    %182 = vmatpush1.msra.mxu0 %v162
    %183 = vmatprep.subr.mxu0 0.0
    %184 = vmatpush1.msra.mxu0 %v177
    %185 = vmatprep.subr.mxu0 0.0
    %186 = vmatpush1.msra.mxu0 0.0
    %187 = vmatprep.subr.mxu0 0.0
    %188 = vmatpush1.msra.mxu0 0.0
    %189 = vmatprep.subr.mxu0 0.0
    %190 = vmatpush1.msra.mxu0 0.0
    %191 = vmatprep.subr.mxu0 0.0
    %192 = vmatpush1.msra.mxu0 0.0
    %193 = vmatprep.subr.mxu0 0.0
    %194 = vmatpush1.msra.mxu0 0.0
    %195 = vmatprep.subr.mxu0 0.0
    %196 = vmatpush1.msra.mxu0 0.0
    %197 = vmatprep.subr.mxu0 0.0
    %198 = vmatpush1.msra.mxu0 0.0
    %199 = vmatprep.subr.mxu0 0.0
    %200 = vmatpush1.msra.mxu0 0.0
    %201 = vmatprep.subr.mxu0 0.0
    %202 = vmatpush1.msra.mxu0 0.0
    %203 = vmatprep.subr.mxu0 0.0
    %204 = vmatpush1.msra.mxu0 0.0
    %205 = vmatprep.subr.mxu0 0.0
    %206 = vmatpush1.msra.mxu0 0.0
    %207 = vmatprep.subr.mxu0 0.0
    %208 = vmatpush1.msra.mxu0 0.0
    %209 = vmatprep.subr.mxu0 0.0
    %210 = vmatpush1.msra.mxu0 0.0
    %211 = vmatprep.subr.mxu0 0.0
    %212 = vmatpush1.msra.mxu0 0.0
    %213 = vmatprep.subr.mxu0 0.0
    %214 = vmatpush1.msra.mxu0 0.0
    %215 = vmatprep.subr.mxu0 0.0
    %216 = vmatpush1.msra.mxu0 0.0
    %217 = vmatprep.subr.mxu0 0.0
    %218 = vmatpush1.msra.mxu0 0.0
    %219 = vmatprep.subr.mxu0 0.0
    %220 = vmatpush1.msra.mxu0 0.0
    %221 = vmatprep.subr.mxu0 0.0
    %222 = vmatpush1.msra.mxu0 0.0
    %223 = vmatprep.subr.mxu0 0.0
    %224 = vmatpush1.msra.mxu0 0.0
    %225 = vmatprep.subr.mxu0 0.0
    %226 = vmatpush1.msra.mxu0 0.0
    %227 = vmatprep.subr.mxu0 0.0
    %228 = vmatpush1.msra.mxu0 0.0
    %229 = vmatprep.subr.mxu0 0.0
    %230 = vmatpush1.msra.mxu0 0.0
    %231 = vmatprep.subr.mxu0 0.0
    %232 = vmatpush1.msra.mxu0 0.0
    %233 = vmatprep.subr.mxu0 0.0
    %234 = vmatpush1.msra.mxu0 0.0
    %235 = vmatprep.subr.mxu0 0.0
    %236 = vmatpush1.msra.mxu0 0.0
    %237 = vmatprep.subr.mxu0 0.0
    %238 = vmatpush1.msra.mxu0 0.0
    %239 = vmatprep.subr.mxu0 0.0
    %240 = vmatpush1.msra.mxu0 0.0
    %241 = vmatprep.subr.mxu0 0.0
    %242 = vmatpush1.msra.mxu0 0.0
    %243 = vmatprep.mubr.f32.mxu0 0.0
    %244 = vmatmul.mubr.f32.gmra.mrb[0].mxu0 %v173
    %v245 = vpop.f32.mrb[0].mxu0
    %v246 = vadd.f32 %v169, %v245
    %v247 = vpop.f32.mrb[0].mxu0
    %248 = vdwg.mxu0
    %vm249 = vcmask 9216
    %v250 = vsel %vm249, %v246, -inf
    %251 = vmax.xlane.f32.xlu0 %v250
    %v252 = vpop.xlane.xlu0 %251
    %v253 = vsub.f32 %v246, %v252
    %v254 = vmul.f32 %v253, 1.442695
    %v255 = vpow.pop %v254
    %v256 = vsel %vm249, %v255, 0.0
    %257 = vadd.xlane.f32.xlu0 %v256
    %v258 = vpop.xlane.xlu0 %257
    %v259 = vrcp.pop %v258
    %v260 = vmul.f32 %v255, %v259
    %261 = vst.msk [vmem:[#allocation3] sm:$0x3] %vm249, %v260
    // Predicated region
    $region26: #{_fgat_forward_impl.5} parent=1 // pred_check
      _
    $region27: #{_fgat_forward_impl.5} parent=1 // pred_check_branch
      %263 = sbr.rel (0) target = $region29
    $region28: #{_fgat_forward_impl.5} parent=1 // pred_region
      %s265 = ssub.s32 32, 32
      %266 = vsyncadd [#allocation4], %s265
      %s268 = sshll.u32 [#allocation3], 4
      %s269 = int_to_ptr.vmem [resolvable:$true] %s268
      %271 = dma.vmem_to_hbm [thread:$0]  %s269, 32, %s6, [#allocation4]
    $region29: #{_fgat_forward_impl.5} parent=1 // pred_fallthru
      _
    // Predicated region
    $region30: #{_fgat_forward_impl.5} parent=1 // pred_check
      _
    $region31: #{_fgat_forward_impl.5} parent=1 // pred_check_branch
      %273 = sbr.rel (0) target = $region33
    $region32: #{_fgat_forward_impl.5} parent=1 // pred_region
      %274 = dma.done [#allocation4], 32
    $region33: #{_fgat_forward_impl.5} parent=1 // pred_fallthru
      _
    %275 = vsyncpa [#allocation4], 1

// kernel: _fgat_forward_impl.3
$region0: #{_fgat_forward_impl.3}
  #allocation0 [shape = 'u32[]', space=smem, size = 0x4, offset = 0x4, fixed_abs, tag = 'smem constant byte address 0x4 - core index']
  #allocation1 [shape = 'u32[144,128]{1,0:T(1,128)}', space=vmem, size = 0x12000, scoped, tag = 'internal scratch']
  %s0 = inlined_call_operand.vmem [shape: f32[16,128], index: 0, kind: input, shape index: {}]
  %s1 = inlined_call_operand.vmem [shape: f32[16,220], index: 1, kind: input, shape index: {}]
  %s2 = inlined_call_operand.vmem [shape: f32[16,16], index: 2, kind: input, shape index: {}]
  %s3 = inlined_call_operand.vmem [shape: bf16[128,1539], index: 3, kind: input, shape index: {}]
  %s4 = inlined_call_operand.vmem [shape: bf16[3,128], index: 4, kind: input, shape index: {}]
  %s5 = inlined_call_operand.vmem [shape: f32[1,1536], index: 5, kind: input, shape index: {}]
  %s6 = inlined_call_operand.vmem [shape: bf16[1536,513], index: 6, kind: input, shape index: {}]
  %s7 = inlined_call_operand.vmem [shape: bf16[1,1536], index: 7, kind: input, shape index: {}]
  %s8 = inlined_call_operand.vmem [shape: f32[1,512], index: 8, kind: input, shape index: {}]
  %s9 = inlined_call_operand.vmem [shape: bf16[512,21], index: 9, kind: input, shape index: {}]
  %s10 = inlined_call_operand.vmem [shape: bf16[1,512], index: 10, kind: input, shape index: {}]
  %s11 = inlined_call_operand.vmem [shape: f32[1,20], index: 11, kind: input, shape index: {}]
  %s12 = inlined_call_operand.vmem [shape: bf16[220,333], index: 12, kind: input, shape index: {}]
  %s13 = inlined_call_operand.vmem [shape: bf16[3,220], index: 13, kind: input, shape index: {}]
  %s14 = inlined_call_operand.vmem [shape: f32[1,330], index: 14, kind: input, shape index: {}]
  %s15 = inlined_call_operand.vmem [shape: bf16[330,111], index: 15, kind: input, shape index: {}]
  %s16 = inlined_call_operand.vmem [shape: bf16[1,330], index: 16, kind: input, shape index: {}]
  %s17 = inlined_call_operand.vmem [shape: f32[1,110], index: 17, kind: input, shape index: {}]
  %s18 = inlined_call_operand.vmem [shape: bf16[110,21], index: 18, kind: input, shape index: {}]
  %s19 = inlined_call_operand.vmem [shape: bf16[1,110], index: 19, kind: input, shape index: {}]
  %s20 = inlined_call_operand.vmem [shape: f32[1,20], index: 20, kind: input, shape index: {}]
  %s21 = inlined_call_operand.vmem [shape: bf16[40,42], index: 21, kind: input, shape index: {}]
  %s22 = inlined_call_operand.vmem [shape: bf16[2,40], index: 22, kind: input, shape index: {}]
  %s23 = inlined_call_operand.vmem [shape: f32[1,40], index: 23, kind: input, shape index: {}]
  %s24 = inlined_call_operand.vmem [shape: f32[16,40], index: 24, kind: output, shape index: {}]
  %s25 = sld [smem:[#allocation0]]
  $region106: #{_fgat_forward_impl.3} parent=0
    _
  %s27 = ssub.s32 1, %s25
  %s28 = scalar_select 0, %s27, %s25
  // Predicated region
  $region2: #{_fgat_forward_impl.3} parent=0 // pred_check
    _
  $region3: #{_fgat_forward_impl.3} parent=0 // pred_check_branch
    %30 = sbr.rel (0) target = $region5
  $region4: #{_fgat_forward_impl.3} parent=0 // pred_region
    _
  $region5: #{_fgat_forward_impl.3} parent=0 // pred_fallthru
    _
  // Predicated region
  $region6: #{_fgat_forward_impl.3} parent=0 // pred_check
    _
  $region7: #{_fgat_forward_impl.3} parent=0 // pred_check_branch
    %32 = sbr.rel (0) target = $region9
  $region8: #{_fgat_forward_impl.3} parent=0 // pred_region
    _
  $region9: #{_fgat_forward_impl.3} parent=0 // pred_fallthru
    _
  // Predicated region
  $region10: #{_fgat_forward_impl.3} parent=0 // pred_check
    _
  $region11: #{_fgat_forward_impl.3} parent=0 // pred_check_branch
    %34 = sbr.rel (0) target = $region13
  $region12: #{_fgat_forward_impl.3} parent=0 // pred_region
    _
  $region13: #{_fgat_forward_impl.3} parent=0 // pred_fallthru
    _
  // Predicated region
  $region14: #{_fgat_forward_impl.3} parent=0 // pred_check
    _
  $region15: #{_fgat_forward_impl.3} parent=0 // pred_check_branch
    %36 = sbr.rel (0) target = $region17
  $region16: #{_fgat_forward_impl.3} parent=0 // pred_region
    _
  $region17: #{_fgat_forward_impl.3} parent=0 // pred_fallthru
    _
  // Predicated region
  $region18: #{_fgat_forward_impl.3} parent=0 // pred_check
    _
  $region19: #{_fgat_forward_impl.3} parent=0 // pred_check_branch
    %38 = sbr.rel (0) target = $region21
  $region20: #{_fgat_forward_impl.3} parent=0 // pred_region
    _
  $region21: #{_fgat_forward_impl.3} parent=0 // pred_fallthru
    _
  // Predicated region
  $region22: #{_fgat_forward_impl.3} parent=0 // pred_check
    _
  $region23: #{_fgat_forward_impl.3} parent=0 // pred_check_branch
    %40 = sbr.rel (0) target = $region25
  $region24: #{_fgat_forward_impl.3} parent=0 // pred_region
    _
  $region25: #{_fgat_forward_impl.3} parent=0 // pred_fallthru
    _
  // Predicated region
  $region26: #{_fgat_forward_impl.3} parent=0 // pred_check
    _
  $region27: #{_fgat_forward_impl.3} parent=0 // pred_check_branch
    %42 = sbr.rel (0) target = $region29
  $region28: #{_fgat_forward_impl.3} parent=0 // pred_region
    _
  $region29: #{_fgat_forward_impl.3} parent=0 // pred_fallthru
    _
  // Predicated region
  $region30: #{_fgat_forward_impl.3} parent=0 // pred_check
    _
  $region31: #{_fgat_forward_impl.3} parent=0 // pred_check_branch
    %44 = sbr.rel (0) target = $region33
  $region32: #{_fgat_forward_impl.3} parent=0 // pred_region
    _
  $region33: #{_fgat_forward_impl.3} parent=0 // pred_fallthru
    _
  // Predicated region
  $region34: #{_fgat_forward_impl.3} parent=0 // pred_check
    _
  $region35: #{_fgat_forward_impl.3} parent=0 // pred_check_branch
    %46 = sbr.rel (0) target = $region37
  $region36: #{_fgat_forward_impl.3} parent=0 // pred_region
    _
  $region37: #{_fgat_forward_impl.3} parent=0 // pred_fallthru
    _
  // Predicated region
  $region38: #{_fgat_forward_impl.3} parent=0 // pred_check
    _
  $region39: #{_fgat_forward_impl.3} parent=0 // pred_check_branch
    %48 = sbr.rel (0) target = $region41
  $region40: #{_fgat_forward_impl.3} parent=0 // pred_region
    _
  $region41: #{_fgat_forward_impl.3} parent=0 // pred_fallthru
    _
  // Predicated region
  $region42: #{_fgat_forward_impl.3} parent=0 // pred_check
    _
  $region43: #{_fgat_forward_impl.3} parent=0 // pred_check_branch
    %50 = sbr.rel (0) target = $region45
  $region44: #{_fgat_forward_impl.3} parent=0 // pred_region
    _
  $region45: #{_fgat_forward_impl.3} parent=0 // pred_fallthru
    _
  // Predicated region
  $region46: #{_fgat_forward_impl.3} parent=0 // pred_check
    _
  $region47: #{_fgat_forward_impl.3} parent=0 // pred_check_branch
    %52 = sbr.rel (0) target = $region49
  $region48: #{_fgat_forward_impl.3} parent=0 // pred_region
    _
  $region49: #{_fgat_forward_impl.3} parent=0 // pred_fallthru
    _
  // Predicated region
  $region50: #{_fgat_forward_impl.3} parent=0 // pred_check
    _
  $region51: #{_fgat_forward_impl.3} parent=0 // pred_check_branch
    %54 = sbr.rel (0) target = $region53
  $region52: #{_fgat_forward_impl.3} parent=0 // pred_region
    _
  $region53: #{_fgat_forward_impl.3} parent=0 // pred_fallthru
    _
  // Predicated region
  $region54: #{_fgat_forward_impl.3} parent=0 // pred_check
    _
  $region55: #{_fgat_forward_impl.3} parent=0 // pred_check_branch
    %56 = sbr.rel (0) target = $region57
  $region56: #{_fgat_forward_impl.3} parent=0 // pred_region
    _
  $region57: #{_fgat_forward_impl.3} parent=0 // pred_fallthru
    _
  // Predicated region
  $region58: #{_fgat_forward_impl.3} parent=0 // pred_check
    _
  $region59: #{_fgat_forward_impl.3} parent=0 // pred_check_branch
    %58 = sbr.rel (0) target = $region61
  $region60: #{_fgat_forward_impl.3} parent=0 // pred_region
    _
  $region61: #{_fgat_forward_impl.3} parent=0 // pred_fallthru
    _
  // Predicated region
  $region62: #{_fgat_forward_impl.3} parent=0 // pred_check
    _
  $region63: #{_fgat_forward_impl.3} parent=0 // pred_check_branch
    %60 = sbr.rel (0) target = $region65
  $region64: #{_fgat_forward_impl.3} parent=0 // pred_region
    _
  $region65: #{_fgat_forward_impl.3} parent=0 // pred_fallthru
    _
  // Predicated region
  $region66: #{_fgat_forward_impl.3} parent=0 // pred_check
    _
  $region67: #{_fgat_forward_impl.3} parent=0 // pred_check_branch
    %62 = sbr.rel (0) target = $region69
  $region68: #{_fgat_forward_impl.3} parent=0 // pred_region
    _
  $region69: #{_fgat_forward_impl.3} parent=0 // pred_fallthru
    _
  // Predicated region
  $region70: #{_fgat_forward_impl.3} parent=0 // pred_check
    _
  $region71: #{_fgat_forward_impl.3} parent=0 // pred_check_branch
    %64 = sbr.rel (0) target = $region73
  $region72: #{_fgat_forward_impl.3} parent=0 // pred_region
    _
  $region73: #{_fgat_forward_impl.3} parent=0 // pred_fallthru
    _
  // Predicated region
  $region74: #{_fgat_forward_impl.3} parent=0 // pred_check
    _
  $region75: #{_fgat_forward_impl.3} parent=0 // pred_check_branch
    %66 = sbr.rel (0) target = $region77
  $region76: #{_fgat_forward_impl.3} parent=0 // pred_region
    _
  $region77: #{_fgat_forward_impl.3} parent=0 // pred_fallthru
    _
  // Predicated region
  $region78: #{_fgat_forward_impl.3} parent=0 // pred_check
    _
  $region79: #{_fgat_forward_impl.3} parent=0 // pred_check_branch
    %68 = sbr.rel (0) target = $region81
  $region80: #{_fgat_forward_impl.3} parent=0 // pred_region
    _
  $region81: #{_fgat_forward_impl.3} parent=0 // pred_fallthru
    _
  // Predicated region
  $region82: #{_fgat_forward_impl.3} parent=0 // pred_check
    _
  $region83: #{_fgat_forward_impl.3} parent=0 // pred_check_branch
    %70 = sbr.rel (0) target = $region85
  $region84: #{_fgat_forward_impl.3} parent=0 // pred_region
    _
  $region85: #{_fgat_forward_impl.3} parent=0 // pred_fallthru
    _
  // Predicated region
  $region86: #{_fgat_forward_impl.3} parent=0 // pred_check
    _
  $region87: #{_fgat_forward_impl.3} parent=0 // pred_check_branch
    %72 = sbr.rel (0) target = $region89
  $region88: #{_fgat_forward_impl.3} parent=0 // pred_region
    _
  $region89: #{_fgat_forward_impl.3} parent=0 // pred_fallthru
    _
  // Predicated region
  $region90: #{_fgat_forward_impl.3} parent=0 // pred_check
    _
  $region91: #{_fgat_forward_impl.3} parent=0 // pred_check_branch
    %74 = sbr.rel (0) target = $region93
  $region92: #{_fgat_forward_impl.3} parent=0 // pred_region
    _
  $region93: #{_fgat_forward_impl.3} parent=0 // pred_fallthru
    _
  // Predicated region
  $region94: #{_fgat_forward_impl.3} parent=0 // pred_check
    _
  $region95: #{_fgat_forward_impl.3} parent=0 // pred_check_branch
    %76 = sbr.rel (0) target = $region97
  $region96: #{_fgat_forward_impl.3} parent=0 // pred_region
    _
  $region97: #{_fgat_forward_impl.3} parent=0 // pred_fallthru
    _
  %v78 = vld [vmem:[%s2] sm:$0xff]
  %v79 = vld [vmem:[%s2 + $0x8] sm:$0xff]
  %vm80 = vcmp.gt.f32.partialorder %v78, 0.0
  %vm81 = vcmp.gt.f32.partialorder %v79, 0.0
  %v82 = vld [vmem:[%s0] sm:$0xff]
  %v83 = vld [vmem:[%s0 + $0x8] sm:$0xff]
  %v84 = vld [vmem:[%s3] sm:$0xff]
  %v85 = vld [vmem:[%s3 + $0x8] sm:$0xff]
  %v86 = vld [vmem:[%s3 + $0x10] sm:$0xff]
  %v87 = vld [vmem:[%s3 + $0x18] sm:$0xff]
  %v88 = vld [vmem:[%s3 + $0x20] sm:$0xff]
  %v89 = vld [vmem:[%s3 + $0x28] sm:$0xff]
  %v90 = vld [vmem:[%s3 + $0x30] sm:$0xf]
  %v91 = vld [vmem:[%s3 + $0x34] sm:$0xff]
  %v92 = vld [vmem:[%s3 + $0x3c] sm:$0xff]
  %v93 = vld [vmem:[%s3 + $0x44] sm:$0xff]
  %v94 = vld [vmem:[%s3 + $0x4c] sm:$0xff]
  %v95 = vld [vmem:[%s3 + $0x54] sm:$0xff]
  %v96 = vld [vmem:[%s3 + $0x5c] sm:$0xff]
  %v97 = vld [vmem:[%s3 + $0x64] sm:$0xf]
  %v98 = vld [vmem:[%s3 + $0x68] sm:$0xff]
  %v99 = vld [vmem:[%s3 + $0x70] sm:$0xff]
  %v100 = vld [vmem:[%s3 + $0x78] sm:$0xff]
  %v101 = vld [vmem:[%s3 + $0x80] sm:$0xff]
  %v102 = vld [vmem:[%s3 + $0x88] sm:$0xff]
  %v103 = vld [vmem:[%s3 + $0x90] sm:$0xff]
  %v104 = vld [vmem:[%s3 + $0x98] sm:$0xf]
  %v105 = vld [vmem:[%s3 + $0x9c] sm:$0xff]
  %v106 = vld [vmem:[%s3 + $0xa4] sm:$0xff]
  %v107 = vld [vmem:[%s3 + $0xac] sm:$0xff]
  %v108 = vld [vmem:[%s3 + $0xb4] sm:$0xff]
  %v109 = vld [vmem:[%s3 + $0xbc] sm:$0xff]
  %v110 = vld [vmem:[%s3 + $0xc4] sm:$0xff]
  %v111 = vld [vmem:[%s3 + $0xcc] sm:$0xf]
  %v112 = vld [vmem:[%s3 + $0xd0] sm:$0xff]
  %v113 = vld [vmem:[%s3 + $0xd8] sm:$0xff]
  %v114 = vld [vmem:[%s3 + $0xe0] sm:$0xff]
  %v115 = vld [vmem:[%s3 + $0xe8] sm:$0xff]
  %v116 = vld [vmem:[%s3 + $0xf0] sm:$0xff]
  %v117 = vld [vmem:[%s3 + $0xf8] sm:$0xff]
  %v118 = vld [vmem:[%s3 + $0x100] sm:$0xf]
  %v119 = vld [vmem:[%s3 + $0x104] sm:$0xff]
  %v120 = vld [vmem:[%s3 + $0x10c] sm:$0xff]
  %v121 = vld [vmem:[%s3 + $0x114] sm:$0xff]
  %v122 = vld [vmem:[%s3 + $0x11c] sm:$0xff]
  %v123 = vld [vmem:[%s3 + $0x124] sm:$0xff]
  %v124 = vld [vmem:[%s3 + $0x12c] sm:$0xff]
  %v125 = vld [vmem:[%s3 + $0x134] sm:$0xf]
  %v126 = vld [vmem:[%s3 + $0x138] sm:$0xff]
  %v127 = vld [vmem:[%s3 + $0x140] sm:$0xff]
  %v128 = vld [vmem:[%s3 + $0x148] sm:$0xff]
  %v129 = vld [vmem:[%s3 + $0x150] sm:$0xff]
  %v130 = vld [vmem:[%s3 + $0x158] sm:$0xff]
  %v131 = vld [vmem:[%s3 + $0x160] sm:$0xff]
  %v132 = vld [vmem:[%s3 + $0x168] sm:$0xf]
  %v133 = vld [vmem:[%s3 + $0x16c] sm:$0xff]
  %v134 = vld [vmem:[%s3 + $0x174] sm:$0xff]
  %v135 = vld [vmem:[%s3 + $0x17c] sm:$0xff]
  %v136 = vld [vmem:[%s3 + $0x184] sm:$0xff]
  %v137 = vld [vmem:[%s3 + $0x18c] sm:$0xff]
  %v138 = vld [vmem:[%s3 + $0x194] sm:$0xff]
  %v139 = vld [vmem:[%s3 + $0x19c] sm:$0xf]
  %v140 = vld [vmem:[%s3 + $0x1a0] sm:$0xff]
  %v141 = vld [vmem:[%s3 + $0x1a8] sm:$0xff]
  %v142 = vld [vmem:[%s3 + $0x1b0] sm:$0xff]
  %v143 = vld [vmem:[%s3 + $0x1b8] sm:$0xff]
  %v144 = vld [vmem:[%s3 + $0x1c0] sm:$0xff]
  %v145 = vld [vmem:[%s3 + $0x1c8] sm:$0xff]
  %v146 = vld [vmem:[%s3 + $0x1d0] sm:$0xf]
  %v147 = vld [vmem:[%s3 + $0x1d4] sm:$0xff]
  %v148 = vld [vmem:[%s3 + $0x1dc] sm:$0xff]
  %v149 = vld [vmem:[%s3 + $0x1e4] sm:$0xff]
  %v150 = vld [vmem:[%s3 + $0x1ec] sm:$0xff]
  %v151 = vld [vmem:[%s3 + $0x1f4] sm:$0xff]
  %v152 = vld [vmem:[%s3 + $0x1fc] sm:$0xff]
  %v153 = vld [vmem:[%s3 + $0x204] sm:$0xf]
  %v154 = vld [vmem:[%s3 + $0x208] sm:$0xff]
  %v155 = vld [vmem:[%s3 + $0x210] sm:$0xff]
  %v156 = vld [vmem:[%s3 + $0x218] sm:$0xff]
  %v157 = vld [vmem:[%s3 + $0x220] sm:$0xff]
  %v158 = vld [vmem:[%s3 + $0x228] sm:$0xff]
  %v159 = vld [vmem:[%s3 + $0x230] sm:$0xff]
  %v160 = vld [vmem:[%s3 + $0x238] sm:$0xf]
  %v161 = vld [vmem:[%s3 + $0x23c] sm:$0xff]
  %v162 = vld [vmem:[%s3 + $0x244] sm:$0xff]
  %v163 = vld [vmem:[%s3 + $0x24c] sm:$0xff]
  %v164 = vld [vmem:[%s3 + $0x254] sm:$0xff]
  %v165 = vld [vmem:[%s3 + $0x25c] sm:$0xff]
  %v166 = vld [vmem:[%s3 + $0x264] sm:$0xff]
  %v167 = vld [vmem:[%s3 + $0x26c] sm:$0xf]
  %v168 = vld [vmem:[%s3 + $0x270] sm:$0xff]
  %v169 = vld [vmem:[%s3 + $0x278] sm:$0xff]
  %v170 = vld [vmem:[%s3 + $0x280] sm:$0xff]
  %v171 = vld [vmem:[%s3 + $0x288] sm:$0xff]
  %v172 = vld [vmem:[%s3 + $0x290] sm:$0xff]
  %v173 = vld [vmem:[%s3 + $0x298] sm:$0xff]
  %v174 = vld [vmem:[%s3 + $0x2a0] sm:$0xf]
  %v175 = vld [vmem:[%s3 + $0x2a4] sm:$0xff]
  %v176 = vld [vmem:[%s3 + $0x2ac] sm:$0xff]
  %v177 = vld [vmem:[%s3 + $0x2b4] sm:$0xff]
  %v178 = vld [vmem:[%s3 + $0x2bc] sm:$0xff]
  %v179 = vld [vmem:[%s3 + $0x2c4] sm:$0xff]
  %v180 = vld [vmem:[%s3 + $0x2cc] sm:$0xff]
  %v181 = vld [vmem:[%s3 + $0x2d4] sm:$0xf]
  %v182 = vld [vmem:[%s3 + $0x2d8] sm:$0xff]
  %v183 = vld [vmem:[%s3 + $0x2e0] sm:$0xff]
  %v184 = vld [vmem:[%s3 + $0x2e8] sm:$0xff]
  %v185 = vld [vmem:[%s3 + $0x2f0] sm:$0xff]
  %v186 = vld [vmem:[%s3 + $0x2f8] sm:$0xff]
  %v187 = vld [vmem:[%s3 + $0x300] sm:$0xff]
  %v188 = vld [vmem:[%s3 + $0x308] sm:$0xf]
  %v189 = vld [vmem:[%s3 + $0x30c] sm:$0xff]
  %v190 = vld [vmem:[%s3 + $0x314] sm:$0xff]
  %v191 = vld [vmem:[%s3 + $0x31c] sm:$0xff]
  %v192 = vld [vmem:[%s3 + $0x324] sm:$0xff]
  %v193 = vld [vmem:[%s3 + $0x32c] sm:$0xff]
  %v194 = vld [vmem:[%s3 + $0x334] sm:$0xff]
  %v195 = vld [vmem:[%s3 + $0x33c] sm:$0xf]
  %v196 = vld [vmem:[%s4] sm:$0x3]
  %v197 = vld [vmem:[%s5] sm:$0xff]
  %v198 = vld [vmem:[%s5 + $0x8] sm:$0xf]
  %v199 = vpack.c.bf16 %v83, %v82
  %v312 = vunpack.c.l.b16 %v84
  %v313 = vunpack.c.h.b16 %v84
  %v314 = vunpack.c.l.b16 %v85
  %v315 = vunpack.c.h.b16 %v85
  %v316 = vunpack.c.l.b16 %v86
  %v317 = vunpack.c.h.b16 %v86
  %v318 = vunpack.c.l.b16 %v87
  %v319 = vunpack.c.h.b16 %v87
  %v320 = vunpack.c.l.b16 %v88
  %v321 = vunpack.c.h.b16 %v88
  %v322 = vunpack.c.l.b16 %v89
  %v323 = vunpack.c.h.b16 %v89
  %v324 = vunpack.c.l.b16 %v90
  %v325 = vunpack.c.l.b16 %v91
  %v326 = vunpack.c.h.b16 %v91
  %v327 = vunpack.c.l.b16 %v92
  %v328 = vunpack.c.h.b16 %v92
  %v329 = vunpack.c.l.b16 %v93
  %v330 = vunpack.c.h.b16 %v93
  %v331 = vunpack.c.l.b16 %v94
  %v332 = vunpack.c.h.b16 %v94
  %v333 = vunpack.c.l.b16 %v95
  %v334 = vunpack.c.h.b16 %v95
  %v335 = vunpack.c.l.b16 %v96
  %v336 = vunpack.c.h.b16 %v96
  %v337 = vunpack.c.l.b16 %v97
  %v338 = vunpack.c.l.b16 %v98
  %v339 = vunpack.c.h.b16 %v98
  %v340 = vunpack.c.l.b16 %v99
  %v341 = vunpack.c.h.b16 %v99
  %v342 = vunpack.c.l.b16 %v100
  %v343 = vunpack.c.h.b16 %v100
  %v344 = vunpack.c.l.b16 %v101
  %v345 = vunpack.c.h.b16 %v101
  %v346 = vunpack.c.l.b16 %v102
  %v347 = vunpack.c.h.b16 %v102
  %v348 = vunpack.c.l.b16 %v103
  %v349 = vunpack.c.h.b16 %v103
  %v350 = vunpack.c.l.b16 %v104
  %v351 = vunpack.c.l.b16 %v105
  %v352 = vunpack.c.h.b16 %v105
  %v353 = vunpack.c.l.b16 %v106
  %v354 = vunpack.c.h.b16 %v106
  %v355 = vunpack.c.l.b16 %v107
  %v356 = vunpack.c.h.b16 %v107
  %v357 = vunpack.c.l.b16 %v108
  %v358 = vunpack.c.h.b16 %v108
  %v359 = vunpack.c.l.b16 %v109
  %v360 = vunpack.c.h.b16 %v109
  %v361 = vunpack.c.l.b16 %v110
  %v362 = vunpack.c.h.b16 %v110
  %v363 = vunpack.c.l.b16 %v111
  %v364 = vunpack.c.l.b16 %v112
  %v365 = vunpack.c.h.b16 %v112
  %v366 = vunpack.c.l.b16 %v113
  %v367 = vunpack.c.h.b16 %v113
  %v368 = vunpack.c.l.b16 %v114
  %v369 = vunpack.c.h.b16 %v114
  %v370 = vunpack.c.l.b16 %v115
  %v371 = vunpack.c.h.b16 %v115
  %v372 = vunpack.c.l.b16 %v116
  %v373 = vunpack.c.h.b16 %v116
  %v374 = vunpack.c.l.b16 %v117
  %v375 = vunpack.c.h.b16 %v117
  %v376 = vunpack.c.l.b16 %v118
  %v377 = vunpack.c.l.b16 %v119
  %v378 = vunpack.c.h.b16 %v119
  %v379 = vunpack.c.l.b16 %v120
  %v380 = vunpack.c.h.b16 %v120
  %v381 = vunpack.c.l.b16 %v121
  %v382 = vunpack.c.h.b16 %v121
  %v383 = vunpack.c.l.b16 %v122
  %v384 = vunpack.c.h.b16 %v122
  %v385 = vunpack.c.l.b16 %v123
  %v386 = vunpack.c.h.b16 %v123
  %v387 = vunpack.c.l.b16 %v124
  %v388 = vunpack.c.h.b16 %v124
  %v389 = vunpack.c.l.b16 %v125
  %v390 = vunpack.c.l.b16 %v126
  %v391 = vunpack.c.h.b16 %v126
  %v392 = vunpack.c.l.b16 %v127
  %v393 = vunpack.c.h.b16 %v127
  %v394 = vunpack.c.l.b16 %v128
  %v395 = vunpack.c.h.b16 %v128
  %v396 = vunpack.c.l.b16 %v129
  %v397 = vunpack.c.h.b16 %v129
  %v398 = vunpack.c.l.b16 %v130
  %v399 = vunpack.c.h.b16 %v130
  %v400 = vunpack.c.l.b16 %v131
  %v401 = vunpack.c.h.b16 %v131
  %v402 = vunpack.c.l.b16 %v132
  %v403 = vunpack.c.l.b16 %v133
  %v404 = vunpack.c.h.b16 %v133
  %v405 = vunpack.c.l.b16 %v134
  %v406 = vunpack.c.h.b16 %v134
  %v407 = vunpack.c.l.b16 %v135
  %v408 = vunpack.c.h.b16 %v135
  %v409 = vunpack.c.l.b16 %v136
  %v410 = vunpack.c.h.b16 %v136
  %v411 = vunpack.c.l.b16 %v137
  %v412 = vunpack.c.h.b16 %v137
  %v413 = vunpack.c.l.b16 %v138
  %v414 = vunpack.c.h.b16 %v138
  %v415 = vunpack.c.l.b16 %v139
  %v416 = vunpack.c.l.b16 %v140
  %v417 = vunpack.c.h.b16 %v140
  %v418 = vunpack.c.l.b16 %v141
  %v419 = vunpack.c.h.b16 %v141
  %v420 = vunpack.c.l.b16 %v142
  %v421 = vunpack.c.h.b16 %v142
  %v422 = vunpack.c.l.b16 %v143
  %v423 = vunpack.c.h.b16 %v143
  %v424 = vunpack.c.l.b16 %v144
  %v425 = vunpack.c.h.b16 %v144
  %v426 = vunpack.c.l.b16 %v145
  %v427 = vunpack.c.h.b16 %v145
  %v428 = vunpack.c.l.b16 %v146
  %v429 = vunpack.c.l.b16 %v147
  %v430 = vunpack.c.h.b16 %v147
  %v431 = vunpack.c.l.b16 %v148
  %v432 = vunpack.c.h.b16 %v148
  %v433 = vunpack.c.l.b16 %v149
  %v434 = vunpack.c.h.b16 %v149
  %v435 = vunpack.c.l.b16 %v150
  %v436 = vunpack.c.h.b16 %v150
  %v437 = vunpack.c.l.b16 %v151
  %v438 = vunpack.c.h.b16 %v151
  %v439 = vunpack.c.l.b16 %v152
  %v440 = vunpack.c.h.b16 %v152
  %v441 = vunpack.c.l.b16 %v153
  %v442 = vunpack.c.l.b16 %v154
  %v443 = vunpack.c.h.b16 %v154
  %v444 = vunpack.c.l.b16 %v155
  %v445 = vunpack.c.h.b16 %v155
  %v446 = vunpack.c.l.b16 %v156
  %v447 = vunpack.c.h.b16 %v156
  %v448 = vunpack.c.l.b16 %v157
  %v449 = vunpack.c.h.b16 %v157
  %v450 = vunpack.c.l.b16 %v158
  %v451 = vunpack.c.h.b16 %v158
  %v452 = vunpack.c.l.b16 %v159
  %v453 = vunpack.c.h.b16 %v159
  %v454 = vunpack.c.l.b16 %v160
  %v455 = vunpack.c.l.b16 %v161
  %v456 = vunpack.c.h.b16 %v161
  %v457 = vunpack.c.l.b16 %v162
  %v458 = vunpack.c.h.b16 %v162
  %v459 = vunpack.c.l.b16 %v163
  %v460 = vunpack.c.h.b16 %v163
  %v461 = vunpack.c.l.b16 %v164
  %v462 = vunpack.c.h.b16 %v164
  %v463 = vunpack.c.l.b16 %v165
  %v464 = vunpack.c.h.b16 %v165
  %v465 = vunpack.c.l.b16 %v166
  %v466 = vunpack.c.h.b16 %v166
  %v467 = vunpack.c.l.b16 %v167
  %v468 = vunpack.c.l.b16 %v168
  %v469 = vunpack.c.h.b16 %v168
  %v470 = vunpack.c.l.b16 %v169
  %v471 = vunpack.c.h.b16 %v169
  %v472 = vunpack.c.l.b16 %v170
  %v473 = vunpack.c.h.b16 %v170
  %v474 = vunpack.c.l.b16 %v171
  %v475 = vunpack.c.h.b16 %v171
  %v476 = vunpack.c.l.b16 %v172
  %v477 = vunpack.c.h.b16 %v172
  %v478 = vunpack.c.l.b16 %v173
  %v479 = vunpack.c.h.b16 %v173
  %v480 = vunpack.c.l.b16 %v174
  %v481 = vunpack.c.l.b16 %v175
  %v482 = vunpack.c.h.b16 %v175
  %v483 = vunpack.c.l.b16 %v176
  %v484 = vunpack.c.h.b16 %v176
  %v485 = vunpack.c.l.b16 %v177
  %v486 = vunpack.c.h.b16 %v177
  %v487 = vunpack.c.l.b16 %v178
  %v488 = vunpack.c.h.b16 %v178
  %v489 = vunpack.c.l.b16 %v179
  %v490 = vunpack.c.h.b16 %v179
  %v491 = vunpack.c.l.b16 %v180
  %v492 = vunpack.c.h.b16 %v180
  %v493 = vunpack.c.l.b16 %v181
  %v494 = vunpack.c.l.b16 %v182
  %v495 = vunpack.c.h.b16 %v182
  %v496 = vunpack.c.l.b16 %v183
  %v497 = vunpack.c.h.b16 %v183
  %v498 = vunpack.c.l.b16 %v184
  %v499 = vunpack.c.h.b16 %v184
  %v500 = vunpack.c.l.b16 %v185
  %v501 = vunpack.c.h.b16 %v185
  %v502 = vunpack.c.l.b16 %v186
  %v503 = vunpack.c.h.b16 %v186
  %v504 = vunpack.c.l.b16 %v187
  %v505 = vunpack.c.h.b16 %v187
  %v506 = vunpack.c.l.b16 %v188
  %v507 = vunpack.c.l.b16 %v189
  %v508 = vunpack.c.h.b16 %v189
  %v509 = vunpack.c.l.b16 %v190
  %v510 = vunpack.c.h.b16 %v190
  %v511 = vunpack.c.l.b16 %v191
  %v512 = vunpack.c.h.b16 %v191
  %v513 = vunpack.c.l.b16 %v192
  %v514 = vunpack.c.h.b16 %v192
  %v515 = vunpack.c.l.b16 %v193
  %v516 = vunpack.c.h.b16 %v193
  %v517 = vunpack.c.l.b16 %v194
  %v518 = vunpack.c.h.b16 %v194
  %v519 = vunpack.c.l.b16 %v195
  %v520 = vpack.c.b16 %v325, %v312
  %v521 = vpack.c.b16 %v326, %v313
  %v522 = vpack.c.b16 %v327, %v314
  %v523 = vpack.c.b16 %v328, %v315
  %v524 = vpack.c.b16 %v329, %v316
  %v525 = vpack.c.b16 %v330, %v317
  %v526 = vpack.c.b16 %v331, %v318
  %v527 = vpack.c.b16 %v332, %v319
  %v528 = vpack.c.b16 %v333, %v320
  %v529 = vpack.c.b16 %v334, %v321
  %v530 = vpack.c.b16 %v335, %v322
  %v531 = vpack.c.b16 %v336, %v323
  %v532 = vpack.c.b16 %v337, %v324
  %v533 = vpack.c.b16 %v351, %v338
  %v534 = vpack.c.b16 %v352, %v339
  %v535 = vpack.c.b16 %v353, %v340
  %v536 = vpack.c.b16 %v354, %v341
  %v537 = vpack.c.b16 %v355, %v342
  %v538 = vpack.c.b16 %v356, %v343
  %v539 = vpack.c.b16 %v357, %v344
  %v540 = vpack.c.b16 %v358, %v345
  %v541 = vpack.c.b16 %v359, %v346
  %v542 = vpack.c.b16 %v360, %v347
  %v543 = vpack.c.b16 %v361, %v348
  %v544 = vpack.c.b16 %v362, %v349
  %v545 = vpack.c.b16 %v363, %v350
  %v546 = vpack.c.b16 %v377, %v364
  %v547 = vpack.c.b16 %v378, %v365
  %v548 = vpack.c.b16 %v379, %v366
  %v549 = vpack.c.b16 %v380, %v367
  %v550 = vpack.c.b16 %v381, %v368
  %v551 = vpack.c.b16 %v382, %v369
  %v552 = vpack.c.b16 %v383, %v370
  %v553 = vpack.c.b16 %v384, %v371
  %v554 = vpack.c.b16 %v385, %v372
  %v555 = vpack.c.b16 %v386, %v373
  %v556 = vpack.c.b16 %v387, %v374
  %v557 = vpack.c.b16 %v388, %v375
  %v558 = vpack.c.b16 %v389, %v376
  %v559 = vpack.c.b16 %v403, %v390
  %v560 = vpack.c.b16 %v404, %v391
  %v561 = vpack.c.b16 %v405, %v392
  %v562 = vpack.c.b16 %v406, %v393
  %v563 = vpack.c.b16 %v407, %v394
  %v564 = vpack.c.b16 %v408, %v395
  %v565 = vpack.c.b16 %v409, %v396
  %v566 = vpack.c.b16 %v410, %v397
  %v567 = vpack.c.b16 %v411, %v398
  %v568 = vpack.c.b16 %v412, %v399
  %v569 = vpack.c.b16 %v413, %v400
  %v570 = vpack.c.b16 %v414, %v401
  %v571 = vpack.c.b16 %v415, %v402
  %v572 = vpack.c.b16 %v429, %v416
  %v573 = vpack.c.b16 %v430, %v417
  %v574 = vpack.c.b16 %v431, %v418
  %v575 = vpack.c.b16 %v432, %v419
  %v576 = vpack.c.b16 %v433, %v420
  %v577 = vpack.c.b16 %v434, %v421
  %v578 = vpack.c.b16 %v435, %v422
  %v579 = vpack.c.b16 %v436, %v423
  %v580 = vpack.c.b16 %v437, %v424
  %v581 = vpack.c.b16 %v438, %v425
  %v582 = vpack.c.b16 %v439, %v426
  %v583 = vpack.c.b16 %v440, %v427
  %v584 = vpack.c.b16 %v441, %v428
  %v585 = vpack.c.b16 %v455, %v442
  %v586 = vpack.c.b16 %v456, %v443
  %v587 = vpack.c.b16 %v457, %v444
  %v588 = vpack.c.b16 %v458, %v445
  %v589 = vpack.c.b16 %v459, %v446
  %v590 = vpack.c.b16 %v460, %v447
  %v591 = vpack.c.b16 %v461, %v448
  %v592 = vpack.c.b16 %v462, %v449
  %v593 = vpack.c.b16 %v463, %v450
  %v594 = vpack.c.b16 %v464, %v451
  %v595 = vpack.c.b16 %v465, %v452
  %v596 = vpack.c.b16 %v466, %v453
  %v597 = vpack.c.b16 %v467, %v454
  %v598 = vpack.c.b16 %v481, %v468
  %v599 = vpack.c.b16 %v482, %v469
  %v600 = vpack.c.b16 %v483, %v470
  %v601 = vpack.c.b16 %v484, %v471
  %v602 = vpack.c.b16 %v485, %v472
  %v603 = vpack.c.b16 %v486, %v473
  %v604 = vpack.c.b16 %v487, %v474
  %v605 = vpack.c.b16 %v488, %v475
  %v606 = vpack.c.b16 %v489, %v476
  %v607 = vpack.c.b16 %v490, %v477
  %v608 = vpack.c.b16 %v491, %v478
  %v609 = vpack.c.b16 %v492, %v479
  %v610 = vpack.c.b16 %v493, %v480
  %v611 = vpack.c.b16 %v507, %v494
  %v612 = vpack.c.b16 %v508, %v495
  %v613 = vpack.c.b16 %v509, %v496
  %v614 = vpack.c.b16 %v510, %v497
  %v615 = vpack.c.b16 %v511, %v498
  %v616 = vpack.c.b16 %v512, %v499
  %v617 = vpack.c.b16 %v513, %v500
  %v618 = vpack.c.b16 %v514, %v501
  %v619 = vpack.c.b16 %v515, %v502
  %v620 = vpack.c.b16 %v516, %v503
  %v621 = vpack.c.b16 %v517, %v504
  %v622 = vpack.c.b16 %v518, %v505
  %v623 = vpack.c.b16 %v519, %v506
  %728 = vmatprep.subr.bf16.mxu0 %v521
  %729 = vmatpush1.bf16.msra.mxu0 %v520
  %730 = vmatprep.subr.bf16.mxu0 %v534
  %731 = vmatpush1.bf16.msra.mxu0 %v533
  %732 = vmatprep.subr.bf16.mxu0 %v547
  %733 = vmatpush1.bf16.msra.mxu0 %v546
  %734 = vmatprep.subr.bf16.mxu0 %v560
  %735 = vmatpush1.bf16.msra.mxu0 %v559
  %736 = vmatprep.subr.bf16.mxu0 %v573
  %737 = vmatpush1.bf16.msra.mxu0 %v572
  %738 = vmatprep.subr.bf16.mxu0 %v586
  %739 = vmatpush1.bf16.msra.mxu0 %v585
  %740 = vmatprep.subr.bf16.mxu0 %v599
  %741 = vmatpush1.bf16.msra.mxu0 %v598
  %742 = vmatprep.subr.bf16.mxu0 %v612
  %743 = vmatpush1.bf16.msra.mxu0 %v611
  %744 = vmatprep.subr.bf16.mxu0 0
  %745 = vmatpush1.bf16.msra.mxu0 0
  %746 = vmatprep.subr.bf16.mxu0 0
  %747 = vmatpush1.bf16.msra.mxu0 0
  %748 = vmatprep.subr.bf16.mxu0 0
  %749 = vmatpush1.bf16.msra.mxu0 0
  %750 = vmatprep.subr.bf16.mxu0 0
  %751 = vmatpush1.bf16.msra.mxu0 0
  %752 = vmatprep.subr.bf16.mxu0 0
  %753 = vmatpush1.bf16.msra.mxu0 0
  %754 = vmatprep.subr.bf16.mxu0 0
  %755 = vmatpush1.bf16.msra.mxu0 0
  %756 = vmatprep.subr.bf16.mxu0 0
  %757 = vmatpush1.bf16.msra.mxu0 0
  %758 = vmatprep.subr.bf16.mxu0 0
  %759 = vmatpush1.bf16.msra.mxu0 0
  %760 = vmatprep.mubr.bf16.mxu0 0
  %761 = vmatmul.mubr.bf16.gmra.mrb[0].mxu0 %v199
  %v762 = vpop.f32.mrb[0].mxu0
  %v763 = vadd.f32 0.0, %v762
  %v764 = vpop.f32.mrb[0].mxu0
  %v765 = vadd.f32 0.0, %v764
  %v766 = vpop.f32.mrb[0].mxu0
  %v767 = vadd.f32 0.0, %v766
  %v768 = vpop.f32.mrb[0].mxu0
  %v769 = vadd.f32 0.0, %v768
  %770 = vdwg.mxu0
  %771 = vmatprep.subr.bf16.mxu0 %v523
  %772 = vmatpush1.bf16.msra.mxu0 %v522
  %773 = vmatprep.subr.bf16.mxu0 %v536
  %774 = vmatpush1.bf16.msra.mxu0 %v535
  %775 = vmatprep.subr.bf16.mxu0 %v549
  %776 = vmatpush1.bf16.msra.mxu0 %v548
  %777 = vmatprep.subr.bf16.mxu0 %v562
  %778 = vmatpush1.bf16.msra.mxu0 %v561
  %779 = vmatprep.subr.bf16.mxu0 %v575
  %780 = vmatpush1.bf16.msra.mxu0 %v574
  %781 = vmatprep.subr.bf16.mxu0 %v588
  %782 = vmatpush1.bf16.msra.mxu0 %v587
  %783 = vmatprep.subr.bf16.mxu0 %v601
  %784 = vmatpush1.bf16.msra.mxu0 %v600
  %785 = vmatprep.subr.bf16.mxu0 %v614
  %786 = vmatpush1.bf16.msra.mxu0 %v613
  %787 = vmatprep.subr.bf16.mxu0 0
  %788 = vmatpush1.bf16.msra.mxu0 0
  %789 = vmatprep.subr.bf16.mxu0 0
  %790 = vmatpush1.bf16.msra.mxu0 0
  %791 = vmatprep.subr.bf16.mxu0 0
  %792 = vmatpush1.bf16.msra.mxu0 0
  %793 = vmatprep.subr.bf16.mxu0 0
  %794 = vmatpush1.bf16.msra.mxu0 0
  %795 = vmatprep.subr.bf16.mxu0 0
  %796 = vmatpush1.bf16.msra.mxu0 0
  %797 = vmatprep.subr.bf16.mxu0 0
  %798 = vmatpush1.bf16.msra.mxu0 0
  %799 = vmatprep.subr.bf16.mxu0 0
  %800 = vmatpush1.bf16.msra.mxu0 0
  %801 = vmatprep.subr.bf16.mxu0 0
  %802 = vmatpush1.bf16.msra.mxu0 0
  %803 = vmatprep.mubr.bf16.mxu0 0
  %804 = vmatmul.mubr.bf16.gmra.mrb[0].mxu0 %v199
  %v805 = vpop.f32.mrb[0].mxu0
  %v806 = vadd.f32 0.0, %v805
  %v807 = vpop.f32.mrb[0].mxu0
  %v808 = vadd.f32 0.0, %v807
  %v809 = vpop.f32.mrb[0].mxu0
  %v810 = vadd.f32 0.0, %v809
  %v811 = vpop.f32.mrb[0].mxu0
  %v812 = vadd.f32 0.0, %v811
  %813 = vdwg.mxu0
  %814 = vmatprep.subr.bf16.mxu0 %v525
  %815 = vmatpush1.bf16.msra.mxu0 %v524
  %816 = vmatprep.subr.bf16.mxu0 %v538
  %817 = vmatpush1.bf16.msra.mxu0 %v537
  %818 = vmatprep.subr.bf16.mxu0 %v551
  %819 = vmatpush1.bf16.msra.mxu0 %v550
  %820 = vmatprep.subr.bf16.mxu0 %v564
  %821 = vmatpush1.bf16.msra.mxu0 %v563
  %822 = vmatprep.subr.bf16.mxu0 %v577
  %823 = vmatpush1.bf16.msra.mxu0 %v576
  %824 = vmatprep.subr.bf16.mxu0 %v590
  %825 = vmatpush1.bf16.msra.mxu0 %v589
  %826 = vmatprep.subr.bf16.mxu0 %v603
  %827 = vmatpush1.bf16.msra.mxu0 %v602
  %828 = vmatprep.subr.bf16.mxu0 %v616
  %829 = vmatpush1.bf16.msra.mxu0 %v615
  %830 = vmatprep.subr.bf16.mxu0 0
  %831 = vmatpush1.bf16.msra.mxu0 0
  %832 = vmatprep.subr.bf16.mxu0 0
  %833 = vmatpush1.bf16.msra.mxu0 0
  %834 = vmatprep.subr.bf16.mxu0 0
  %835 = vmatpush1.bf16.msra.mxu0 0
  %836 = vmatprep.subr.bf16.mxu0 0
  %837 = vmatpush1.bf16.msra.mxu0 0
  %838 = vmatprep.subr.bf16.mxu0 0
  %839 = vmatpush1.bf16.msra.mxu0 0
  %840 = vmatprep.subr.bf16.mxu0 0
  %841 = vmatpush1.bf16.msra.mxu0 0
  %842 = vmatprep.subr.bf16.mxu0 0
  %843 = vmatpush1.bf16.msra.mxu0 0
  %844 = vmatprep.subr.bf16.mxu0 0
  %845 = vmatpush1.bf16.msra.mxu0 0
  %846 = vmatprep.mubr.bf16.mxu0 0
  %847 = vmatmul.mubr.bf16.gmra.mrb[0].mxu0 %v199
  %v848 = vpop.f32.mrb[0].mxu0
  %v849 = vadd.f32 0.0, %v848
  %v850 = vpop.f32.mrb[0].mxu0
  %v851 = vadd.f32 0.0, %v850
  %v852 = vpop.f32.mrb[0].mxu0
  %v853 = vadd.f32 0.0, %v852
  %v854 = vpop.f32.mrb[0].mxu0
  %v855 = vadd.f32 0.0, %v854
  %856 = vdwg.mxu0
  %857 = vmatprep.subr.bf16.mxu0 %v527
  %858 = vmatpush1.bf16.msra.mxu0 %v526
  %859 = vmatprep.subr.bf16.mxu0 %v540
  %860 = vmatpush1.bf16.msra.mxu0 %v539
  %861 = vmatprep.subr.bf16.mxu0 %v553
  %862 = vmatpush1.bf16.msra.mxu0 %v552
  %863 = vmatprep.subr.bf16.mxu0 %v566
  %864 = vmatpush1.bf16.msra.mxu0 %v565
  %865 = vmatprep.subr.bf16.mxu0 %v579
  %866 = vmatpush1.bf16.msra.mxu0 %v578
  %867 = vmatprep.subr.bf16.mxu0 %v592
  %868 = vmatpush1.bf16.msra.mxu0 %v591
  %869 = vmatprep.subr.bf16.mxu0 %v605
  %870 = vmatpush1.bf16.msra.mxu0 %v604
  %871 = vmatprep.subr.bf16.mxu0 %v618
  %872 = vmatpush1.bf16.msra.mxu0 %v617
  %873 = vmatprep.subr.bf16.mxu0 0
  %874 = vmatpush1.bf16.msra.mxu0 0
  %875 = vmatprep.subr.bf16.mxu0 0
  %876 = vmatpush1.bf16.msra.mxu0 0
  %877 = vmatprep.subr.bf16.mxu0 0
  %878 = vmatpush1.bf16.msra.mxu0 0
  %879 = vmatprep.subr.bf16.mxu0 0
  %880 = vmatpush1.bf16.msra.mxu0 0
  %881 = vmatprep.subr.bf16.mxu0 0
  %882 = vmatpush1.bf16.msra.mxu0 0
  %883 = vmatprep.subr.bf16.mxu0 0
  %884 = vmatpush1.bf16.msra.mxu0 0
  %885 = vmatprep.subr.bf16.mxu0 0
  %886 = vmatpush1.bf16.msra.mxu0 0
  %887 = vmatprep.subr.bf16.mxu0 0
  %888 = vmatpush1.bf16.msra.mxu0 0
  %889 = vmatprep.mubr.bf16.mxu0 0
  %890 = vmatmul.mubr.bf16.gmra.mrb[0].mxu0 %v199
  %v891 = vpop.f32.mrb[0].mxu0
  %v892 = vadd.f32 0.0, %v891
  %v893 = vpop.f32.mrb[0].mxu0
  %v894 = vadd.f32 0.0, %v893
  %v895 = vpop.f32.mrb[0].mxu0
  %v896 = vadd.f32 0.0, %v895
  %v897 = vpop.f32.mrb[0].mxu0
  %v898 = vadd.f32 0.0, %v897
  %899 = vdwg.mxu0
  %900 = vmatprep.subr.bf16.mxu0 %v529
  %901 = vmatpush1.bf16.msra.mxu0 %v528
  %902 = vmatprep.subr.bf16.mxu0 %v542
  %903 = vmatpush1.bf16.msra.mxu0 %v541
  %904 = vmatprep.subr.bf16.mxu0 %v555
  %905 = vmatpush1.bf16.msra.mxu0 %v554
  %906 = vmatprep.subr.bf16.mxu0 %v568
  %907 = vmatpush1.bf16.msra.mxu0 %v567
  %908 = vmatprep.subr.bf16.mxu0 %v581
  %909 = vmatpush1.bf16.msra.mxu0 %v580
  %910 = vmatprep.subr.bf16.mxu0 %v594
  %911 = vmatpush1.bf16.msra.mxu0 %v593
  %912 = vmatprep.subr.bf16.mxu0 %v607
  %913 = vmatpush1.bf16.msra.mxu0 %v606
  %914 = vmatprep.subr.bf16.mxu0 %v620
  %915 = vmatpush1.bf16.msra.mxu0 %v619
  %916 = vmatprep.subr.bf16.mxu0 0
  %917 = vmatpush1.bf16.msra.mxu0 0
  %918 = vmatprep.subr.bf16.mxu0 0
  %919 = vmatpush1.bf16.msra.mxu0 0
  %920 = vmatprep.subr.bf16.mxu0 0
  %921 = vmatpush1.bf16.msra.mxu0 0
  %922 = vmatprep.subr.bf16.mxu0 0
  %923 = vmatpush1.bf16.msra.mxu0 0
  %924 = vmatprep.subr.bf16.mxu0 0
  %925 = vmatpush1.bf16.msra.mxu0 0
  %926 = vmatprep.subr.bf16.mxu0 0
  %927 = vmatpush1.bf16.msra.mxu0 0
  %928 = vmatprep.subr.bf16.mxu0 0
  %929 = vmatpush1.bf16.msra.mxu0 0
  %930 = vmatprep.subr.bf16.mxu0 0
  %931 = vmatpush1.bf16.msra.mxu0 0
  %932 = vmatprep.mubr.bf16.mxu0 0
  %933 = vmatmul.mubr.bf16.gmra.mrb[0].mxu0 %v199
  %v934 = vpop.f32.mrb[0].mxu0
  %v935 = vadd.f32 0.0, %v934
  %v936 = vpop.f32.mrb[0].mxu0
  %v937 = vadd.f32 0.0, %v936
  %v938 = vpop.f32.mrb[0].mxu0
  %v939 = vadd.f32 0.0, %v938
  %v940 = vpop.f32.mrb[0].mxu0
  %v941 = vadd.f32 0.0, %v940
  %942 = vdwg.mxu0
  %943 = vmatprep.subr.bf16.mxu0 %v531
  %944 = vmatpush1.bf16.msra.mxu0 %v530
  %945 = vmatprep.subr.bf16.mxu0 %v544
  %946 = vmatpush1.bf16.msra.mxu0 %v543
  %947 = vmatprep.subr.bf16.mxu0 %v557
  %948 = vmatpush1.bf16.msra.mxu0 %v556
  %949 = vmatprep.subr.bf16.mxu0 %v570
  %950 = vmatpush1.bf16.msra.mxu0 %v569
  %951 = vmatprep.subr.bf16.mxu0 %v583
  %952 = vmatpush1.bf16.msra.mxu0 %v582
  %953 = vmatprep.subr.bf16.mxu0 %v596
  %954 = vmatpush1.bf16.msra.mxu0 %v595
  %955 = vmatprep.subr.bf16.mxu0 %v609
  %956 = vmatpush1.bf16.msra.mxu0 %v608
  %957 = vmatprep.subr.bf16.mxu0 %v622
  %958 = vmatpush1.bf16.msra.mxu0 %v621
  %959 = vmatprep.subr.bf16.mxu0 0
  %960 = vmatpush1.bf16.msra.mxu0 0
  %961 = vmatprep.subr.bf16.mxu0 0
  %962 = vmatpush1.bf16.msra.mxu0 0
  %963 = vmatprep.subr.bf16.mxu0 0
  %964 = vmatpush1.bf16.msra.mxu0 0
  %965 = vmatprep.subr.bf16.mxu0 0
  %966 = vmatpush1.bf16.msra.mxu0 0
  %967 = vmatprep.subr.bf16.mxu0 0
  %968 = vmatpush1.bf16.msra.mxu0 0
  %969 = vmatprep.subr.bf16.mxu0 0
  %970 = vmatpush1.bf16.msra.mxu0 0
  %971 = vmatprep.subr.bf16.mxu0 0
  %972 = vmatpush1.bf16.msra.mxu0 0
  %973 = vmatprep.subr.bf16.mxu0 0
  %974 = vmatpush1.bf16.msra.mxu0 0
  %975 = vmatprep.mubr.bf16.mxu0 0
  %976 = vmatmul.mubr.bf16.gmra.mrb[0].mxu0 %v199
  %v977 = vpop.f32.mrb[0].mxu0
  %v978 = vadd.f32 0.0, %v977
  %v979 = vpop.f32.mrb[0].mxu0
  %v980 = vadd.f32 0.0, %v979
  %v981 = vpop.f32.mrb[0].mxu0
  %v982 = vadd.f32 0.0, %v981
  %v983 = vpop.f32.mrb[0].mxu0
  %v984 = vadd.f32 0.0, %v983
  %985 = vdwg.mxu0
  %986 = vmatprep.subr.bf16.mxu0 0
  %987 = vmatpush1.bf16.msra.mxu0 %v532
  %988 = vmatprep.subr.bf16.mxu0 0
  %989 = vmatpush1.bf16.msra.mxu0 %v545
  %990 = vmatprep.subr.bf16.mxu0 0
  %991 = vmatpush1.bf16.msra.mxu0 %v558
  %992 = vmatprep.subr.bf16.mxu0 0
  %993 = vmatpush1.bf16.msra.mxu0 %v571
  %994 = vmatprep.subr.bf16.mxu0 0
  %995 = vmatpush1.bf16.msra.mxu0 %v584
  %996 = vmatprep.subr.bf16.mxu0 0
  %997 = vmatpush1.bf16.msra.mxu0 %v597
  %998 = vmatprep.subr.bf16.mxu0 0
  %999 = vmatpush1.bf16.msra.mxu0 %v610
  %1000 = vmatprep.subr.bf16.mxu0 0
  %1001 = vmatpush1.bf16.msra.mxu0 %v623
  %1002 = vmatprep.subr.bf16.mxu0 0
  %1003 = vmatpush1.bf16.msra.mxu0 0
  %1004 = vmatprep.subr.bf16.mxu0 0
  %1005 = vmatpush1.bf16.msra.mxu0 0
  %1006 = vmatprep.subr.bf16.mxu0 0
  %1007 = vmatpush1.bf16.msra.mxu0 0
  %1008 = vmatprep.subr.bf16.mxu0 0
  %1009 = vmatpush1.bf16.msra.mxu0 0
  %1010 = vmatprep.subr.bf16.mxu0 0
  %1011 = vmatpush1.bf16.msra.mxu0 0
  %1012 = vmatprep.subr.bf16.mxu0 0
  %1013 = vmatpush1.bf16.msra.mxu0 0
  %1014 = vmatprep.subr.bf16.mxu0 0
  %1015 = vmatpush1.bf16.msra.mxu0 0
  %1016 = vmatprep.subr.bf16.mxu0 0
  %1017 = vmatpush1.bf16.msra.mxu0 0
  %1018 = vmatprep.mubr.bf16.mxu0 0
  %1019 = vmatmul.mubr.bf16.gmra.mrb[0].mxu0 %v199
  %v1020 = vpop.f32.mrb[0].mxu0
  %v1021 = vadd.f32 0.0, %v1020
  %v1022 = vpop.f32.mrb[0].mxu0
  %v1023 = vpop.f32.mrb[0].mxu0
  %v1024 = vadd.f32 0.0, %v1023
  %v1025 = vpop.f32.mrb[0].mxu0
  %1026 = vdwg.mxu0
  %1027 = vmatprep.subr.bf16.mxu0 0
  %1028 = vmatpush1.bf16.xpose.msra.mxu0 %v199
  %1029 = vmatprep.subr.bf16.mxu0 0
  %1030 = vmatpush1.bf16.xpose.msra.mxu0 0
  %1031 = vmatprep.subr.bf16.mxu0 0
  %1032 = vmatpush1.bf16.xpose.msra.mxu0 0
  %1033 = vmatprep.subr.bf16.mxu0 0
  %1034 = vmatpush1.bf16.xpose.msra.mxu0 0
  %1035 = vmatprep.subr.bf16.mxu0 0
  %1036 = vmatpush1.bf16.xpose.msra.mxu0 0
  %1037 = vmatprep.subr.bf16.mxu0 0
  %1038 = vmatpush1.bf16.xpose.msra.mxu0 0
  %1039 = vmatprep.subr.bf16.mxu0 0
  %1040 = vmatpush1.bf16.xpose.msra.mxu0 0
  %1041 = vmatprep.subr.bf16.mxu0 0
  %1042 = vmatpush1.bf16.xpose.msra.mxu0 0
  %1043 = vmatprep.subr.bf16.mxu0 0
  %1044 = vmatpush1.bf16.xpose.msra.mxu0 0
  %1045 = vmatprep.subr.bf16.mxu0 0
  %1046 = vmatpush1.bf16.xpose.msra.mxu0 0
  %1047 = vmatprep.subr.bf16.mxu0 0
  %1048 = vmatpush1.bf16.xpose.msra.mxu0 0
  %1049 = vmatprep.subr.bf16.mxu0 0
  %1050 = vmatpush1.bf16.xpose.msra.mxu0 0
  %1051 = vmatprep.subr.bf16.mxu0 0
  %1052 = vmatpush1.bf16.xpose.msra.mxu0 0
  %1053 = vmatprep.subr.bf16.mxu0 0
  %1054 = vmatpush1.bf16.xpose.msra.mxu0 0
  %1055 = vmatprep.subr.bf16.mxu0 0
  %1056 = vmatpush1.bf16.xpose.msra.mxu0 0
  %1057 = vmatprep.subr.bf16.mxu0 0
  %1058 = vmatpush1.bf16.xpose.msra.mxu0 0
  %1059 = vmatprep.mubr.bf16.mxu0 0
  %1060 = vmatmul.mubr.bf16.gmra.mrb[0].mxu0 %v196
  %v1061 = vpop.f32.mrb[0].mxu0
  %v1062 = vadd.f32 0.0, %v1061
  %v1063 = vpop.f32.mrb[0].mxu0
  %v1064 = vpop.f32.mrb[0].mxu0
  %v1065 = vpop.f32.mrb[0].mxu0
  %1066 = vdwg.mxu0
  %1068 = vset.pattern.permute.xlu0 0
  %1069 = vperm.xlu0 %1068, %v1021
  %v1070 = vpop.permute.xlu0 %1069
  %1073 = vset.pattern.permute.xlu0 0
  %1074 = vperm.xlu0 %1073, %v1024
  %v1075 = vpop.permute.xlu0 %1074
  %v1077 = vlaneseq
  %v1078 = vshrl.u32 %v1077, 7
  %v1079 = vsub.s32 0, %v1078
  %v1080 = vrot.slane %v1062, %v1079
  %v1081 = vadd.f32 %v1070, %v1080
  %v1082 = vadd.f32 %v1075, %v1080
  %vm1083 = vcmp.gt.f32.partialorder %v1081, 0.0
  %vm1084 = vcmp.gt.f32.partialorder %v1082, 0.0
  %v1085 = vmul.f32 %v1081, 0.2
  %v1086 = vmul.f32 %v1082, 0.2
  %v1087 = vsel %vm1083, %v1081, %v1085
  %v1088 = vsel %vm1084, %v1082, %v1086
  %v1089 = vsel %vm80, %v1087, -1e+30
  %v1090 = vsel %vm81, %v1088, -1e+30
  %vm1091 = vcmask 130048
  %v1092 = vsel %vm1091, %v1089, -inf
  %1093 = vmax.xlane.f32.xlu0 %v1092
  %v1094 = vpop.xlane.xlu0 %1093
  %v1095 = vsel %vm1091, %v1090, -inf
  %1096 = vmax.xlane.f32.xlu0 %v1095
  %v1097 = vpop.xlane.xlu0 %1096
  %v1098 = vsub.f32 %v1089, %v1094
  %v1099 = vsub.f32 %v1090, %v1097
  %v1100 = vmul.f32 %v1098, 1.442695
  %v1101 = vpow.pop %v1100
  %v1102 = vmul.f32 %v1099, 1.442695
  %v1103 = vpow.pop %v1102
  %v1104 = vsel %vm1091, %v1101, 0.0
  %1105 = vadd.xlane.f32.xlu0 %v1104
  %v1106 = vpop.xlane.xlu0 %1105
  %v1107 = vsel %vm1091, %v1103, 0.0
  %1108 = vadd.xlane.f32.xlu0 %v1107
  %v1109 = vpop.xlane.xlu0 %1108
  %v1110 = vrcp.pop %v1106
  %v1111 = vrcp.pop %v1109
  %v1112 = vmul.f32 %v1101, %v1110
  %v1113 = vmul.f32 %v1103, %v1111
  %v1114 = vpack.c.bf16 %v1113, %v1112
  %v1115 = vpack.c.bf16 %v767, %v763
  %v1116 = vpack.c.bf16 %v769, %v765
  %v1117 = vpack.c.bf16 %v810, %v806
  %v1118 = vpack.c.bf16 %v812, %v808
  %v1120 = vsel %vm1091, %v1114, 0
  %1122 = vmatprep.subr.bf16.mxu0 %v1116
  %1123 = vmatpush1.bf16.msra.mxu0 %v1115
  %1124 = vmatprep.subr.bf16.mxu0 0
  %1125 = vmatpush1.bf16.msra.mxu0 0
  %1126 = vmatprep.subr.bf16.mxu0 0
  %1127 = vmatpush1.bf16.msra.mxu0 0
  %1128 = vmatprep.subr.bf16.mxu0 0
  %1129 = vmatpush1.bf16.msra.mxu0 0
  %1130 = vmatprep.subr.bf16.mxu0 0
  %1131 = vmatpush1.bf16.msra.mxu0 0
  %1132 = vmatprep.subr.bf16.mxu0 0
  %1133 = vmatpush1.bf16.msra.mxu0 0
  %1134 = vmatprep.subr.bf16.mxu0 0
  %1135 = vmatpush1.bf16.msra.mxu0 0
  %1136 = vmatprep.subr.bf16.mxu0 0
  %1137 = vmatpush1.bf16.msra.mxu0 0
  %1138 = vmatprep.subr.bf16.mxu0 0
  %1139 = vmatpush1.bf16.msra.mxu0 0
  %1140 = vmatprep.subr.bf16.mxu0 0
  %1141 = vmatpush1.bf16.msra.mxu0 0
  %1142 = vmatprep.subr.bf16.mxu0 0
  %1143 = vmatpush1.bf16.msra.mxu0 0
  %1144 = vmatprep.subr.bf16.mxu0 0
  %1145 = vmatpush1.bf16.msra.mxu0 0
  %1146 = vmatprep.subr.bf16.mxu0 0
  %1147 = vmatpush1.bf16.msra.mxu0 0
  %1148 = vmatprep.subr.bf16.mxu0 0
  %1149 = vmatpush1.bf16.msra.mxu0 0
  %1150 = vmatprep.subr.bf16.mxu0 0
  %1151 = vmatpush1.bf16.msra.mxu0 0
  %1152 = vmatprep.subr.bf16.mxu0 0
  %1153 = vmatpush1.bf16.msra.mxu0 0
  %1154 = vmatprep.mubr.bf16.mxu0 0
  %1155 = vmatmul.mubr.bf16.gmra.mrb[0].mxu0 %v1120
  %v1156 = vpop.f32.mrb[0].mxu0
  %v1157 = vadd.f32 0.0, %v1156
  %v1158 = vpop.f32.mrb[0].mxu0
  %v1159 = vadd.f32 0.0, %v1158
  %v1160 = vpop.f32.mrb[0].mxu0
  %v1161 = vadd.f32 0.0, %v1160
  %v1162 = vpop.f32.mrb[0].mxu0
  %v1163 = vadd.f32 0.0, %v1162
  %1164 = vdwg.mxu0
  %1165 = vmatprep.subr.bf16.mxu0 %v1118
  %1166 = vmatpush1.bf16.msra.mxu0 %v1117
  %1167 = vmatprep.subr.bf16.mxu0 0
  %1168 = vmatpush1.bf16.msra.mxu0 0
  %1169 = vmatprep.subr.bf16.mxu0 0
  %1170 = vmatpush1.bf16.msra.mxu0 0
  %1171 = vmatprep.subr.bf16.mxu0 0
  %1172 = vmatpush1.bf16.msra.mxu0 0
  %1173 = vmatprep.subr.bf16.mxu0 0
  %1174 = vmatpush1.bf16.msra.mxu0 0
  %1175 = vmatprep.subr.bf16.mxu0 0
  %1176 = vmatpush1.bf16.msra.mxu0 0
  %1177 = vmatprep.subr.bf16.mxu0 0
  %1178 = vmatpush1.bf16.msra.mxu0 0
  %1179 = vmatprep.subr.bf16.mxu0 0
  %1180 = vmatpush1.bf16.msra.mxu0 0
  %1181 = vmatprep.subr.bf16.mxu0 0
  %1182 = vmatpush1.bf16.msra.mxu0 0
  %1183 = vmatprep.subr.bf16.mxu0 0
  %1184 = vmatpush1.bf16.msra.mxu0 0
  %1185 = vmatprep.subr.bf16.mxu0 0
  %1186 = vmatpush1.bf16.msra.mxu0 0
  %1187 = vmatprep.subr.bf16.mxu0 0
  %1188 = vmatpush1.bf16.msra.mxu0 0
  %1189 = vmatprep.subr.bf16.mxu0 0
  %1190 = vmatpush1.bf16.msra.mxu0 0
  %1191 = vmatprep.subr.bf16.mxu0 0
  %1192 = vmatpush1.bf16.msra.mxu0 0
  %1193 = vmatprep.subr.bf16.mxu0 0
  %1194 = vmatpush1.bf16.msra.mxu0 0
  %1195 = vmatprep.subr.bf16.mxu0 0
  %1196 = vmatpush1.bf16.msra.mxu0 0
  %1197 = vmatprep.mubr.bf16.mxu0 0
  %1198 = vmatmul.mubr.bf16.gmra.mrb[0].mxu0 %v1120
  %v1199 = vpop.f32.mrb[0].mxu0
  %v1200 = vadd.f32 0.0, %v1199
  %v1201 = vpop.f32.mrb[0].mxu0
  %v1202 = vadd.f32 0.0, %v1201
  %v1203 = vpop.f32.mrb[0].mxu0
  %v1204 = vadd.f32 0.0, %v1203
  %v1205 = vpop.f32.mrb[0].mxu0
  %v1206 = vadd.f32 0.0, %v1205
  %1207 = vdwg.mxu0
  %1208 = vset.pattern.permute.xlu0 1
  %1209 = vperm.xlu0 %1208, %v1021
  %v1210 = vpop.permute.xlu0 %1209
  %1212 = vset.pattern.permute.xlu0 1
  %1213 = vperm.xlu0 %1212, %v1024
  %v1214 = vpop.permute.xlu0 %1213
  %v1216 = vlaneseq
  %v1217 = vshrl.u32 %v1216, 7
  %v1218 = vsub.s32 1, %v1217
  %v1219 = vrot.slane %v1062, %v1218
  %v1220 = vadd.f32 %v1210, %v1219
  %v1221 = vadd.f32 %v1214, %v1219
  %vm1222 = vcmp.gt.f32.partialorder %v1220, 0.0
  %vm1223 = vcmp.gt.f32.partialorder %v1221, 0.0
  %v1224 = vmul.f32 %v1220, 0.2
  %v1225 = vmul.f32 %v1221, 0.2
  %v1226 = vsel %vm1222, %v1220, %v1224
  %v1227 = vsel %vm1223, %v1221, %v1225
  %v1228 = vsel %vm80, %v1226, -1e+30
  %v1229 = vsel %vm81, %v1227, -1e+30
  %v1230 = vsel %vm1091, %v1228, -inf
  %1231 = vmax.xlane.f32.xlu0 %v1230
  %v1232 = vpop.xlane.xlu0 %1231
  %v1233 = vsel %vm1091, %v1229, -inf
  %1234 = vmax.xlane.f32.xlu0 %v1233
  %v1235 = vpop.xlane.xlu0 %1234
  %v1236 = vsub.f32 %v1228, %v1232
  %v1237 = vsub.f32 %v1229, %v1235
  %v1238 = vmul.f32 %v1236, 1.442695
  %v1239 = vpow.pop %v1238
  %v1240 = vmul.f32 %v1237, 1.442695
  %v1241 = vpow.pop %v1240
  %v1242 = vsel %vm1091, %v1239, 0.0
  %1243 = vadd.xlane.f32.xlu0 %v1242
  %v1244 = vpop.xlane.xlu0 %1243
  %v1245 = vsel %vm1091, %v1241, 0.0
  %1246 = vadd.xlane.f32.xlu0 %v1245
  %v1247 = vpop.xlane.xlu0 %1246
  %v1248 = vrcp.pop %v1244
  %v1249 = vrcp.pop %v1247
  %v1250 = vmul.f32 %v1239, %v1248
  %v1251 = vmul.f32 %v1241, %v1249
  %v1252 = vpack.c.bf16 %v1251, %v1250
  %v1253 = vpack.c.bf16 %v853, %v849
  %v1254 = vpack.c.bf16 %v855, %v851
  %v1255 = vpack.c.bf16 %v896, %v892
  %v1256 = vpack.c.bf16 %v898, %v894
  %v1258 = vsel %vm1091, %v1252, 0
  %1260 = vmatprep.subr.bf16.mxu0 %v1254
  %1261 = vmatpush1.bf16.msra.mxu0 %v1253
  %1262 = vmatprep.subr.bf16.mxu0 0
  %1263 = vmatpush1.bf16.msra.mxu0 0
  %1264 = vmatprep.subr.bf16.mxu0 0
  %1265 = vmatpush1.bf16.msra.mxu0 0
  %1266 = vmatprep.subr.bf16.mxu0 0
  %1267 = vmatpush1.bf16.msra.mxu0 0
  %1268 = vmatprep.subr.bf16.mxu0 0
  %1269 = vmatpush1.bf16.msra.mxu0 0
  %1270 = vmatprep.subr.bf16.mxu0 0
  %1271 = vmatpush1.bf16.msra.mxu0 0
  %1272 = vmatprep.subr.bf16.mxu0 0
  %1273 = vmatpush1.bf16.msra.mxu0 0
  %1274 = vmatprep.subr.bf16.mxu0 0
  %1275 = vmatpush1.bf16.msra.mxu0 0
  %1276 = vmatprep.subr.bf16.mxu0 0
  %1277 = vmatpush1.bf16.msra.mxu0 0
  %1278 = vmatprep.subr.bf16.mxu0 0
  %1279 = vmatpush1.bf16.msra.mxu0 0
  %1280 = vmatprep.subr.bf16.mxu0 0
  %1281 = vmatpush1.bf16.msra.mxu0 0
  %1282 = vmatprep.subr.bf16.mxu0 0
  %1283 = vmatpush1.bf16.msra.mxu0 0
  %1284 = vmatprep.subr.bf16.mxu0 0
  %1285 = vmatpush1.bf16.msra.mxu0 0
  %1286 = vmatprep.subr.bf16.mxu0 0
  %1287 = vmatpush1.bf16.msra.mxu0 0
  %1288 = vmatprep.subr.bf16.mxu0 0
  %1289 = vmatpush1.bf16.msra.mxu0 0
  %1290 = vmatprep.subr.bf16.mxu0 0
  %1291 = vmatpush1.bf16.msra.mxu0 0
  %1292 = vmatprep.mubr.bf16.mxu0 0
  %1293 = vmatmul.mubr.bf16.gmra.mrb[0].mxu0 %v1258
  %v1294 = vpop.f32.mrb[0].mxu0
  %v1295 = vadd.f32 0.0, %v1294
  %v1296 = vpop.f32.mrb[0].mxu0
  %v1297 = vadd.f32 0.0, %v1296
  %v1298 = vpop.f32.mrb[0].mxu0
  %v1299 = vadd.f32 0.0, %v1298
  %v1300 = vpop.f32.mrb[0].mxu0
  %v1301 = vadd.f32 0.0, %v1300
  %1302 = vdwg.mxu0
  %1303 = vmatprep.subr.bf16.mxu0 %v1256
  %1304 = vmatpush1.bf16.msra.mxu0 %v1255
  %1305 = vmatprep.subr.bf16.mxu0 0
  %1306 = vmatpush1.bf16.msra.mxu0 0
  %1307 = vmatprep.subr.bf16.mxu0 0
  %1308 = vmatpush1.bf16.msra.mxu0 0
  %1309 = vmatprep.subr.bf16.mxu0 0
  %1310 = vmatpush1.bf16.msra.mxu0 0
  %1311 = vmatprep.subr.bf16.mxu0 0
  %1312 = vmatpush1.bf16.msra.mxu0 0
  %1313 = vmatprep.subr.bf16.mxu0 0
  %1314 = vmatpush1.bf16.msra.mxu0 0
  %1315 = vmatprep.subr.bf16.mxu0 0
  %1316 = vmatpush1.bf16.msra.mxu0 0
  %1317 = vmatprep.subr.bf16.mxu0 0
  %1318 = vmatpush1.bf16.msra.mxu0 0
  %1319 = vmatprep.subr.bf16.mxu0 0
  %1320 = vmatpush1.bf16.msra.mxu0 0
  %1321 = vmatprep.subr.bf16.mxu0 0
  %1322 = vmatpush1.bf16.msra.mxu0 0
  %1323 = vmatprep.subr.bf16.mxu0 0
  %1324 = vmatpush1.bf16.msra.mxu0 0
  %1325 = vmatprep.subr.bf16.mxu0 0
  %1326 = vmatpush1.bf16.msra.mxu0 0
  %1327 = vmatprep.subr.bf16.mxu0 0
  %1328 = vmatpush1.bf16.msra.mxu0 0
  %1329 = vmatprep.subr.bf16.mxu0 0
  %1330 = vmatpush1.bf16.msra.mxu0 0
  %1331 = vmatprep.subr.bf16.mxu0 0
  %1332 = vmatpush1.bf16.msra.mxu0 0
  %1333 = vmatprep.subr.bf16.mxu0 0
  %1334 = vmatpush1.bf16.msra.mxu0 0
  %1335 = vmatprep.mubr.bf16.mxu0 0
  %1336 = vmatmul.mubr.bf16.gmra.mrb[0].mxu0 %v1258
  %v1337 = vpop.f32.mrb[0].mxu0
  %v1338 = vadd.f32 0.0, %v1337
  %v1339 = vpop.f32.mrb[0].mxu0
  %v1340 = vadd.f32 0.0, %v1339
  %v1341 = vpop.f32.mrb[0].mxu0
  %v1342 = vadd.f32 0.0, %v1341
  %v1343 = vpop.f32.mrb[0].mxu0
  %v1344 = vadd.f32 0.0, %v1343
  %1345 = vdwg.mxu0
  %1346 = vset.pattern.permute.xlu0 2
  %1347 = vperm.xlu0 %1346, %v1021
  %v1348 = vpop.permute.xlu0 %1347
  %1350 = vset.pattern.permute.xlu0 2
  %1351 = vperm.xlu0 %1350, %v1024
  %v1352 = vpop.permute.xlu0 %1351
  %v1354 = vlaneseq
  %v1355 = vshrl.u32 %v1354, 7
  %v1356 = vsub.s32 2, %v1355
  %v1357 = vrot.slane %v1062, %v1356
  %v1358 = vadd.f32 %v1348, %v1357
  %v1359 = vadd.f32 %v1352, %v1357
  %vm1360 = vcmp.gt.f32.partialorder %v1358, 0.0
  %vm1361 = vcmp.gt.f32.partialorder %v1359, 0.0
  %v1362 = vmul.f32 %v1358, 0.2
  %v1363 = vmul.f32 %v1359, 0.2
  %v1364 = vsel %vm1360, %v1358, %v1362
  %v1365 = vsel %vm1361, %v1359, %v1363
  %v1366 = vsel %vm80, %v1364, -1e+30
  %v1367 = vsel %vm81, %v1365, -1e+30
  %v1368 = vsel %vm1091, %v1366, -inf
  %1369 = vmax.xlane.f32.xlu0 %v1368
  %v1370 = vpop.xlane.xlu0 %1369
  %v1371 = vsel %vm1091, %v1367, -inf
  %1372 = vmax.xlane.f32.xlu0 %v1371
  %v1373 = vpop.xlane.xlu0 %1372
  %v1374 = vsub.f32 %v1366, %v1370
  %v1375 = vsub.f32 %v1367, %v1373
  %v1376 = vmul.f32 %v1374, 1.442695
  %v1377 = vpow.pop %v1376
  %v1378 = vmul.f32 %v1375, 1.442695
  %v1379 = vpow.pop %v1378
  %v1380 = vsel %vm1091, %v1377, 0.0
  %1381 = vadd.xlane.f32.xlu0 %v1380
  %v1382 = vpop.xlane.xlu0 %1381
  %v1383 = vsel %vm1091, %v1379, 0.0
  %1384 = vadd.xlane.f32.xlu0 %v1383
  %v1385 = vpop.xlane.xlu0 %1384
  %v1386 = vrcp.pop %v1382
  %v1387 = vrcp.pop %v1385
  %v1388 = vmul.f32 %v1377, %v1386
  %v1389 = vmul.f32 %v1379, %v1387
  %v1390 = vpack.c.bf16 %v1389, %v1388
  %v1391 = vpack.c.bf16 %v939, %v935
  %v1392 = vpack.c.bf16 %v941, %v937
  %v1393 = vpack.c.bf16 %v982, %v978
  %v1394 = vpack.c.bf16 %v984, %v980
  %v1396 = vsel %vm1091, %v1390, 0
  %1398 = vmatprep.subr.bf16.mxu0 %v1392
  %1399 = vmatpush1.bf16.msra.mxu0 %v1391
  %1400 = vmatprep.subr.bf16.mxu0 0
  %1401 = vmatpush1.bf16.msra.mxu0 0
  %1402 = vmatprep.subr.bf16.mxu0 0
  %1403 = vmatpush1.bf16.msra.mxu0 0
  %1404 = vmatprep.subr.bf16.mxu0 0
  %1405 = vmatpush1.bf16.msra.mxu0 0
  %1406 = vmatprep.subr.bf16.mxu0 0
  %1407 = vmatpush1.bf16.msra.mxu0 0
  %1408 = vmatprep.subr.bf16.mxu0 0
  %1409 = vmatpush1.bf16.msra.mxu0 0
  %1410 = vmatprep.subr.bf16.mxu0 0
  %1411 = vmatpush1.bf16.msra.mxu0 0
  %1412 = vmatprep.subr.bf16.mxu0 0
  %1413 = vmatpush1.bf16.msra.mxu0 0
  %1414 = vmatprep.subr.bf16.mxu0 0
  %1415 = vmatpush1.bf16.msra.mxu0 0
  %1416 = vmatprep.subr.bf16.mxu0 0
  %1417 = vmatpush1.bf16.msra.mxu0 0
  %1418 = vmatprep.subr.bf16.mxu0 0
  %1419 = vmatpush1.bf16.msra.mxu0 0
  %1420 = vmatprep.subr.bf16.mxu0 0
  %1421 = vmatpush1.bf16.msra.mxu0 0
  %1422 = vmatprep.subr.bf16.mxu0 0
  %1423 = vmatpush1.bf16.msra.mxu0 0
  %1424 = vmatprep.subr.bf16.mxu0 0
  %1425 = vmatpush1.bf16.msra.mxu0 0
  %1426 = vmatprep.subr.bf16.mxu0 0
  %1427 = vmatpush1.bf16.msra.mxu0 0
  %1428 = vmatprep.subr.bf16.mxu0 0
  %1429 = vmatpush1.bf16.msra.mxu0 0
  %1430 = vmatprep.mubr.bf16.mxu0 0
  %1431 = vmatmul.mubr.bf16.gmra.mrb[0].mxu0 %v1396
  %v1432 = vpop.f32.mrb[0].mxu0
  %v1433 = vadd.f32 0.0, %v1432
  %v1434 = vpop.f32.mrb[0].mxu0
  %v1435 = vadd.f32 0.0, %v1434
  %v1436 = vpop.f32.mrb[0].mxu0
  %v1437 = vadd.f32 0.0, %v1436
  %v1438 = vpop.f32.mrb[0].mxu0
  %v1439 = vadd.f32 0.0, %v1438
  %1440 = vdwg.mxu0
  %1441 = vmatprep.subr.bf16.mxu0 %v1394
  %1442 = vmatpush1.bf16.msra.mxu0 %v1393
  %1443 = vmatprep.subr.bf16.mxu0 0
  %1444 = vmatpush1.bf16.msra.mxu0 0
  %1445 = vmatprep.subr.bf16.mxu0 0
  %1446 = vmatpush1.bf16.msra.mxu0 0
  %1447 = vmatprep.subr.bf16.mxu0 0
  %1448 = vmatpush1.bf16.msra.mxu0 0
  %1449 = vmatprep.subr.bf16.mxu0 0
  %1450 = vmatpush1.bf16.msra.mxu0 0
  %1451 = vmatprep.subr.bf16.mxu0 0
  %1452 = vmatpush1.bf16.msra.mxu0 0
  %1453 = vmatprep.subr.bf16.mxu0 0
  %1454 = vmatpush1.bf16.msra.mxu0 0
  %1455 = vmatprep.subr.bf16.mxu0 0
  %1456 = vmatpush1.bf16.msra.mxu0 0
  %1457 = vmatprep.subr.bf16.mxu0 0
  %1458 = vmatpush1.bf16.msra.mxu0 0
  %1459 = vmatprep.subr.bf16.mxu0 0
  %1460 = vmatpush1.bf16.msra.mxu0 0
  %1461 = vmatprep.subr.bf16.mxu0 0
  %1462 = vmatpush1.bf16.msra.mxu0 0
  %1463 = vmatprep.subr.bf16.mxu0 0
  %1464 = vmatpush1.bf16.msra.mxu0 0
  %1465 = vmatprep.subr.bf16.mxu0 0
  %1466 = vmatpush1.bf16.msra.mxu0 0
  %1467 = vmatprep.subr.bf16.mxu0 0
  %1468 = vmatpush1.bf16.msra.mxu0 0
  %1469 = vmatprep.subr.bf16.mxu0 0
  %1470 = vmatpush1.bf16.msra.mxu0 0
  %1471 = vmatprep.subr.bf16.mxu0 0
  %1472 = vmatpush1.bf16.msra.mxu0 0
  %1473 = vmatprep.mubr.bf16.mxu0 0
  %1474 = vmatmul.mubr.bf16.gmra.mrb[0].mxu0 %v1396
  %v1475 = vpop.f32.mrb[0].mxu0
  %v1476 = vadd.f32 0.0, %v1475
  %v1477 = vpop.f32.mrb[0].mxu0
  %v1478 = vadd.f32 0.0, %v1477
  %v1479 = vpop.f32.mrb[0].mxu0
  %v1480 = vadd.f32 0.0, %v1479
  %v1481 = vpop.f32.mrb[0].mxu0
  %v1482 = vadd.f32 0.0, %v1481
  %1483 = vdwg.mxu0
  %v1486 = vlaneseq
  %v1487 = vshrl.u32 %v1486, 7
  %v1488 = vsub.s32 0, %v1487
  %v1489 = vrot.slane %v197, %v1488
  %v1490 = vlaneseq
  %v1491 = vshrl.u32 %v1490, 7
  %v1492 = vsub.s32 1, %v1491
  %v1493 = vrot.slane %v197, %v1492
  %v1494 = vlaneseq
  %v1495 = vshrl.u32 %v1494, 7
  %v1496 = vsub.s32 2, %v1495
  %v1497 = vrot.slane %v197, %v1496
  %v1498 = vlaneseq
  %v1499 = vshrl.u32 %v1498, 7
  %v1500 = vsub.s32 3, %v1499
  %v1501 = vrot.slane %v197, %v1500
  %v1502 = vlaneseq
  %v1503 = vshrl.u32 %v1502, 7
  %v1504 = vsub.s32 4, %v1503
  %v1505 = vrot.slane %v197, %v1504
  %v1506 = vlaneseq
  %v1507 = vshrl.u32 %v1506, 7
  %v1508 = vsub.s32 5, %v1507
  %v1509 = vrot.slane %v197, %v1508
  %v1510 = vlaneseq
  %v1511 = vshrl.u32 %v1510, 7
  %v1512 = vsub.s32 6, %v1511
  %v1513 = vrot.slane %v197, %v1512
  %v1514 = vlaneseq
  %v1515 = vshrl.u32 %v1514, 7
  %v1516 = vsub.s32 7, %v1515
  %v1517 = vrot.slane %v197, %v1516
  %v1518 = vlaneseq
  %v1519 = vshrl.u32 %v1518, 7
  %v1520 = vsub.s32 0, %v1519
  %v1521 = vrot.slane %v198, %v1520
  %v1522 = vlaneseq
  %v1523 = vshrl.u32 %v1522, 7
  %v1524 = vsub.s32 1, %v1523
  %v1525 = vrot.slane %v198, %v1524
  %v1526 = vlaneseq
  %v1527 = vshrl.u32 %v1526, 7
  %v1528 = vsub.s32 2, %v1527
  %v1529 = vrot.slane %v198, %v1528
  %v1530 = vlaneseq
  %v1531 = vshrl.u32 %v1530, 7
  %v1532 = vsub.s32 3, %v1531
  %v1533 = vrot.slane %v198, %v1532
  %v1546 = vadd.f32 %v1157, %v1489
  %v1547 = vadd.f32 %v1159, %v1493
  %v1548 = vadd.f32 %v1200, %v1497
  %v1549 = vadd.f32 %v1202, %v1501
  %v1550 = vadd.f32 %v1295, %v1505
  %v1551 = vadd.f32 %v1297, %v1509
  %v1552 = vadd.f32 %v1338, %v1513
  %v1553 = vadd.f32 %v1340, %v1517
  %v1554 = vadd.f32 %v1433, %v1521
  %v1555 = vadd.f32 %v1435, %v1525
  %v1556 = vadd.f32 %v1476, %v1529
  %v1557 = vadd.f32 %v1478, %v1533
  %v1558 = vadd.f32 %v1161, %v1489
  %v1559 = vadd.f32 %v1163, %v1493
  %v1560 = vadd.f32 %v1204, %v1497
  %v1561 = vadd.f32 %v1206, %v1501
  %v1562 = vadd.f32 %v1299, %v1505
  %v1563 = vadd.f32 %v1301, %v1509
  %v1564 = vadd.f32 %v1342, %v1513
  %v1565 = vadd.f32 %v1344, %v1517
  %v1566 = vadd.f32 %v1437, %v1521
  %v1567 = vadd.f32 %v1439, %v1525
  %v1568 = vadd.f32 %v1480, %v1529
  %v1569 = vadd.f32 %v1482, %v1533
  %v1570 = vmax.f32 %v1546, 0.0
  %v1571 = vmax.f32 %v1547, 0.0
  %v1572 = vmax.f32 %v1548, 0.0
  %v1573 = vmax.f32 %v1549, 0.0
  %v1574 = vmax.f32 %v1550, 0.0
  %v1575 = vmax.f32 %v1551, 0.0
  %v1576 = vmax.f32 %v1552, 0.0
  %v1577 = vmax.f32 %v1553, 0.0
  %v1578 = vmax.f32 %v1554, 0.0
  %v1579 = vmax.f32 %v1555, 0.0
  %v1580 = vmax.f32 %v1556, 0.0
  %v1581 = vmax.f32 %v1557, 0.0
  %v1582 = vmax.f32 %v1558, 0.0
  %v1583 = vmax.f32 %v1559, 0.0
  %v1584 = vmax.f32 %v1560, 0.0
  %v1585 = vmax.f32 %v1561, 0.0
  %v1586 = vmax.f32 %v1562, 0.0
  %v1587 = vmax.f32 %v1563, 0.0
  %v1588 = vmax.f32 %v1564, 0.0
  %v1589 = vmax.f32 %v1565, 0.0
  %v1590 = vmax.f32 %v1566, 0.0
  %v1591 = vmax.f32 %v1567, 0.0
  %v1592 = vmax.f32 %v1568, 0.0
  %v1593 = vmax.f32 %v1569, 0.0
  %v1594 = vld [vmem:[%s6] sm:$0xff]
  %v1595 = vld [vmem:[%s6 + $0x8] sm:$0xff]
  %v1596 = vld [vmem:[%s6 + $0x10] sm:$0xf]
  %v1597 = vld [vmem:[%s6 + $0x14] sm:$0xff]
  %v1598 = vld [vmem:[%s6 + $0x1c] sm:$0xff]
  %v1599 = vld [vmem:[%s6 + $0x24] sm:$0xf]
  %v1600 = vld [vmem:[%s6 + $0x28] sm:$0xff]
  %v1601 = vld [vmem:[%s6 + $0x30] sm:$0xff]
  %v1602 = vld [vmem:[%s6 + $0x38] sm:$0xf]
  %v1603 = vld [vmem:[%s6 + $0x3c] sm:$0xff]
  %v1604 = vld [vmem:[%s6 + $0x44] sm:$0xff]
  %v1605 = vld [vmem:[%s6 + $0x4c] sm:$0xf]
  %v1606 = vld [vmem:[%s6 + $0x50] sm:$0xff]
  %v1607 = vld [vmem:[%s6 + $0x58] sm:$0xff]
  %v1608 = vld [vmem:[%s6 + $0x60] sm:$0xf]
  %v1609 = vld [vmem:[%s6 + $0x64] sm:$0xff]
  %v1610 = vld [vmem:[%s6 + $0x6c] sm:$0xff]
  %v1611 = vld [vmem:[%s6 + $0x74] sm:$0xf]
  %v1612 = vld [vmem:[%s6 + $0x78] sm:$0xff]
  %v1613 = vld [vmem:[%s6 + $0x80] sm:$0xff]
  %v1614 = vld [vmem:[%s6 + $0x88] sm:$0xf]
  %v1615 = vld [vmem:[%s6 + $0x8c] sm:$0xff]
  %v1616 = vld [vmem:[%s6 + $0x94] sm:$0xff]
  %v1617 = vld [vmem:[%s6 + $0x9c] sm:$0xf]
  %v1618 = vld [vmem:[%s6 + $0xa0] sm:$0xff]
  %v1619 = vld [vmem:[%s6 + $0xa8] sm:$0xff]
  %v1620 = vld [vmem:[%s6 + $0xb0] sm:$0xf]
  %v1621 = vld [vmem:[%s6 + $0xb4] sm:$0xff]
  %v1622 = vld [vmem:[%s6 + $0xbc] sm:$0xff]
  %v1623 = vld [vmem:[%s6 + $0xc4] sm:$0xf]
  %v1624 = vld [vmem:[%s6 + $0xc8] sm:$0xff]
  %v1625 = vld [vmem:[%s6 + $0xd0] sm:$0xff]
  %v1626 = vld [vmem:[%s6 + $0xd8] sm:$0xf]
  %v1627 = vld [vmem:[%s6 + $0xdc] sm:$0xff]
  %v1628 = vld [vmem:[%s6 + $0xe4] sm:$0xff]
  %v1629 = vld [vmem:[%s6 + $0xec] sm:$0xf]
  %v1630 = vld [vmem:[%s6 + $0xf0] sm:$0xff]
  %v1631 = vld [vmem:[%s6 + $0xf8] sm:$0xff]
  %v1632 = vld [vmem:[%s6 + $0x100] sm:$0xf]
  %v1633 = vld [vmem:[%s6 + $0x104] sm:$0xff]
  %v1634 = vld [vmem:[%s6 + $0x10c] sm:$0xff]
  %v1635 = vld [vmem:[%s6 + $0x114] sm:$0xf]
  %v1636 = vld [vmem:[%s6 + $0x118] sm:$0xff]
  %v1637 = vld [vmem:[%s6 + $0x120] sm:$0xff]
  %v1638 = vld [vmem:[%s6 + $0x128] sm:$0xf]
  %v1639 = vld [vmem:[%s6 + $0x12c] sm:$0xff]
  %v1640 = vld [vmem:[%s6 + $0x134] sm:$0xff]
  %v1641 = vld [vmem:[%s6 + $0x13c] sm:$0xf]
  %v1642 = vld [vmem:[%s6 + $0x140] sm:$0xff]
  %v1643 = vld [vmem:[%s6 + $0x148] sm:$0xff]
  %v1644 = vld [vmem:[%s6 + $0x150] sm:$0xf]
  %v1645 = vld [vmem:[%s6 + $0x154] sm:$0xff]
  %v1646 = vld [vmem:[%s6 + $0x15c] sm:$0xff]
  %v1647 = vld [vmem:[%s6 + $0x164] sm:$0xf]
  %v1648 = vld [vmem:[%s6 + $0x168] sm:$0xff]
  %v1649 = vld [vmem:[%s6 + $0x170] sm:$0xff]
  %v1650 = vld [vmem:[%s6 + $0x178] sm:$0xf]
  %v1651 = vld [vmem:[%s6 + $0x17c] sm:$0xff]
  %v1652 = vld [vmem:[%s6 + $0x184] sm:$0xff]
  %v1653 = vld [vmem:[%s6 + $0x18c] sm:$0xf]
  %v1654 = vld [vmem:[%s6 + $0x190] sm:$0xff]
  %v1655 = vld [vmem:[%s6 + $0x198] sm:$0xff]
  %v1656 = vld [vmem:[%s6 + $0x1a0] sm:$0xf]
  %v1657 = vld [vmem:[%s6 + $0x1a4] sm:$0xff]
  %v1658 = vld [vmem:[%s6 + $0x1ac] sm:$0xff]
  %v1659 = vld [vmem:[%s6 + $0x1b4] sm:$0xf]
  %v1660 = vld [vmem:[%s6 + $0x1b8] sm:$0xff]
  %v1661 = vld [vmem:[%s6 + $0x1c0] sm:$0xff]
  %v1662 = vld [vmem:[%s6 + $0x1c8] sm:$0xf]
  %v1663 = vld [vmem:[%s6 + $0x1cc] sm:$0xff]
  %v1664 = vld [vmem:[%s6 + $0x1d4] sm:$0xff]
  %v1665 = vld [vmem:[%s6 + $0x1dc] sm:$0xf]
  %v1666 = vld [vmem:[%s6 + $0x1e0] sm:$0xff]
  %v1667 = vld [vmem:[%s6 + $0x1e8] sm:$0xff]
  %v1668 = vld [vmem:[%s6 + $0x1f0] sm:$0xf]
  %v1669 = vld [vmem:[%s6 + $0x1f4] sm:$0xff]
  %v1670 = vld [vmem:[%s6 + $0x1fc] sm:$0xff]
  %v1671 = vld [vmem:[%s6 + $0x204] sm:$0xf]
  %v1672 = vld [vmem:[%s6 + $0x208] sm:$0xff]
  %v1673 = vld [vmem:[%s6 + $0x210] sm:$0xff]
  %v1674 = vld [vmem:[%s6 + $0x218] sm:$0xf]
  %v1675 = vld [vmem:[%s6 + $0x21c] sm:$0xff]
  %v1676 = vld [vmem:[%s6 + $0x224] sm:$0xff]
  %v1677 = vld [vmem:[%s6 + $0x22c] sm:$0xf]
  %v1678 = vld [vmem:[%s6 + $0x230] sm:$0xff]
  %v1679 = vld [vmem:[%s6 + $0x238] sm:$0xff]
  %v1680 = vld [vmem:[%s6 + $0x240] sm:$0xf]
  %v1681 = vld [vmem:[%s6 + $0x244] sm:$0xff]
  %v1682 = vld [vmem:[%s6 + $0x24c] sm:$0xff]
  %v1683 = vld [vmem:[%s6 + $0x254] sm:$0xf]
  %v1684 = vld [vmem:[%s6 + $0x258] sm:$0xff]
  %v1685 = vld [vmem:[%s6 + $0x260] sm:$0xff]
  %v1686 = vld [vmem:[%s6 + $0x268] sm:$0xf]
  %v1687 = vld [vmem:[%s6 + $0x26c] sm:$0xff]
  %v1688 = vld [vmem:[%s6 + $0x274] sm:$0xff]
  %v1689 = vld [vmem:[%s6 + $0x27c] sm:$0xf]
  %v1690 = vld [vmem:[%s6 + $0x280] sm:$0xff]
  %v1691 = vld [vmem:[%s6 + $0x288] sm:$0xff]
  %v1692 = vld [vmem:[%s6 + $0x290] sm:$0xf]
  %v1693 = vld [vmem:[%s6 + $0x294] sm:$0xff]
  %v1694 = vld [vmem:[%s6 + $0x29c] sm:$0xff]
  %v1695 = vld [vmem:[%s6 + $0x2a4] sm:$0xf]
  %v1696 = vld [vmem:[%s6 + $0x2a8] sm:$0xff]
  %v1697 = vld [vmem:[%s6 + $0x2b0] sm:$0xff]
  %v1698 = vld [vmem:[%s6 + $0x2b8] sm:$0xf]
  %v1699 = vld [vmem:[%s6 + $0x2bc] sm:$0xff]
  %v1700 = vld [vmem:[%s6 + $0x2c4] sm:$0xff]
  %v1701 = vld [vmem:[%s6 + $0x2cc] sm:$0xf]
  %v1702 = vld [vmem:[%s6 + $0x2d0] sm:$0xff]
  %v1703 = vld [vmem:[%s6 + $0x2d8] sm:$0xff]
  %v1704 = vld [vmem:[%s6 + $0x2e0] sm:$0xf]
  %v1705 = vld [vmem:[%s6 + $0x2e4] sm:$0xff]
  %v1706 = vld [vmem:[%s6 + $0x2ec] sm:$0xff]
  %v1707 = vld [vmem:[%s6 + $0x2f4] sm:$0xf]
  %v1708 = vld [vmem:[%s6 + $0x2f8] sm:$0xff]
  %v1709 = vld [vmem:[%s6 + $0x300] sm:$0xff]
  %v1710 = vld [vmem:[%s6 + $0x308] sm:$0xf]
  %v1711 = vld [vmem:[%s6 + $0x30c] sm:$0xff]
  %v1712 = vld [vmem:[%s6 + $0x314] sm:$0xff]
  %v1713 = vld [vmem:[%s6 + $0x31c] sm:$0xf]
  %v1714 = vld [vmem:[%s6 + $0x320] sm:$0xff]
  %v1715 = vld [vmem:[%s6 + $0x328] sm:$0xff]
  %v1716 = vld [vmem:[%s6 + $0x330] sm:$0xf]
  %v1717 = vld [vmem:[%s6 + $0x334] sm:$0xff]
  %v1718 = vld [vmem:[%s6 + $0x33c] sm:$0xff]
  %v1719 = vld [vmem:[%s6 + $0x344] sm:$0xf]
  %v1720 = vld [vmem:[%s6 + $0x348] sm:$0xff]
  %v1721 = vld [vmem:[%s6 + $0x350] sm:$0xff]
  %v1722 = vld [vmem:[%s6 + $0x358] sm:$0xf]
  %v1723 = vld [vmem:[%s6 + $0x35c] sm:$0xff]
  %v1724 = vld [vmem:[%s6 + $0x364] sm:$0xff]
  %v1725 = vld [vmem:[%s6 + $0x36c] sm:$0xf]
  %v1726 = vld [vmem:[%s6 + $0x370] sm:$0xff]
  %v1727 = vld [vmem:[%s6 + $0x378] sm:$0xff]
  %v1728 = vld [vmem:[%s6 + $0x380] sm:$0xf]
  %v1729 = vld [vmem:[%s6 + $0x384] sm:$0xff]
  %v1730 = vld [vmem:[%s6 + $0x38c] sm:$0xff]
  %v1731 = vld [vmem:[%s6 + $0x394] sm:$0xf]
  %v1732 = vld [vmem:[%s6 + $0x398] sm:$0xff]
  %v1733 = vld [vmem:[%s6 + $0x3a0] sm:$0xff]
  %v1734 = vld [vmem:[%s6 + $0x3a8] sm:$0xf]
  %v1735 = vld [vmem:[%s6 + $0x3ac] sm:$0xff]
  %v1736 = vld [vmem:[%s6 + $0x3b4] sm:$0xff]
  %v1737 = vld [vmem:[%s6 + $0x3bc] sm:$0xf]
  %v1738 = vld [vmem:[%s6 + $0x3c0] sm:$0xff]
  %v1739 = vld [vmem:[%s6 + $0x3c8] sm:$0xff]
  %v1740 = vld [vmem:[%s6 + $0x3d0] sm:$0xf]
  %v1741 = vld [vmem:[%s6 + $0x3d4] sm:$0xff]
  %v1742 = vld [vmem:[%s6 + $0x3dc] sm:$0xff]
  %v1743 = vld [vmem:[%s6 + $0x3e4] sm:$0xf]
  %v1744 = vld [vmem:[%s6 + $0x3e8] sm:$0xff]
  %v1745 = vld [vmem:[%s6 + $0x3f0] sm:$0xff]
  %v1746 = vld [vmem:[%s6 + $0x3f8] sm:$0xf]
  %v1747 = vld [vmem:[%s6 + $0x3fc] sm:$0xff]
  %v1748 = vld [vmem:[%s6 + $0x404] sm:$0xff]
  %v1749 = vld [vmem:[%s6 + $0x40c] sm:$0xf]
  %v1750 = vld [vmem:[%s6 + $0x410] sm:$0xff]
  %v1751 = vld [vmem:[%s6 + $0x418] sm:$0xff]
  %v1752 = vld [vmem:[%s6 + $0x420] sm:$0xf]
  %v1753 = vld [vmem:[%s6 + $0x424] sm:$0xff]
  %v1754 = vld [vmem:[%s6 + $0x42c] sm:$0xff]
  %v1755 = vld [vmem:[%s6 + $0x434] sm:$0xf]
  %v1756 = vld [vmem:[%s6 + $0x438] sm:$0xff]
  %v1757 = vld [vmem:[%s6 + $0x440] sm:$0xff]
  %v1758 = vld [vmem:[%s6 + $0x448] sm:$0xf]
  %v1759 = vld [vmem:[%s6 + $0x44c] sm:$0xff]
  %v1760 = vld [vmem:[%s6 + $0x454] sm:$0xff]
  %v1761 = vld [vmem:[%s6 + $0x45c] sm:$0xf]
  %v1762 = vld [vmem:[%s6 + $0x460] sm:$0xff]
  %v1763 = vld [vmem:[%s6 + $0x468] sm:$0xff]
  %v1764 = vld [vmem:[%s6 + $0x470] sm:$0xf]
  %v1765 = vld [vmem:[%s6 + $0x474] sm:$0xff]
  %v1766 = vld [vmem:[%s6 + $0x47c] sm:$0xff]
  %v1767 = vld [vmem:[%s6 + $0x484] sm:$0xf]
  %v1768 = vld [vmem:[%s6 + $0x488] sm:$0xff]
  %v1769 = vld [vmem:[%s6 + $0x490] sm:$0xff]
  %v1770 = vld [vmem:[%s6 + $0x498] sm:$0xf]
  %v1771 = vld [vmem:[%s6 + $0x49c] sm:$0xff]
  %v1772 = vld [vmem:[%s6 + $0x4a4] sm:$0xff]
  %v1773 = vld [vmem:[%s6 + $0x4ac] sm:$0xf]
  %v1774 = vld [vmem:[%s6 + $0x4b0] sm:$0xff]
  %v1775 = vld [vmem:[%s6 + $0x4b8] sm:$0xff]
  %v1776 = vld [vmem:[%s6 + $0x4c0] sm:$0xf]
  %v1777 = vld [vmem:[%s6 + $0x4c4] sm:$0xff]
  %v1778 = vld [vmem:[%s6 + $0x4cc] sm:$0xff]
  %v1779 = vld [vmem:[%s6 + $0x4d4] sm:$0xf]
  %v1780 = vld [vmem:[%s6 + $0x4d8] sm:$0xff]
  %v1781 = vld [vmem:[%s6 + $0x4e0] sm:$0xff]
  %v1782 = vld [vmem:[%s6 + $0x4e8] sm:$0xf]
  %v1783 = vld [vmem:[%s6 + $0x4ec] sm:$0xff]
  %v1784 = vld [vmem:[%s6 + $0x4f4] sm:$0xff]
  %v1785 = vld [vmem:[%s6 + $0x4fc] sm:$0xf]
  %v1786 = vld [vmem:[%s6 + $0x500] sm:$0xff]
  %v1787 = vld [vmem:[%s6 + $0x508] sm:$0xff]
  %v1788 = vld [vmem:[%s6 + $0x510] sm:$0xf]
  %v1789 = vld [vmem:[%s6 + $0x514] sm:$0xff]
  %v1790 = vld [vmem:[%s6 + $0x51c] sm:$0xff]
  %v1791 = vld [vmem:[%s6 + $0x524] sm:$0xf]
  %v1792 = vld [vmem:[%s6 + $0x528] sm:$0xff]
  %v1793 = vld [vmem:[%s6 + $0x530] sm:$0xff]
  %v1794 = vld [vmem:[%s6 + $0x538] sm:$0xf]
  %v1795 = vld [vmem:[%s6 + $0x53c] sm:$0xff]
  %v1796 = vld [vmem:[%s6 + $0x544] sm:$0xff]
  %v1797 = vld [vmem:[%s6 + $0x54c] sm:$0xf]
  %v1798 = vld [vmem:[%s6 + $0x550] sm:$0xff]
  %v1799 = vld [vmem:[%s6 + $0x558] sm:$0xff]
  %v1800 = vld [vmem:[%s6 + $0x560] sm:$0xf]
  %v1801 = vld [vmem:[%s6 + $0x564] sm:$0xff]
  %v1802 = vld [vmem:[%s6 + $0x56c] sm:$0xff]
  %v1803 = vld [vmem:[%s6 + $0x574] sm:$0xf]
  %v1804 = vld [vmem:[%s6 + $0x578] sm:$0xff]
  %v1805 = vld [vmem:[%s6 + $0x580] sm:$0xff]
  %v1806 = vld [vmem:[%s6 + $0x588] sm:$0xf]
  %v1807 = vld [vmem:[%s6 + $0x58c] sm:$0xff]
  %v1808 = vld [vmem:[%s6 + $0x594] sm:$0xff]
  %v1809 = vld [vmem:[%s6 + $0x59c] sm:$0xf]
  %v1810 = vld [vmem:[%s6 + $0x5a0] sm:$0xff]
  %v1811 = vld [vmem:[%s6 + $0x5a8] sm:$0xff]
  %v1812 = vld [vmem:[%s6 + $0x5b0] sm:$0xf]
  %v1813 = vld [vmem:[%s6 + $0x5b4] sm:$0xff]
  %v1814 = vld [vmem:[%s6 + $0x5bc] sm:$0xff]
  %v1815 = vld [vmem:[%s6 + $0x5c4] sm:$0xf]
  %v1816 = vld [vmem:[%s6 + $0x5c8] sm:$0xff]
  %v1817 = vld [vmem:[%s6 + $0x5d0] sm:$0xff]
  %v1818 = vld [vmem:[%s6 + $0x5d8] sm:$0xf]
  %v1819 = vld [vmem:[%s6 + $0x5dc] sm:$0xff]
  %v1820 = vld [vmem:[%s6 + $0x5e4] sm:$0xff]
  %v1821 = vld [vmem:[%s6 + $0x5ec] sm:$0xf]
  %v1822 = vld [vmem:[%s6 + $0x5f0] sm:$0xff]
  %v1823 = vld [vmem:[%s6 + $0x5f8] sm:$0xff]
  %v1824 = vld [vmem:[%s6 + $0x600] sm:$0xf]
  %v1825 = vld [vmem:[%s6 + $0x604] sm:$0xff]
  %v1826 = vld [vmem:[%s6 + $0x60c] sm:$0xff]
  %v1827 = vld [vmem:[%s6 + $0x614] sm:$0xf]
  %v1828 = vld [vmem:[%s6 + $0x618] sm:$0xff]
  %v1829 = vld [vmem:[%s6 + $0x620] sm:$0xff]
  %v1830 = vld [vmem:[%s6 + $0x628] sm:$0xf]
  %v1831 = vld [vmem:[%s6 + $0x62c] sm:$0xff]
  %v1832 = vld [vmem:[%s6 + $0x634] sm:$0xff]
  %v1833 = vld [vmem:[%s6 + $0x63c] sm:$0xf]
  %v1834 = vld [vmem:[%s6 + $0x640] sm:$0xff]
  %v1835 = vld [vmem:[%s6 + $0x648] sm:$0xff]
  %v1836 = vld [vmem:[%s6 + $0x650] sm:$0xf]
  %v1837 = vld [vmem:[%s6 + $0x654] sm:$0xff]
  %v1838 = vld [vmem:[%s6 + $0x65c] sm:$0xff]
  %v1839 = vld [vmem:[%s6 + $0x664] sm:$0xf]
  %v1840 = vld [vmem:[%s6 + $0x668] sm:$0xff]
  %v1841 = vld [vmem:[%s6 + $0x670] sm:$0xff]
  %v1842 = vld [vmem:[%s6 + $0x678] sm:$0xf]
  %v1843 = vld [vmem:[%s6 + $0x67c] sm:$0xff]
  %v1844 = vld [vmem:[%s6 + $0x684] sm:$0xff]
  %v1845 = vld [vmem:[%s6 + $0x68c] sm:$0xf]
  %v1846 = vld [vmem:[%s6 + $0x690] sm:$0xff]
  %v1847 = vld [vmem:[%s6 + $0x698] sm:$0xff]
  %v1848 = vld [vmem:[%s6 + $0x6a0] sm:$0xf]
  %v1849 = vld [vmem:[%s6 + $0x6a4] sm:$0xff]
  %v1850 = vld [vmem:[%s6 + $0x6ac] sm:$0xff]
  %v1851 = vld [vmem:[%s6 + $0x6b4] sm:$0xf]
  %v1852 = vld [vmem:[%s6 + $0x6b8] sm:$0xff]
  %v1853 = vld [vmem:[%s6 + $0x6c0] sm:$0xff]
  %v1854 = vld [vmem:[%s6 + $0x6c8] sm:$0xf]
  %v1855 = vld [vmem:[%s6 + $0x6cc] sm:$0xff]
  %v1856 = vld [vmem:[%s6 + $0x6d4] sm:$0xff]
  %v1857 = vld [vmem:[%s6 + $0x6dc] sm:$0xf]
  %v1858 = vld [vmem:[%s6 + $0x6e0] sm:$0xff]
  %v1859 = vld [vmem:[%s6 + $0x6e8] sm:$0xff]
  %v1860 = vld [vmem:[%s6 + $0x6f0] sm:$0xf]
  %v1861 = vld [vmem:[%s6 + $0x6f4] sm:$0xff]
  %v1862 = vld [vmem:[%s6 + $0x6fc] sm:$0xff]
  %v1863 = vld [vmem:[%s6 + $0x704] sm:$0xf]
  %v1864 = vld [vmem:[%s6 + $0x708] sm:$0xff]
  %v1865 = vld [vmem:[%s6 + $0x710] sm:$0xff]
  %v1866 = vld [vmem:[%s6 + $0x718] sm:$0xf]
  %v1867 = vld [vmem:[%s6 + $0x71c] sm:$0xff]
  %v1868 = vld [vmem:[%s6 + $0x724] sm:$0xff]
  %v1869 = vld [vmem:[%s6 + $0x72c] sm:$0xf]
  %v1870 = vld [vmem:[%s6 + $0x730] sm:$0xff]
  %v1871 = vld [vmem:[%s6 + $0x738] sm:$0xff]
  %v1872 = vld [vmem:[%s6 + $0x740] sm:$0xf]
  %v1873 = vld [vmem:[%s6 + $0x744] sm:$0xff]
  %v1874 = vld [vmem:[%s6 + $0x74c] sm:$0xff]
  %v1875 = vld [vmem:[%s6 + $0x754] sm:$0xf]
  %v1876 = vld [vmem:[%s6 + $0x758] sm:$0xff]
  %v1877 = vld [vmem:[%s6 + $0x760] sm:$0xff]
  %v1878 = vld [vmem:[%s6 + $0x768] sm:$0xf]
  %v1879 = vld [vmem:[%s6 + $0x76c] sm:$0xff]
  %v1880 = vld [vmem:[%s6 + $0x774] sm:$0xff]
  %v1881 = vld [vmem:[%s6 + $0x77c] sm:$0xf]
  %v1882 = vld [vmem:[%s6 + $0x780] sm:$0xff]
  %v1883 = vld [vmem:[%s6 + $0x788] sm:$0xff]
  %v1884 = vld [vmem:[%s6 + $0x790] sm:$0xf]
  %v1885 = vld [vmem:[%s6 + $0x794] sm:$0xff]
  %v1886 = vld [vmem:[%s6 + $0x79c] sm:$0xff]
  %v1887 = vld [vmem:[%s6 + $0x7a4] sm:$0xf]
  %v1888 = vld [vmem:[%s6 + $0x7a8] sm:$0xff]
  %v1889 = vld [vmem:[%s6 + $0x7b0] sm:$0xff]
  %v1890 = vld [vmem:[%s6 + $0x7b8] sm:$0xf]
  %v1891 = vld [vmem:[%s6 + $0x7bc] sm:$0xff]
  %v1892 = vld [vmem:[%s6 + $0x7c4] sm:$0xff]
  %v1893 = vld [vmem:[%s6 + $0x7cc] sm:$0xf]
  %v1894 = vld [vmem:[%s6 + $0x7d0] sm:$0xff]
  %v1895 = vld [vmem:[%s6 + $0x7d8] sm:$0xff]
  %v1896 = vld [vmem:[%s6 + $0x7e0] sm:$0xf]
  %v1897 = vld [vmem:[%s6 + $0x7e4] sm:$0xff]
  %v1898 = vld [vmem:[%s6 + $0x7ec] sm:$0xff]
  %v1899 = vld [vmem:[%s6 + $0x7f4] sm:$0xf]
  %v1900 = vld [vmem:[%s6 + $0x7f8] sm:$0xff]
  %v1901 = vld [vmem:[%s6 + $0x800] sm:$0xff]
  %v1902 = vld [vmem:[%s6 + $0x808] sm:$0xf]
  %v1903 = vld [vmem:[%s6 + $0x80c] sm:$0xff]
  %v1904 = vld [vmem:[%s6 + $0x814] sm:$0xff]
  %v1905 = vld [vmem:[%s6 + $0x81c] sm:$0xf]
  %v1906 = vld [vmem:[%s6 + $0x820] sm:$0xff]
  %v1907 = vld [vmem:[%s6 + $0x828] sm:$0xff]
  %v1908 = vld [vmem:[%s6 + $0x830] sm:$0xf]
  %v1909 = vld [vmem:[%s6 + $0x834] sm:$0xff]
  %v1910 = vld [vmem:[%s6 + $0x83c] sm:$0xff]
  %v1911 = vld [vmem:[%s6 + $0x844] sm:$0xf]
  %v1912 = vld [vmem:[%s6 + $0x848] sm:$0xff]
  %v1913 = vld [vmem:[%s6 + $0x850] sm:$0xff]
  %v1914 = vld [vmem:[%s6 + $0x858] sm:$0xf]
  %v1915 = vld [vmem:[%s6 + $0x85c] sm:$0xff]
  %v1916 = vld [vmem:[%s6 + $0x864] sm:$0xff]
  %v1917 = vld [vmem:[%s6 + $0x86c] sm:$0xf]
  %v1918 = vld [vmem:[%s6 + $0x870] sm:$0xff]
  %v1919 = vld [vmem:[%s6 + $0x878] sm:$0xff]
  %v1920 = vld [vmem:[%s6 + $0x880] sm:$0xf]
  %v1921 = vld [vmem:[%s6 + $0x884] sm:$0xff]
  %v1922 = vld [vmem:[%s6 + $0x88c] sm:$0xff]
  %v1923 = vld [vmem:[%s6 + $0x894] sm:$0xf]
  %v1924 = vld [vmem:[%s6 + $0x898] sm:$0xff]
  %v1925 = vld [vmem:[%s6 + $0x8a0] sm:$0xff]
  %v1926 = vld [vmem:[%s6 + $0x8a8] sm:$0xf]
  %v1927 = vld [vmem:[%s6 + $0x8ac] sm:$0xff]
  %v1928 = vld [vmem:[%s6 + $0x8b4] sm:$0xff]
  %v1929 = vld [vmem:[%s6 + $0x8bc] sm:$0xf]
  %v1930 = vld [vmem:[%s6 + $0x8c0] sm:$0xff]
  %v1931 = vld [vmem:[%s6 + $0x8c8] sm:$0xff]
  %v1932 = vld [vmem:[%s6 + $0x8d0] sm:$0xf]
  %v1933 = vld [vmem:[%s6 + $0x8d4] sm:$0xff]
  %v1934 = vld [vmem:[%s6 + $0x8dc] sm:$0xff]
  %v1935 = vld [vmem:[%s6 + $0x8e4] sm:$0xf]
  %v1936 = vld [vmem:[%s6 + $0x8e8] sm:$0xff]
  %v1937 = vld [vmem:[%s6 + $0x8f0] sm:$0xff]
  %v1938 = vld [vmem:[%s6 + $0x8f8] sm:$0xf]
  %v1939 = vld [vmem:[%s6 + $0x8fc] sm:$0xff]
  %v1940 = vld [vmem:[%s6 + $0x904] sm:$0xff]
  %v1941 = vld [vmem:[%s6 + $0x90c] sm:$0xf]
  %v1942 = vld [vmem:[%s6 + $0x910] sm:$0xff]
  %v1943 = vld [vmem:[%s6 + $0x918] sm:$0xff]
  %v1944 = vld [vmem:[%s6 + $0x920] sm:$0xf]
  %v1945 = vld [vmem:[%s6 + $0x924] sm:$0xff]
  %v1946 = vld [vmem:[%s6 + $0x92c] sm:$0xff]
  %v1947 = vld [vmem:[%s6 + $0x934] sm:$0xf]
  %v1948 = vld [vmem:[%s6 + $0x938] sm:$0xff]
  %v1949 = vld [vmem:[%s6 + $0x940] sm:$0xff]
  %v1950 = vld [vmem:[%s6 + $0x948] sm:$0xf]
  %v1951 = vld [vmem:[%s6 + $0x94c] sm:$0xff]
  %v1952 = vld [vmem:[%s6 + $0x954] sm:$0xff]
  %v1953 = vld [vmem:[%s6 + $0x95c] sm:$0xf]
  %v1954 = vld [vmem:[%s6 + $0x960] sm:$0xff]
  %v1955 = vld [vmem:[%s6 + $0x968] sm:$0xff]
  %v1956 = vld [vmem:[%s6 + $0x970] sm:$0xf]
  %v1957 = vld [vmem:[%s6 + $0x974] sm:$0xff]
  %v1958 = vld [vmem:[%s6 + $0x97c] sm:$0xff]
  %v1959 = vld [vmem:[%s6 + $0x984] sm:$0xf]
  %v1960 = vld [vmem:[%s6 + $0x988] sm:$0xff]
  %v1961 = vld [vmem:[%s6 + $0x990] sm:$0xff]
  %v1962 = vld [vmem:[%s6 + $0x998] sm:$0xf]
  %v1963 = vld [vmem:[%s6 + $0x99c] sm:$0xff]
  %v1964 = vld [vmem:[%s6 + $0x9a4] sm:$0xff]
  %v1965 = vld [vmem:[%s6 + $0x9ac] sm:$0xf]
  %v1966 = vld [vmem:[%s6 + $0x9b0] sm:$0xff]
  %v1967 = vld [vmem:[%s6 + $0x9b8] sm:$0xff]
  %v1968 = vld [vmem:[%s6 + $0x9c0] sm:$0xf]
  %v1969 = vld [vmem:[%s6 + $0x9c4] sm:$0xff]
  %v1970 = vld [vmem:[%s6 + $0x9cc] sm:$0xff]
  %v1971 = vld [vmem:[%s6 + $0x9d4] sm:$0xf]
  %v1972 = vld [vmem:[%s6 + $0x9d8] sm:$0xff]
  %v1973 = vld [vmem:[%s6 + $0x9e0] sm:$0xff]
  %v1974 = vld [vmem:[%s6 + $0x9e8] sm:$0xf]
  %v1975 = vld [vmem:[%s6 + $0x9ec] sm:$0xff]
  %v1976 = vld [vmem:[%s6 + $0x9f4] sm:$0xff]
  %v1977 = vld [vmem:[%s6 + $0x9fc] sm:$0xf]
  %v1978 = vld [vmem:[%s6 + $0xa00] sm:$0xff]
  %v1979 = vld [vmem:[%s6 + $0xa08] sm:$0xff]
  %v1980 = vld [vmem:[%s6 + $0xa10] sm:$0xf]
  %v1981 = vld [vmem:[%s6 + $0xa14] sm:$0xff]
  %v1982 = vld [vmem:[%s6 + $0xa1c] sm:$0xff]
  %v1983 = vld [vmem:[%s6 + $0xa24] sm:$0xf]
  %v1984 = vld [vmem:[%s6 + $0xa28] sm:$0xff]
  %v1985 = vld [vmem:[%s6 + $0xa30] sm:$0xff]
  %v1986 = vld [vmem:[%s6 + $0xa38] sm:$0xf]
  %v1987 = vld [vmem:[%s6 + $0xa3c] sm:$0xff]
  %v1988 = vld [vmem:[%s6 + $0xa44] sm:$0xff]
  %v1989 = vld [vmem:[%s6 + $0xa4c] sm:$0xf]
  %v1990 = vld [vmem:[%s6 + $0xa50] sm:$0xff]
  %v1991 = vld [vmem:[%s6 + $0xa58] sm:$0xff]
  %v1992 = vld [vmem:[%s6 + $0xa60] sm:$0xf]
  %v1993 = vld [vmem:[%s6 + $0xa64] sm:$0xff]
  %v1994 = vld [vmem:[%s6 + $0xa6c] sm:$0xff]
  %v1995 = vld [vmem:[%s6 + $0xa74] sm:$0xf]
  %v1996 = vld [vmem:[%s6 + $0xa78] sm:$0xff]
  %v1997 = vld [vmem:[%s6 + $0xa80] sm:$0xff]
  %v1998 = vld [vmem:[%s6 + $0xa88] sm:$0xf]
  %v1999 = vld [vmem:[%s6 + $0xa8c] sm:$0xff]
  %v2000 = vld [vmem:[%s6 + $0xa94] sm:$0xff]
  %v2001 = vld [vmem:[%s6 + $0xa9c] sm:$0xf]
  %v2002 = vld [vmem:[%s6 + $0xaa0] sm:$0xff]
  %v2003 = vld [vmem:[%s6 + $0xaa8] sm:$0xff]
  %v2004 = vld [vmem:[%s6 + $0xab0] sm:$0xf]
  %v2005 = vld [vmem:[%s6 + $0xab4] sm:$0xff]
  %v2006 = vld [vmem:[%s6 + $0xabc] sm:$0xff]
  %v2007 = vld [vmem:[%s6 + $0xac4] sm:$0xf]
  %v2008 = vld [vmem:[%s6 + $0xac8] sm:$0xff]
  %v2009 = vld [vmem:[%s6 + $0xad0] sm:$0xff]
  %v2010 = vld [vmem:[%s6 + $0xad8] sm:$0xf]
  %v2011 = vld [vmem:[%s6 + $0xadc] sm:$0xff]
  %v2012 = vld [vmem:[%s6 + $0xae4] sm:$0xff]
  %v2013 = vld [vmem:[%s6 + $0xaec] sm:$0xf]
  %v2014 = vld [vmem:[%s6 + $0xaf0] sm:$0xff]
  %v2015 = vld [vmem:[%s6 + $0xaf8] sm:$0xff]
  %v2016 = vld [vmem:[%s6 + $0xb00] sm:$0xf]
  %v2017 = vld [vmem:[%s6 + $0xb04] sm:$0xff]
  %v2018 = vld [vmem:[%s6 + $0xb0c] sm:$0xff]
  %v2019 = vld [vmem:[%s6 + $0xb14] sm:$0xf]
  %v2020 = vld [vmem:[%s6 + $0xb18] sm:$0xff]
  %v2021 = vld [vmem:[%s6 + $0xb20] sm:$0xff]
  %v2022 = vld [vmem:[%s6 + $0xb28] sm:$0xf]
  %v2023 = vld [vmem:[%s6 + $0xb2c] sm:$0xff]
  %v2024 = vld [vmem:[%s6 + $0xb34] sm:$0xff]
  %v2025 = vld [vmem:[%s6 + $0xb3c] sm:$0xf]
  %v2026 = vld [vmem:[%s6 + $0xb40] sm:$0xff]
  %v2027 = vld [vmem:[%s6 + $0xb48] sm:$0xff]
  %v2028 = vld [vmem:[%s6 + $0xb50] sm:$0xf]
  %v2029 = vld [vmem:[%s6 + $0xb54] sm:$0xff]
  %v2030 = vld [vmem:[%s6 + $0xb5c] sm:$0xff]
  %v2031 = vld [vmem:[%s6 + $0xb64] sm:$0xf]
  %v2032 = vld [vmem:[%s6 + $0xb68] sm:$0xff]
  %v2033 = vld [vmem:[%s6 + $0xb70] sm:$0xff]
  %v2034 = vld [vmem:[%s6 + $0xb78] sm:$0xf]
  %v2035 = vld [vmem:[%s6 + $0xb7c] sm:$0xff]
  %v2036 = vld [vmem:[%s6 + $0xb84] sm:$0xff]
  %v2037 = vld [vmem:[%s6 + $0xb8c] sm:$0xf]
  %v2038 = vld [vmem:[%s6 + $0xb90] sm:$0xff]
  %v2039 = vld [vmem:[%s6 + $0xb98] sm:$0xff]
  %v2040 = vld [vmem:[%s6 + $0xba0] sm:$0xf]
  %v2041 = vld [vmem:[%s6 + $0xba4] sm:$0xff]
  %v2042 = vld [vmem:[%s6 + $0xbac] sm:$0xff]
  %v2043 = vld [vmem:[%s6 + $0xbb4] sm:$0xf]
  %v2044 = vld [vmem:[%s6 + $0xbb8] sm:$0xff]
  %v2045 = vld [vmem:[%s6 + $0xbc0] sm:$0xff]
  %v2046 = vld [vmem:[%s6 + $0xbc8] sm:$0xf]
  %v2047 = vld [vmem:[%s6 + $0xbcc] sm:$0xff]
  %v2048 = vld [vmem:[%s6 + $0xbd4] sm:$0xff]
  %v2049 = vld [vmem:[%s6 + $0xbdc] sm:$0xf]
  %v2050 = vld [vmem:[%s6 + $0xbe0] sm:$0xff]
  %v2051 = vld [vmem:[%s6 + $0xbe8] sm:$0xff]
  %v2052 = vld [vmem:[%s6 + $0xbf0] sm:$0xf]
  %v2053 = vld [vmem:[%s6 + $0xbf4] sm:$0xff]
  %v2054 = vld [vmem:[%s6 + $0xbfc] sm:$0xff]
  %v2055 = vld [vmem:[%s6 + $0xc04] sm:$0xf]
  %v2056 = vld [vmem:[%s6 + $0xc08] sm:$0xff]
  %v2057 = vld [vmem:[%s6 + $0xc10] sm:$0xff]
  %v2058 = vld [vmem:[%s6 + $0xc18] sm:$0xf]
  %v2059 = vld [vmem:[%s6 + $0xc1c] sm:$0xff]
  %v2060 = vld [vmem:[%s6 + $0xc24] sm:$0xff]
  %v2061 = vld [vmem:[%s6 + $0xc2c] sm:$0xf]
  %v2062 = vld [vmem:[%s6 + $0xc30] sm:$0xff]
  %v2063 = vld [vmem:[%s6 + $0xc38] sm:$0xff]
  %v2064 = vld [vmem:[%s6 + $0xc40] sm:$0xf]
  %v2065 = vld [vmem:[%s6 + $0xc44] sm:$0xff]
  %v2066 = vld [vmem:[%s6 + $0xc4c] sm:$0xff]
  %v2067 = vld [vmem:[%s6 + $0xc54] sm:$0xf]
  %v2068 = vld [vmem:[%s6 + $0xc58] sm:$0xff]
  %v2069 = vld [vmem:[%s6 + $0xc60] sm:$0xff]
  %v2070 = vld [vmem:[%s6 + $0xc68] sm:$0xf]
  %v2071 = vld [vmem:[%s6 + $0xc6c] sm:$0xff]
  %v2072 = vld [vmem:[%s6 + $0xc74] sm:$0xff]
  %v2073 = vld [vmem:[%s6 + $0xc7c] sm:$0xf]
  %v2074 = vld [vmem:[%s6 + $0xc80] sm:$0xff]
  %v2075 = vld [vmem:[%s6 + $0xc88] sm:$0xff]
  %v2076 = vld [vmem:[%s6 + $0xc90] sm:$0xf]
  %v2077 = vld [vmem:[%s6 + $0xc94] sm:$0xff]
  %v2078 = vld [vmem:[%s6 + $0xc9c] sm:$0xff]
  %v2079 = vld [vmem:[%s6 + $0xca4] sm:$0xf]
  %v2080 = vld [vmem:[%s6 + $0xca8] sm:$0xff]
  %v2081 = vld [vmem:[%s6 + $0xcb0] sm:$0xff]
  %v2082 = vld [vmem:[%s6 + $0xcb8] sm:$0xf]
  %v2083 = vld [vmem:[%s6 + $0xcbc] sm:$0xff]
  %v2084 = vld [vmem:[%s6 + $0xcc4] sm:$0xff]
  %v2085 = vld [vmem:[%s6 + $0xccc] sm:$0xf]
  %v2086 = vld [vmem:[%s6 + $0xcd0] sm:$0xff]
  %v2087 = vld [vmem:[%s6 + $0xcd8] sm:$0xff]
  %v2088 = vld [vmem:[%s6 + $0xce0] sm:$0xf]
  %v2089 = vld [vmem:[%s6 + $0xce4] sm:$0xff]
  %v2090 = vld [vmem:[%s6 + $0xcec] sm:$0xff]
  %v2091 = vld [vmem:[%s6 + $0xcf4] sm:$0xf]
  %v2092 = vld [vmem:[%s6 + $0xcf8] sm:$0xff]
  %v2093 = vld [vmem:[%s6 + $0xd00] sm:$0xff]
  %v2094 = vld [vmem:[%s6 + $0xd08] sm:$0xf]
  %v2095 = vld [vmem:[%s6 + $0xd0c] sm:$0xff]
  %v2096 = vld [vmem:[%s6 + $0xd14] sm:$0xff]
  %v2097 = vld [vmem:[%s6 + $0xd1c] sm:$0xf]
  %v2098 = vld [vmem:[%s6 + $0xd20] sm:$0xff]
  %v2099 = vld [vmem:[%s6 + $0xd28] sm:$0xff]
  %v2100 = vld [vmem:[%s6 + $0xd30] sm:$0xf]
  %v2101 = vld [vmem:[%s6 + $0xd34] sm:$0xff]
  %v2102 = vld [vmem:[%s6 + $0xd3c] sm:$0xff]
  %v2103 = vld [vmem:[%s6 + $0xd44] sm:$0xf]
  %v2104 = vld [vmem:[%s6 + $0xd48] sm:$0xff]
  %v2105 = vld [vmem:[%s6 + $0xd50] sm:$0xff]
  %v2106 = vld [vmem:[%s6 + $0xd58] sm:$0xf]
  %v2107 = vld [vmem:[%s6 + $0xd5c] sm:$0xff]
  %v2108 = vld [vmem:[%s6 + $0xd64] sm:$0xff]
  %v2109 = vld [vmem:[%s6 + $0xd6c] sm:$0xf]
  %v2110 = vld [vmem:[%s6 + $0xd70] sm:$0xff]
  %v2111 = vld [vmem:[%s6 + $0xd78] sm:$0xff]
  %v2112 = vld [vmem:[%s6 + $0xd80] sm:$0xf]
  %v2113 = vld [vmem:[%s6 + $0xd84] sm:$0xff]
  %v2114 = vld [vmem:[%s6 + $0xd8c] sm:$0xff]
  %v2115 = vld [vmem:[%s6 + $0xd94] sm:$0xf]
  %v2116 = vld [vmem:[%s6 + $0xd98] sm:$0xff]
  %v2117 = vld [vmem:[%s6 + $0xda0] sm:$0xff]
  %v2118 = vld [vmem:[%s6 + $0xda8] sm:$0xf]
  %v2119 = vld [vmem:[%s6 + $0xdac] sm:$0xff]
  %v2120 = vld [vmem:[%s6 + $0xdb4] sm:$0xff]
  %v2121 = vld [vmem:[%s6 + $0xdbc] sm:$0xf]
  %v2122 = vld [vmem:[%s6 + $0xdc0] sm:$0xff]
  %v2123 = vld [vmem:[%s6 + $0xdc8] sm:$0xff]
  %v2124 = vld [vmem:[%s6 + $0xdd0] sm:$0xf]
  %v2125 = vld [vmem:[%s6 + $0xdd4] sm:$0xff]
  %v2126 = vld [vmem:[%s6 + $0xddc] sm:$0xff]
  %v2127 = vld [vmem:[%s6 + $0xde4] sm:$0xf]
  %v2128 = vld [vmem:[%s6 + $0xde8] sm:$0xff]
  %v2129 = vld [vmem:[%s6 + $0xdf0] sm:$0xff]
  %v2130 = vld [vmem:[%s6 + $0xdf8] sm:$0xf]
  %v2131 = vld [vmem:[%s6 + $0xdfc] sm:$0xff]
  %v2132 = vld [vmem:[%s6 + $0xe04] sm:$0xff]
  %v2133 = vld [vmem:[%s6 + $0xe0c] sm:$0xf]
  %v2134 = vld [vmem:[%s6 + $0xe10] sm:$0xff]
  %v2135 = vld [vmem:[%s6 + $0xe18] sm:$0xff]
  %v2136 = vld [vmem:[%s6 + $0xe20] sm:$0xf]
  %v2137 = vld [vmem:[%s6 + $0xe24] sm:$0xff]
  %v2138 = vld [vmem:[%s6 + $0xe2c] sm:$0xff]
  %v2139 = vld [vmem:[%s6 + $0xe34] sm:$0xf]
  %v2140 = vld [vmem:[%s6 + $0xe38] sm:$0xff]
  %v2141 = vld [vmem:[%s6 + $0xe40] sm:$0xff]
  %v2142 = vld [vmem:[%s6 + $0xe48] sm:$0xf]
  %v2143 = vld [vmem:[%s6 + $0xe4c] sm:$0xff]
  %v2144 = vld [vmem:[%s6 + $0xe54] sm:$0xff]
  %v2145 = vld [vmem:[%s6 + $0xe5c] sm:$0xf]
  %v2146 = vld [vmem:[%s6 + $0xe60] sm:$0xff]
  %v2147 = vld [vmem:[%s6 + $0xe68] sm:$0xff]
  %v2148 = vld [vmem:[%s6 + $0xe70] sm:$0xf]
  %v2149 = vld [vmem:[%s6 + $0xe74] sm:$0xff]
  %v2150 = vld [vmem:[%s6 + $0xe7c] sm:$0xff]
  %v2151 = vld [vmem:[%s6 + $0xe84] sm:$0xf]
  %v2152 = vld [vmem:[%s6 + $0xe88] sm:$0xff]
  %v2153 = vld [vmem:[%s6 + $0xe90] sm:$0xff]
  %v2154 = vld [vmem:[%s6 + $0xe98] sm:$0xf]
  %v2155 = vld [vmem:[%s6 + $0xe9c] sm:$0xff]
  %v2156 = vld [vmem:[%s6 + $0xea4] sm:$0xff]
  %v2157 = vld [vmem:[%s6 + $0xeac] sm:$0xf]
  %v2158 = vld [vmem:[%s6 + $0xeb0] sm:$0xff]
  %v2159 = vld [vmem:[%s6 + $0xeb8] sm:$0xff]
  %v2160 = vld [vmem:[%s6 + $0xec0] sm:$0xf]
  %v2161 = vld [vmem:[%s6 + $0xec4] sm:$0xff]
  %v2162 = vld [vmem:[%s6 + $0xecc] sm:$0xff]
  %v2163 = vld [vmem:[%s6 + $0xed4] sm:$0xf]
  %v2164 = vld [vmem:[%s6 + $0xed8] sm:$0xff]
  %v2165 = vld [vmem:[%s6 + $0xee0] sm:$0xff]
  %v2166 = vld [vmem:[%s6 + $0xee8] sm:$0xf]
  %v2167 = vld [vmem:[%s6 + $0xeec] sm:$0xff]
  %v2168 = vld [vmem:[%s6 + $0xef4] sm:$0xff]
  %v2169 = vld [vmem:[%s6 + $0xefc] sm:$0xf]
  %v2170 = vld [vmem:[%s7] sm:$0xff]
  %v2171 = vld [vmem:[%s7 + $0x8] sm:$0xf]
  %v2172 = vld [vmem:[%s8] sm:$0xf]
  %v2173 = vpack.c.bf16 %v1582, %v1570
  %v2174 = vpack.c.bf16 %v1583, %v1571
  %v2175 = vpack.c.bf16 %v1584, %v1572
  %v2176 = vpack.c.bf16 %v1585, %v1573
  %v2177 = vpack.c.bf16 %v1586, %v1574
  %v2178 = vpack.c.bf16 %v1587, %v1575
  %v2179 = vpack.c.bf16 %v1588, %v1576
  %v2180 = vpack.c.bf16 %v1589, %v1577
  %v2181 = vpack.c.bf16 %v1590, %v1578
  %v2182 = vpack.c.bf16 %v1591, %v1579
  %v2183 = vpack.c.bf16 %v1592, %v1580
  %v2184 = vpack.c.bf16 %v1593, %v1581
  %v2761 = vunpack.c.l.b16 %v1594
  %v2762 = vunpack.c.h.b16 %v1594
  %v2763 = vunpack.c.l.b16 %v1595
  %v2764 = vunpack.c.h.b16 %v1595
  %v2765 = vunpack.c.l.b16 %v1596
  %v2766 = vunpack.c.l.b16 %v1597
  %v2767 = vunpack.c.h.b16 %v1597
  %v2768 = vunpack.c.l.b16 %v1598
  %v2769 = vunpack.c.h.b16 %v1598
  %v2770 = vunpack.c.l.b16 %v1599
  %v2771 = vunpack.c.l.b16 %v1600
  %v2772 = vunpack.c.h.b16 %v1600
  %v2773 = vunpack.c.l.b16 %v1601
  %v2774 = vunpack.c.h.b16 %v1601
  %v2775 = vunpack.c.l.b16 %v1602
  %v2776 = vunpack.c.l.b16 %v1603
  %v2777 = vunpack.c.h.b16 %v1603
  %v2778 = vunpack.c.l.b16 %v1604
  %v2779 = vunpack.c.h.b16 %v1604
  %v2780 = vunpack.c.l.b16 %v1605
  %v2781 = vunpack.c.l.b16 %v1606
  %v2782 = vunpack.c.h.b16 %v1606
  %v2783 = vunpack.c.l.b16 %v1607
  %v2784 = vunpack.c.h.b16 %v1607
  %v2785 = vunpack.c.l.b16 %v1608
  %v2786 = vunpack.c.l.b16 %v1609
  %v2787 = vunpack.c.h.b16 %v1609
  %v2788 = vunpack.c.l.b16 %v1610
  %v2789 = vunpack.c.h.b16 %v1610
  %v2790 = vunpack.c.l.b16 %v1611
  %v2791 = vunpack.c.l.b16 %v1612
  %v2792 = vunpack.c.h.b16 %v1612
  %v2793 = vunpack.c.l.b16 %v1613
  %v2794 = vunpack.c.h.b16 %v1613
  %v2795 = vunpack.c.l.b16 %v1614
  %v2796 = vunpack.c.l.b16 %v1615
  %v2797 = vunpack.c.h.b16 %v1615
  %v2798 = vunpack.c.l.b16 %v1616
  %v2799 = vunpack.c.h.b16 %v1616
  %v2800 = vunpack.c.l.b16 %v1617
  %v2801 = vunpack.c.l.b16 %v1618
  %v2802 = vunpack.c.h.b16 %v1618
  %v2803 = vunpack.c.l.b16 %v1619
  %v2804 = vunpack.c.h.b16 %v1619
  %v2805 = vunpack.c.l.b16 %v1620
  %v2806 = vunpack.c.l.b16 %v1621
  %v2807 = vunpack.c.h.b16 %v1621
  %v2808 = vunpack.c.l.b16 %v1622
  %v2809 = vunpack.c.h.b16 %v1622
  %v2810 = vunpack.c.l.b16 %v1623
  %v2811 = vunpack.c.l.b16 %v1624
  %v2812 = vunpack.c.h.b16 %v1624
  %v2813 = vunpack.c.l.b16 %v1625
  %v2814 = vunpack.c.h.b16 %v1625
  %v2815 = vunpack.c.l.b16 %v1626
  %v2816 = vunpack.c.l.b16 %v1627
  %v2817 = vunpack.c.h.b16 %v1627
  %v2818 = vunpack.c.l.b16 %v1628
  %v2819 = vunpack.c.h.b16 %v1628
  %v2820 = vunpack.c.l.b16 %v1629
  %v2821 = vunpack.c.l.b16 %v1630
  %v2822 = vunpack.c.h.b16 %v1630
  %v2823 = vunpack.c.l.b16 %v1631
  %v2824 = vunpack.c.h.b16 %v1631
  %v2825 = vunpack.c.l.b16 %v1632
  %v2826 = vunpack.c.l.b16 %v1633
  %v2827 = vunpack.c.h.b16 %v1633
  %v2828 = vunpack.c.l.b16 %v1634
  %v2829 = vunpack.c.h.b16 %v1634
  %v2830 = vunpack.c.l.b16 %v1635
  %v2831 = vunpack.c.l.b16 %v1636
  %v2832 = vunpack.c.h.b16 %v1636
  %v2833 = vunpack.c.l.b16 %v1637
  %v2834 = vunpack.c.h.b16 %v1637
  %v2835 = vunpack.c.l.b16 %v1638
  %v2836 = vunpack.c.l.b16 %v1639
  %v2837 = vunpack.c.h.b16 %v1639
  %v2838 = vunpack.c.l.b16 %v1640
  %v2839 = vunpack.c.h.b16 %v1640
  %v2840 = vunpack.c.l.b16 %v1641
  %v2841 = vunpack.c.l.b16 %v1642
  %v2842 = vunpack.c.h.b16 %v1642
  %v2843 = vunpack.c.l.b16 %v1643
  %v2844 = vunpack.c.h.b16 %v1643
  %v2845 = vunpack.c.l.b16 %v1644
  %v2846 = vunpack.c.l.b16 %v1645
  %v2847 = vunpack.c.h.b16 %v1645
  %v2848 = vunpack.c.l.b16 %v1646
  %v2849 = vunpack.c.h.b16 %v1646
  %v2850 = vunpack.c.l.b16 %v1647
  %v2851 = vunpack.c.l.b16 %v1648
  %v2852 = vunpack.c.h.b16 %v1648
  %v2853 = vunpack.c.l.b16 %v1649
  %v2854 = vunpack.c.h.b16 %v1649
  %v2855 = vunpack.c.l.b16 %v1650
  %v2856 = vunpack.c.l.b16 %v1651
  %v2857 = vunpack.c.h.b16 %v1651
  %v2858 = vunpack.c.l.b16 %v1652
  %v2859 = vunpack.c.h.b16 %v1652
  %v2860 = vunpack.c.l.b16 %v1653
  %v2861 = vunpack.c.l.b16 %v1654
  %v2862 = vunpack.c.h.b16 %v1654
  %v2863 = vunpack.c.l.b16 %v1655
  %v2864 = vunpack.c.h.b16 %v1655
  %v2865 = vunpack.c.l.b16 %v1656
  %v2866 = vunpack.c.l.b16 %v1657
  %v2867 = vunpack.c.h.b16 %v1657
  %v2868 = vunpack.c.l.b16 %v1658
  %v2869 = vunpack.c.h.b16 %v1658
  %v2870 = vunpack.c.l.b16 %v1659
  %v2871 = vunpack.c.l.b16 %v1660
  %v2872 = vunpack.c.h.b16 %v1660
  %v2873 = vunpack.c.l.b16 %v1661
  %v2874 = vunpack.c.h.b16 %v1661
  %v2875 = vunpack.c.l.b16 %v1662
  %v2876 = vunpack.c.l.b16 %v1663
  %v2877 = vunpack.c.h.b16 %v1663
  %v2878 = vunpack.c.l.b16 %v1664
  %v2879 = vunpack.c.h.b16 %v1664
  %v2880 = vunpack.c.l.b16 %v1665
  %v2881 = vunpack.c.l.b16 %v1666
  %v2882 = vunpack.c.h.b16 %v1666
  %v2883 = vunpack.c.l.b16 %v1667
  %v2884 = vunpack.c.h.b16 %v1667
  %v2885 = vunpack.c.l.b16 %v1668
  %v2886 = vunpack.c.l.b16 %v1669
  %v2887 = vunpack.c.h.b16 %v1669
  %v2888 = vunpack.c.l.b16 %v1670
  %v2889 = vunpack.c.h.b16 %v1670
  %v2890 = vunpack.c.l.b16 %v1671
  %v2891 = vunpack.c.l.b16 %v1672
  %v2892 = vunpack.c.h.b16 %v1672
  %v2893 = vunpack.c.l.b16 %v1673
  %v2894 = vunpack.c.h.b16 %v1673
  %v2895 = vunpack.c.l.b16 %v1674
  %v2896 = vunpack.c.l.b16 %v1675
  %v2897 = vunpack.c.h.b16 %v1675
  %v2898 = vunpack.c.l.b16 %v1676
  %v2899 = vunpack.c.h.b16 %v1676
  %v2900 = vunpack.c.l.b16 %v1677
  %v2901 = vunpack.c.l.b16 %v1678
  %v2902 = vunpack.c.h.b16 %v1678
  %v2903 = vunpack.c.l.b16 %v1679
  %v2904 = vunpack.c.h.b16 %v1679
  %v2905 = vunpack.c.l.b16 %v1680
  %v2906 = vunpack.c.l.b16 %v1681
  %v2907 = vunpack.c.h.b16 %v1681
  %v2908 = vunpack.c.l.b16 %v1682
  %v2909 = vunpack.c.h.b16 %v1682
  %v2910 = vunpack.c.l.b16 %v1683
  %v2911 = vunpack.c.l.b16 %v1684
  %v2912 = vunpack.c.h.b16 %v1684
  %v2913 = vunpack.c.l.b16 %v1685
  %v2914 = vunpack.c.h.b16 %v1685
  %v2915 = vunpack.c.l.b16 %v1686
  %v2916 = vunpack.c.l.b16 %v1687
  %v2917 = vunpack.c.h.b16 %v1687
  %v2918 = vunpack.c.l.b16 %v1688
  %v2919 = vunpack.c.h.b16 %v1688
  %v2920 = vunpack.c.l.b16 %v1689
  %v2921 = vunpack.c.l.b16 %v1690
  %v2922 = vunpack.c.h.b16 %v1690
  %v2923 = vunpack.c.l.b16 %v1691
  %v2924 = vunpack.c.h.b16 %v1691
  %v2925 = vunpack.c.l.b16 %v1692
  %v2926 = vunpack.c.l.b16 %v1693
  %v2927 = vunpack.c.h.b16 %v1693
  %v2928 = vunpack.c.l.b16 %v1694
  %v2929 = vunpack.c.h.b16 %v1694
  %v2930 = vunpack.c.l.b16 %v1695
  %v2931 = vunpack.c.l.b16 %v1696
  %v2932 = vunpack.c.h.b16 %v1696
  %v2933 = vunpack.c.l.b16 %v1697
  %v2934 = vunpack.c.h.b16 %v1697
  %v2935 = vunpack.c.l.b16 %v1698
  %v2936 = vunpack.c.l.b16 %v1699
  %v2937 = vunpack.c.h.b16 %v1699
  %v2938 = vunpack.c.l.b16 %v1700
  %v2939 = vunpack.c.h.b16 %v1700
  %v2940 = vunpack.c.l.b16 %v1701
  %v2941 = vunpack.c.l.b16 %v1702
  %v2942 = vunpack.c.h.b16 %v1702
  %v2943 = vunpack.c.l.b16 %v1703
  %v2944 = vunpack.c.h.b16 %v1703
  %v2945 = vunpack.c.l.b16 %v1704
  %v2946 = vunpack.c.l.b16 %v1705
  %v2947 = vunpack.c.h.b16 %v1705
  %v2948 = vunpack.c.l.b16 %v1706
  %v2949 = vunpack.c.h.b16 %v1706
  %v2950 = vunpack.c.l.b16 %v1707
  %v2951 = vunpack.c.l.b16 %v1708
  %v2952 = vunpack.c.h.b16 %v1708
  %v2953 = vunpack.c.l.b16 %v1709
  %v2954 = vunpack.c.h.b16 %v1709
  %v2955 = vunpack.c.l.b16 %v1710
  %v2956 = vunpack.c.l.b16 %v1711
  %v2957 = vunpack.c.h.b16 %v1711
  %v2958 = vunpack.c.l.b16 %v1712
  %v2959 = vunpack.c.h.b16 %v1712
  %v2960 = vunpack.c.l.b16 %v1713
  %v2961 = vunpack.c.l.b16 %v1714
  %v2962 = vunpack.c.h.b16 %v1714
  %v2963 = vunpack.c.l.b16 %v1715
  %v2964 = vunpack.c.h.b16 %v1715
  %v2965 = vunpack.c.l.b16 %v1716
  %v2966 = vunpack.c.l.b16 %v1717
  %v2967 = vunpack.c.h.b16 %v1717
  %v2968 = vunpack.c.l.b16 %v1718
  %v2969 = vunpack.c.h.b16 %v1718
  %v2970 = vunpack.c.l.b16 %v1719
  %v2971 = vunpack.c.l.b16 %v1720
  %v2972 = vunpack.c.h.b16 %v1720
  %v2973 = vunpack.c.l.b16 %v1721
  %v2974 = vunpack.c.h.b16 %v1721
  %v2975 = vunpack.c.l.b16 %v1722
  %v2976 = vunpack.c.l.b16 %v1723
  %v2977 = vunpack.c.h.b16 %v1723
  %v2978 = vunpack.c.l.b16 %v1724
  %v2979 = vunpack.c.h.b16 %v1724
  %v2980 = vunpack.c.l.b16 %v1725
  %v2981 = vunpack.c.l.b16 %v1726
  %v2982 = vunpack.c.h.b16 %v1726
  %v2983 = vunpack.c.l.b16 %v1727
  %v2984 = vunpack.c.h.b16 %v1727
  %v2985 = vunpack.c.l.b16 %v1728
  %v2986 = vunpack.c.l.b16 %v1729
  %v2987 = vunpack.c.h.b16 %v1729
  %v2988 = vunpack.c.l.b16 %v1730
  %v2989 = vunpack.c.h.b16 %v1730
  %v2990 = vunpack.c.l.b16 %v1731
  %v2991 = vunpack.c.l.b16 %v1732
  %v2992 = vunpack.c.h.b16 %v1732
  %v2993 = vunpack.c.l.b16 %v1733
  %v2994 = vunpack.c.h.b16 %v1733
  %v2995 = vunpack.c.l.b16 %v1734
  %v2996 = vunpack.c.l.b16 %v1735
  %v2997 = vunpack.c.h.b16 %v1735
  %v2998 = vunpack.c.l.b16 %v1736
  %v2999 = vunpack.c.h.b16 %v1736
  %v3000 = vunpack.c.l.b16 %v1737
  %v3001 = vunpack.c.l.b16 %v1738
  %v3002 = vunpack.c.h.b16 %v1738
  %v3003 = vunpack.c.l.b16 %v1739
  %v3004 = vunpack.c.h.b16 %v1739
  %v3005 = vunpack.c.l.b16 %v1740
  %v3006 = vunpack.c.l.b16 %v1741
  %v3007 = vunpack.c.h.b16 %v1741
  %v3008 = vunpack.c.l.b16 %v1742
  %v3009 = vunpack.c.h.b16 %v1742
  %v3010 = vunpack.c.l.b16 %v1743
  %v3011 = vunpack.c.l.b16 %v1744
  %v3012 = vunpack.c.h.b16 %v1744
  %v3013 = vunpack.c.l.b16 %v1745
  %v3014 = vunpack.c.h.b16 %v1745
  %v3015 = vunpack.c.l.b16 %v1746
  %v3016 = vunpack.c.l.b16 %v1747
  %v3017 = vunpack.c.h.b16 %v1747
  %v3018 = vunpack.c.l.b16 %v1748
  %v3019 = vunpack.c.h.b16 %v1748
  %v3020 = vunpack.c.l.b16 %v1749
  %v3021 = vunpack.c.l.b16 %v1750
  %v3022 = vunpack.c.h.b16 %v1750
  %v3023 = vunpack.c.l.b16 %v1751
  %v3024 = vunpack.c.h.b16 %v1751
  %v3025 = vunpack.c.l.b16 %v1752
  %v3026 = vunpack.c.l.b16 %v1753
  %v3027 = vunpack.c.h.b16 %v1753
  %v3028 = vunpack.c.l.b16 %v1754
  %v3029 = vunpack.c.h.b16 %v1754
  %v3030 = vunpack.c.l.b16 %v1755
  %v3031 = vunpack.c.l.b16 %v1756
  %v3032 = vunpack.c.h.b16 %v1756
  %v3033 = vunpack.c.l.b16 %v1757
  %v3034 = vunpack.c.h.b16 %v1757
  %v3035 = vunpack.c.l.b16 %v1758
  %v3036 = vunpack.c.l.b16 %v1759
  %v3037 = vunpack.c.h.b16 %v1759
  %v3038 = vunpack.c.l.b16 %v1760
  %v3039 = vunpack.c.h.b16 %v1760
  %v3040 = vunpack.c.l.b16 %v1761
  %v3041 = vunpack.c.l.b16 %v1762
  %v3042 = vunpack.c.h.b16 %v1762
  %v3043 = vunpack.c.l.b16 %v1763
  %v3044 = vunpack.c.h.b16 %v1763
  %v3045 = vunpack.c.l.b16 %v1764
  %v3046 = vunpack.c.l.b16 %v1765
  %v3047 = vunpack.c.h.b16 %v1765
  %v3048 = vunpack.c.l.b16 %v1766
  %v3049 = vunpack.c.h.b16 %v1766
  %v3050 = vunpack.c.l.b16 %v1767
  %v3051 = vunpack.c.l.b16 %v1768
  %v3052 = vunpack.c.h.b16 %v1768
  %v3053 = vunpack.c.l.b16 %v1769
  %v3054 = vunpack.c.h.b16 %v1769
  %v3055 = vunpack.c.l.b16 %v1770
  %v3056 = vunpack.c.l.b16 %v1771
  %v3057 = vunpack.c.h.b16 %v1771
  %v3058 = vunpack.c.l.b16 %v1772
  %v3059 = vunpack.c.h.b16 %v1772
  %v3060 = vunpack.c.l.b16 %v1773
  %v3061 = vunpack.c.l.b16 %v1774
  %v3062 = vunpack.c.h.b16 %v1774
  %v3063 = vunpack.c.l.b16 %v1775
  %v3064 = vunpack.c.h.b16 %v1775
  %v3065 = vunpack.c.l.b16 %v1776
  %v3066 = vunpack.c.l.b16 %v1777
  %v3067 = vunpack.c.h.b16 %v1777
  %v3068 = vunpack.c.l.b16 %v1778
  %v3069 = vunpack.c.h.b16 %v1778
  %v3070 = vunpack.c.l.b16 %v1779
  %v3071 = vunpack.c.l.b16 %v1780
  %v3072 = vunpack.c.h.b16 %v1780
  %v3073 = vunpack.c.l.b16 %v1781
  %v3074 = vunpack.c.h.b16 %v1781
  %v3075 = vunpack.c.l.b16 %v1782
  %v3076 = vunpack.c.l.b16 %v1783
  %v3077 = vunpack.c.h.b16 %v1783
  %v3078 = vunpack.c.l.b16 %v1784
  %v3079 = vunpack.c.h.b16 %v1784
  %v3080 = vunpack.c.l.b16 %v1785
  %v3081 = vunpack.c.l.b16 %v1786
  %v3082 = vunpack.c.h.b16 %v1786
  %v3083 = vunpack.c.l.b16 %v1787
  %v3084 = vunpack.c.h.b16 %v1787
  %v3085 = vunpack.c.l.b16 %v1788
  %v3086 = vunpack.c.l.b16 %v1789
  %v3087 = vunpack.c.h.b16 %v1789
  %v3088 = vunpack.c.l.b16 %v1790
  %v3089 = vunpack.c.h.b16 %v1790
  %v3090 = vunpack.c.l.b16 %v1791
  %v3091 = vunpack.c.l.b16 %v1792
  %v3092 = vunpack.c.h.b16 %v1792
  %v3093 = vunpack.c.l.b16 %v1793
  %v3094 = vunpack.c.h.b16 %v1793
  %v3095 = vunpack.c.l.b16 %v1794
  %v3096 = vunpack.c.l.b16 %v1795
  %v3097 = vunpack.c.h.b16 %v1795
  %v3098 = vunpack.c.l.b16 %v1796
  %v3099 = vunpack.c.h.b16 %v1796
  %v3100 = vunpack.c.l.b16 %v1797
  %v3101 = vunpack.c.l.b16 %v1798
  %v3102 = vunpack.c.h.b16 %v1798
  %v3103 = vunpack.c.l.b16 %v1799
  %v3104 = vunpack.c.h.b16 %v1799
  %v3105 = vunpack.c.l.b16 %v1800
  %v3106 = vunpack.c.l.b16 %v1801
  %v3107 = vunpack.c.h.b16 %v1801
  %v3108 = vunpack.c.l.b16 %v1802
  %v3109 = vunpack.c.h.b16 %v1802
  %v3110 = vunpack.c.l.b16 %v1803
  %v3111 = vunpack.c.l.b16 %v1804
  %v3112 = vunpack.c.h.b16 %v1804
  %v3113 = vunpack.c.l.b16 %v1805
  %v3114 = vunpack.c.h.b16 %v1805
  %v3115 = vunpack.c.l.b16 %v1806
  %v3116 = vunpack.c.l.b16 %v1807
  %v3117 = vunpack.c.h.b16 %v1807
  %v3118 = vunpack.c.l.b16 %v1808
  %v3119 = vunpack.c.h.b16 %v1808
  %v3120 = vunpack.c.l.b16 %v1809
  %v3121 = vunpack.c.l.b16 %v1810
  %v3122 = vunpack.c.h.b16 %v1810
  %v3123 = vunpack.c.l.b16 %v1811
  %v3124 = vunpack.c.h.b16 %v1811
  %v3125 = vunpack.c.l.b16 %v1812
  %v3126 = vunpack.c.l.b16 %v1813
  %v3127 = vunpack.c.h.b16 %v1813
  %v3128 = vunpack.c.l.b16 %v1814
  %v3129 = vunpack.c.h.b16 %v1814
  %v3130 = vunpack.c.l.b16 %v1815
  %v3131 = vunpack.c.l.b16 %v1816
  %v3132 = vunpack.c.h.b16 %v1816
  %v3133 = vunpack.c.l.b16 %v1817
  %v3134 = vunpack.c.h.b16 %v1817
  %v3135 = vunpack.c.l.b16 %v1818
  %v3136 = vunpack.c.l.b16 %v1819
  %v3137 = vunpack.c.h.b16 %v1819
  %v3138 = vunpack.c.l.b16 %v1820
  %v3139 = vunpack.c.h.b16 %v1820
  %v3140 = vunpack.c.l.b16 %v1821
  %v3141 = vunpack.c.l.b16 %v1822
  %v3142 = vunpack.c.h.b16 %v1822
  %v3143 = vunpack.c.l.b16 %v1823
  %v3144 = vunpack.c.h.b16 %v1823
  %v3145 = vunpack.c.l.b16 %v1824
  %v3146 = vunpack.c.l.b16 %v1825
  %v3147 = vunpack.c.h.b16 %v1825
  %v3148 = vunpack.c.l.b16 %v1826
  %v3149 = vunpack.c.h.b16 %v1826
  %v3150 = vunpack.c.l.b16 %v1827
  %v3151 = vunpack.c.l.b16 %v1828
  %v3152 = vunpack.c.h.b16 %v1828
  %v3153 = vunpack.c.l.b16 %v1829
  %v3154 = vunpack.c.h.b16 %v1829
  %v3155 = vunpack.c.l.b16 %v1830
  %v3156 = vunpack.c.l.b16 %v1831
  %v3157 = vunpack.c.h.b16 %v1831
  %v3158 = vunpack.c.l.b16 %v1832
  %v3159 = vunpack.c.h.b16 %v1832
  %v3160 = vunpack.c.l.b16 %v1833
  %v3161 = vunpack.c.l.b16 %v1834
  %v3162 = vunpack.c.h.b16 %v1834
  %v3163 = vunpack.c.l.b16 %v1835
  %v3164 = vunpack.c.h.b16 %v1835
  %v3165 = vunpack.c.l.b16 %v1836
  %v3166 = vunpack.c.l.b16 %v1837
  %v3167 = vunpack.c.h.b16 %v1837
  %v3168 = vunpack.c.l.b16 %v1838
  %v3169 = vunpack.c.h.b16 %v1838
  %v3170 = vunpack.c.l.b16 %v1839
  %v3171 = vunpack.c.l.b16 %v1840
  %v3172 = vunpack.c.h.b16 %v1840
  %v3173 = vunpack.c.l.b16 %v1841
  %v3174 = vunpack.c.h.b16 %v1841
  %v3175 = vunpack.c.l.b16 %v1842
  %v3176 = vunpack.c.l.b16 %v1843
  %v3177 = vunpack.c.h.b16 %v1843
  %v3178 = vunpack.c.l.b16 %v1844
  %v3179 = vunpack.c.h.b16 %v1844
  %v3180 = vunpack.c.l.b16 %v1845
  %v3181 = vunpack.c.l.b16 %v1846
  %v3182 = vunpack.c.h.b16 %v1846
  %v3183 = vunpack.c.l.b16 %v1847
  %v3184 = vunpack.c.h.b16 %v1847
  %v3185 = vunpack.c.l.b16 %v1848
  %v3186 = vunpack.c.l.b16 %v1849
  %v3187 = vunpack.c.h.b16 %v1849
  %v3188 = vunpack.c.l.b16 %v1850
  %v3189 = vunpack.c.h.b16 %v1850
  %v3190 = vunpack.c.l.b16 %v1851
  %v3191 = vunpack.c.l.b16 %v1852
  %v3192 = vunpack.c.h.b16 %v1852
  %v3193 = vunpack.c.l.b16 %v1853
  %v3194 = vunpack.c.h.b16 %v1853
  %v3195 = vunpack.c.l.b16 %v1854
  %v3196 = vunpack.c.l.b16 %v1855
  %v3197 = vunpack.c.h.b16 %v1855
  %v3198 = vunpack.c.l.b16 %v1856
  %v3199 = vunpack.c.h.b16 %v1856
  %v3200 = vunpack.c.l.b16 %v1857
  %v3201 = vunpack.c.l.b16 %v1858
  %v3202 = vunpack.c.h.b16 %v1858
  %v3203 = vunpack.c.l.b16 %v1859
  %v3204 = vunpack.c.h.b16 %v1859
  %v3205 = vunpack.c.l.b16 %v1860
  %v3206 = vunpack.c.l.b16 %v1861
  %v3207 = vunpack.c.h.b16 %v1861
  %v3208 = vunpack.c.l.b16 %v1862
  %v3209 = vunpack.c.h.b16 %v1862
  %v3210 = vunpack.c.l.b16 %v1863
  %v3211 = vunpack.c.l.b16 %v1864
  %v3212 = vunpack.c.h.b16 %v1864
  %v3213 = vunpack.c.l.b16 %v1865
  %v3214 = vunpack.c.h.b16 %v1865
  %v3215 = vunpack.c.l.b16 %v1866
  %v3216 = vunpack.c.l.b16 %v1867
  %v3217 = vunpack.c.h.b16 %v1867
  %v3218 = vunpack.c.l.b16 %v1868
  %v3219 = vunpack.c.h.b16 %v1868
  %v3220 = vunpack.c.l.b16 %v1869
  %v3221 = vunpack.c.l.b16 %v1870
  %v3222 = vunpack.c.h.b16 %v1870
  %v3223 = vunpack.c.l.b16 %v1871
  %v3224 = vunpack.c.h.b16 %v1871
  %v3225 = vunpack.c.l.b16 %v1872
  %v3226 = vunpack.c.l.b16 %v1873
  %v3227 = vunpack.c.h.b16 %v1873
  %v3228 = vunpack.c.l.b16 %v1874
  %v3229 = vunpack.c.h.b16 %v1874
  %v3230 = vunpack.c.l.b16 %v1875
  %v3231 = vunpack.c.l.b16 %v1876
  %v3232 = vunpack.c.h.b16 %v1876
  %v3233 = vunpack.c.l.b16 %v1877
  %v3234 = vunpack.c.h.b16 %v1877
  %v3235 = vunpack.c.l.b16 %v1878
  %v3236 = vunpack.c.l.b16 %v1879
  %v3237 = vunpack.c.h.b16 %v1879
  %v3238 = vunpack.c.l.b16 %v1880
  %v3239 = vunpack.c.h.b16 %v1880
  %v3240 = vunpack.c.l.b16 %v1881
  %v3241 = vunpack.c.l.b16 %v1882
  %v3242 = vunpack.c.h.b16 %v1882
  %v3243 = vunpack.c.l.b16 %v1883
  %v3244 = vunpack.c.h.b16 %v1883
  %v3245 = vunpack.c.l.b16 %v1884
  %v3246 = vunpack.c.l.b16 %v1885
  %v3247 = vunpack.c.h.b16 %v1885
  %v3248 = vunpack.c.l.b16 %v1886
  %v3249 = vunpack.c.h.b16 %v1886
  %v3250 = vunpack.c.l.b16 %v1887
  %v3251 = vunpack.c.l.b16 %v1888
  %v3252 = vunpack.c.h.b16 %v1888
  %v3253 = vunpack.c.l.b16 %v1889
  %v3254 = vunpack.c.h.b16 %v1889
  %v3255 = vunpack.c.l.b16 %v1890
  %v3256 = vunpack.c.l.b16 %v1891
  %v3257 = vunpack.c.h.b16 %v1891
  %v3258 = vunpack.c.l.b16 %v1892
  %v3259 = vunpack.c.h.b16 %v1892
  %v3260 = vunpack.c.l.b16 %v1893
  %v3261 = vunpack.c.l.b16 %v1894
  %v3262 = vunpack.c.h.b16 %v1894
  %v3263 = vunpack.c.l.b16 %v1895
  %v3264 = vunpack.c.h.b16 %v1895
  %v3265 = vunpack.c.l.b16 %v1896
  %v3266 = vunpack.c.l.b16 %v1897
  %v3267 = vunpack.c.h.b16 %v1897
  %v3268 = vunpack.c.l.b16 %v1898
  %v3269 = vunpack.c.h.b16 %v1898
  %v3270 = vunpack.c.l.b16 %v1899
  %v3271 = vunpack.c.l.b16 %v1900
  %v3272 = vunpack.c.h.b16 %v1900
  %v3273 = vunpack.c.l.b16 %v1901
  %v3274 = vunpack.c.h.b16 %v1901
  %v3275 = vunpack.c.l.b16 %v1902
  %v3276 = vunpack.c.l.b16 %v1903
  %v3277 = vunpack.c.h.b16 %v1903
  %v3278 = vunpack.c.l.b16 %v1904
  %v3279 = vunpack.c.h.b16 %v1904
  %v3280 = vunpack.c.l.b16 %v1905
  %v3281 = vunpack.c.l.b16 %v1906
  %v3282 = vunpack.c.h.b16 %v1906
  %v3283 = vunpack.c.l.b16 %v1907
  %v3284 = vunpack.c.h.b16 %v1907
  %v3285 = vunpack.c.l.b16 %v1908
  %v3286 = vunpack.c.l.b16 %v1909
  %v3287 = vunpack.c.h.b16 %v1909
  %v3288 = vunpack.c.l.b16 %v1910
  %v3289 = vunpack.c.h.b16 %v1910
  %v3290 = vunpack.c.l.b16 %v1911
  %v3291 = vunpack.c.l.b16 %v1912
  %v3292 = vunpack.c.h.b16 %v1912
  %v3293 = vunpack.c.l.b16 %v1913
  %v3294 = vunpack.c.h.b16 %v1913
  %v3295 = vunpack.c.l.b16 %v1914
  %v3296 = vunpack.c.l.b16 %v1915
  %v3297 = vunpack.c.h.b16 %v1915
  %v3298 = vunpack.c.l.b16 %v1916
  %v3299 = vunpack.c.h.b16 %v1916
  %v3300 = vunpack.c.l.b16 %v1917
  %v3301 = vunpack.c.l.b16 %v1918
  %v3302 = vunpack.c.h.b16 %v1918
  %v3303 = vunpack.c.l.b16 %v1919
  %v3304 = vunpack.c.h.b16 %v1919
  %v3305 = vunpack.c.l.b16 %v1920
  %v3306 = vunpack.c.l.b16 %v1921
  %v3307 = vunpack.c.h.b16 %v1921
  %v3308 = vunpack.c.l.b16 %v1922
  %v3309 = vunpack.c.h.b16 %v1922
  %v3310 = vunpack.c.l.b16 %v1923
  %v3311 = vunpack.c.l.b16 %v1924
  %v3312 = vunpack.c.h.b16 %v1924
  %v3313 = vunpack.c.l.b16 %v1925
  %v3314 = vunpack.c.h.b16 %v1925
  %v3315 = vunpack.c.l.b16 %v1926
  %v3316 = vunpack.c.l.b16 %v1927
  %v3317 = vunpack.c.h.b16 %v1927
  %v3318 = vunpack.c.l.b16 %v1928
  %v3319 = vunpack.c.h.b16 %v1928
  %v3320 = vunpack.c.l.b16 %v1929
  %v3321 = vunpack.c.l.b16 %v1930
  %v3322 = vunpack.c.h.b16 %v1930
  %v3323 = vunpack.c.l.b16 %v1931
  %v3324 = vunpack.c.h.b16 %v1931
  %v3325 = vunpack.c.l.b16 %v1932
  %v3326 = vunpack.c.l.b16 %v1933
  %v3327 = vunpack.c.h.b16 %v1933
  %v3328 = vunpack.c.l.b16 %v1934
  %v3329 = vunpack.c.h.b16 %v1934
  %v3330 = vunpack.c.l.b16 %v1935
  %v3331 = vunpack.c.l.b16 %v1936
  %v3332 = vunpack.c.h.b16 %v1936
  %v3333 = vunpack.c.l.b16 %v1937
  %v3334 = vunpack.c.h.b16 %v1937
  %v3335 = vunpack.c.l.b16 %v1938
  %v3336 = vunpack.c.l.b16 %v1939
  %v3337 = vunpack.c.h.b16 %v1939
  %v3338 = vunpack.c.l.b16 %v1940
  %v3339 = vunpack.c.h.b16 %v1940
  %v3340 = vunpack.c.l.b16 %v1941
  %v3341 = vunpack.c.l.b16 %v1942
  %v3342 = vunpack.c.h.b16 %v1942
  %v3343 = vunpack.c.l.b16 %v1943
  %v3344 = vunpack.c.h.b16 %v1943
  %v3345 = vunpack.c.l.b16 %v1944
  %v3346 = vunpack.c.l.b16 %v1945
  %v3347 = vunpack.c.h.b16 %v1945
  %v3348 = vunpack.c.l.b16 %v1946
  %v3349 = vunpack.c.h.b16 %v1946
  %v3350 = vunpack.c.l.b16 %v1947
  %v3351 = vunpack.c.l.b16 %v1948
  %v3352 = vunpack.c.h.b16 %v1948
  %v3353 = vunpack.c.l.b16 %v1949
  %v3354 = vunpack.c.h.b16 %v1949
  %v3355 = vunpack.c.l.b16 %v1950
  %v3356 = vunpack.c.l.b16 %v1951
  %v3357 = vunpack.c.h.b16 %v1951
  %v3358 = vunpack.c.l.b16 %v1952
  %v3359 = vunpack.c.h.b16 %v1952
  %v3360 = vunpack.c.l.b16 %v1953
  %v3361 = vunpack.c.l.b16 %v1954
  %v3362 = vunpack.c.h.b16 %v1954
  %v3363 = vunpack.c.l.b16 %v1955
  %v3364 = vunpack.c.h.b16 %v1955
  %v3365 = vunpack.c.l.b16 %v1956
  %v3366 = vunpack.c.l.b16 %v1957
  %v3367 = vunpack.c.h.b16 %v1957
  %v3368 = vunpack.c.l.b16 %v1958
  %v3369 = vunpack.c.h.b16 %v1958
  %v3370 = vunpack.c.l.b16 %v1959
  %v3371 = vunpack.c.l.b16 %v1960
  %v3372 = vunpack.c.h.b16 %v1960
  %v3373 = vunpack.c.l.b16 %v1961
  %v3374 = vunpack.c.h.b16 %v1961
  %v3375 = vunpack.c.l.b16 %v1962
  %v3376 = vunpack.c.l.b16 %v1963
  %v3377 = vunpack.c.h.b16 %v1963
  %v3378 = vunpack.c.l.b16 %v1964
  %v3379 = vunpack.c.h.b16 %v1964
  %v3380 = vunpack.c.l.b16 %v1965
  %v3381 = vunpack.c.l.b16 %v1966
  %v3382 = vunpack.c.h.b16 %v1966
  %v3383 = vunpack.c.l.b16 %v1967
  %v3384 = vunpack.c.h.b16 %v1967
  %v3385 = vunpack.c.l.b16 %v1968
  %v3386 = vunpack.c.l.b16 %v1969
  %v3387 = vunpack.c.h.b16 %v1969
  %v3388 = vunpack.c.l.b16 %v1970
  %v3389 = vunpack.c.h.b16 %v1970
  %v3390 = vunpack.c.l.b16 %v1971
  %v3391 = vunpack.c.l.b16 %v1972
  %v3392 = vunpack.c.h.b16 %v1972
  %v3393 = vunpack.c.l.b16 %v1973
  %v3394 = vunpack.c.h.b16 %v1973
  %v3395 = vunpack.c.l.b16 %v1974
  %v3396 = vunpack.c.l.b16 %v1975
  %v3397 = vunpack.c.h.b16 %v1975
  %v3398 = vunpack.c.l.b16 %v1976
  %v3399 = vunpack.c.h.b16 %v1976
  %v3400 = vunpack.c.l.b16 %v1977
  %v3401 = vunpack.c.l.b16 %v1978
  %v3402 = vunpack.c.h.b16 %v1978
  %v3403 = vunpack.c.l.b16 %v1979
  %v3404 = vunpack.c.h.b16 %v1979
  %v3405 = vunpack.c.l.b16 %v1980
  %v3406 = vunpack.c.l.b16 %v1981
  %v3407 = vunpack.c.h.b16 %v1981
  %v3408 = vunpack.c.l.b16 %v1982
  %v3409 = vunpack.c.h.b16 %v1982
  %v3410 = vunpack.c.l.b16 %v1983
  %v3411 = vunpack.c.l.b16 %v1984
  %v3412 = vunpack.c.h.b16 %v1984
  %v3413 = vunpack.c.l.b16 %v1985
  %v3414 = vunpack.c.h.b16 %v1985
  %v3415 = vunpack.c.l.b16 %v1986
  %v3416 = vunpack.c.l.b16 %v1987
  %v3417 = vunpack.c.h.b16 %v1987
  %v3418 = vunpack.c.l.b16 %v1988
  %v3419 = vunpack.c.h.b16 %v1988
  %v3420 = vunpack.c.l.b16 %v1989
  %v3421 = vunpack.c.l.b16 %v1990
  %v3422 = vunpack.c.h.b16 %v1990
  %v3423 = vunpack.c.l.b16 %v1991
  %v3424 = vunpack.c.h.b16 %v1991
  %v3425 = vunpack.c.l.b16 %v1992
  %v3426 = vunpack.c.l.b16 %v1993
  %v3427 = vunpack.c.h.b16 %v1993
  %v3428 = vunpack.c.l.b16 %v1994
  %v3429 = vunpack.c.h.b16 %v1994
  %v3430 = vunpack.c.l.b16 %v1995
  %v3431 = vunpack.c.l.b16 %v1996
  %v3432 = vunpack.c.h.b16 %v1996
  %v3433 = vunpack.c.l.b16 %v1997
  %v3434 = vunpack.c.h.b16 %v1997
  %v3435 = vunpack.c.l.b16 %v1998
  %v3436 = vunpack.c.l.b16 %v1999
  %v3437 = vunpack.c.h.b16 %v1999
  %v3438 = vunpack.c.l.b16 %v2000
  %v3439 = vunpack.c.h.b16 %v2000
  %v3440 = vunpack.c.l.b16 %v2001
  %v3441 = vunpack.c.l.b16 %v2002
  %v3442 = vunpack.c.h.b16 %v2002
  %v3443 = vunpack.c.l.b16 %v2003
  %v3444 = vunpack.c.h.b16 %v2003
  %v3445 = vunpack.c.l.b16 %v2004
  %v3446 = vunpack.c.l.b16 %v2005
  %v3447 = vunpack.c.h.b16 %v2005
  %v3448 = vunpack.c.l.b16 %v2006
  %v3449 = vunpack.c.h.b16 %v2006
  %v3450 = vunpack.c.l.b16 %v2007
  %v3451 = vunpack.c.l.b16 %v2008
  %v3452 = vunpack.c.h.b16 %v2008
  %v3453 = vunpack.c.l.b16 %v2009
  %v3454 = vunpack.c.h.b16 %v2009
  %v3455 = vunpack.c.l.b16 %v2010
  %v3456 = vunpack.c.l.b16 %v2011
  %v3457 = vunpack.c.h.b16 %v2011
  %v3458 = vunpack.c.l.b16 %v2012
  %v3459 = vunpack.c.h.b16 %v2012
  %v3460 = vunpack.c.l.b16 %v2013
  %v3461 = vunpack.c.l.b16 %v2014
  %v3462 = vunpack.c.h.b16 %v2014
  %v3463 = vunpack.c.l.b16 %v2015
  %v3464 = vunpack.c.h.b16 %v2015
  %v3465 = vunpack.c.l.b16 %v2016
  %v3466 = vunpack.c.l.b16 %v2017
  %v3467 = vunpack.c.h.b16 %v2017
  %v3468 = vunpack.c.l.b16 %v2018
  %v3469 = vunpack.c.h.b16 %v2018
  %v3470 = vunpack.c.l.b16 %v2019
  %v3471 = vunpack.c.l.b16 %v2020
  %v3472 = vunpack.c.h.b16 %v2020
  %v3473 = vunpack.c.l.b16 %v2021
  %v3474 = vunpack.c.h.b16 %v2021
  %v3475 = vunpack.c.l.b16 %v2022
  %v3476 = vunpack.c.l.b16 %v2023
  %v3477 = vunpack.c.h.b16 %v2023
  %v3478 = vunpack.c.l.b16 %v2024
  %v3479 = vunpack.c.h.b16 %v2024
  %v3480 = vunpack.c.l.b16 %v2025
  %v3481 = vunpack.c.l.b16 %v2026
  %v3482 = vunpack.c.h.b16 %v2026
  %v3483 = vunpack.c.l.b16 %v2027
  %v3484 = vunpack.c.h.b16 %v2027
  %v3485 = vunpack.c.l.b16 %v2028
  %v3486 = vunpack.c.l.b16 %v2029
  %v3487 = vunpack.c.h.b16 %v2029
  %v3488 = vunpack.c.l.b16 %v2030
  %v3489 = vunpack.c.h.b16 %v2030
  %v3490 = vunpack.c.l.b16 %v2031
  %v3491 = vunpack.c.l.b16 %v2032
  %v3492 = vunpack.c.h.b16 %v2032
  %v3493 = vunpack.c.l.b16 %v2033
  %v3494 = vunpack.c.h.b16 %v2033
  %v3495 = vunpack.c.l.b16 %v2034
  %v3496 = vunpack.c.l.b16 %v2035
  %v3497 = vunpack.c.h.b16 %v2035
  %v3498 = vunpack.c.l.b16 %v2036
  %v3499 = vunpack.c.h.b16 %v2036
  %v3500 = vunpack.c.l.b16 %v2037
  %v3501 = vunpack.c.l.b16 %v2038
  %v3502 = vunpack.c.h.b16 %v2038
  %v3503 = vunpack.c.l.b16 %v2039
  %v3504 = vunpack.c.h.b16 %v2039
  %v3505 = vunpack.c.l.b16 %v2040
  %v3506 = vunpack.c.l.b16 %v2041
  %v3507 = vunpack.c.h.b16 %v2041
  %v3508 = vunpack.c.l.b16 %v2042
  %v3509 = vunpack.c.h.b16 %v2042
  %v3510 = vunpack.c.l.b16 %v2043
  %v3511 = vunpack.c.l.b16 %v2044
  %v3512 = vunpack.c.h.b16 %v2044
  %v3513 = vunpack.c.l.b16 %v2045
  %v3514 = vunpack.c.h.b16 %v2045
  %v3515 = vunpack.c.l.b16 %v2046
  %v3516 = vunpack.c.l.b16 %v2047
  %v3517 = vunpack.c.h.b16 %v2047
  %v3518 = vunpack.c.l.b16 %v2048
  %v3519 = vunpack.c.h.b16 %v2048
  %v3520 = vunpack.c.l.b16 %v2049
  %v3521 = vunpack.c.l.b16 %v2050
  %v3522 = vunpack.c.h.b16 %v2050
  %v3523 = vunpack.c.l.b16 %v2051
  %v3524 = vunpack.c.h.b16 %v2051
  %v3525 = vunpack.c.l.b16 %v2052
  %v3526 = vunpack.c.l.b16 %v2053
  %v3527 = vunpack.c.h.b16 %v2053
  %v3528 = vunpack.c.l.b16 %v2054
  %v3529 = vunpack.c.h.b16 %v2054
  %v3530 = vunpack.c.l.b16 %v2055
  %v3531 = vunpack.c.l.b16 %v2056
  %v3532 = vunpack.c.h.b16 %v2056
  %v3533 = vunpack.c.l.b16 %v2057
  %v3534 = vunpack.c.h.b16 %v2057
  %v3535 = vunpack.c.l.b16 %v2058
  %v3536 = vunpack.c.l.b16 %v2059
  %v3537 = vunpack.c.h.b16 %v2059
  %v3538 = vunpack.c.l.b16 %v2060
  %v3539 = vunpack.c.h.b16 %v2060
  %v3540 = vunpack.c.l.b16 %v2061
  %v3541 = vunpack.c.l.b16 %v2062
  %v3542 = vunpack.c.h.b16 %v2062
  %v3543 = vunpack.c.l.b16 %v2063
  %v3544 = vunpack.c.h.b16 %v2063
  %v3545 = vunpack.c.l.b16 %v2064
  %v3546 = vunpack.c.l.b16 %v2065
  %v3547 = vunpack.c.h.b16 %v2065
  %v3548 = vunpack.c.l.b16 %v2066
  %v3549 = vunpack.c.h.b16 %v2066
  %v3550 = vunpack.c.l.b16 %v2067
  %v3551 = vunpack.c.l.b16 %v2068
  %v3552 = vunpack.c.h.b16 %v2068
  %v3553 = vunpack.c.l.b16 %v2069
  %v3554 = vunpack.c.h.b16 %v2069
  %v3555 = vunpack.c.l.b16 %v2070
  %v3556 = vunpack.c.l.b16 %v2071
  %v3557 = vunpack.c.h.b16 %v2071
  %v3558 = vunpack.c.l.b16 %v2072
  %v3559 = vunpack.c.h.b16 %v2072
  %v3560 = vunpack.c.l.b16 %v2073
  %v3561 = vunpack.c.l.b16 %v2074
  %v3562 = vunpack.c.h.b16 %v2074
  %v3563 = vunpack.c.l.b16 %v2075
  %v3564 = vunpack.c.h.b16 %v2075
  %v3565 = vunpack.c.l.b16 %v2076
  %v3566 = vunpack.c.l.b16 %v2077
  %v3567 = vunpack.c.h.b16 %v2077
  %v3568 = vunpack.c.l.b16 %v2078
  %v3569 = vunpack.c.h.b16 %v2078
  %v3570 = vunpack.c.l.b16 %v2079
  %v3571 = vunpack.c.l.b16 %v2080
  %v3572 = vunpack.c.h.b16 %v2080
  %v3573 = vunpack.c.l.b16 %v2081
  %v3574 = vunpack.c.h.b16 %v2081
  %v3575 = vunpack.c.l.b16 %v2082
  %v3576 = vunpack.c.l.b16 %v2083
  %v3577 = vunpack.c.h.b16 %v2083
  %v3578 = vunpack.c.l.b16 %v2084
  %v3579 = vunpack.c.h.b16 %v2084
  %v3580 = vunpack.c.l.b16 %v2085
  %v3581 = vunpack.c.l.b16 %v2086
  %v3582 = vunpack.c.h.b16 %v2086
  %v3583 = vunpack.c.l.b16 %v2087
  %v3584 = vunpack.c.h.b16 %v2087
  %v3585 = vunpack.c.l.b16 %v2088
  %v3586 = vunpack.c.l.b16 %v2089
  %v3587 = vunpack.c.h.b16 %v2089
  %v3588 = vunpack.c.l.b16 %v2090
  %v3589 = vunpack.c.h.b16 %v2090
  %v3590 = vunpack.c.l.b16 %v2091
  %v3591 = vunpack.c.l.b16 %v2092
  %v3592 = vunpack.c.h.b16 %v2092
  %v3593 = vunpack.c.l.b16 %v2093
  %v3594 = vunpack.c.h.b16 %v2093
  %v3595 = vunpack.c.l.b16 %v2094
  %v3596 = vunpack.c.l.b16 %v2095
  %v3597 = vunpack.c.h.b16 %v2095
  %v3598 = vunpack.c.l.b16 %v2096
  %v3599 = vunpack.c.h.b16 %v2096
  %v3600 = vunpack.c.l.b16 %v2097
  %v3601 = vunpack.c.l.b16 %v2098
  %v3602 = vunpack.c.h.b16 %v2098
  %v3603 = vunpack.c.l.b16 %v2099
  %v3604 = vunpack.c.h.b16 %v2099
  %v3605 = vunpack.c.l.b16 %v2100
  %v3606 = vunpack.c.l.b16 %v2101
  %v3607 = vunpack.c.h.b16 %v2101
  %v3608 = vunpack.c.l.b16 %v2102
  %v3609 = vunpack.c.h.b16 %v2102
  %v3610 = vunpack.c.l.b16 %v2103
  %v3611 = vunpack.c.l.b16 %v2104
  %v3612 = vunpack.c.h.b16 %v2104
  %v3613 = vunpack.c.l.b16 %v2105
  %v3614 = vunpack.c.h.b16 %v2105
  %v3615 = vunpack.c.l.b16 %v2106
  %v3616 = vunpack.c.l.b16 %v2107
  %v3617 = vunpack.c.h.b16 %v2107
  %v3618 = vunpack.c.l.b16 %v2108
  %v3619 = vunpack.c.h.b16 %v2108
  %v3620 = vunpack.c.l.b16 %v2109
  %v3621 = vunpack.c.l.b16 %v2110
  %v3622 = vunpack.c.h.b16 %v2110
  %v3623 = vunpack.c.l.b16 %v2111
  %v3624 = vunpack.c.h.b16 %v2111
  %v3625 = vunpack.c.l.b16 %v2112
  %v3626 = vunpack.c.l.b16 %v2113
  %v3627 = vunpack.c.h.b16 %v2113
  %v3628 = vunpack.c.l.b16 %v2114
  %v3629 = vunpack.c.h.b16 %v2114
  %v3630 = vunpack.c.l.b16 %v2115
  %v3631 = vunpack.c.l.b16 %v2116
  %v3632 = vunpack.c.h.b16 %v2116
  %v3633 = vunpack.c.l.b16 %v2117
  %v3634 = vunpack.c.h.b16 %v2117
  %v3635 = vunpack.c.l.b16 %v2118
  %v3636 = vunpack.c.l.b16 %v2119
  %v3637 = vunpack.c.h.b16 %v2119
  %v3638 = vunpack.c.l.b16 %v2120
  %v3639 = vunpack.c.h.b16 %v2120
  %v3640 = vunpack.c.l.b16 %v2121
  %v3641 = vunpack.c.l.b16 %v2122
  %v3642 = vunpack.c.h.b16 %v2122
  %v3643 = vunpack.c.l.b16 %v2123
  %v3644 = vunpack.c.h.b16 %v2123
  %v3645 = vunpack.c.l.b16 %v2124
  %v3646 = vunpack.c.l.b16 %v2125
  %v3647 = vunpack.c.h.b16 %v2125
  %v3648 = vunpack.c.l.b16 %v2126
  %v3649 = vunpack.c.h.b16 %v2126
  %v3650 = vunpack.c.l.b16 %v2127
  %v3651 = vunpack.c.l.b16 %v2128
  %v3652 = vunpack.c.h.b16 %v2128
  %v3653 = vunpack.c.l.b16 %v2129
  %v3654 = vunpack.c.h.b16 %v2129
  %v3655 = vunpack.c.l.b16 %v2130
  %v3656 = vunpack.c.l.b16 %v2131
  %v3657 = vunpack.c.h.b16 %v2131
  %v3658 = vunpack.c.l.b16 %v2132
  %v3659 = vunpack.c.h.b16 %v2132
  %v3660 = vunpack.c.l.b16 %v2133
  %v3661 = vunpack.c.l.b16 %v2134
  %v3662 = vunpack.c.h.b16 %v2134
  %v3663 = vunpack.c.l.b16 %v2135
  %v3664 = vunpack.c.h.b16 %v2135
  %v3665 = vunpack.c.l.b16 %v2136
  %v3666 = vunpack.c.l.b16 %v2137
  %v3667 = vunpack.c.h.b16 %v2137
  %v3668 = vunpack.c.l.b16 %v2138
  %v3669 = vunpack.c.h.b16 %v2138
  %v3670 = vunpack.c.l.b16 %v2139
  %v3671 = vunpack.c.l.b16 %v2140
  %v3672 = vunpack.c.h.b16 %v2140
  %v3673 = vunpack.c.l.b16 %v2141
  %v3674 = vunpack.c.h.b16 %v2141
  %v3675 = vunpack.c.l.b16 %v2142
  %v3676 = vunpack.c.l.b16 %v2143
  %v3677 = vunpack.c.h.b16 %v2143
  %v3678 = vunpack.c.l.b16 %v2144
  %v3679 = vunpack.c.h.b16 %v2144
  %v3680 = vunpack.c.l.b16 %v2145
  %v3681 = vunpack.c.l.b16 %v2146
  %v3682 = vunpack.c.h.b16 %v2146
  %v3683 = vunpack.c.l.b16 %v2147
  %v3684 = vunpack.c.h.b16 %v2147
  %v3685 = vunpack.c.l.b16 %v2148
  %v3686 = vunpack.c.l.b16 %v2149
  %v3687 = vunpack.c.h.b16 %v2149
  %v3688 = vunpack.c.l.b16 %v2150
  %v3689 = vunpack.c.h.b16 %v2150
  %v3690 = vunpack.c.l.b16 %v2151
  %v3691 = vunpack.c.l.b16 %v2152
  %v3692 = vunpack.c.h.b16 %v2152
  %v3693 = vunpack.c.l.b16 %v2153
  %v3694 = vunpack.c.h.b16 %v2153
  %v3695 = vunpack.c.l.b16 %v2154
  %v3696 = vunpack.c.l.b16 %v2155
  %v3697 = vunpack.c.h.b16 %v2155
  %v3698 = vunpack.c.l.b16 %v2156
  %v3699 = vunpack.c.h.b16 %v2156
  %v3700 = vunpack.c.l.b16 %v2157
  %v3701 = vunpack.c.l.b16 %v2158
  %v3702 = vunpack.c.h.b16 %v2158
  %v3703 = vunpack.c.l.b16 %v2159
  %v3704 = vunpack.c.h.b16 %v2159
  %v3705 = vunpack.c.l.b16 %v2160
  %v3706 = vunpack.c.l.b16 %v2161
  %v3707 = vunpack.c.h.b16 %v2161
  %v3708 = vunpack.c.l.b16 %v2162
  %v3709 = vunpack.c.h.b16 %v2162
  %v3710 = vunpack.c.l.b16 %v2163
  %v3711 = vunpack.c.l.b16 %v2164
  %v3712 = vunpack.c.h.b16 %v2164
  %v3713 = vunpack.c.l.b16 %v2165
  %v3714 = vunpack.c.h.b16 %v2165
  %v3715 = vunpack.c.l.b16 %v2166
  %v3716 = vunpack.c.l.b16 %v2167
  %v3717 = vunpack.c.h.b16 %v2167
  %v3718 = vunpack.c.l.b16 %v2168
  %v3719 = vunpack.c.h.b16 %v2168
  %v3720 = vunpack.c.l.b16 %v2169
  %v3721 = vpack.c.b16 %v2766, %v2761
  %v3722 = vpack.c.b16 %v2767, %v2762
  %v3723 = vpack.c.b16 %v2768, %v2763
  %v3724 = vpack.c.b16 %v2769, %v2764
  %v3725 = vpack.c.b16 %v2770, %v2765
  %v3726 = vpack.c.b16 %v2776, %v2771
  %v3727 = vpack.c.b16 %v2777, %v2772
  %v3728 = vpack.c.b16 %v2778, %v2773
  %v3729 = vpack.c.b16 %v2779, %v2774
  %v3730 = vpack.c.b16 %v2780, %v2775
  %v3731 = vpack.c.b16 %v2786, %v2781
  %v3732 = vpack.c.b16 %v2787, %v2782
  %v3733 = vpack.c.b16 %v2788, %v2783
  %v3734 = vpack.c.b16 %v2789, %v2784
  %v3735 = vpack.c.b16 %v2790, %v2785
  %v3736 = vpack.c.b16 %v2796, %v2791
  %v3737 = vpack.c.b16 %v2797, %v2792
  %v3738 = vpack.c.b16 %v2798, %v2793
  %v3739 = vpack.c.b16 %v2799, %v2794
  %v3740 = vpack.c.b16 %v2800, %v2795
  %v3741 = vpack.c.b16 %v2806, %v2801
  %v3742 = vpack.c.b16 %v2807, %v2802
  %v3743 = vpack.c.b16 %v2808, %v2803
  %v3744 = vpack.c.b16 %v2809, %v2804
  %v3745 = vpack.c.b16 %v2810, %v2805
  %v3746 = vpack.c.b16 %v2816, %v2811
  %v3747 = vpack.c.b16 %v2817, %v2812
  %v3748 = vpack.c.b16 %v2818, %v2813
  %v3749 = vpack.c.b16 %v2819, %v2814
  %v3750 = vpack.c.b16 %v2820, %v2815
  %v3751 = vpack.c.b16 %v2826, %v2821
  %v3752 = vpack.c.b16 %v2827, %v2822
  %v3753 = vpack.c.b16 %v2828, %v2823
  %v3754 = vpack.c.b16 %v2829, %v2824
  %v3755 = vpack.c.b16 %v2830, %v2825
  %v3756 = vpack.c.b16 %v2836, %v2831
  %v3757 = vpack.c.b16 %v2837, %v2832
  %v3758 = vpack.c.b16 %v2838, %v2833
  %v3759 = vpack.c.b16 %v2839, %v2834
  %v3760 = vpack.c.b16 %v2840, %v2835
  %v3761 = vpack.c.b16 %v2846, %v2841
  %v3762 = vpack.c.b16 %v2847, %v2842
  %v3763 = vpack.c.b16 %v2848, %v2843
  %v3764 = vpack.c.b16 %v2849, %v2844
  %v3765 = vpack.c.b16 %v2850, %v2845
  %v3766 = vpack.c.b16 %v2856, %v2851
  %v3767 = vpack.c.b16 %v2857, %v2852
  %v3768 = vpack.c.b16 %v2858, %v2853
  %v3769 = vpack.c.b16 %v2859, %v2854
  %v3770 = vpack.c.b16 %v2860, %v2855
  %v3771 = vpack.c.b16 %v2866, %v2861
  %v3772 = vpack.c.b16 %v2867, %v2862
  %v3773 = vpack.c.b16 %v2868, %v2863
  %v3774 = vpack.c.b16 %v2869, %v2864
  %v3775 = vpack.c.b16 %v2870, %v2865
  %v3776 = vpack.c.b16 %v2876, %v2871
  %v3777 = vpack.c.b16 %v2877, %v2872
  %v3778 = vpack.c.b16 %v2878, %v2873
  %v3779 = vpack.c.b16 %v2879, %v2874
  %v3780 = vpack.c.b16 %v2880, %v2875
  %v3781 = vpack.c.b16 %v2886, %v2881
  %v3782 = vpack.c.b16 %v2887, %v2882
  %v3783 = vpack.c.b16 %v2888, %v2883
  %v3784 = vpack.c.b16 %v2889, %v2884
  %v3785 = vpack.c.b16 %v2890, %v2885
  %v3786 = vpack.c.b16 %v2896, %v2891
  %v3787 = vpack.c.b16 %v2897, %v2892
  %v3788 = vpack.c.b16 %v2898, %v2893
  %v3789 = vpack.c.b16 %v2899, %v2894
  %v3790 = vpack.c.b16 %v2900, %v2895
  %v3791 = vpack.c.b16 %v2906, %v2901
  %v3792 = vpack.c.b16 %v2907, %v2902
  %v3793 = vpack.c.b16 %v2908, %v2903
  %v3794 = vpack.c.b16 %v2909, %v2904
  %v3795 = vpack.c.b16 %v2910, %v2905
  %v3796 = vpack.c.b16 %v2916, %v2911
  %v3797 = vpack.c.b16 %v2917, %v2912
  %v3798 = vpack.c.b16 %v2918, %v2913
  %v3799 = vpack.c.b16 %v2919, %v2914
  %v3800 = vpack.c.b16 %v2920, %v2915
  %v3801 = vpack.c.b16 %v2926, %v2921
  %v3802 = vpack.c.b16 %v2927, %v2922
  %v3803 = vpack.c.b16 %v2928, %v2923
  %v3804 = vpack.c.b16 %v2929, %v2924
  %v3805 = vpack.c.b16 %v2930, %v2925
  %v3806 = vpack.c.b16 %v2936, %v2931
  %v3807 = vpack.c.b16 %v2937, %v2932
  %v3808 = vpack.c.b16 %v2938, %v2933
  %v3809 = vpack.c.b16 %v2939, %v2934
  %v3810 = vpack.c.b16 %v2940, %v2935
  %v3811 = vpack.c.b16 %v2946, %v2941
  %v3812 = vpack.c.b16 %v2947, %v2942
  %v3813 = vpack.c.b16 %v2948, %v2943
  %v3814 = vpack.c.b16 %v2949, %v2944
  %v3815 = vpack.c.b16 %v2950, %v2945
  %v3816 = vpack.c.b16 %v2956, %v2951
  %v3817 = vpack.c.b16 %v2957, %v2952
  %v3818 = vpack.c.b16 %v2958, %v2953
  %v3819 = vpack.c.b16 %v2959, %v2954
  %v3820 = vpack.c.b16 %v2960, %v2955
  %v3821 = vpack.c.b16 %v2966, %v2961
  %v3822 = vpack.c.b16 %v2967, %v2962
  %v3823 = vpack.c.b16 %v2968, %v2963
  %v3824 = vpack.c.b16 %v2969, %v2964
  %v3825 = vpack.c.b16 %v2970, %v2965
  %v3826 = vpack.c.b16 %v2976, %v2971
  %v3827 = vpack.c.b16 %v2977, %v2972
  %v3828 = vpack.c.b16 %v2978, %v2973
  %v3829 = vpack.c.b16 %v2979, %v2974
  %v3830 = vpack.c.b16 %v2980, %v2975
  %v3831 = vpack.c.b16 %v2986, %v2981
  %v3832 = vpack.c.b16 %v2987, %v2982
  %v3833 = vpack.c.b16 %v2988, %v2983
  %v3834 = vpack.c.b16 %v2989, %v2984
  %v3835 = vpack.c.b16 %v2990, %v2985
  %v3836 = vpack.c.b16 %v2996, %v2991
  %v3837 = vpack.c.b16 %v2997, %v2992
  %v3838 = vpack.c.b16 %v2998, %v2993
  %v3839 = vpack.c.b16 %v2999, %v2994
  %v3840 = vpack.c.b16 %v3000, %v2995
  %v3841 = vpack.c.b16 %v3006, %v3001
  %v3842 = vpack.c.b16 %v3007, %v3002
  %v3843 = vpack.c.b16 %v3008, %v3003
  %v3844 = vpack.c.b16 %v3009, %v3004
  %v3845 = vpack.c.b16 %v3010, %v3005
  %v3846 = vpack.c.b16 %v3016, %v3011
  %v3847 = vpack.c.b16 %v3017, %v3012
  %v3848 = vpack.c.b16 %v3018, %v3013
  %v3849 = vpack.c.b16 %v3019, %v3014
  %v3850 = vpack.c.b16 %v3020, %v3015
  %v3851 = vpack.c.b16 %v3026, %v3021
  %v3852 = vpack.c.b16 %v3027, %v3022
  %v3853 = vpack.c.b16 %v3028, %v3023
  %v3854 = vpack.c.b16 %v3029, %v3024
  %v3855 = vpack.c.b16 %v3030, %v3025
  %v3856 = vpack.c.b16 %v3036, %v3031
  %v3857 = vpack.c.b16 %v3037, %v3032
  %v3858 = vpack.c.b16 %v3038, %v3033
  %v3859 = vpack.c.b16 %v3039, %v3034
  %v3860 = vpack.c.b16 %v3040, %v3035
  %v3861 = vpack.c.b16 %v3046, %v3041
  %v3862 = vpack.c.b16 %v3047, %v3042
  %v3863 = vpack.c.b16 %v3048, %v3043
  %v3864 = vpack.c.b16 %v3049, %v3044
  %v3865 = vpack.c.b16 %v3050, %v3045
  %v3866 = vpack.c.b16 %v3056, %v3051
  %v3867 = vpack.c.b16 %v3057, %v3052
  %v3868 = vpack.c.b16 %v3058, %v3053
  %v3869 = vpack.c.b16 %v3059, %v3054
  %v3870 = vpack.c.b16 %v3060, %v3055
  %v3871 = vpack.c.b16 %v3066, %v3061
  %v3872 = vpack.c.b16 %v3067, %v3062
  %v3873 = vpack.c.b16 %v3068, %v3063
  %v3874 = vpack.c.b16 %v3069, %v3064
  %v3875 = vpack.c.b16 %v3070, %v3065
  %v3876 = vpack.c.b16 %v3076, %v3071
  %v3877 = vpack.c.b16 %v3077, %v3072
  %v3878 = vpack.c.b16 %v3078, %v3073
  %v3879 = vpack.c.b16 %v3079, %v3074
  %v3880 = vpack.c.b16 %v3080, %v3075
  %v3881 = vpack.c.b16 %v3086, %v3081
  %v3882 = vpack.c.b16 %v3087, %v3082
  %v3883 = vpack.c.b16 %v3088, %v3083
  %v3884 = vpack.c.b16 %v3089, %v3084
  %v3885 = vpack.c.b16 %v3090, %v3085
  %v3886 = vpack.c.b16 %v3096, %v3091
  %v3887 = vpack.c.b16 %v3097, %v3092
  %v3888 = vpack.c.b16 %v3098, %v3093
  %v3889 = vpack.c.b16 %v3099, %v3094
  %v3890 = vpack.c.b16 %v3100, %v3095
  %v3891 = vpack.c.b16 %v3106, %v3101
  %v3892 = vpack.c.b16 %v3107, %v3102
  %v3893 = vpack.c.b16 %v3108, %v3103
  %v3894 = vpack.c.b16 %v3109, %v3104
  %v3895 = vpack.c.b16 %v3110, %v3105
  %v3896 = vpack.c.b16 %v3116, %v3111
  %v3897 = vpack.c.b16 %v3117, %v3112
  %v3898 = vpack.c.b16 %v3118, %v3113
  %v3899 = vpack.c.b16 %v3119, %v3114
  %v3900 = vpack.c.b16 %v3120, %v3115
  %v3901 = vpack.c.b16 %v3126, %v3121
  %v3902 = vpack.c.b16 %v3127, %v3122
  %v3903 = vpack.c.b16 %v3128, %v3123
  %v3904 = vpack.c.b16 %v3129, %v3124
  %v3905 = vpack.c.b16 %v3130, %v3125
  %v3906 = vpack.c.b16 %v3136, %v3131
  %v3907 = vpack.c.b16 %v3137, %v3132
  %v3908 = vpack.c.b16 %v3138, %v3133
  %v3909 = vpack.c.b16 %v3139, %v3134
  %v3910 = vpack.c.b16 %v3140, %v3135
  %v3911 = vpack.c.b16 %v3146, %v3141
  %v3912 = vpack.c.b16 %v3147, %v3142
  %v3913 = vpack.c.b16 %v3148, %v3143
  %v3914 = vpack.c.b16 %v3149, %v3144
  %v3915 = vpack.c.b16 %v3150, %v3145
  %v3916 = vpack.c.b16 %v3156, %v3151
  %v3917 = vpack.c.b16 %v3157, %v3152
  %v3918 = vpack.c.b16 %v3158, %v3153
  %v3919 = vpack.c.b16 %v3159, %v3154
  %v3920 = vpack.c.b16 %v3160, %v3155
  %v3921 = vpack.c.b16 %v3166, %v3161
  %v3922 = vpack.c.b16 %v3167, %v3162
  %v3923 = vpack.c.b16 %v3168, %v3163
  %v3924 = vpack.c.b16 %v3169, %v3164
  %v3925 = vpack.c.b16 %v3170, %v3165
  %v3926 = vpack.c.b16 %v3176, %v3171
  %v3927 = vpack.c.b16 %v3177, %v3172
  %v3928 = vpack.c.b16 %v3178, %v3173
  %v3929 = vpack.c.b16 %v3179, %v3174
  %v3930 = vpack.c.b16 %v3180, %v3175
  %v3931 = vpack.c.b16 %v3186, %v3181
  %v3932 = vpack.c.b16 %v3187, %v3182
  %v3933 = vpack.c.b16 %v3188, %v3183
  %v3934 = vpack.c.b16 %v3189, %v3184
  %v3935 = vpack.c.b16 %v3190, %v3185
  %v3936 = vpack.c.b16 %v3196, %v3191
  %v3937 = vpack.c.b16 %v3197, %v3192
  %v3938 = vpack.c.b16 %v3198, %v3193
  %v3939 = vpack.c.b16 %v3199, %v3194
  %v3940 = vpack.c.b16 %v3200, %v3195
  %v3941 = vpack.c.b16 %v3206, %v3201
  %v3942 = vpack.c.b16 %v3207, %v3202
  %v3943 = vpack.c.b16 %v3208, %v3203
  %v3944 = vpack.c.b16 %v3209, %v3204
  %v3945 = vpack.c.b16 %v3210, %v3205
  %v3946 = vpack.c.b16 %v3216, %v3211
  %v3947 = vpack.c.b16 %v3217, %v3212
  %v3948 = vpack.c.b16 %v3218, %v3213
  %v3949 = vpack.c.b16 %v3219, %v3214
  %v3950 = vpack.c.b16 %v3220, %v3215
  %v3951 = vpack.c.b16 %v3226, %v3221
  %v3952 = vpack.c.b16 %v3227, %v3222
  %v3953 = vpack.c.b16 %v3228, %v3223
  %v3954 = vpack.c.b16 %v3229, %v3224
  %v3955 = vpack.c.b16 %v3230, %v3225
  %v3956 = vpack.c.b16 %v3236, %v3231
  %v3957 = vpack.c.b16 %v3237, %v3232
  %v3958 = vpack.c.b16 %v3238, %v3233
  %v3959 = vpack.c.b16 %v3239, %v3234
  %v3960 = vpack.c.b16 %v3240, %v3235
  %v3961 = vpack.c.b16 %v3246, %v3241
  %v3962 = vpack.c.b16 %v3247, %v3242
  %v3963 = vpack.c.b16 %v3248, %v3243
  %v3964 = vpack.c.b16 %v3249, %v3244
  %v3965 = vpack.c.b16 %v3250, %v3245
  %v3966 = vpack.c.b16 %v3256, %v3251
  %v3967 = vpack.c.b16 %v3257, %v3252
  %v3968 = vpack.c.b16 %v3258, %v3253
  %v3969 = vpack.c.b16 %v3259, %v3254
  %v3970 = vpack.c.b16 %v3260, %v3255
  %v3971 = vpack.c.b16 %v3266, %v3261
  %v3972 = vpack.c.b16 %v3267, %v3262
  %v3973 = vpack.c.b16 %v3268, %v3263
  %v3974 = vpack.c.b16 %v3269, %v3264
  %v3975 = vpack.c.b16 %v3270, %v3265
  %v3976 = vpack.c.b16 %v3276, %v3271
  %v3977 = vpack.c.b16 %v3277, %v3272
  %v3978 = vpack.c.b16 %v3278, %v3273
  %v3979 = vpack.c.b16 %v3279, %v3274
  %v3980 = vpack.c.b16 %v3280, %v3275
  %v3981 = vpack.c.b16 %v3286, %v3281
  %v3982 = vpack.c.b16 %v3287, %v3282
  %v3983 = vpack.c.b16 %v3288, %v3283
  %v3984 = vpack.c.b16 %v3289, %v3284
  %v3985 = vpack.c.b16 %v3290, %v3285
  %v3986 = vpack.c.b16 %v3296, %v3291
  %v3987 = vpack.c.b16 %v3297, %v3292
  %v3988 = vpack.c.b16 %v3298, %v3293
  %v3989 = vpack.c.b16 %v3299, %v3294
  %v3990 = vpack.c.b16 %v3300, %v3295
  %v3991 = vpack.c.b16 %v3306, %v3301
  %v3992 = vpack.c.b16 %v3307, %v3302
  %v3993 = vpack.c.b16 %v3308, %v3303
  %v3994 = vpack.c.b16 %v3309, %v3304
  %v3995 = vpack.c.b16 %v3310, %v3305
  %v3996 = vpack.c.b16 %v3316, %v3311
  %v3997 = vpack.c.b16 %v3317, %v3312
  %v3998 = vpack.c.b16 %v3318, %v3313
  %v3999 = vpack.c.b16 %v3319, %v3314
  %v4000 = vpack.c.b16 %v3320, %v3315
  %v4001 = vpack.c.b16 %v3326, %v3321
  %v4002 = vpack.c.b16 %v3327, %v3322
  %v4003 = vpack.c.b16 %v3328, %v3323
  %v4004 = vpack.c.b16 %v3329, %v3324
  %v4005 = vpack.c.b16 %v3330, %v3325
  %v4006 = vpack.c.b16 %v3336, %v3331
  %v4007 = vpack.c.b16 %v3337, %v3332
  %v4008 = vpack.c.b16 %v3338, %v3333
  %v4009 = vpack.c.b16 %v3339, %v3334
  %v4010 = vpack.c.b16 %v3340, %v3335
  %v4011 = vpack.c.b16 %v3346, %v3341
  %v4012 = vpack.c.b16 %v3347, %v3342
  %v4013 = vpack.c.b16 %v3348, %v3343
  %v4014 = vpack.c.b16 %v3349, %v3344
  %v4015 = vpack.c.b16 %v3350, %v3345
  %v4016 = vpack.c.b16 %v3356, %v3351
  %v4017 = vpack.c.b16 %v3357, %v3352
  %v4018 = vpack.c.b16 %v3358, %v3353
  %v4019 = vpack.c.b16 %v3359, %v3354
  %v4020 = vpack.c.b16 %v3360, %v3355
  %v4021 = vpack.c.b16 %v3366, %v3361
  %v4022 = vpack.c.b16 %v3367, %v3362
  %v4023 = vpack.c.b16 %v3368, %v3363
  %v4024 = vpack.c.b16 %v3369, %v3364
  %v4025 = vpack.c.b16 %v3370, %v3365
  %v4026 = vpack.c.b16 %v3376, %v3371
  %v4027 = vpack.c.b16 %v3377, %v3372
  %v4028 = vpack.c.b16 %v3378, %v3373
  %v4029 = vpack.c.b16 %v3379, %v3374
  %v4030 = vpack.c.b16 %v3380, %v3375
  %v4031 = vpack.c.b16 %v3386, %v3381
  %v4032 = vpack.c.b16 %v3387, %v3382
  %v4033 = vpack.c.b16 %v3388, %v3383
  %v4034 = vpack.c.b16 %v3389, %v3384
  %v4035 = vpack.c.b16 %v3390, %v3385
  %v4036 = vpack.c.b16 %v3396, %v3391
  %v4037 = vpack.c.b16 %v3397, %v3392
  %v4038 = vpack.c.b16 %v3398, %v3393
  %v4039 = vpack.c.b16 %v3399, %v3394
  %v4040 = vpack.c.b16 %v3400, %v3395
  %v4041 = vpack.c.b16 %v3406, %v3401
  %v4042 = vpack.c.b16 %v3407, %v3402
  %v4043 = vpack.c.b16 %v3408, %v3403
  %v4044 = vpack.c.b16 %v3409, %v3404
  %v4045 = vpack.c.b16 %v3410, %v3405
  %v4046 = vpack.c.b16 %v3416, %v3411
  %v4047 = vpack.c.b16 %v3417, %v3412
  %v4048 = vpack.c.b16 %v3418, %v3413
  %v4049 = vpack.c.b16 %v3419, %v3414
  %v4050 = vpack.c.b16 %v3420, %v3415
  %v4051 = vpack.c.b16 %v3426, %v3421
  %v4052 = vpack.c.b16 %v3427, %v3422
  %v4053 = vpack.c.b16 %v3428, %v3423
  %v4054 = vpack.c.b16 %v3429, %v3424
  %v4055 = vpack.c.b16 %v3430, %v3425
  %v4056 = vpack.c.b16 %v3436, %v3431
  %v4057 = vpack.c.b16 %v3437, %v3432
  %v4058 = vpack.c.b16 %v3438, %v3433
  %v4059 = vpack.c.b16 %v3439, %v3434
  %v4060 = vpack.c.b16 %v3440, %v3435
  %v4061 = vpack.c.b16 %v3446, %v3441
  %v4062 = vpack.c.b16 %v3447, %v3442
  %v4063 = vpack.c.b16 %v3448, %v3443
  %v4064 = vpack.c.b16 %v3449, %v3444
  %v4065 = vpack.c.b16 %v3450, %v3445
  %v4066 = vpack.c.b16 %v3456, %v3451
  %v4067 = vpack.c.b16 %v3457, %v3452
  %v4068 = vpack.c.b16 %v3458, %v3453
  %v4069 = vpack.c.b16 %v3459, %v3454
  %v4070 = vpack.c.b16 %v3460, %v3455
  %v4071 = vpack.c.b16 %v3466, %v3461
  %v4072 = vpack.c.b16 %v3467, %v3462
  %v4073 = vpack.c.b16 %v3468, %v3463
  %v4074 = vpack.c.b16 %v3469, %v3464
  %v4075 = vpack.c.b16 %v3470, %v3465
  %v4076 = vpack.c.b16 %v3476, %v3471
  %v4077 = vpack.c.b16 %v3477, %v3472
  %v4078 = vpack.c.b16 %v3478, %v3473
  %v4079 = vpack.c.b16 %v3479, %v3474
  %v4080 = vpack.c.b16 %v3480, %v3475
  %v4081 = vpack.c.b16 %v3486, %v3481
  %v4082 = vpack.c.b16 %v3487, %v3482
  %v4083 = vpack.c.b16 %v3488, %v3483
  %v4084 = vpack.c.b16 %v3489, %v3484
  %v4085 = vpack.c.b16 %v3490, %v3485
  %v4086 = vpack.c.b16 %v3496, %v3491
  %v4087 = vpack.c.b16 %v3497, %v3492
  %v4088 = vpack.c.b16 %v3498, %v3493
  %v4089 = vpack.c.b16 %v3499, %v3494
  %v4090 = vpack.c.b16 %v3500, %v3495
  %v4091 = vpack.c.b16 %v3506, %v3501
  %v4092 = vpack.c.b16 %v3507, %v3502
  %v4093 = vpack.c.b16 %v3508, %v3503
  %v4094 = vpack.c.b16 %v3509, %v3504
  %v4095 = vpack.c.b16 %v3510, %v3505
  %v4096 = vpack.c.b16 %v3516, %v3511
  %v4097 = vpack.c.b16 %v3517, %v3512
  %v4098 = vpack.c.b16 %v3518, %v3513
  %v4099 = vpack.c.b16 %v3519, %v3514
  %v4100 = vpack.c.b16 %v3520, %v3515
  %v4101 = vpack.c.b16 %v3526, %v3521
  %v4102 = vpack.c.b16 %v3527, %v3522
  %v4103 = vpack.c.b16 %v3528, %v3523
  %v4104 = vpack.c.b16 %v3529, %v3524
  %v4105 = vpack.c.b16 %v3530, %v3525
  %v4106 = vpack.c.b16 %v3536, %v3531
  %v4107 = vpack.c.b16 %v3537, %v3532
  %v4108 = vpack.c.b16 %v3538, %v3533
  %v4109 = vpack.c.b16 %v3539, %v3534
  %v4110 = vpack.c.b16 %v3540, %v3535
  %v4111 = vpack.c.b16 %v3546, %v3541
  %v4112 = vpack.c.b16 %v3547, %v3542
  %v4113 = vpack.c.b16 %v3548, %v3543
  %v4114 = vpack.c.b16 %v3549, %v3544
  %v4115 = vpack.c.b16 %v3550, %v3545
  %v4116 = vpack.c.b16 %v3556, %v3551
  %v4117 = vpack.c.b16 %v3557, %v3552
  %v4118 = vpack.c.b16 %v3558, %v3553
  %v4119 = vpack.c.b16 %v3559, %v3554
  %v4120 = vpack.c.b16 %v3560, %v3555
  %v4121 = vpack.c.b16 %v3566, %v3561
  %v4122 = vpack.c.b16 %v3567, %v3562
  %v4123 = vpack.c.b16 %v3568, %v3563
  %v4124 = vpack.c.b16 %v3569, %v3564
  %v4125 = vpack.c.b16 %v3570, %v3565
  %v4126 = vpack.c.b16 %v3576, %v3571
  %v4127 = vpack.c.b16 %v3577, %v3572
  %v4128 = vpack.c.b16 %v3578, %v3573
  %v4129 = vpack.c.b16 %v3579, %v3574
  %v4130 = vpack.c.b16 %v3580, %v3575
  %v4131 = vpack.c.b16 %v3586, %v3581
  %v4132 = vpack.c.b16 %v3587, %v3582
  %v4133 = vpack.c.b16 %v3588, %v3583
  %v4134 = vpack.c.b16 %v3589, %v3584
  %v4135 = vpack.c.b16 %v3590, %v3585
  %v4136 = vpack.c.b16 %v3596, %v3591
  %v4137 = vpack.c.b16 %v3597, %v3592
  %v4138 = vpack.c.b16 %v3598, %v3593
  %v4139 = vpack.c.b16 %v3599, %v3594
  %v4140 = vpack.c.b16 %v3600, %v3595
  %v4141 = vpack.c.b16 %v3606, %v3601
  %v4142 = vpack.c.b16 %v3607, %v3602
  %v4143 = vpack.c.b16 %v3608, %v3603
  %v4144 = vpack.c.b16 %v3609, %v3604
  %v4145 = vpack.c.b16 %v3610, %v3605
  %v4146 = vpack.c.b16 %v3616, %v3611
  %v4147 = vpack.c.b16 %v3617, %v3612
  %v4148 = vpack.c.b16 %v3618, %v3613
  %v4149 = vpack.c.b16 %v3619, %v3614
  %v4150 = vpack.c.b16 %v3620, %v3615
  %v4151 = vpack.c.b16 %v3626, %v3621
  %v4152 = vpack.c.b16 %v3627, %v3622
  %v4153 = vpack.c.b16 %v3628, %v3623
  %v4154 = vpack.c.b16 %v3629, %v3624
  %v4155 = vpack.c.b16 %v3630, %v3625
  %v4156 = vpack.c.b16 %v3636, %v3631
  %v4157 = vpack.c.b16 %v3637, %v3632
  %v4158 = vpack.c.b16 %v3638, %v3633
  %v4159 = vpack.c.b16 %v3639, %v3634
  %v4160 = vpack.c.b16 %v3640, %v3635
  %v4161 = vpack.c.b16 %v3646, %v3641
  %v4162 = vpack.c.b16 %v3647, %v3642
  %v4163 = vpack.c.b16 %v3648, %v3643
  %v4164 = vpack.c.b16 %v3649, %v3644
  %v4165 = vpack.c.b16 %v3650, %v3645
  %v4166 = vpack.c.b16 %v3656, %v3651
  %v4167 = vpack.c.b16 %v3657, %v3652
  %v4168 = vpack.c.b16 %v3658, %v3653
  %v4169 = vpack.c.b16 %v3659, %v3654
  %v4170 = vpack.c.b16 %v3660, %v3655
  %v4171 = vpack.c.b16 %v3666, %v3661
  %v4172 = vpack.c.b16 %v3667, %v3662
  %v4173 = vpack.c.b16 %v3668, %v3663
  %v4174 = vpack.c.b16 %v3669, %v3664
  %v4175 = vpack.c.b16 %v3670, %v3665
  %v4176 = vpack.c.b16 %v3676, %v3671
  %v4177 = vpack.c.b16 %v3677, %v3672
  %v4178 = vpack.c.b16 %v3678, %v3673
  %v4179 = vpack.c.b16 %v3679, %v3674
  %v4180 = vpack.c.b16 %v3680, %v3675
  %v4181 = vpack.c.b16 %v3686, %v3681
  %v4182 = vpack.c.b16 %v3687, %v3682
  %v4183 = vpack.c.b16 %v3688, %v3683
  %v4184 = vpack.c.b16 %v3689, %v3684
  %v4185 = vpack.c.b16 %v3690, %v3685
  %v4186 = vpack.c.b16 %v3696, %v3691
  %v4187 = vpack.c.b16 %v3697, %v3692
  %v4188 = vpack.c.b16 %v3698, %v3693
  %v4189 = vpack.c.b16 %v3699, %v3694
  %v4190 = vpack.c.b16 %v3700, %v3695
  %v4191 = vpack.c.b16 %v3706, %v3701
  %v4192 = vpack.c.b16 %v3707, %v3702
  %v4193 = vpack.c.b16 %v3708, %v3703
  %v4194 = vpack.c.b16 %v3709, %v3704
  %v4195 = vpack.c.b16 %v3710, %v3705
  %v4196 = vpack.c.b16 %v3716, %v3711
  %v4197 = vpack.c.b16 %v3717, %v3712
  %v4198 = vpack.c.b16 %v3718, %v3713
  %v4199 = vpack.c.b16 %v3719, %v3714
  %v4200 = vpack.c.b16 %v3720, %v3715
  %4681 = vmatprep.subr.bf16.mxu0 %v3722
  %4682 = vmatpush1.bf16.msra.mxu0 %v3721
  %4683 = vmatprep.subr.bf16.mxu0 %v3727
  %4684 = vmatpush1.bf16.msra.mxu0 %v3726
  %4685 = vmatprep.subr.bf16.mxu0 %v3732
  %4686 = vmatpush1.bf16.msra.mxu0 %v3731
  %4687 = vmatprep.subr.bf16.mxu0 %v3737
  %4688 = vmatpush1.bf16.msra.mxu0 %v3736
  %4689 = vmatprep.subr.bf16.mxu0 %v3742
  %4690 = vmatpush1.bf16.msra.mxu0 %v3741
  %4691 = vmatprep.subr.bf16.mxu0 %v3747
  %4692 = vmatpush1.bf16.msra.mxu0 %v3746
  %4693 = vmatprep.subr.bf16.mxu0 %v3752
  %4694 = vmatpush1.bf16.msra.mxu0 %v3751
  %4695 = vmatprep.subr.bf16.mxu0 %v3757
  %4696 = vmatpush1.bf16.msra.mxu0 %v3756
  %4697 = vmatprep.subr.bf16.mxu0 %v3762
  %4698 = vmatpush1.bf16.msra.mxu0 %v3761
  %4699 = vmatprep.subr.bf16.mxu0 %v3767
  %4700 = vmatpush1.bf16.msra.mxu0 %v3766
  %4701 = vmatprep.subr.bf16.mxu0 %v3772
  %4702 = vmatpush1.bf16.msra.mxu0 %v3771
  %4703 = vmatprep.subr.bf16.mxu0 %v3777
  %4704 = vmatpush1.bf16.msra.mxu0 %v3776
  %4705 = vmatprep.subr.bf16.mxu0 %v3782
  %4706 = vmatpush1.bf16.msra.mxu0 %v3781
  %4707 = vmatprep.subr.bf16.mxu0 %v3787
  %4708 = vmatpush1.bf16.msra.mxu0 %v3786
  %4709 = vmatprep.subr.bf16.mxu0 %v3792
  %4710 = vmatpush1.bf16.msra.mxu0 %v3791
  %4711 = vmatprep.subr.bf16.mxu0 %v3797
  %4712 = vmatpush1.bf16.msra.mxu0 %v3796
  %4713 = vmatprep.mubr.bf16.mxu0 %v2174
  %4714 = vmatmul.mubr.bf16.gmra.mrb[0].mxu0 %v2173
  %v4715 = vpop.f32.mrb[0].mxu0
  %v4716 = vadd.f32 0.0, %v4715
  %v4717 = vpop.f32.mrb[0].mxu0
  %v4718 = vadd.f32 0.0, %v4717
  %v4719 = vpop.f32.mrb[0].mxu0
  %v4720 = vadd.f32 0.0, %v4719
  %v4721 = vpop.f32.mrb[0].mxu0
  %v4722 = vadd.f32 0.0, %v4721
  %4723 = vdwg.mxu0
  %4724 = vmatprep.subr.bf16.mxu0 %v3802
  %4725 = vmatpush1.bf16.msra.mxu0 %v3801
  %4726 = vmatprep.subr.bf16.mxu0 %v3807
  %4727 = vmatpush1.bf16.msra.mxu0 %v3806
  %4728 = vmatprep.subr.bf16.mxu0 %v3812
  %4729 = vmatpush1.bf16.msra.mxu0 %v3811
  %4730 = vmatprep.subr.bf16.mxu0 %v3817
  %4731 = vmatpush1.bf16.msra.mxu0 %v3816
  %4732 = vmatprep.subr.bf16.mxu0 %v3822
  %4733 = vmatpush1.bf16.msra.mxu0 %v3821
  %4734 = vmatprep.subr.bf16.mxu0 %v3827
  %4735 = vmatpush1.bf16.msra.mxu0 %v3826
  %4736 = vmatprep.subr.bf16.mxu0 %v3832
  %4737 = vmatpush1.bf16.msra.mxu0 %v3831
  %4738 = vmatprep.subr.bf16.mxu0 %v3837
  %4739 = vmatpush1.bf16.msra.mxu0 %v3836
  %4740 = vmatprep.subr.bf16.mxu0 %v3842
  %4741 = vmatpush1.bf16.msra.mxu0 %v3841
  %4742 = vmatprep.subr.bf16.mxu0 %v3847
  %4743 = vmatpush1.bf16.msra.mxu0 %v3846
  %4744 = vmatprep.subr.bf16.mxu0 %v3852
  %4745 = vmatpush1.bf16.msra.mxu0 %v3851
  %4746 = vmatprep.subr.bf16.mxu0 %v3857
  %4747 = vmatpush1.bf16.msra.mxu0 %v3856
  %4748 = vmatprep.subr.bf16.mxu0 %v3862
  %4749 = vmatpush1.bf16.msra.mxu0 %v3861
  %4750 = vmatprep.subr.bf16.mxu0 %v3867
  %4751 = vmatpush1.bf16.msra.mxu0 %v3866
  %4752 = vmatprep.subr.bf16.mxu0 %v3872
  %4753 = vmatpush1.bf16.msra.mxu0 %v3871
  %4754 = vmatprep.subr.bf16.mxu0 %v3877
  %4755 = vmatpush1.bf16.msra.mxu0 %v3876
  %4756 = vmatprep.mubr.bf16.mxu0 %v2176
  %4757 = vmatmul.mubr.bf16.gmra.mrb[0].mxu0 %v2175
  %v4758 = vpop.f32.mrb[0].mxu0
  %v4759 = vadd.f32 %v4716, %v4758
  %v4760 = vpop.f32.mrb[0].mxu0
  %v4761 = vadd.f32 %v4718, %v4760
  %v4762 = vpop.f32.mrb[0].mxu0
  %v4763 = vadd.f32 %v4720, %v4762
  %v4764 = vpop.f32.mrb[0].mxu0
  %v4765 = vadd.f32 %v4722, %v4764
  %4766 = vdwg.mxu0
  %4767 = vmatprep.subr.bf16.mxu0 %v3882
  %4768 = vmatpush1.bf16.msra.mxu0 %v3881
  %4769 = vmatprep.subr.bf16.mxu0 %v3887
  %4770 = vmatpush1.bf16.msra.mxu0 %v3886
  %4771 = vmatprep.subr.bf16.mxu0 %v3892
  %4772 = vmatpush1.bf16.msra.mxu0 %v3891
  %4773 = vmatprep.subr.bf16.mxu0 %v3897
  %4774 = vmatpush1.bf16.msra.mxu0 %v3896
  %4775 = vmatprep.subr.bf16.mxu0 %v3902
  %4776 = vmatpush1.bf16.msra.mxu0 %v3901
  %4777 = vmatprep.subr.bf16.mxu0 %v3907
  %4778 = vmatpush1.bf16.msra.mxu0 %v3906
  %4779 = vmatprep.subr.bf16.mxu0 %v3912
  %4780 = vmatpush1.bf16.msra.mxu0 %v3911
  %4781 = vmatprep.subr.bf16.mxu0 %v3917
  %4782 = vmatpush1.bf16.msra.mxu0 %v3916
  %4783 = vmatprep.subr.bf16.mxu0 %v3922
  %4784 = vmatpush1.bf16.msra.mxu0 %v3921
  %4785 = vmatprep.subr.bf16.mxu0 %v3927
  %4786 = vmatpush1.bf16.msra.mxu0 %v3926
  %4787 = vmatprep.subr.bf16.mxu0 %v3932
  %4788 = vmatpush1.bf16.msra.mxu0 %v3931
  %4789 = vmatprep.subr.bf16.mxu0 %v3937
  %4790 = vmatpush1.bf16.msra.mxu0 %v3936
  %4791 = vmatprep.subr.bf16.mxu0 %v3942
  %4792 = vmatpush1.bf16.msra.mxu0 %v3941
  %4793 = vmatprep.subr.bf16.mxu0 %v3947
  %4794 = vmatpush1.bf16.msra.mxu0 %v3946
  %4795 = vmatprep.subr.bf16.mxu0 %v3952
  %4796 = vmatpush1.bf16.msra.mxu0 %v3951
  %4797 = vmatprep.subr.bf16.mxu0 %v3957
  %4798 = vmatpush1.bf16.msra.mxu0 %v3956
  %4799 = vmatprep.mubr.bf16.mxu0 %v2178
  %4800 = vmatmul.mubr.bf16.gmra.mrb[0].mxu0 %v2177
  %v4801 = vpop.f32.mrb[0].mxu0
  %v4802 = vadd.f32 %v4759, %v4801
  %v4803 = vpop.f32.mrb[0].mxu0
  %v4804 = vadd.f32 %v4761, %v4803
  %v4805 = vpop.f32.mrb[0].mxu0
  %v4806 = vadd.f32 %v4763, %v4805
  %v4807 = vpop.f32.mrb[0].mxu0
  %v4808 = vadd.f32 %v4765, %v4807
  %4809 = vdwg.mxu0
  %4810 = vmatprep.subr.bf16.mxu0 %v3962
  %4811 = vmatpush1.bf16.msra.mxu0 %v3961
  %4812 = vmatprep.subr.bf16.mxu0 %v3967
  %4813 = vmatpush1.bf16.msra.mxu0 %v3966
  %4814 = vmatprep.subr.bf16.mxu0 %v3972
  %4815 = vmatpush1.bf16.msra.mxu0 %v3971
  %4816 = vmatprep.subr.bf16.mxu0 %v3977
  %4817 = vmatpush1.bf16.msra.mxu0 %v3976
  %4818 = vmatprep.subr.bf16.mxu0 %v3982
  %4819 = vmatpush1.bf16.msra.mxu0 %v3981
  %4820 = vmatprep.subr.bf16.mxu0 %v3987
  %4821 = vmatpush1.bf16.msra.mxu0 %v3986
  %4822 = vmatprep.subr.bf16.mxu0 %v3992
  %4823 = vmatpush1.bf16.msra.mxu0 %v3991
  %4824 = vmatprep.subr.bf16.mxu0 %v3997
  %4825 = vmatpush1.bf16.msra.mxu0 %v3996
  %4826 = vmatprep.subr.bf16.mxu0 %v4002
  %4827 = vmatpush1.bf16.msra.mxu0 %v4001
  %4828 = vmatprep.subr.bf16.mxu0 %v4007
  %4829 = vmatpush1.bf16.msra.mxu0 %v4006
  %4830 = vmatprep.subr.bf16.mxu0 %v4012
  %4831 = vmatpush1.bf16.msra.mxu0 %v4011
  %4832 = vmatprep.subr.bf16.mxu0 %v4017
  %4833 = vmatpush1.bf16.msra.mxu0 %v4016
  %4834 = vmatprep.subr.bf16.mxu0 %v4022
  %4835 = vmatpush1.bf16.msra.mxu0 %v4021
  %4836 = vmatprep.subr.bf16.mxu0 %v4027
  %4837 = vmatpush1.bf16.msra.mxu0 %v4026
  %4838 = vmatprep.subr.bf16.mxu0 %v4032
  %4839 = vmatpush1.bf16.msra.mxu0 %v4031
  %4840 = vmatprep.subr.bf16.mxu0 %v4037
  %4841 = vmatpush1.bf16.msra.mxu0 %v4036
  %4842 = vmatprep.mubr.bf16.mxu0 %v2180
  %4843 = vmatmul.mubr.bf16.gmra.mrb[0].mxu0 %v2179
  %v4844 = vpop.f32.mrb[0].mxu0
  %v4845 = vadd.f32 %v4802, %v4844
  %v4846 = vpop.f32.mrb[0].mxu0
  %v4847 = vadd.f32 %v4804, %v4846
  %v4848 = vpop.f32.mrb[0].mxu0
  %v4849 = vadd.f32 %v4806, %v4848
  %v4850 = vpop.f32.mrb[0].mxu0
  %v4851 = vadd.f32 %v4808, %v4850
  %4852 = vdwg.mxu0
  %4853 = vmatprep.subr.bf16.mxu0 %v4042
  %4854 = vmatpush1.bf16.msra.mxu0 %v4041
  %4855 = vmatprep.subr.bf16.mxu0 %v4047
  %4856 = vmatpush1.bf16.msra.mxu0 %v4046
  %4857 = vmatprep.subr.bf16.mxu0 %v4052
  %4858 = vmatpush1.bf16.msra.mxu0 %v4051
  %4859 = vmatprep.subr.bf16.mxu0 %v4057
  %4860 = vmatpush1.bf16.msra.mxu0 %v4056
  %4861 = vmatprep.subr.bf16.mxu0 %v4062
  %4862 = vmatpush1.bf16.msra.mxu0 %v4061
  %4863 = vmatprep.subr.bf16.mxu0 %v4067
  %4864 = vmatpush1.bf16.msra.mxu0 %v4066
  %4865 = vmatprep.subr.bf16.mxu0 %v4072
  %4866 = vmatpush1.bf16.msra.mxu0 %v4071
  %4867 = vmatprep.subr.bf16.mxu0 %v4077
  %4868 = vmatpush1.bf16.msra.mxu0 %v4076
  %4869 = vmatprep.subr.bf16.mxu0 %v4082
  %4870 = vmatpush1.bf16.msra.mxu0 %v4081
  %4871 = vmatprep.subr.bf16.mxu0 %v4087
  %4872 = vmatpush1.bf16.msra.mxu0 %v4086
  %4873 = vmatprep.subr.bf16.mxu0 %v4092
  %4874 = vmatpush1.bf16.msra.mxu0 %v4091
  %4875 = vmatprep.subr.bf16.mxu0 %v4097
  %4876 = vmatpush1.bf16.msra.mxu0 %v4096
  %4877 = vmatprep.subr.bf16.mxu0 %v4102
  %4878 = vmatpush1.bf16.msra.mxu0 %v4101
  %4879 = vmatprep.subr.bf16.mxu0 %v4107
  %4880 = vmatpush1.bf16.msra.mxu0 %v4106
  %4881 = vmatprep.subr.bf16.mxu0 %v4112
  %4882 = vmatpush1.bf16.msra.mxu0 %v4111
  %4883 = vmatprep.subr.bf16.mxu0 %v4117
  %4884 = vmatpush1.bf16.msra.mxu0 %v4116
  %4885 = vmatprep.mubr.bf16.mxu0 %v2182
  %4886 = vmatmul.mubr.bf16.gmra.mrb[0].mxu0 %v2181
  %v4887 = vpop.f32.mrb[0].mxu0
  %v4888 = vadd.f32 %v4845, %v4887
  %v4889 = vpop.f32.mrb[0].mxu0
  %v4890 = vadd.f32 %v4847, %v4889
  %v4891 = vpop.f32.mrb[0].mxu0
  %v4892 = vadd.f32 %v4849, %v4891
  %v4893 = vpop.f32.mrb[0].mxu0
  %v4894 = vadd.f32 %v4851, %v4893
  %4895 = vdwg.mxu0
  %4896 = vmatprep.subr.bf16.mxu0 %v4122
  %4897 = vmatpush1.bf16.msra.mxu0 %v4121
  %4898 = vmatprep.subr.bf16.mxu0 %v4127
  %4899 = vmatpush1.bf16.msra.mxu0 %v4126
  %4900 = vmatprep.subr.bf16.mxu0 %v4132
  %4901 = vmatpush1.bf16.msra.mxu0 %v4131
  %4902 = vmatprep.subr.bf16.mxu0 %v4137
  %4903 = vmatpush1.bf16.msra.mxu0 %v4136
  %4904 = vmatprep.subr.bf16.mxu0 %v4142
  %4905 = vmatpush1.bf16.msra.mxu0 %v4141
  %4906 = vmatprep.subr.bf16.mxu0 %v4147
  %4907 = vmatpush1.bf16.msra.mxu0 %v4146
  %4908 = vmatprep.subr.bf16.mxu0 %v4152
  %4909 = vmatpush1.bf16.msra.mxu0 %v4151
  %4910 = vmatprep.subr.bf16.mxu0 %v4157
  %4911 = vmatpush1.bf16.msra.mxu0 %v4156
  %4912 = vmatprep.subr.bf16.mxu0 %v4162
  %4913 = vmatpush1.bf16.msra.mxu0 %v4161
  %4914 = vmatprep.subr.bf16.mxu0 %v4167
  %4915 = vmatpush1.bf16.msra.mxu0 %v4166
  %4916 = vmatprep.subr.bf16.mxu0 %v4172
  %4917 = vmatpush1.bf16.msra.mxu0 %v4171
  %4918 = vmatprep.subr.bf16.mxu0 %v4177
  %4919 = vmatpush1.bf16.msra.mxu0 %v4176
  %4920 = vmatprep.subr.bf16.mxu0 %v4182
  %4921 = vmatpush1.bf16.msra.mxu0 %v4181
  %4922 = vmatprep.subr.bf16.mxu0 %v4187
  %4923 = vmatpush1.bf16.msra.mxu0 %v4186
  %4924 = vmatprep.subr.bf16.mxu0 %v4192
  %4925 = vmatpush1.bf16.msra.mxu0 %v4191
  %4926 = vmatprep.subr.bf16.mxu0 %v4197
  %4927 = vmatpush1.bf16.msra.mxu0 %v4196
  %4928 = vmatprep.mubr.bf16.mxu0 %v2184
  %4929 = vmatmul.mubr.bf16.gmra.mrb[0].mxu0 %v2183
  %v4930 = vpop.f32.mrb[0].mxu0
  %v4931 = vadd.f32 %v4888, %v4930
  %v4932 = vpop.f32.mrb[0].mxu0
  %v4933 = vadd.f32 %v4890, %v4932
  %v4934 = vpop.f32.mrb[0].mxu0
  %v4935 = vadd.f32 %v4892, %v4934
  %v4936 = vpop.f32.mrb[0].mxu0
  %v4937 = vadd.f32 %v4894, %v4936
  %4938 = vdwg.mxu0
  %4939 = vmatprep.subr.bf16.mxu0 %v3724
  %4940 = vmatpush1.bf16.msra.mxu0 %v3723
  %4941 = vmatprep.subr.bf16.mxu0 %v3729
  %4942 = vmatpush1.bf16.msra.mxu0 %v3728
  %4943 = vmatprep.subr.bf16.mxu0 %v3734
  %4944 = vmatpush1.bf16.msra.mxu0 %v3733
  %4945 = vmatprep.subr.bf16.mxu0 %v3739
  %4946 = vmatpush1.bf16.msra.mxu0 %v3738
  %4947 = vmatprep.subr.bf16.mxu0 %v3744
  %4948 = vmatpush1.bf16.msra.mxu0 %v3743
  %4949 = vmatprep.subr.bf16.mxu0 %v3749
  %4950 = vmatpush1.bf16.msra.mxu0 %v3748
  %4951 = vmatprep.subr.bf16.mxu0 %v3754
  %4952 = vmatpush1.bf16.msra.mxu0 %v3753
  %4953 = vmatprep.subr.bf16.mxu0 %v3759
  %4954 = vmatpush1.bf16.msra.mxu0 %v3758
  %4955 = vmatprep.subr.bf16.mxu0 %v3764
  %4956 = vmatpush1.bf16.msra.mxu0 %v3763
  %4957 = vmatprep.subr.bf16.mxu0 %v3769
  %4958 = vmatpush1.bf16.msra.mxu0 %v3768
  %4959 = vmatprep.subr.bf16.mxu0 %v3774
  %4960 = vmatpush1.bf16.msra.mxu0 %v3773
  %4961 = vmatprep.subr.bf16.mxu0 %v3779
  %4962 = vmatpush1.bf16.msra.mxu0 %v3778
  %4963 = vmatprep.subr.bf16.mxu0 %v3784
  %4964 = vmatpush1.bf16.msra.mxu0 %v3783
  %4965 = vmatprep.subr.bf16.mxu0 %v3789
  %4966 = vmatpush1.bf16.msra.mxu0 %v3788
  %4967 = vmatprep.subr.bf16.mxu0 %v3794
  %4968 = vmatpush1.bf16.msra.mxu0 %v3793
  %4969 = vmatprep.subr.bf16.mxu0 %v3799
  %4970 = vmatpush1.bf16.msra.mxu0 %v3798
  %4971 = vmatprep.mubr.bf16.mxu0 %v2174
  %4972 = vmatmul.mubr.bf16.gmra.mrb[0].mxu0 %v2173
  %v4973 = vpop.f32.mrb[0].mxu0
  %v4974 = vadd.f32 0.0, %v4973
  %v4975 = vpop.f32.mrb[0].mxu0
  %v4976 = vadd.f32 0.0, %v4975
  %v4977 = vpop.f32.mrb[0].mxu0
  %v4978 = vadd.f32 0.0, %v4977
  %v4979 = vpop.f32.mrb[0].mxu0
  %v4980 = vadd.f32 0.0, %v4979
  %4981 = vdwg.mxu0
  %4982 = vmatprep.subr.bf16.mxu0 %v3804
  %4983 = vmatpush1.bf16.msra.mxu0 %v3803
  %4984 = vmatprep.subr.bf16.mxu0 %v3809
  %4985 = vmatpush1.bf16.msra.mxu0 %v3808
  %4986 = vmatprep.subr.bf16.mxu0 %v3814
  %4987 = vmatpush1.bf16.msra.mxu0 %v3813
  %4988 = vmatprep.subr.bf16.mxu0 %v3819
  %4989 = vmatpush1.bf16.msra.mxu0 %v3818
  %4990 = vmatprep.subr.bf16.mxu0 %v3824
  %4991 = vmatpush1.bf16.msra.mxu0 %v3823
  %4992 = vmatprep.subr.bf16.mxu0 %v3829
  %4993 = vmatpush1.bf16.msra.mxu0 %v3828
  %4994 = vmatprep.subr.bf16.mxu0 %v3834
  %4995 = vmatpush1.bf16.msra.mxu0 %v3833
  %4996 = vmatprep.subr.bf16.mxu0 %v3839
  %4997 = vmatpush1.bf16.msra.mxu0 %v3838
  %4998 = vmatprep.subr.bf16.mxu0 %v3844
  %4999 = vmatpush1.bf16.msra.mxu0 %v3843
  %5000 = vmatprep.subr.bf16.mxu0 %v3849
  %5001 = vmatpush1.bf16.msra.mxu0 %v3848
  %5002 = vmatprep.subr.bf16.mxu0 %v3854
  %5003 = vmatpush1.bf16.msra.mxu0 %v3853
  %5004 = vmatprep.subr.bf16.mxu0 %v3859
  %5005 = vmatpush1.bf16.msra.mxu0 %v3858
  %5006 = vmatprep.subr.bf16.mxu0 %v3864
  %5007 = vmatpush1.bf16.msra.mxu0 %v3863
  %5008 = vmatprep.subr.bf16.mxu0 %v3869
  %5009 = vmatpush1.bf16.msra.mxu0 %v3868
  %5010 = vmatprep.subr.bf16.mxu0 %v3874
  %5011 = vmatpush1.bf16.msra.mxu0 %v3873
  %5012 = vmatprep.subr.bf16.mxu0 %v3879
  %5013 = vmatpush1.bf16.msra.mxu0 %v3878
  %5014 = vmatprep.mubr.bf16.mxu0 %v2176
  %5015 = vmatmul.mubr.bf16.gmra.mrb[0].mxu0 %v2175
  %v5016 = vpop.f32.mrb[0].mxu0
  %v5017 = vadd.f32 %v4974, %v5016
  %v5018 = vpop.f32.mrb[0].mxu0
  %v5019 = vadd.f32 %v4976, %v5018
  %v5020 = vpop.f32.mrb[0].mxu0
  %v5021 = vadd.f32 %v4978, %v5020
  %v5022 = vpop.f32.mrb[0].mxu0
  %v5023 = vadd.f32 %v4980, %v5022
  %5024 = vdwg.mxu0
  %5025 = vmatprep.subr.bf16.mxu0 %v3884
  %5026 = vmatpush1.bf16.msra.mxu0 %v3883
  %5027 = vmatprep.subr.bf16.mxu0 %v3889
  %5028 = vmatpush1.bf16.msra.mxu0 %v3888
  %5029 = vmatprep.subr.bf16.mxu0 %v3894
  %5030 = vmatpush1.bf16.msra.mxu0 %v3893
  %5031 = vmatprep.subr.bf16.mxu0 %v3899
  %5032 = vmatpush1.bf16.msra.mxu0 %v3898
  %5033 = vmatprep.subr.bf16.mxu0 %v3904
  %5034 = vmatpush1.bf16.msra.mxu0 %v3903
  %5035 = vmatprep.subr.bf16.mxu0 %v3909
  %5036 = vmatpush1.bf16.msra.mxu0 %v3908
  %5037 = vmatprep.subr.bf16.mxu0 %v3914
  %5038 = vmatpush1.bf16.msra.mxu0 %v3913
  %5039 = vmatprep.subr.bf16.mxu0 %v3919
  %5040 = vmatpush1.bf16.msra.mxu0 %v3918
  %5041 = vmatprep.subr.bf16.mxu0 %v3924
  %5042 = vmatpush1.bf16.msra.mxu0 %v3923
  %5043 = vmatprep.subr.bf16.mxu0 %v3929
  %5044 = vmatpush1.bf16.msra.mxu0 %v3928
  %5045 = vmatprep.subr.bf16.mxu0 %v3934
  %5046 = vmatpush1.bf16.msra.mxu0 %v3933
  %5047 = vmatprep.subr.bf16.mxu0 %v3939
  %5048 = vmatpush1.bf16.msra.mxu0 %v3938
  %5049 = vmatprep.subr.bf16.mxu0 %v3944
  %5050 = vmatpush1.bf16.msra.mxu0 %v3943
  %5051 = vmatprep.subr.bf16.mxu0 %v3949
  %5052 = vmatpush1.bf16.msra.mxu0 %v3948
  %5053 = vmatprep.subr.bf16.mxu0 %v3954
  %5054 = vmatpush1.bf16.msra.mxu0 %v3953
  %5055 = vmatprep.subr.bf16.mxu0 %v3959
  %5056 = vmatpush1.bf16.msra.mxu0 %v3958
  %5057 = vmatprep.mubr.bf16.mxu0 %v2178
  %5058 = vmatmul.mubr.bf16.gmra.mrb[0].mxu0 %v2177
  %v5059 = vpop.f32.mrb[0].mxu0
  %v5060 = vadd.f32 %v5017, %v5059
  %v5061 = vpop.f32.mrb[0].mxu0
  %v5062 = vadd.f32 %v5019, %v5061
  %v5063 = vpop.f32.mrb[0].mxu0
  %v5064 = vadd.f32 %v5021, %v5063
  %v5065 = vpop.f32.mrb[0].mxu0
  %v5066 = vadd.f32 %v5023, %v5065
  %5067 = vdwg.mxu0
  %5068 = vmatprep.subr.bf16.mxu0 %v3964
  %5069 = vmatpush1.bf16.msra.mxu0 %v3963
  %5070 = vmatprep.subr.bf16.mxu0 %v3969
  %5071 = vmatpush1.bf16.msra.mxu0 %v3968
  %5072 = vmatprep.subr.bf16.mxu0 %v3974
  %5073 = vmatpush1.bf16.msra.mxu0 %v3973
  %5074 = vmatprep.subr.bf16.mxu0 %v3979
  %5075 = vmatpush1.bf16.msra.mxu0 %v3978
  %5076 = vmatprep.subr.bf16.mxu0 %v3984
  %5077 = vmatpush1.bf16.msra.mxu0 %v3983
  %5078 = vmatprep.subr.bf16.mxu0 %v3989
  %5079 = vmatpush1.bf16.msra.mxu0 %v3988
  %5080 = vmatprep.subr.bf16.mxu0 %v3994
  %5081 = vmatpush1.bf16.msra.mxu0 %v3993
  %5082 = vmatprep.subr.bf16.mxu0 %v3999
  %5083 = vmatpush1.bf16.msra.mxu0 %v3998
  %5084 = vmatprep.subr.bf16.mxu0 %v4004
  %5085 = vmatpush1.bf16.msra.mxu0 %v4003
  %5086 = vmatprep.subr.bf16.mxu0 %v4009
  %5087 = vmatpush1.bf16.msra.mxu0 %v4008
  %5088 = vmatprep.subr.bf16.mxu0 %v4014
  %5089 = vmatpush1.bf16.msra.mxu0 %v4013
  %5090 = vmatprep.subr.bf16.mxu0 %v4019
  %5091 = vmatpush1.bf16.msra.mxu0 %v4018
  %5092 = vmatprep.subr.bf16.mxu0 %v4024
  %5093 = vmatpush1.bf16.msra.mxu0 %v4023
  %5094 = vmatprep.subr.bf16.mxu0 %v4029
  %5095 = vmatpush1.bf16.msra.mxu0 %v4028
  %5096 = vmatprep.subr.bf16.mxu0 %v4034
  %5097 = vmatpush1.bf16.msra.mxu0 %v4033
  %5098 = vmatprep.subr.bf16.mxu0 %v4039
  %5099 = vmatpush1.bf16.msra.mxu0 %v4038
  %5100 = vmatprep.mubr.bf16.mxu0 %v2180
  %5101 = vmatmul.mubr.bf16.gmra.mrb[0].mxu0 %v2179
  %v5102 = vpop.f32.mrb[0].mxu0
  %v5103 = vadd.f32 %v5060, %v5102
  %v5104 = vpop.f32.mrb[0].mxu0
  %v5105 = vadd.f32 %v5062, %v5104
  %v5106 = vpop.f32.mrb[0].mxu0
  %v5107 = vadd.f32 %v5064, %v5106
  %v5108 = vpop.f32.mrb[0].mxu0
  %v5109 = vadd.f32 %v5066, %v5108
  %5110 = vdwg.mxu0
  %5111 = vmatprep.subr.bf16.mxu0 %v4044
  %5112 = vmatpush1.bf16.msra.mxu0 %v4043
  %5113 = vmatprep.subr.bf16.mxu0 %v4049
  %5114 = vmatpush1.bf16.msra.mxu0 %v4048
  %5115 = vmatprep.subr.bf16.mxu0 %v4054
  %5116 = vmatpush1.bf16.msra.mxu0 %v4053
  %5117 = vmatprep.subr.bf16.mxu0 %v4059
  %5118 = vmatpush1.bf16.msra.mxu0 %v4058
  %5119 = vmatprep.subr.bf16.mxu0 %v4064
  %5120 = vmatpush1.bf16.msra.mxu0 %v4063
  %5121 = vmatprep.subr.bf16.mxu0 %v4069
  %5122 = vmatpush1.bf16.msra.mxu0 %v4068
  %5123 = vmatprep.subr.bf16.mxu0 %v4074
  %5124 = vmatpush1.bf16.msra.mxu0 %v4073
  %5125 = vmatprep.subr.bf16.mxu0 %v4079
  %5126 = vmatpush1.bf16.msra.mxu0 %v4078
  %5127 = vmatprep.subr.bf16.mxu0 %v4084
  %5128 = vmatpush1.bf16.msra.mxu0 %v4083
  %5129 = vmatprep.subr.bf16.mxu0 %v4089
  %5130 = vmatpush1.bf16.msra.mxu0 %v4088
  %5131 = vmatprep.subr.bf16.mxu0 %v4094
  %5132 = vmatpush1.bf16.msra.mxu0 %v4093
  %5133 = vmatprep.subr.bf16.mxu0 %v4099
  %5134 = vmatpush1.bf16.msra.mxu0 %v4098
  %5135 = vmatprep.subr.bf16.mxu0 %v4104
  %5136 = vmatpush1.bf16.msra.mxu0 %v4103
  %5137 = vmatprep.subr.bf16.mxu0 %v4109
  %5138 = vmatpush1.bf16.msra.mxu0 %v4108
  %5139 = vmatprep.subr.bf16.mxu0 %v4114
  %5140 = vmatpush1.bf16.msra.mxu0 %v4113
  %5141 = vmatprep.subr.bf16.mxu0 %v4119
  %5142 = vmatpush1.bf16.msra.mxu0 %v4118
  %5143 = vmatprep.mubr.bf16.mxu0 %v2182
  %5144 = vmatmul.mubr.bf16.gmra.mrb[0].mxu0 %v2181
  %v5145 = vpop.f32.mrb[0].mxu0
  %v5146 = vadd.f32 %v5103, %v5145
  %v5147 = vpop.f32.mrb[0].mxu0
  %v5148 = vadd.f32 %v5105, %v5147
  %v5149 = vpop.f32.mrb[0].mxu0
  %v5150 = vadd.f32 %v5107, %v5149
  %v5151 = vpop.f32.mrb[0].mxu0
  %v5152 = vadd.f32 %v5109, %v5151
  %5153 = vdwg.mxu0
  %5154 = vmatprep.subr.bf16.mxu0 %v4124
  %5155 = vmatpush1.bf16.msra.mxu0 %v4123
  %5156 = vmatprep.subr.bf16.mxu0 %v4129
  %5157 = vmatpush1.bf16.msra.mxu0 %v4128
  %5158 = vmatprep.subr.bf16.mxu0 %v4134
  %5159 = vmatpush1.bf16.msra.mxu0 %v4133
  %5160 = vmatprep.subr.bf16.mxu0 %v4139
  %5161 = vmatpush1.bf16.msra.mxu0 %v4138
  %5162 = vmatprep.subr.bf16.mxu0 %v4144
  %5163 = vmatpush1.bf16.msra.mxu0 %v4143
  %5164 = vmatprep.subr.bf16.mxu0 %v4149
  %5165 = vmatpush1.bf16.msra.mxu0 %v4148
  %5166 = vmatprep.subr.bf16.mxu0 %v4154
  %5167 = vmatpush1.bf16.msra.mxu0 %v4153
  %5168 = vmatprep.subr.bf16.mxu0 %v4159
  %5169 = vmatpush1.bf16.msra.mxu0 %v4158
  %5170 = vmatprep.subr.bf16.mxu0 %v4164
  %5171 = vmatpush1.bf16.msra.mxu0 %v4163
  %5172 = vmatprep.subr.bf16.mxu0 %v4169
  %5173 = vmatpush1.bf16.msra.mxu0 %v4168
  %5174 = vmatprep.subr.bf16.mxu0 %v4174
  %5175 = vmatpush1.bf16.msra.mxu0 %v4173
  %5176 = vmatprep.subr.bf16.mxu0 %v4179
  %5177 = vmatpush1.bf16.msra.mxu0 %v4178
  %5178 = vmatprep.subr.bf16.mxu0 %v4184
  %5179 = vmatpush1.bf16.msra.mxu0 %v4183
  %5180 = vmatprep.subr.bf16.mxu0 %v4189
  %5181 = vmatpush1.bf16.msra.mxu0 %v4188
  %5182 = vmatprep.subr.bf16.mxu0 %v4194
  %5183 = vmatpush1.bf16.msra.mxu0 %v4193
  %5184 = vmatprep.subr.bf16.mxu0 %v4199
  %5185 = vmatpush1.bf16.msra.mxu0 %v4198
  %5186 = vmatprep.mubr.bf16.mxu0 %v2184
  %5187 = vmatmul.mubr.bf16.gmra.mrb[0].mxu0 %v2183
  %v5188 = vpop.f32.mrb[0].mxu0
  %v5189 = vadd.f32 %v5146, %v5188
  %v5190 = vpop.f32.mrb[0].mxu0
  %v5191 = vadd.f32 %v5148, %v5190
  %v5192 = vpop.f32.mrb[0].mxu0
  %v5193 = vadd.f32 %v5150, %v5192
  %v5194 = vpop.f32.mrb[0].mxu0
  %v5195 = vadd.f32 %v5152, %v5194
  %5196 = vdwg.mxu0
  %5197 = vmatprep.subr.bf16.mxu0 0
  %5198 = vmatpush1.bf16.msra.mxu0 %v3725
  %5199 = vmatprep.subr.bf16.mxu0 0
  %5200 = vmatpush1.bf16.msra.mxu0 %v3730
  %5201 = vmatprep.subr.bf16.mxu0 0
  %5202 = vmatpush1.bf16.msra.mxu0 %v3735
  %5203 = vmatprep.subr.bf16.mxu0 0
  %5204 = vmatpush1.bf16.msra.mxu0 %v3740
  %5205 = vmatprep.subr.bf16.mxu0 0
  %5206 = vmatpush1.bf16.msra.mxu0 %v3745
  %5207 = vmatprep.subr.bf16.mxu0 0
  %5208 = vmatpush1.bf16.msra.mxu0 %v3750
  %5209 = vmatprep.subr.bf16.mxu0 0
  %5210 = vmatpush1.bf16.msra.mxu0 %v3755
  %5211 = vmatprep.subr.bf16.mxu0 0
  %5212 = vmatpush1.bf16.msra.mxu0 %v3760
  %5213 = vmatprep.subr.bf16.mxu0 0
  %5214 = vmatpush1.bf16.msra.mxu0 %v3765
  %5215 = vmatprep.subr.bf16.mxu0 0
  %5216 = vmatpush1.bf16.msra.mxu0 %v3770
  %5217 = vmatprep.subr.bf16.mxu0 0
  %5218 = vmatpush1.bf16.msra.mxu0 %v3775
  %5219 = vmatprep.subr.bf16.mxu0 0
  %5220 = vmatpush1.bf16.msra.mxu0 %v3780
  %5221 = vmatprep.subr.bf16.mxu0 0
  %5222 = vmatpush1.bf16.msra.mxu0 %v3785
  %5223 = vmatprep.subr.bf16.mxu0 0
  %5224 = vmatpush1.bf16.msra.mxu0 %v3790
  %5225 = vmatprep.subr.bf16.mxu0 0
  %5226 = vmatpush1.bf16.msra.mxu0 %v3795
  %5227 = vmatprep.subr.bf16.mxu0 0
  %5228 = vmatpush1.bf16.msra.mxu0 %v3800
  %5229 = vmatprep.mubr.bf16.mxu0 %v2174
  %5230 = vmatmul.mubr.bf16.gmra.mrb[0].mxu0 %v2173
  %v5231 = vpop.f32.mrb[0].mxu0
  %v5232 = vadd.f32 0.0, %v5231
  %v5233 = vpop.f32.mrb[0].mxu0
  %v5234 = vpop.f32.mrb[0].mxu0
  %v5235 = vadd.f32 0.0, %v5234
  %v5236 = vpop.f32.mrb[0].mxu0
  %5237 = vdwg.mxu0
  %5238 = vmatprep.subr.bf16.mxu0 0
  %5239 = vmatpush1.bf16.msra.mxu0 %v3805
  %5240 = vmatprep.subr.bf16.mxu0 0
  %5241 = vmatpush1.bf16.msra.mxu0 %v3810
  %5242 = vmatprep.subr.bf16.mxu0 0
  %5243 = vmatpush1.bf16.msra.mxu0 %v3815
  %5244 = vmatprep.subr.bf16.mxu0 0
  %5245 = vmatpush1.bf16.msra.mxu0 %v3820
  %5246 = vmatprep.subr.bf16.mxu0 0
  %5247 = vmatpush1.bf16.msra.mxu0 %v3825
  %5248 = vmatprep.subr.bf16.mxu0 0
  %5249 = vmatpush1.bf16.msra.mxu0 %v3830
  %5250 = vmatprep.subr.bf16.mxu0 0
  %5251 = vmatpush1.bf16.msra.mxu0 %v3835
  %5252 = vmatprep.subr.bf16.mxu0 0
  %5253 = vmatpush1.bf16.msra.mxu0 %v3840
  %5254 = vmatprep.subr.bf16.mxu0 0
  %5255 = vmatpush1.bf16.msra.mxu0 %v3845
  %5256 = vmatprep.subr.bf16.mxu0 0
  %5257 = vmatpush1.bf16.msra.mxu0 %v3850
  %5258 = vmatprep.subr.bf16.mxu0 0
  %5259 = vmatpush1.bf16.msra.mxu0 %v3855
  %5260 = vmatprep.subr.bf16.mxu0 0
  %5261 = vmatpush1.bf16.msra.mxu0 %v3860
  %5262 = vmatprep.subr.bf16.mxu0 0
  %5263 = vmatpush1.bf16.msra.mxu0 %v3865
  %5264 = vmatprep.subr.bf16.mxu0 0
  %5265 = vmatpush1.bf16.msra.mxu0 %v3870
  %5266 = vmatprep.subr.bf16.mxu0 0
  %5267 = vmatpush1.bf16.msra.mxu0 %v3875
  %5268 = vmatprep.subr.bf16.mxu0 0
  %5269 = vmatpush1.bf16.msra.mxu0 %v3880
  %5270 = vmatprep.mubr.bf16.mxu0 %v2176
  %5271 = vmatmul.mubr.bf16.gmra.mrb[0].mxu0 %v2175
  %v5272 = vpop.f32.mrb[0].mxu0
  %v5273 = vadd.f32 %v5232, %v5272
  %v5274 = vpop.f32.mrb[0].mxu0
  %v5275 = vpop.f32.mrb[0].mxu0
  %v5276 = vadd.f32 %v5235, %v5275
  %v5277 = vpop.f32.mrb[0].mxu0
  %5278 = vdwg.mxu0
  %5279 = vmatprep.subr.bf16.mxu0 0
  %5280 = vmatpush1.bf16.msra.mxu0 %v3885
  %5281 = vmatprep.subr.bf16.mxu0 0
  %5282 = vmatpush1.bf16.msra.mxu0 %v3890
  %5283 = vmatprep.subr.bf16.mxu0 0
  %5284 = vmatpush1.bf16.msra.mxu0 %v3895
  %5285 = vmatprep.subr.bf16.mxu0 0
  %5286 = vmatpush1.bf16.msra.mxu0 %v3900
  %5287 = vmatprep.subr.bf16.mxu0 0
  %5288 = vmatpush1.bf16.msra.mxu0 %v3905
  %5289 = vmatprep.subr.bf16.mxu0 0
  %5290 = vmatpush1.bf16.msra.mxu0 %v3910
  %5291 = vmatprep.subr.bf16.mxu0 0
  %5292 = vmatpush1.bf16.msra.mxu0 %v3915
  %5293 = vmatprep.subr.bf16.mxu0 0
  %5294 = vmatpush1.bf16.msra.mxu0 %v3920
  %5295 = vmatprep.subr.bf16.mxu0 0
  %5296 = vmatpush1.bf16.msra.mxu0 %v3925
  %5297 = vmatprep.subr.bf16.mxu0 0
  %5298 = vmatpush1.bf16.msra.mxu0 %v3930
  %5299 = vmatprep.subr.bf16.mxu0 0
  %5300 = vmatpush1.bf16.msra.mxu0 %v3935
  %5301 = vmatprep.subr.bf16.mxu0 0
  %5302 = vmatpush1.bf16.msra.mxu0 %v3940
  %5303 = vmatprep.subr.bf16.mxu0 0
  %5304 = vmatpush1.bf16.msra.mxu0 %v3945
  %5305 = vmatprep.subr.bf16.mxu0 0
  %5306 = vmatpush1.bf16.msra.mxu0 %v3950
  %5307 = vmatprep.subr.bf16.mxu0 0
  %5308 = vmatpush1.bf16.msra.mxu0 %v3955
  %5309 = vmatprep.subr.bf16.mxu0 0
  %5310 = vmatpush1.bf16.msra.mxu0 %v3960
  %5311 = vmatprep.mubr.bf16.mxu0 %v2178
  %5312 = vmatmul.mubr.bf16.gmra.mrb[0].mxu0 %v2177
  %v5313 = vpop.f32.mrb[0].mxu0
  %v5314 = vadd.f32 %v5273, %v5313
  %v5315 = vpop.f32.mrb[0].mxu0
  %v5316 = vpop.f32.mrb[0].mxu0
  %v5317 = vadd.f32 %v5276, %v5316
  %v5318 = vpop.f32.mrb[0].mxu0
  %5319 = vdwg.mxu0
  %5320 = vmatprep.subr.bf16.mxu0 0
  %5321 = vmatpush1.bf16.msra.mxu0 %v3965
  %5322 = vmatprep.subr.bf16.mxu0 0
  %5323 = vmatpush1.bf16.msra.mxu0 %v3970
  %5324 = vmatprep.subr.bf16.mxu0 0
  %5325 = vmatpush1.bf16.msra.mxu0 %v3975
  %5326 = vmatprep.subr.bf16.mxu0 0
  %5327 = vmatpush1.bf16.msra.mxu0 %v3980
  %5328 = vmatprep.subr.bf16.mxu0 0
  %5329 = vmatpush1.bf16.msra.mxu0 %v3985
  %5330 = vmatprep.subr.bf16.mxu0 0
  %5331 = vmatpush1.bf16.msra.mxu0 %v3990
  %5332 = vmatprep.subr.bf16.mxu0 0
  %5333 = vmatpush1.bf16.msra.mxu0 %v3995
  %5334 = vmatprep.subr.bf16.mxu0 0
  %5335 = vmatpush1.bf16.msra.mxu0 %v4000
  %5336 = vmatprep.subr.bf16.mxu0 0
  %5337 = vmatpush1.bf16.msra.mxu0 %v4005
  %5338 = vmatprep.subr.bf16.mxu0 0
  %5339 = vmatpush1.bf16.msra.mxu0 %v4010
  %5340 = vmatprep.subr.bf16.mxu0 0
  %5341 = vmatpush1.bf16.msra.mxu0 %v4015
  %5342 = vmatprep.subr.bf16.mxu0 0
  %5343 = vmatpush1.bf16.msra.mxu0 %v4020
  %5344 = vmatprep.subr.bf16.mxu0 0
  %5345 = vmatpush1.bf16.msra.mxu0 %v4025
  %5346 = vmatprep.subr.bf16.mxu0 0
  %5347 = vmatpush1.bf16.msra.mxu0 %v4030
  %5348 = vmatprep.subr.bf16.mxu0 0
  %5349 = vmatpush1.bf16.msra.mxu0 %v4035
  %5350 = vmatprep.subr.bf16.mxu0 0
  %5351 = vmatpush1.bf16.msra.mxu0 %v4040
  %5352 = vmatprep.mubr.bf16.mxu0 %v2180
  %5353 = vmatmul.mubr.bf16.gmra.mrb[0].mxu0 %v2179
  %v5354 = vpop.f32.mrb[0].mxu0
  %v5355 = vadd.f32 %v5314, %v5354
  %v5356 = vpop.f32.mrb[0].mxu0
  %v5357 = vpop.f32.mrb[0].mxu0
  %v5358 = vadd.f32 %v5317, %v5357
  %v5359 = vpop.f32.mrb[0].mxu0
  %5360 = vdwg.mxu0
  %5361 = vmatprep.subr.bf16.mxu0 0
  %5362 = vmatpush1.bf16.msra.mxu0 %v4045
  %5363 = vmatprep.subr.bf16.mxu0 0
  %5364 = vmatpush1.bf16.msra.mxu0 %v4050
  %5365 = vmatprep.subr.bf16.mxu0 0
  %5366 = vmatpush1.bf16.msra.mxu0 %v4055
  %5367 = vmatprep.subr.bf16.mxu0 0
  %5368 = vmatpush1.bf16.msra.mxu0 %v4060
  %5369 = vmatprep.subr.bf16.mxu0 0
  %5370 = vmatpush1.bf16.msra.mxu0 %v4065
  %5371 = vmatprep.subr.bf16.mxu0 0
  %5372 = vmatpush1.bf16.msra.mxu0 %v4070
  %5373 = vmatprep.subr.bf16.mxu0 0
  %5374 = vmatpush1.bf16.msra.mxu0 %v4075
  %5375 = vmatprep.subr.bf16.mxu0 0
  %5376 = vmatpush1.bf16.msra.mxu0 %v4080
  %5377 = vmatprep.subr.bf16.mxu0 0
  %5378 = vmatpush1.bf16.msra.mxu0 %v4085
  %5379 = vmatprep.subr.bf16.mxu0 0
  %5380 = vmatpush1.bf16.msra.mxu0 %v4090
  %5381 = vmatprep.subr.bf16.mxu0 0
  %5382 = vmatpush1.bf16.msra.mxu0 %v4095
  %5383 = vmatprep.subr.bf16.mxu0 0
  %5384 = vmatpush1.bf16.msra.mxu0 %v4100
  %5385 = vmatprep.subr.bf16.mxu0 0
  %5386 = vmatpush1.bf16.msra.mxu0 %v4105
  %5387 = vmatprep.subr.bf16.mxu0 0
  %5388 = vmatpush1.bf16.msra.mxu0 %v4110
  %5389 = vmatprep.subr.bf16.mxu0 0
  %5390 = vmatpush1.bf16.msra.mxu0 %v4115
  %5391 = vmatprep.subr.bf16.mxu0 0
  %5392 = vmatpush1.bf16.msra.mxu0 %v4120
  %5393 = vmatprep.mubr.bf16.mxu0 %v2182
  %5394 = vmatmul.mubr.bf16.gmra.mrb[0].mxu0 %v2181
  %v5395 = vpop.f32.mrb[0].mxu0
  %v5396 = vadd.f32 %v5355, %v5395
  %v5397 = vpop.f32.mrb[0].mxu0
  %v5398 = vpop.f32.mrb[0].mxu0
  %v5399 = vadd.f32 %v5358, %v5398
  %v5400 = vpop.f32.mrb[0].mxu0
  %5401 = vdwg.mxu0
  %5402 = vmatprep.subr.bf16.mxu0 0
  %5403 = vmatpush1.bf16.msra.mxu0 %v4125
  %5404 = vmatprep.subr.bf16.mxu0 0
  %5405 = vmatpush1.bf16.msra.mxu0 %v4130
  %5406 = vmatprep.subr.bf16.mxu0 0
  %5407 = vmatpush1.bf16.msra.mxu0 %v4135
  %5408 = vmatprep.subr.bf16.mxu0 0
  %5409 = vmatpush1.bf16.msra.mxu0 %v4140
  %5410 = vmatprep.subr.bf16.mxu0 0
  %5411 = vmatpush1.bf16.msra.mxu0 %v4145
  %5412 = vmatprep.subr.bf16.mxu0 0
  %5413 = vmatpush1.bf16.msra.mxu0 %v4150
  %5414 = vmatprep.subr.bf16.mxu0 0
  %5415 = vmatpush1.bf16.msra.mxu0 %v4155
  %5416 = vmatprep.subr.bf16.mxu0 0
  %5417 = vmatpush1.bf16.msra.mxu0 %v4160
  %5418 = vmatprep.subr.bf16.mxu0 0
  %5419 = vmatpush1.bf16.msra.mxu0 %v4165
  %5420 = vmatprep.subr.bf16.mxu0 0
  %5421 = vmatpush1.bf16.msra.mxu0 %v4170
  %5422 = vmatprep.subr.bf16.mxu0 0
  %5423 = vmatpush1.bf16.msra.mxu0 %v4175
  %5424 = vmatprep.subr.bf16.mxu0 0
  %5425 = vmatpush1.bf16.msra.mxu0 %v4180
  %5426 = vmatprep.subr.bf16.mxu0 0
  %5427 = vmatpush1.bf16.msra.mxu0 %v4185
  %5428 = vmatprep.subr.bf16.mxu0 0
  %5429 = vmatpush1.bf16.msra.mxu0 %v4190
  %5430 = vmatprep.subr.bf16.mxu0 0
  %5431 = vmatpush1.bf16.msra.mxu0 %v4195
  %5432 = vmatprep.subr.bf16.mxu0 0
  %5433 = vmatpush1.bf16.msra.mxu0 %v4200
  %5434 = vmatprep.mubr.bf16.mxu0 %v2184
  %5435 = vmatmul.mubr.bf16.gmra.mrb[0].mxu0 %v2183
  %v5436 = vpop.f32.mrb[0].mxu0
  %v5437 = vadd.f32 %v5396, %v5436
  %v5438 = vpop.f32.mrb[0].mxu0
  %v5439 = vpop.f32.mrb[0].mxu0
  %v5440 = vadd.f32 %v5399, %v5439
  %v5441 = vpop.f32.mrb[0].mxu0
  %5442 = vdwg.mxu0
  %v5445 = vcombine.high %v2170, %v2170
  %v5447 = vunpack.c.l.s4 1966171168
  %v5448 = vunpack.c.0.s8 %v5447
  %v5449 = vlaneseq
  %v5450 = vshrl.u32 %v5449, 7
  %v5451 = vsub.s32 %v5448, %v5450
  %v5452 = vrot.slane %v2170, %v5451
  %v5454 = vunpack.c.l.s4 1966171168
  %v5455 = vunpack.c.0.s8 %v5454
  %v5456 = vlaneseq
  %v5457 = vshrl.u32 %v5456, 7
  %v5458 = vsub.s32 %v5455, %v5457
  %v5459 = vrot.slane %v5445, %v5458
  %v5460 = vcombine.high %v5452, %v5452
  %v5461 = vcombine.high %v5459, %v5459
  %v5463 = vunpack.c.l.s4 1966171168
  %v5464 = vunpack.c.0.s8 %v5463
  %v5465 = vlaneseq
  %v5466 = vshrl.u32 %v5465, 7
  %v5467 = vsub.s32 %v5464, %v5466
  %v5468 = vrot.slane %v5452, %v5467
  %v5470 = vunpack.c.l.s4 1966171168
  %v5471 = vunpack.c.0.s8 %v5470
  %v5472 = vlaneseq
  %v5473 = vshrl.u32 %v5472, 7
  %v5474 = vsub.s32 %v5471, %v5473
  %v5475 = vrot.slane %v5459, %v5474
  %v5477 = vunpack.c.l.s4 1966171168
  %v5478 = vunpack.c.0.s8 %v5477
  %v5479 = vlaneseq
  %v5480 = vshrl.u32 %v5479, 7
  %v5481 = vsub.s32 %v5478, %v5480
  %v5482 = vrot.slane %v5460, %v5481
  %v5484 = vunpack.c.l.s4 1966171168
  %v5485 = vunpack.c.0.s8 %v5484
  %v5486 = vlaneseq
  %v5487 = vshrl.u32 %v5486, 7
  %v5488 = vsub.s32 %v5485, %v5487
  %v5489 = vrot.slane %v5461, %v5488
  %v5490 = vcombine.high %v5468, %v5468
  %v5491 = vcombine.high %v5475, %v5475
  %v5492 = vcombine.high %v5482, %v5482
  %v5493 = vcombine.high %v5489, %v5489
  %v5495 = vunpack.c.l.s4 1966171168
  %v5496 = vunpack.c.0.s8 %v5495
  %v5497 = vlaneseq
  %v5498 = vshrl.u32 %v5497, 7
  %v5499 = vsub.s32 %v5496, %v5498
  %v5500 = vrot.slane %v2171, %v5499
  %v5501 = vcombine.high %v5500, %v5500
  %v5503 = vunpack.c.l.s4 1966171168
  %v5504 = vunpack.c.0.s8 %v5503
  %v5505 = vlaneseq
  %v5506 = vshrl.u32 %v5505, 7
  %v5507 = vsub.s32 %v5504, %v5506
  %v5508 = vrot.slane %v5500, %v5507
  %v5510 = vunpack.c.l.s4 1966171168
  %v5511 = vunpack.c.0.s8 %v5510
  %v5512 = vlaneseq
  %v5513 = vshrl.u32 %v5512, 7
  %v5514 = vsub.s32 %v5511, %v5513
  %v5515 = vrot.slane %v5501, %v5514
  %v5516 = vcombine.high %v5508, %v5508
  %v5517 = vcombine.high %v5515, %v5515
  %5530 = vmatprep.subr.bf16.mxu0 %v2174
  %5531 = vmatpush1.bf16.xpose.msra.mxu0 %v2173
  %5532 = vmatprep.subr.bf16.mxu0 0
  %5533 = vmatpush1.bf16.xpose.msra.mxu0 0
  %5534 = vmatprep.subr.bf16.mxu0 0
  %5535 = vmatpush1.bf16.xpose.msra.mxu0 0
  %5536 = vmatprep.subr.bf16.mxu0 0
  %5537 = vmatpush1.bf16.xpose.msra.mxu0 0
  %5538 = vmatprep.subr.bf16.mxu0 0
  %5539 = vmatpush1.bf16.xpose.msra.mxu0 0
  %5540 = vmatprep.subr.bf16.mxu0 0
  %5541 = vmatpush1.bf16.xpose.msra.mxu0 0
  %5542 = vmatprep.subr.bf16.mxu0 0
  %5543 = vmatpush1.bf16.xpose.msra.mxu0 0
  %5544 = vmatprep.subr.bf16.mxu0 0
  %5545 = vmatpush1.bf16.xpose.msra.mxu0 0
  %5546 = vmatprep.subr.bf16.mxu0 0
  %5547 = vmatpush1.bf16.xpose.msra.mxu0 0
  %5548 = vmatprep.subr.bf16.mxu0 0
  %5549 = vmatpush1.bf16.xpose.msra.mxu0 0
  %5550 = vmatprep.subr.bf16.mxu0 0
  %5551 = vmatpush1.bf16.xpose.msra.mxu0 0
  %5552 = vmatprep.subr.bf16.mxu0 0
  %5553 = vmatpush1.bf16.xpose.msra.mxu0 0
  %5554 = vmatprep.subr.bf16.mxu0 0
  %5555 = vmatpush1.bf16.xpose.msra.mxu0 0
  %5556 = vmatprep.subr.bf16.mxu0 0
  %5557 = vmatpush1.bf16.xpose.msra.mxu0 0
  %5558 = vmatprep.subr.bf16.mxu0 0
  %5559 = vmatpush1.bf16.xpose.msra.mxu0 0
  %5560 = vmatprep.subr.bf16.mxu0 0
  %5561 = vmatpush1.bf16.xpose.msra.mxu0 0
  %5562 = vmatprep.mubr.bf16.mxu0 %v5482
  %5563 = vmatmul.mubr.bf16.gmra.mrb[0].mxu0 %v5468
  %v5564 = vpop.f32.mrb[0].mxu0
  %v5565 = vadd.f32 0.0, %v5564
  %v5566 = vpop.f32.mrb[0].mxu0
  %v5567 = vpop.f32.mrb[0].mxu0
  %v5568 = vpop.f32.mrb[0].mxu0
  %5569 = vdwg.mxu0
  %5570 = vmatprep.subr.bf16.mxu0 %v2176
  %5571 = vmatpush1.bf16.xpose.msra.mxu0 %v2175
  %5572 = vmatprep.subr.bf16.mxu0 0
  %5573 = vmatpush1.bf16.xpose.msra.mxu0 0
  %5574 = vmatprep.subr.bf16.mxu0 0
  %5575 = vmatpush1.bf16.xpose.msra.mxu0 0
  %5576 = vmatprep.subr.bf16.mxu0 0
  %5577 = vmatpush1.bf16.xpose.msra.mxu0 0
  %5578 = vmatprep.subr.bf16.mxu0 0
  %5579 = vmatpush1.bf16.xpose.msra.mxu0 0
  %5580 = vmatprep.subr.bf16.mxu0 0
  %5581 = vmatpush1.bf16.xpose.msra.mxu0 0
  %5582 = vmatprep.subr.bf16.mxu0 0
  %5583 = vmatpush1.bf16.xpose.msra.mxu0 0
  %5584 = vmatprep.subr.bf16.mxu0 0
  %5585 = vmatpush1.bf16.xpose.msra.mxu0 0
  %5586 = vmatprep.subr.bf16.mxu0 0
  %5587 = vmatpush1.bf16.xpose.msra.mxu0 0
  %5588 = vmatprep.subr.bf16.mxu0 0
  %5589 = vmatpush1.bf16.xpose.msra.mxu0 0
  %5590 = vmatprep.subr.bf16.mxu0 0
  %5591 = vmatpush1.bf16.xpose.msra.mxu0 0
  %5592 = vmatprep.subr.bf16.mxu0 0
  %5593 = vmatpush1.bf16.xpose.msra.mxu0 0
  %5594 = vmatprep.subr.bf16.mxu0 0
  %5595 = vmatpush1.bf16.xpose.msra.mxu0 0
  %5596 = vmatprep.subr.bf16.mxu0 0
  %5597 = vmatpush1.bf16.xpose.msra.mxu0 0
  %5598 = vmatprep.subr.bf16.mxu0 0
  %5599 = vmatpush1.bf16.xpose.msra.mxu0 0
  %5600 = vmatprep.subr.bf16.mxu0 0
  %5601 = vmatpush1.bf16.xpose.msra.mxu0 0
  %5602 = vmatprep.mubr.bf16.mxu0 %v5492
  %5603 = vmatmul.mubr.bf16.gmra.mrb[0].mxu0 %v5490
  %v5604 = vpop.f32.mrb[0].mxu0
  %v5605 = vadd.f32 %v5565, %v5604
  %v5606 = vpop.f32.mrb[0].mxu0
  %v5607 = vpop.f32.mrb[0].mxu0
  %v5608 = vpop.f32.mrb[0].mxu0
  %5609 = vdwg.mxu0
  %5610 = vmatprep.subr.bf16.mxu0 %v2178
  %5611 = vmatpush1.bf16.xpose.msra.mxu0 %v2177
  %5612 = vmatprep.subr.bf16.mxu0 0
  %5613 = vmatpush1.bf16.xpose.msra.mxu0 0
  %5614 = vmatprep.subr.bf16.mxu0 0
  %5615 = vmatpush1.bf16.xpose.msra.mxu0 0
  %5616 = vmatprep.subr.bf16.mxu0 0
  %5617 = vmatpush1.bf16.xpose.msra.mxu0 0
  %5618 = vmatprep.subr.bf16.mxu0 0
  %5619 = vmatpush1.bf16.xpose.msra.mxu0 0
  %5620 = vmatprep.subr.bf16.mxu0 0
  %5621 = vmatpush1.bf16.xpose.msra.mxu0 0
  %5622 = vmatprep.subr.bf16.mxu0 0
  %5623 = vmatpush1.bf16.xpose.msra.mxu0 0
  %5624 = vmatprep.subr.bf16.mxu0 0
  %5625 = vmatpush1.bf16.xpose.msra.mxu0 0
  %5626 = vmatprep.subr.bf16.mxu0 0
  %5627 = vmatpush1.bf16.xpose.msra.mxu0 0
  %5628 = vmatprep.subr.bf16.mxu0 0
  %5629 = vmatpush1.bf16.xpose.msra.mxu0 0
  %5630 = vmatprep.subr.bf16.mxu0 0
  %5631 = vmatpush1.bf16.xpose.msra.mxu0 0
  %5632 = vmatprep.subr.bf16.mxu0 0
  %5633 = vmatpush1.bf16.xpose.msra.mxu0 0
  %5634 = vmatprep.subr.bf16.mxu0 0
  %5635 = vmatpush1.bf16.xpose.msra.mxu0 0
  %5636 = vmatprep.subr.bf16.mxu0 0
  %5637 = vmatpush1.bf16.xpose.msra.mxu0 0
  %5638 = vmatprep.subr.bf16.mxu0 0
  %5639 = vmatpush1.bf16.xpose.msra.mxu0 0
  %5640 = vmatprep.subr.bf16.mxu0 0
  %5641 = vmatpush1.bf16.xpose.msra.mxu0 0
  %5642 = vmatprep.mubr.bf16.mxu0 %v5489
  %5643 = vmatmul.mubr.bf16.gmra.mrb[0].mxu0 %v5475
  %v5644 = vpop.f32.mrb[0].mxu0
  %v5645 = vadd.f32 %v5605, %v5644
  %v5646 = vpop.f32.mrb[0].mxu0
  %v5647 = vpop.f32.mrb[0].mxu0
  %v5648 = vpop.f32.mrb[0].mxu0
  %5649 = vdwg.mxu0
  %5650 = vmatprep.subr.bf16.mxu0 %v2180
  %5651 = vmatpush1.bf16.xpose.msra.mxu0 %v2179
  %5652 = vmatprep.subr.bf16.mxu0 0
  %5653 = vmatpush1.bf16.xpose.msra.mxu0 0
  %5654 = vmatprep.subr.bf16.mxu0 0
  %5655 = vmatpush1.bf16.xpose.msra.mxu0 0
  %5656 = vmatprep.subr.bf16.mxu0 0
  %5657 = vmatpush1.bf16.xpose.msra.mxu0 0
  %5658 = vmatprep.subr.bf16.mxu0 0
  %5659 = vmatpush1.bf16.xpose.msra.mxu0 0
  %5660 = vmatprep.subr.bf16.mxu0 0
  %5661 = vmatpush1.bf16.xpose.msra.mxu0 0
  %5662 = vmatprep.subr.bf16.mxu0 0
  %5663 = vmatpush1.bf16.xpose.msra.mxu0 0
  %5664 = vmatprep.subr.bf16.mxu0 0
  %5665 = vmatpush1.bf16.xpose.msra.mxu0 0
  %5666 = vmatprep.subr.bf16.mxu0 0
  %5667 = vmatpush1.bf16.xpose.msra.mxu0 0
  %5668 = vmatprep.subr.bf16.mxu0 0
  %5669 = vmatpush1.bf16.xpose.msra.mxu0 0
  %5670 = vmatprep.subr.bf16.mxu0 0
  %5671 = vmatpush1.bf16.xpose.msra.mxu0 0
  %5672 = vmatprep.subr.bf16.mxu0 0
  %5673 = vmatpush1.bf16.xpose.msra.mxu0 0
  %5674 = vmatprep.subr.bf16.mxu0 0
  %5675 = vmatpush1.bf16.xpose.msra.mxu0 0
  %5676 = vmatprep.subr.bf16.mxu0 0
  %5677 = vmatpush1.bf16.xpose.msra.mxu0 0
  %5678 = vmatprep.subr.bf16.mxu0 0
  %5679 = vmatpush1.bf16.xpose.msra.mxu0 0
  %5680 = vmatprep.subr.bf16.mxu0 0
  %5681 = vmatpush1.bf16.xpose.msra.mxu0 0
  %5682 = vmatprep.mubr.bf16.mxu0 %v5493
  %5683 = vmatmul.mubr.bf16.gmra.mrb[0].mxu0 %v5491
  %v5684 = vpop.f32.mrb[0].mxu0
  %v5685 = vadd.f32 %v5645, %v5684
  %v5686 = vpop.f32.mrb[0].mxu0
  %v5687 = vpop.f32.mrb[0].mxu0
  %v5688 = vpop.f32.mrb[0].mxu0
  %5689 = vdwg.mxu0
  %5690 = vmatprep.subr.bf16.mxu0 %v2182
  %5691 = vmatpush1.bf16.xpose.msra.mxu0 %v2181
  %5692 = vmatprep.subr.bf16.mxu0 0
  %5693 = vmatpush1.bf16.xpose.msra.mxu0 0
  %5694 = vmatprep.subr.bf16.mxu0 0
  %5695 = vmatpush1.bf16.xpose.msra.mxu0 0
  %5696 = vmatprep.subr.bf16.mxu0 0
  %5697 = vmatpush1.bf16.xpose.msra.mxu0 0
  %5698 = vmatprep.subr.bf16.mxu0 0
  %5699 = vmatpush1.bf16.xpose.msra.mxu0 0
  %5700 = vmatprep.subr.bf16.mxu0 0
  %5701 = vmatpush1.bf16.xpose.msra.mxu0 0
  %5702 = vmatprep.subr.bf16.mxu0 0
  %5703 = vmatpush1.bf16.xpose.msra.mxu0 0
  %5704 = vmatprep.subr.bf16.mxu0 0
  %5705 = vmatpush1.bf16.xpose.msra.mxu0 0
  %5706 = vmatprep.subr.bf16.mxu0 0
  %5707 = vmatpush1.bf16.xpose.msra.mxu0 0
  %5708 = vmatprep.subr.bf16.mxu0 0
  %5709 = vmatpush1.bf16.xpose.msra.mxu0 0
  %5710 = vmatprep.subr.bf16.mxu0 0
  %5711 = vmatpush1.bf16.xpose.msra.mxu0 0
  %5712 = vmatprep.subr.bf16.mxu0 0
  %5713 = vmatpush1.bf16.xpose.msra.mxu0 0
  %5714 = vmatprep.subr.bf16.mxu0 0
  %5715 = vmatpush1.bf16.xpose.msra.mxu0 0
  %5716 = vmatprep.subr.bf16.mxu0 0
  %5717 = vmatpush1.bf16.xpose.msra.mxu0 0
  %5718 = vmatprep.subr.bf16.mxu0 0
  %5719 = vmatpush1.bf16.xpose.msra.mxu0 0
  %5720 = vmatprep.subr.bf16.mxu0 0
  %5721 = vmatpush1.bf16.xpose.msra.mxu0 0
  %5722 = vmatprep.mubr.bf16.mxu0 %v5515
  %5723 = vmatmul.mubr.bf16.gmra.mrb[0].mxu0 %v5508
  %v5724 = vpop.f32.mrb[0].mxu0
  %v5725 = vadd.f32 %v5685, %v5724
  %v5726 = vpop.f32.mrb[0].mxu0
  %v5727 = vpop.f32.mrb[0].mxu0
  %v5728 = vpop.f32.mrb[0].mxu0
  %5729 = vdwg.mxu0
  %5730 = vmatprep.subr.bf16.mxu0 %v2184
  %5731 = vmatpush1.bf16.xpose.msra.mxu0 %v2183
  %5732 = vmatprep.subr.bf16.mxu0 0
  %5733 = vmatpush1.bf16.xpose.msra.mxu0 0
  %5734 = vmatprep.subr.bf16.mxu0 0
  %5735 = vmatpush1.bf16.xpose.msra.mxu0 0
  %5736 = vmatprep.subr.bf16.mxu0 0
  %5737 = vmatpush1.bf16.xpose.msra.mxu0 0
  %5738 = vmatprep.subr.bf16.mxu0 0
  %5739 = vmatpush1.bf16.xpose.msra.mxu0 0
  %5740 = vmatprep.subr.bf16.mxu0 0
  %5741 = vmatpush1.bf16.xpose.msra.mxu0 0
  %5742 = vmatprep.subr.bf16.mxu0 0
  %5743 = vmatpush1.bf16.xpose.msra.mxu0 0
  %5744 = vmatprep.subr.bf16.mxu0 0
  %5745 = vmatpush1.bf16.xpose.msra.mxu0 0
  %5746 = vmatprep.subr.bf16.mxu0 0
  %5747 = vmatpush1.bf16.xpose.msra.mxu0 0
  %5748 = vmatprep.subr.bf16.mxu0 0
  %5749 = vmatpush1.bf16.xpose.msra.mxu0 0
  %5750 = vmatprep.subr.bf16.mxu0 0
  %5751 = vmatpush1.bf16.xpose.msra.mxu0 0
  %5752 = vmatprep.subr.bf16.mxu0 0
  %5753 = vmatpush1.bf16.xpose.msra.mxu0 0
  %5754 = vmatprep.subr.bf16.mxu0 0
  %5755 = vmatpush1.bf16.xpose.msra.mxu0 0
  %5756 = vmatprep.subr.bf16.mxu0 0
  %5757 = vmatpush1.bf16.xpose.msra.mxu0 0
  %5758 = vmatprep.subr.bf16.mxu0 0
  %5759 = vmatpush1.bf16.xpose.msra.mxu0 0
  %5760 = vmatprep.subr.bf16.mxu0 0
  %5761 = vmatpush1.bf16.xpose.msra.mxu0 0
  %5762 = vmatprep.mubr.bf16.mxu0 %v5517
  %5763 = vmatmul.mubr.bf16.gmra.mrb[0].mxu0 %v5516
  %v5764 = vpop.f32.mrb[0].mxu0
  %v5765 = vadd.f32 %v5725, %v5764
  %v5766 = vpop.f32.mrb[0].mxu0
  %v5767 = vpop.f32.mrb[0].mxu0
  %v5768 = vpop.f32.mrb[0].mxu0
  %5769 = vdwg.mxu0
  %5771 = vset.pattern.permute.xlu0 0
  %5772 = vperm.xlu0 %5771, %v5437
  %v5773 = vpop.permute.xlu0 %5772
  %5776 = vset.pattern.permute.xlu0 0
  %5777 = vperm.xlu0 %5776, %v5440
  %v5778 = vpop.permute.xlu0 %5777
  %v5780 = vlaneseq
  %v5781 = vshrl.u32 %v5780, 7
  %v5782 = vsub.s32 0, %v5781
  %v5783 = vrot.slane %v5765, %v5782
  %v5784 = vadd.f32 %v5773, %v5783
  %v5785 = vadd.f32 %v5778, %v5783
  %vm5786 = vcmp.gt.f32.partialorder %v5784, 0.0
  %vm5787 = vcmp.gt.f32.partialorder %v5785, 0.0
  %v5788 = vmul.f32 %v5784, 0.2
  %v5789 = vmul.f32 %v5785, 0.2
  %v5790 = vsel %vm5786, %v5784, %v5788
  %v5791 = vsel %vm5787, %v5785, %v5789
  %v5792 = vsel %vm80, %v5790, -1e+30
  %v5793 = vsel %vm81, %v5791, -1e+30
  %v5794 = vsel %vm1091, %v5792, -inf
  %5795 = vmax.xlane.f32.xlu0 %v5794
  %v5796 = vpop.xlane.xlu0 %5795
  %v5797 = vsel %vm1091, %v5793, -inf
  %5798 = vmax.xlane.f32.xlu0 %v5797
  %v5799 = vpop.xlane.xlu0 %5798
  %v5800 = vsub.f32 %v5792, %v5796
  %v5801 = vsub.f32 %v5793, %v5799
  %v5802 = vmul.f32 %v5800, 1.442695
  %v5803 = vpow.pop %v5802
  %v5804 = vmul.f32 %v5801, 1.442695
  %v5805 = vpow.pop %v5804
  %v5806 = vsel %vm1091, %v5803, 0.0
  %5807 = vadd.xlane.f32.xlu0 %v5806
  %v5808 = vpop.xlane.xlu0 %5807
  %v5809 = vsel %vm1091, %v5805, 0.0
  %5810 = vadd.xlane.f32.xlu0 %v5809
  %v5811 = vpop.xlane.xlu0 %5810
  %v5812 = vrcp.pop %v5808
  %v5813 = vrcp.pop %v5811
  %v5814 = vmul.f32 %v5803, %v5812
  %v5815 = vmul.f32 %v5805, %v5813
  %v5816 = vpack.c.bf16 %v5815, %v5814
  %v5817 = vpack.c.bf16 %v4935, %v4931
  %v5818 = vpack.c.bf16 %v4937, %v4933
  %v5819 = vpack.c.bf16 %v5193, %v5189
  %v5820 = vpack.c.bf16 %v5195, %v5191
  %v5822 = vlaneseq
  %v5823 = vshrl.u32 %v5822, 7
  %v5824 = vsub.s32 0, %v5823
  %v5825 = vrot.slane %v2172, %v5824
  %v5826 = vlaneseq
  %v5827 = vshrl.u32 %v5826, 7
  %v5828 = vsub.s32 1, %v5827
  %v5829 = vrot.slane %v2172, %v5828
  %v5830 = vlaneseq
  %v5831 = vshrl.u32 %v5830, 7
  %v5832 = vsub.s32 2, %v5831
  %v5833 = vrot.slane %v2172, %v5832
  %v5834 = vlaneseq
  %v5835 = vshrl.u32 %v5834, 7
  %v5836 = vsub.s32 3, %v5835
  %v5837 = vrot.slane %v2172, %v5836
  %v5843 = vsel %vm1091, %v5816, 0
  %5845 = vmatprep.subr.bf16.mxu0 %v5818
  %5846 = vmatpush1.bf16.msra.mxu0 %v5817
  %5847 = vmatprep.subr.bf16.mxu0 0
  %5848 = vmatpush1.bf16.msra.mxu0 0
  %5849 = vmatprep.subr.bf16.mxu0 0
  %5850 = vmatpush1.bf16.msra.mxu0 0
  %5851 = vmatprep.subr.bf16.mxu0 0
  %5852 = vmatpush1.bf16.msra.mxu0 0
  %5853 = vmatprep.subr.bf16.mxu0 0
  %5854 = vmatpush1.bf16.msra.mxu0 0
  %5855 = vmatprep.subr.bf16.mxu0 0
  %5856 = vmatpush1.bf16.msra.mxu0 0
  %5857 = vmatprep.subr.bf16.mxu0 0
  %5858 = vmatpush1.bf16.msra.mxu0 0
  %5859 = vmatprep.subr.bf16.mxu0 0
  %5860 = vmatpush1.bf16.msra.mxu0 0
  %5861 = vmatprep.subr.bf16.mxu0 0
  %5862 = vmatpush1.bf16.msra.mxu0 0
  %5863 = vmatprep.subr.bf16.mxu0 0
  %5864 = vmatpush1.bf16.msra.mxu0 0
  %5865 = vmatprep.subr.bf16.mxu0 0
  %5866 = vmatpush1.bf16.msra.mxu0 0
  %5867 = vmatprep.subr.bf16.mxu0 0
  %5868 = vmatpush1.bf16.msra.mxu0 0
  %5869 = vmatprep.subr.bf16.mxu0 0
  %5870 = vmatpush1.bf16.msra.mxu0 0
  %5871 = vmatprep.subr.bf16.mxu0 0
  %5872 = vmatpush1.bf16.msra.mxu0 0
  %5873 = vmatprep.subr.bf16.mxu0 0
  %5874 = vmatpush1.bf16.msra.mxu0 0
  %5875 = vmatprep.subr.bf16.mxu0 0
  %5876 = vmatpush1.bf16.msra.mxu0 0
  %5877 = vmatprep.mubr.bf16.mxu0 0
  %5878 = vmatmul.mubr.bf16.gmra.mrb[0].mxu0 %v5843
  %v5879 = vpop.f32.mrb[0].mxu0
  %v5880 = vadd.f32 %v5825, %v5879
  %v5881 = vpop.f32.mrb[0].mxu0
  %v5882 = vadd.f32 %v5829, %v5881
  %v5883 = vpop.f32.mrb[0].mxu0
  %v5884 = vadd.f32 %v5825, %v5883
  %v5885 = vpop.f32.mrb[0].mxu0
  %v5886 = vadd.f32 %v5829, %v5885
  %5887 = vdwg.mxu0
  %5888 = vmatprep.subr.bf16.mxu0 %v5820
  %5889 = vmatpush1.bf16.msra.mxu0 %v5819
  %5890 = vmatprep.subr.bf16.mxu0 0
  %5891 = vmatpush1.bf16.msra.mxu0 0
  %5892 = vmatprep.subr.bf16.mxu0 0
  %5893 = vmatpush1.bf16.msra.mxu0 0
  %5894 = vmatprep.subr.bf16.mxu0 0
  %5895 = vmatpush1.bf16.msra.mxu0 0
  %5896 = vmatprep.subr.bf16.mxu0 0
  %5897 = vmatpush1.bf16.msra.mxu0 0
  %5898 = vmatprep.subr.bf16.mxu0 0
  %5899 = vmatpush1.bf16.msra.mxu0 0
  %5900 = vmatprep.subr.bf16.mxu0 0
  %5901 = vmatpush1.bf16.msra.mxu0 0
  %5902 = vmatprep.subr.bf16.mxu0 0
  %5903 = vmatpush1.bf16.msra.mxu0 0
  %5904 = vmatprep.subr.bf16.mxu0 0
  %5905 = vmatpush1.bf16.msra.mxu0 0
  %5906 = vmatprep.subr.bf16.mxu0 0
  %5907 = vmatpush1.bf16.msra.mxu0 0
  %5908 = vmatprep.subr.bf16.mxu0 0
  %5909 = vmatpush1.bf16.msra.mxu0 0
  %5910 = vmatprep.subr.bf16.mxu0 0
  %5911 = vmatpush1.bf16.msra.mxu0 0
  %5912 = vmatprep.subr.bf16.mxu0 0
  %5913 = vmatpush1.bf16.msra.mxu0 0
  %5914 = vmatprep.subr.bf16.mxu0 0
  %5915 = vmatpush1.bf16.msra.mxu0 0
  %5916 = vmatprep.subr.bf16.mxu0 0
  %5917 = vmatpush1.bf16.msra.mxu0 0
  %5918 = vmatprep.subr.bf16.mxu0 0
  %5919 = vmatpush1.bf16.msra.mxu0 0
  %5920 = vmatprep.mubr.bf16.mxu0 0
  %5921 = vmatmul.mubr.bf16.gmra.mrb[0].mxu0 %v5843
  %v5922 = vpop.f32.mrb[0].mxu0
  %v5923 = vadd.f32 %v5833, %v5922
  %v5924 = vpop.f32.mrb[0].mxu0
  %v5925 = vadd.f32 %v5837, %v5924
  %v5926 = vpop.f32.mrb[0].mxu0
  %v5927 = vadd.f32 %v5833, %v5926
  %v5928 = vpop.f32.mrb[0].mxu0
  %v5929 = vadd.f32 %v5837, %v5928
  %5930 = vdwg.mxu0
  %v5931 = vmax.f32 %v5880, 0.0
  %v5932 = vmax.f32 %v5882, 0.0
  %v5933 = vmax.f32 %v5923, 0.0
  %v5934 = vmax.f32 %v5925, 0.0
  %v5935 = vmax.f32 %v5884, 0.0
  %v5936 = vmax.f32 %v5886, 0.0
  %v5937 = vmax.f32 %v5927, 0.0
  %v5938 = vmax.f32 %v5929, 0.0
  %v5939 = vld [vmem:[%s9] sm:$0xf]
  %v5940 = vld [vmem:[%s9 + $0x4] sm:$0xf]
  %v5941 = vld [vmem:[%s9 + $0x8] sm:$0xf]
  %v5942 = vld [vmem:[%s9 + $0xc] sm:$0xf]
  %v5943 = vld [vmem:[%s9 + $0x10] sm:$0xf]
  %v5944 = vld [vmem:[%s9 + $0x14] sm:$0xf]
  %v5945 = vld [vmem:[%s9 + $0x18] sm:$0xf]
  %v5946 = vld [vmem:[%s9 + $0x1c] sm:$0xf]
  %v5947 = vld [vmem:[%s9 + $0x20] sm:$0xf]
  %v5948 = vld [vmem:[%s9 + $0x24] sm:$0xf]
  %v5949 = vld [vmem:[%s9 + $0x28] sm:$0xf]
  %v5950 = vld [vmem:[%s9 + $0x2c] sm:$0xf]
  %v5951 = vld [vmem:[%s9 + $0x30] sm:$0xf]
  %v5952 = vld [vmem:[%s9 + $0x34] sm:$0xf]
  %v5953 = vld [vmem:[%s9 + $0x38] sm:$0xf]
  %v5954 = vld [vmem:[%s9 + $0x3c] sm:$0xf]
  %v5955 = vld [vmem:[%s9 + $0x40] sm:$0xf]
  %v5956 = vld [vmem:[%s9 + $0x44] sm:$0xf]
  %v5957 = vld [vmem:[%s9 + $0x48] sm:$0xf]
  %v5958 = vld [vmem:[%s9 + $0x4c] sm:$0xf]
  %v5959 = vld [vmem:[%s9 + $0x50] sm:$0xf]
  %v5960 = vld [vmem:[%s9 + $0x54] sm:$0xf]
  %v5961 = vld [vmem:[%s9 + $0x58] sm:$0xf]
  %v5962 = vld [vmem:[%s9 + $0x5c] sm:$0xf]
  %v5963 = vld [vmem:[%s9 + $0x60] sm:$0xf]
  %v5964 = vld [vmem:[%s9 + $0x64] sm:$0xf]
  %v5965 = vld [vmem:[%s9 + $0x68] sm:$0xf]
  %v5966 = vld [vmem:[%s9 + $0x6c] sm:$0xf]
  %v5967 = vld [vmem:[%s9 + $0x70] sm:$0xf]
  %v5968 = vld [vmem:[%s9 + $0x74] sm:$0xf]
  %v5969 = vld [vmem:[%s9 + $0x78] sm:$0xf]
  %v5970 = vld [vmem:[%s9 + $0x7c] sm:$0xf]
  %v5971 = vld [vmem:[%s9 + $0x80] sm:$0xf]
  %v5972 = vld [vmem:[%s9 + $0x84] sm:$0xf]
  %v5973 = vld [vmem:[%s9 + $0x88] sm:$0xf]
  %v5974 = vld [vmem:[%s9 + $0x8c] sm:$0xf]
  %v5975 = vld [vmem:[%s9 + $0x90] sm:$0xf]
  %v5976 = vld [vmem:[%s9 + $0x94] sm:$0xf]
  %v5977 = vld [vmem:[%s9 + $0x98] sm:$0xf]
  %v5978 = vld [vmem:[%s9 + $0x9c] sm:$0xf]
  %v5979 = vld [vmem:[%s9 + $0xa0] sm:$0xf]
  %v5980 = vld [vmem:[%s9 + $0xa4] sm:$0xf]
  %v5981 = vld [vmem:[%s9 + $0xa8] sm:$0xf]
  %v5982 = vld [vmem:[%s9 + $0xac] sm:$0xf]
  %v5983 = vld [vmem:[%s9 + $0xb0] sm:$0xf]
  %v5984 = vld [vmem:[%s9 + $0xb4] sm:$0xf]
  %v5985 = vld [vmem:[%s9 + $0xb8] sm:$0xf]
  %v5986 = vld [vmem:[%s9 + $0xbc] sm:$0xf]
  %v5987 = vld [vmem:[%s9 + $0xc0] sm:$0xf]
  %v5988 = vld [vmem:[%s9 + $0xc4] sm:$0xf]
  %v5989 = vld [vmem:[%s9 + $0xc8] sm:$0xf]
  %v5990 = vld [vmem:[%s9 + $0xcc] sm:$0xf]
  %v5991 = vld [vmem:[%s9 + $0xd0] sm:$0xf]
  %v5992 = vld [vmem:[%s9 + $0xd4] sm:$0xf]
  %v5993 = vld [vmem:[%s9 + $0xd8] sm:$0xf]
  %v5994 = vld [vmem:[%s9 + $0xdc] sm:$0xf]
  %v5995 = vld [vmem:[%s9 + $0xe0] sm:$0xf]
  %v5996 = vld [vmem:[%s9 + $0xe4] sm:$0xf]
  %v5997 = vld [vmem:[%s9 + $0xe8] sm:$0xf]
  %v5998 = vld [vmem:[%s9 + $0xec] sm:$0xf]
  %v5999 = vld [vmem:[%s9 + $0xf0] sm:$0xf]
  %v6000 = vld [vmem:[%s9 + $0xf4] sm:$0xf]
  %v6001 = vld [vmem:[%s9 + $0xf8] sm:$0xf]
  %v6002 = vld [vmem:[%s9 + $0xfc] sm:$0xf]
  %v6003 = vld [vmem:[%s10] sm:$0xf]
  %v6004 = vld [vmem:[%s11] sm:$0x1]
  %v6005 = vpack.c.bf16 %v5935, %v5931
  %v6006 = vpack.c.bf16 %v5936, %v5932
  %v6007 = vpack.c.bf16 %v5937, %v5933
  %v6008 = vpack.c.bf16 %v5938, %v5934
  %v6073 = vunpack.c.l.b16 %v5939
  %v6074 = vunpack.c.l.b16 %v5940
  %v6075 = vunpack.c.l.b16 %v5941
  %v6076 = vunpack.c.l.b16 %v5942
  %v6077 = vunpack.c.l.b16 %v5943
  %v6078 = vunpack.c.l.b16 %v5944
  %v6079 = vunpack.c.l.b16 %v5945
  %v6080 = vunpack.c.l.b16 %v5946
  %v6081 = vunpack.c.l.b16 %v5947
  %v6082 = vunpack.c.l.b16 %v5948
  %v6083 = vunpack.c.l.b16 %v5949
  %v6084 = vunpack.c.l.b16 %v5950
  %v6085 = vunpack.c.l.b16 %v5951
  %v6086 = vunpack.c.l.b16 %v5952
  %v6087 = vunpack.c.l.b16 %v5953
  %v6088 = vunpack.c.l.b16 %v5954
  %v6089 = vunpack.c.l.b16 %v5955
  %v6090 = vunpack.c.l.b16 %v5956
  %v6091 = vunpack.c.l.b16 %v5957
  %v6092 = vunpack.c.l.b16 %v5958
  %v6093 = vunpack.c.l.b16 %v5959
  %v6094 = vunpack.c.l.b16 %v5960
  %v6095 = vunpack.c.l.b16 %v5961
  %v6096 = vunpack.c.l.b16 %v5962
  %v6097 = vunpack.c.l.b16 %v5963
  %v6098 = vunpack.c.l.b16 %v5964
  %v6099 = vunpack.c.l.b16 %v5965
  %v6100 = vunpack.c.l.b16 %v5966
  %v6101 = vunpack.c.l.b16 %v5967
  %v6102 = vunpack.c.l.b16 %v5968
  %v6103 = vunpack.c.l.b16 %v5969
  %v6104 = vunpack.c.l.b16 %v5970
  %v6105 = vunpack.c.l.b16 %v5971
  %v6106 = vunpack.c.l.b16 %v5972
  %v6107 = vunpack.c.l.b16 %v5973
  %v6108 = vunpack.c.l.b16 %v5974
  %v6109 = vunpack.c.l.b16 %v5975
  %v6110 = vunpack.c.l.b16 %v5976
  %v6111 = vunpack.c.l.b16 %v5977
  %v6112 = vunpack.c.l.b16 %v5978
  %v6113 = vunpack.c.l.b16 %v5979
  %v6114 = vunpack.c.l.b16 %v5980
  %v6115 = vunpack.c.l.b16 %v5981
  %v6116 = vunpack.c.l.b16 %v5982
  %v6117 = vunpack.c.l.b16 %v5983
  %v6118 = vunpack.c.l.b16 %v5984
  %v6119 = vunpack.c.l.b16 %v5985
  %v6120 = vunpack.c.l.b16 %v5986
  %v6121 = vunpack.c.l.b16 %v5987
  %v6122 = vunpack.c.l.b16 %v5988
  %v6123 = vunpack.c.l.b16 %v5989
  %v6124 = vunpack.c.l.b16 %v5990
  %v6125 = vunpack.c.l.b16 %v5991
  %v6126 = vunpack.c.l.b16 %v5992
  %v6127 = vunpack.c.l.b16 %v5993
  %v6128 = vunpack.c.l.b16 %v5994
  %v6129 = vunpack.c.l.b16 %v5995
  %v6130 = vunpack.c.l.b16 %v5996
  %v6131 = vunpack.c.l.b16 %v5997
  %v6132 = vunpack.c.l.b16 %v5998
  %v6133 = vunpack.c.l.b16 %v5999
  %v6134 = vunpack.c.l.b16 %v6000
  %v6135 = vunpack.c.l.b16 %v6001
  %v6136 = vunpack.c.l.b16 %v6002
  %v6137 = vpack.c.b16 %v6074, %v6073
  %v6138 = vpack.c.b16 %v6076, %v6075
  %v6139 = vpack.c.b16 %v6078, %v6077
  %v6140 = vpack.c.b16 %v6080, %v6079
  %v6141 = vpack.c.b16 %v6082, %v6081
  %v6142 = vpack.c.b16 %v6084, %v6083
  %v6143 = vpack.c.b16 %v6086, %v6085
  %v6144 = vpack.c.b16 %v6088, %v6087
  %v6145 = vpack.c.b16 %v6090, %v6089
  %v6146 = vpack.c.b16 %v6092, %v6091
  %v6147 = vpack.c.b16 %v6094, %v6093
  %v6148 = vpack.c.b16 %v6096, %v6095
  %v6149 = vpack.c.b16 %v6098, %v6097
  %v6150 = vpack.c.b16 %v6100, %v6099
  %v6151 = vpack.c.b16 %v6102, %v6101
  %v6152 = vpack.c.b16 %v6104, %v6103
  %v6153 = vpack.c.b16 %v6106, %v6105
  %v6154 = vpack.c.b16 %v6108, %v6107
  %v6155 = vpack.c.b16 %v6110, %v6109
  %v6156 = vpack.c.b16 %v6112, %v6111
  %v6157 = vpack.c.b16 %v6114, %v6113
  %v6158 = vpack.c.b16 %v6116, %v6115
  %v6159 = vpack.c.b16 %v6118, %v6117
  %v6160 = vpack.c.b16 %v6120, %v6119
  %v6161 = vpack.c.b16 %v6122, %v6121
  %v6162 = vpack.c.b16 %v6124, %v6123
  %v6163 = vpack.c.b16 %v6126, %v6125
  %v6164 = vpack.c.b16 %v6128, %v6127
  %v6165 = vpack.c.b16 %v6130, %v6129
  %v6166 = vpack.c.b16 %v6132, %v6131
  %v6167 = vpack.c.b16 %v6134, %v6133
  %v6168 = vpack.c.b16 %v6136, %v6135
  %6201 = vmatprep.subr.bf16.mxu0 0
  %6202 = vmatpush1.bf16.msra.mxu0 %v6137
  %6203 = vmatprep.subr.bf16.mxu0 0
  %6204 = vmatpush1.bf16.msra.mxu0 %v6138
  %6205 = vmatprep.subr.bf16.mxu0 0
  %6206 = vmatpush1.bf16.msra.mxu0 %v6139
  %6207 = vmatprep.subr.bf16.mxu0 0
  %6208 = vmatpush1.bf16.msra.mxu0 %v6140
  %6209 = vmatprep.subr.bf16.mxu0 0
  %6210 = vmatpush1.bf16.msra.mxu0 %v6141
  %6211 = vmatprep.subr.bf16.mxu0 0
  %6212 = vmatpush1.bf16.msra.mxu0 %v6142
  %6213 = vmatprep.subr.bf16.mxu0 0
  %6214 = vmatpush1.bf16.msra.mxu0 %v6143
  %6215 = vmatprep.subr.bf16.mxu0 0
  %6216 = vmatpush1.bf16.msra.mxu0 %v6144
  %6217 = vmatprep.subr.bf16.mxu0 0
  %6218 = vmatpush1.bf16.msra.mxu0 %v6145
  %6219 = vmatprep.subr.bf16.mxu0 0
  %6220 = vmatpush1.bf16.msra.mxu0 %v6146
  %6221 = vmatprep.subr.bf16.mxu0 0
  %6222 = vmatpush1.bf16.msra.mxu0 %v6147
  %6223 = vmatprep.subr.bf16.mxu0 0
  %6224 = vmatpush1.bf16.msra.mxu0 %v6148
  %6225 = vmatprep.subr.bf16.mxu0 0
  %6226 = vmatpush1.bf16.msra.mxu0 %v6149
  %6227 = vmatprep.subr.bf16.mxu0 0
  %6228 = vmatpush1.bf16.msra.mxu0 %v6150
  %6229 = vmatprep.subr.bf16.mxu0 0
  %6230 = vmatpush1.bf16.msra.mxu0 %v6151
  %6231 = vmatprep.subr.bf16.mxu0 0
  %6232 = vmatpush1.bf16.msra.mxu0 %v6152
  %6233 = vmatprep.mubr.bf16.mxu0 %v6006
  %6234 = vmatmul.mubr.bf16.gmra.mrb[0].mxu0 %v6005
  %v6235 = vpop.f32.mrb[0].mxu0
  %v6236 = vadd.f32 0.0, %v6235
  %v6237 = vpop.f32.mrb[0].mxu0
  %v6238 = vpop.f32.mrb[0].mxu0
  %v6239 = vadd.f32 0.0, %v6238
  %v6240 = vpop.f32.mrb[0].mxu0
  %6241 = vdwg.mxu0
  %6242 = vmatprep.subr.bf16.mxu0 0
  %6243 = vmatpush1.bf16.msra.mxu0 %v6153
  %6244 = vmatprep.subr.bf16.mxu0 0
  %6245 = vmatpush1.bf16.msra.mxu0 %v6154
  %6246 = vmatprep.subr.bf16.mxu0 0
  %6247 = vmatpush1.bf16.msra.mxu0 %v6155
  %6248 = vmatprep.subr.bf16.mxu0 0
  %6249 = vmatpush1.bf16.msra.mxu0 %v6156
  %6250 = vmatprep.subr.bf16.mxu0 0
  %6251 = vmatpush1.bf16.msra.mxu0 %v6157
  %6252 = vmatprep.subr.bf16.mxu0 0
  %6253 = vmatpush1.bf16.msra.mxu0 %v6158
  %6254 = vmatprep.subr.bf16.mxu0 0
  %6255 = vmatpush1.bf16.msra.mxu0 %v6159
  %6256 = vmatprep.subr.bf16.mxu0 0
  %6257 = vmatpush1.bf16.msra.mxu0 %v6160
  %6258 = vmatprep.subr.bf16.mxu0 0
  %6259 = vmatpush1.bf16.msra.mxu0 %v6161
  %6260 = vmatprep.subr.bf16.mxu0 0
  %6261 = vmatpush1.bf16.msra.mxu0 %v6162
  %6262 = vmatprep.subr.bf16.mxu0 0
  %6263 = vmatpush1.bf16.msra.mxu0 %v6163
  %6264 = vmatprep.subr.bf16.mxu0 0
  %6265 = vmatpush1.bf16.msra.mxu0 %v6164
  %6266 = vmatprep.subr.bf16.mxu0 0
  %6267 = vmatpush1.bf16.msra.mxu0 %v6165
  %6268 = vmatprep.subr.bf16.mxu0 0
  %6269 = vmatpush1.bf16.msra.mxu0 %v6166
  %6270 = vmatprep.subr.bf16.mxu0 0
  %6271 = vmatpush1.bf16.msra.mxu0 %v6167
  %6272 = vmatprep.subr.bf16.mxu0 0
  %6273 = vmatpush1.bf16.msra.mxu0 %v6168
  %6274 = vmatprep.mubr.bf16.mxu0 %v6008
  %6275 = vmatmul.mubr.bf16.gmra.mrb[0].mxu0 %v6007
  %v6276 = vpop.f32.mrb[0].mxu0
  %v6277 = vadd.f32 %v6236, %v6276
  %v6278 = vpop.f32.mrb[0].mxu0
  %v6279 = vpop.f32.mrb[0].mxu0
  %v6280 = vadd.f32 %v6239, %v6279
  %v6281 = vpop.f32.mrb[0].mxu0
  %6282 = vdwg.mxu0
  %v6285 = vunpack.c.l.s4 1966171168
  %v6286 = vunpack.c.0.s8 %v6285
  %v6287 = vlaneseq
  %v6288 = vshrl.u32 %v6287, 7
  %v6289 = vsub.s32 %v6286, %v6288
  %v6290 = vrot.slane %v6003, %v6289
  %v6291 = vcombine.high %v6290, %v6290
  %v6293 = vunpack.c.l.s4 1966171168
  %v6294 = vunpack.c.0.s8 %v6293
  %v6295 = vlaneseq
  %v6296 = vshrl.u32 %v6295, 7
  %v6297 = vsub.s32 %v6294, %v6296
  %v6298 = vrot.slane %v6290, %v6297
  %v6300 = vunpack.c.l.s4 1966171168
  %v6301 = vunpack.c.0.s8 %v6300
  %v6302 = vlaneseq
  %v6303 = vshrl.u32 %v6302, 7
  %v6304 = vsub.s32 %v6301, %v6303
  %v6305 = vrot.slane %v6291, %v6304
  %v6306 = vcombine.high %v6298, %v6298
  %v6307 = vcombine.high %v6305, %v6305
  %6312 = vmatprep.subr.bf16.mxu0 %v6006
  %6313 = vmatpush1.bf16.xpose.msra.mxu0 %v6005
  %6314 = vmatprep.subr.bf16.mxu0 0
  %6315 = vmatpush1.bf16.xpose.msra.mxu0 0
  %6316 = vmatprep.subr.bf16.mxu0 0
  %6317 = vmatpush1.bf16.xpose.msra.mxu0 0
  %6318 = vmatprep.subr.bf16.mxu0 0
  %6319 = vmatpush1.bf16.xpose.msra.mxu0 0
  %6320 = vmatprep.subr.bf16.mxu0 0
  %6321 = vmatpush1.bf16.xpose.msra.mxu0 0
  %6322 = vmatprep.subr.bf16.mxu0 0
  %6323 = vmatpush1.bf16.xpose.msra.mxu0 0
  %6324 = vmatprep.subr.bf16.mxu0 0
  %6325 = vmatpush1.bf16.xpose.msra.mxu0 0
  %6326 = vmatprep.subr.bf16.mxu0 0
  %6327 = vmatpush1.bf16.xpose.msra.mxu0 0
  %6328 = vmatprep.subr.bf16.mxu0 0
  %6329 = vmatpush1.bf16.xpose.msra.mxu0 0
  %6330 = vmatprep.subr.bf16.mxu0 0
  %6331 = vmatpush1.bf16.xpose.msra.mxu0 0
  %6332 = vmatprep.subr.bf16.mxu0 0
  %6333 = vmatpush1.bf16.xpose.msra.mxu0 0
  %6334 = vmatprep.subr.bf16.mxu0 0
  %6335 = vmatpush1.bf16.xpose.msra.mxu0 0
  %6336 = vmatprep.subr.bf16.mxu0 0
  %6337 = vmatpush1.bf16.xpose.msra.mxu0 0
  %6338 = vmatprep.subr.bf16.mxu0 0
  %6339 = vmatpush1.bf16.xpose.msra.mxu0 0
  %6340 = vmatprep.subr.bf16.mxu0 0
  %6341 = vmatpush1.bf16.xpose.msra.mxu0 0
  %6342 = vmatprep.subr.bf16.mxu0 0
  %6343 = vmatpush1.bf16.xpose.msra.mxu0 0
  %6344 = vmatprep.mubr.bf16.mxu0 %v6305
  %6345 = vmatmul.mubr.bf16.gmra.mrb[0].mxu0 %v6298
  %v6346 = vpop.f32.mrb[0].mxu0
  %v6347 = vadd.f32 0.0, %v6346
  %v6348 = vpop.f32.mrb[0].mxu0
  %v6349 = vpop.f32.mrb[0].mxu0
  %v6350 = vpop.f32.mrb[0].mxu0
  %6351 = vdwg.mxu0
  %6352 = vmatprep.subr.bf16.mxu0 %v6008
  %6353 = vmatpush1.bf16.xpose.msra.mxu0 %v6007
  %6354 = vmatprep.subr.bf16.mxu0 0
  %6355 = vmatpush1.bf16.xpose.msra.mxu0 0
  %6356 = vmatprep.subr.bf16.mxu0 0
  %6357 = vmatpush1.bf16.xpose.msra.mxu0 0
  %6358 = vmatprep.subr.bf16.mxu0 0
  %6359 = vmatpush1.bf16.xpose.msra.mxu0 0
  %6360 = vmatprep.subr.bf16.mxu0 0
  %6361 = vmatpush1.bf16.xpose.msra.mxu0 0
  %6362 = vmatprep.subr.bf16.mxu0 0
  %6363 = vmatpush1.bf16.xpose.msra.mxu0 0
  %6364 = vmatprep.subr.bf16.mxu0 0
  %6365 = vmatpush1.bf16.xpose.msra.mxu0 0
  %6366 = vmatprep.subr.bf16.mxu0 0
  %6367 = vmatpush1.bf16.xpose.msra.mxu0 0
  %6368 = vmatprep.subr.bf16.mxu0 0
  %6369 = vmatpush1.bf16.xpose.msra.mxu0 0
  %6370 = vmatprep.subr.bf16.mxu0 0
  %6371 = vmatpush1.bf16.xpose.msra.mxu0 0
  %6372 = vmatprep.subr.bf16.mxu0 0
  %6373 = vmatpush1.bf16.xpose.msra.mxu0 0
  %6374 = vmatprep.subr.bf16.mxu0 0
  %6375 = vmatpush1.bf16.xpose.msra.mxu0 0
  %6376 = vmatprep.subr.bf16.mxu0 0
  %6377 = vmatpush1.bf16.xpose.msra.mxu0 0
  %6378 = vmatprep.subr.bf16.mxu0 0
  %6379 = vmatpush1.bf16.xpose.msra.mxu0 0
  %6380 = vmatprep.subr.bf16.mxu0 0
  %6381 = vmatpush1.bf16.xpose.msra.mxu0 0
  %6382 = vmatprep.subr.bf16.mxu0 0
  %6383 = vmatpush1.bf16.xpose.msra.mxu0 0
  %6384 = vmatprep.mubr.bf16.mxu0 %v6307
  %6385 = vmatmul.mubr.bf16.gmra.mrb[0].mxu0 %v6306
  %v6386 = vpop.f32.mrb[0].mxu0
  %v6387 = vadd.f32 %v6347, %v6386
  %v6388 = vpop.f32.mrb[0].mxu0
  %v6389 = vpop.f32.mrb[0].mxu0
  %v6390 = vpop.f32.mrb[0].mxu0
  %6391 = vdwg.mxu0
  %6393 = vset.pattern.permute.xlu0 20
  %6394 = vperm.xlu0 %6393, %v6277
  %v6395 = vpop.permute.xlu0 %6394
  %6398 = vset.pattern.permute.xlu0 20
  %6399 = vperm.xlu0 %6398, %v6280
  %v6400 = vpop.permute.xlu0 %6399
  %v6402 = vlaneseq
  %v6403 = vshrl.u32 %v6402, 7
  %v6404 = vsub.s32 0, %v6403
  %v6405 = vrot.slane %v6387, %v6404
  %v6406 = vadd.f32 %v6395, %v6405
  %v6407 = vadd.f32 %v6400, %v6405
  %vm6408 = vcmp.gt.f32.partialorder %v6406, 0.0
  %vm6409 = vcmp.gt.f32.partialorder %v6407, 0.0
  %v6410 = vmul.f32 %v6406, 0.2
  %v6411 = vmul.f32 %v6407, 0.2
  %v6412 = vsel %vm6408, %v6406, %v6410
  %v6413 = vsel %vm6409, %v6407, %v6411
  %v6414 = vsel %vm80, %v6412, -1e+30
  %v6415 = vsel %vm81, %v6413, -1e+30
  %v6416 = vsel %vm1091, %v6414, -inf
  %6417 = vmax.xlane.f32.xlu0 %v6416
  %v6418 = vpop.xlane.xlu0 %6417
  %v6419 = vsel %vm1091, %v6415, -inf
  %6420 = vmax.xlane.f32.xlu0 %v6419
  %v6421 = vpop.xlane.xlu0 %6420
  %v6422 = vsub.f32 %v6414, %v6418
  %v6423 = vsub.f32 %v6415, %v6421
  %v6424 = vmul.f32 %v6422, 1.442695
  %v6425 = vpow.pop %v6424
  %v6426 = vmul.f32 %v6423, 1.442695
  %v6427 = vpow.pop %v6426
  %v6428 = vsel %vm1091, %v6425, 0.0
  %6429 = vadd.xlane.f32.xlu0 %v6428
  %v6430 = vpop.xlane.xlu0 %6429
  %v6431 = vsel %vm1091, %v6427, 0.0
  %6432 = vadd.xlane.f32.xlu0 %v6431
  %v6433 = vpop.xlane.xlu0 %6432
  %v6434 = vrcp.pop %v6430
  %v6435 = vrcp.pop %v6433
  %v6436 = vmul.f32 %v6425, %v6434
  %v6437 = vmul.f32 %v6427, %v6435
  %v6438 = vpack.c.bf16 %v6437, %v6436
  %v6439 = vpack.c.bf16 %v6280, %v6277
  %v6441 = vlaneseq
  %v6442 = vshrl.u32 %v6441, 7
  %v6443 = vsub.s32 0, %v6442
  %v6444 = vrot.slane %v6004, %v6443
  %v6447 = vsel %vm1091, %v6438, 0
  %6449 = vmatprep.subr.bf16.mxu0 0
  %6450 = vmatpush1.bf16.msra.mxu0 %v6439
  %6451 = vmatprep.subr.bf16.mxu0 0
  %6452 = vmatpush1.bf16.msra.mxu0 0
  %6453 = vmatprep.subr.bf16.mxu0 0
  %6454 = vmatpush1.bf16.msra.mxu0 0
  %6455 = vmatprep.subr.bf16.mxu0 0
  %6456 = vmatpush1.bf16.msra.mxu0 0
  %6457 = vmatprep.subr.bf16.mxu0 0
  %6458 = vmatpush1.bf16.msra.mxu0 0
  %6459 = vmatprep.subr.bf16.mxu0 0
  %6460 = vmatpush1.bf16.msra.mxu0 0
  %6461 = vmatprep.subr.bf16.mxu0 0
  %6462 = vmatpush1.bf16.msra.mxu0 0
  %6463 = vmatprep.subr.bf16.mxu0 0
  %6464 = vmatpush1.bf16.msra.mxu0 0
  %6465 = vmatprep.subr.bf16.mxu0 0
  %6466 = vmatpush1.bf16.msra.mxu0 0
  %6467 = vmatprep.subr.bf16.mxu0 0
  %6468 = vmatpush1.bf16.msra.mxu0 0
  %6469 = vmatprep.subr.bf16.mxu0 0
  %6470 = vmatpush1.bf16.msra.mxu0 0
  %6471 = vmatprep.subr.bf16.mxu0 0
  %6472 = vmatpush1.bf16.msra.mxu0 0
  %6473 = vmatprep.subr.bf16.mxu0 0
  %6474 = vmatpush1.bf16.msra.mxu0 0
  %6475 = vmatprep.subr.bf16.mxu0 0
  %6476 = vmatpush1.bf16.msra.mxu0 0
  %6477 = vmatprep.subr.bf16.mxu0 0
  %6478 = vmatpush1.bf16.msra.mxu0 0
  %6479 = vmatprep.subr.bf16.mxu0 0
  %6480 = vmatpush1.bf16.msra.mxu0 0
  %6481 = vmatprep.mubr.bf16.mxu0 0
  %6482 = vmatmul.mubr.bf16.gmra.mrb[0].mxu0 %v6447
  %v6483 = vpop.f32.mrb[0].mxu0
  %v6484 = vadd.f32 %v6444, %v6483
  %v6485 = vpop.f32.mrb[0].mxu0
  %v6486 = vpop.f32.mrb[0].mxu0
  %v6487 = vadd.f32 %v6444, %v6486
  %v6488 = vpop.f32.mrb[0].mxu0
  %6489 = vdwg.mxu0
  %v6490 = vmax.f32 %v6484, 0.0
  %v6491 = vmax.f32 %v6487, 0.0
  %v6492 = vld [vmem:[%s1] sm:$0xff]
  %v6493 = vld [vmem:[%s1 + $0x8] sm:$0xff]
  %v6494 = vld [vmem:[%s1 + $0x10] sm:$0xff]
  %v6495 = vld [vmem:[%s1 + $0x18] sm:$0xff]
  %v6496 = vld [vmem:[%s12] sm:$0xff]
  %v6497 = vld [vmem:[%s12 + $0x8] sm:$0xf]
  %v6498 = vld [vmem:[%s12 + $0xc] sm:$0xff]
  %v6499 = vld [vmem:[%s12 + $0x14] sm:$0xf]
  %v6500 = vld [vmem:[%s12 + $0x18] sm:$0xff]
  %v6501 = vld [vmem:[%s12 + $0x20] sm:$0xf]
  %v6502 = vld [vmem:[%s12 + $0x24] sm:$0xff]
  %v6503 = vld [vmem:[%s12 + $0x2c] sm:$0xf]
  %v6504 = vld [vmem:[%s12 + $0x30] sm:$0xff]
  %v6505 = vld [vmem:[%s12 + $0x38] sm:$0xf]
  %v6506 = vld [vmem:[%s12 + $0x3c] sm:$0xff]
  %v6507 = vld [vmem:[%s12 + $0x44] sm:$0xf]
  %v6508 = vld [vmem:[%s12 + $0x48] sm:$0xff]
  %v6509 = vld [vmem:[%s12 + $0x50] sm:$0xf]
  %v6510 = vld [vmem:[%s12 + $0x54] sm:$0xff]
  %v6511 = vld [vmem:[%s12 + $0x5c] sm:$0xf]
  %v6512 = vld [vmem:[%s12 + $0x60] sm:$0xff]
  %v6513 = vld [vmem:[%s12 + $0x68] sm:$0xf]
  %v6514 = vld [vmem:[%s12 + $0x6c] sm:$0xff]
  %v6515 = vld [vmem:[%s12 + $0x74] sm:$0xf]
  %v6516 = vld [vmem:[%s12 + $0x78] sm:$0xff]
  %v6517 = vld [vmem:[%s12 + $0x80] sm:$0xf]
  %v6518 = vld [vmem:[%s12 + $0x84] sm:$0xff]
  %v6519 = vld [vmem:[%s12 + $0x8c] sm:$0xf]
  %v6520 = vld [vmem:[%s12 + $0x90] sm:$0xff]
  %v6521 = vld [vmem:[%s12 + $0x98] sm:$0xf]
  %v6522 = vld [vmem:[%s12 + $0x9c] sm:$0xff]
  %v6523 = vld [vmem:[%s12 + $0xa4] sm:$0xf]
  %v6524 = vld [vmem:[%s12 + $0xa8] sm:$0xff]
  %v6525 = vld [vmem:[%s12 + $0xb0] sm:$0xf]
  %v6526 = vld [vmem:[%s12 + $0xb4] sm:$0xff]
  %v6527 = vld [vmem:[%s12 + $0xbc] sm:$0xf]
  %v6528 = vld [vmem:[%s12 + $0xc0] sm:$0xff]
  %v6529 = vld [vmem:[%s12 + $0xc8] sm:$0xf]
  %v6530 = vld [vmem:[%s12 + $0xcc] sm:$0xff]
  %v6531 = vld [vmem:[%s12 + $0xd4] sm:$0xf]
  %v6532 = vld [vmem:[%s12 + $0xd8] sm:$0xff]
  %v6533 = vld [vmem:[%s12 + $0xe0] sm:$0xf]
  %v6534 = vld [vmem:[%s12 + $0xe4] sm:$0xff]
  %v6535 = vld [vmem:[%s12 + $0xec] sm:$0xf]
  %v6536 = vld [vmem:[%s12 + $0xf0] sm:$0xff]
  %v6537 = vld [vmem:[%s12 + $0xf8] sm:$0xf]
  %v6538 = vld [vmem:[%s12 + $0xfc] sm:$0xff]
  %v6539 = vld [vmem:[%s12 + $0x104] sm:$0xf]
  %v6540 = vld [vmem:[%s12 + $0x108] sm:$0xff]
  %v6541 = vld [vmem:[%s12 + $0x110] sm:$0xf]
  %v6542 = vld [vmem:[%s12 + $0x114] sm:$0xff]
  %v6543 = vld [vmem:[%s12 + $0x11c] sm:$0xf]
  %v6544 = vld [vmem:[%s12 + $0x120] sm:$0xff]
  %v6545 = vld [vmem:[%s12 + $0x128] sm:$0xf]
  %v6546 = vld [vmem:[%s12 + $0x12c] sm:$0xff]
  %v6547 = vld [vmem:[%s12 + $0x134] sm:$0xf]
  %v6548 = vld [vmem:[%s12 + $0x138] sm:$0xff]
  %v6549 = vld [vmem:[%s12 + $0x140] sm:$0xf]
  %v6550 = vld [vmem:[%s12 + $0x144] sm:$0x33]
  %v6551 = vld [vmem:[%s12 + $0x14c] sm:$0x3]
  %v6552 = vld [vmem:[%s13] sm:$0xf]
  %v6553 = vld [vmem:[%s14] sm:$0x7]
  %v6554 = vpack.c.bf16 %v6494, %v6492
  %v6555 = vpack.c.bf16 %v6495, %v6493
  %v6612 = vunpack.c.l.b16 %v6496
  %v6613 = vunpack.c.h.b16 %v6496
  %v6614 = vunpack.c.l.b16 %v6497
  %v6615 = vunpack.c.l.b16 %v6498
  %v6616 = vunpack.c.h.b16 %v6498
  %v6617 = vunpack.c.l.b16 %v6499
  %v6618 = vunpack.c.l.b16 %v6500
  %v6619 = vunpack.c.h.b16 %v6500
  %v6620 = vunpack.c.l.b16 %v6501
  %v6621 = vunpack.c.l.b16 %v6502
  %v6622 = vunpack.c.h.b16 %v6502
  %v6623 = vunpack.c.l.b16 %v6503
  %v6624 = vunpack.c.l.b16 %v6504
  %v6625 = vunpack.c.h.b16 %v6504
  %v6626 = vunpack.c.l.b16 %v6505
  %v6627 = vunpack.c.l.b16 %v6506
  %v6628 = vunpack.c.h.b16 %v6506
  %v6629 = vunpack.c.l.b16 %v6507
  %v6630 = vunpack.c.l.b16 %v6508
  %v6631 = vunpack.c.h.b16 %v6508
  %v6632 = vunpack.c.l.b16 %v6509
  %v6633 = vunpack.c.l.b16 %v6510
  %v6634 = vunpack.c.h.b16 %v6510
  %v6635 = vunpack.c.l.b16 %v6511
  %v6636 = vunpack.c.l.b16 %v6512
  %v6637 = vunpack.c.h.b16 %v6512
  %v6638 = vunpack.c.l.b16 %v6513
  %v6639 = vunpack.c.l.b16 %v6514
  %v6640 = vunpack.c.h.b16 %v6514
  %v6641 = vunpack.c.l.b16 %v6515
  %v6642 = vunpack.c.l.b16 %v6516
  %v6643 = vunpack.c.h.b16 %v6516
  %v6644 = vunpack.c.l.b16 %v6517
  %v6645 = vunpack.c.l.b16 %v6518
  %v6646 = vunpack.c.h.b16 %v6518
  %v6647 = vunpack.c.l.b16 %v6519
  %v6648 = vunpack.c.l.b16 %v6520
  %v6649 = vunpack.c.h.b16 %v6520
  %v6650 = vunpack.c.l.b16 %v6521
  %v6651 = vunpack.c.l.b16 %v6522
  %v6652 = vunpack.c.h.b16 %v6522
  %v6653 = vunpack.c.l.b16 %v6523
  %v6654 = vunpack.c.l.b16 %v6524
  %v6655 = vunpack.c.h.b16 %v6524
  %v6656 = vunpack.c.l.b16 %v6525
  %v6657 = vunpack.c.l.b16 %v6526
  %v6658 = vunpack.c.h.b16 %v6526
  %v6659 = vunpack.c.l.b16 %v6527
  %v6660 = vunpack.c.l.b16 %v6528
  %v6661 = vunpack.c.h.b16 %v6528
  %v6662 = vunpack.c.l.b16 %v6529
  %v6663 = vunpack.c.l.b16 %v6530
  %v6664 = vunpack.c.h.b16 %v6530
  %v6665 = vunpack.c.l.b16 %v6531
  %v6666 = vunpack.c.l.b16 %v6532
  %v6667 = vunpack.c.h.b16 %v6532
  %v6668 = vunpack.c.l.b16 %v6533
  %v6669 = vunpack.c.l.b16 %v6534
  %v6670 = vunpack.c.h.b16 %v6534
  %v6671 = vunpack.c.l.b16 %v6535
  %v6672 = vunpack.c.l.b16 %v6536
  %v6673 = vunpack.c.h.b16 %v6536
  %v6674 = vunpack.c.l.b16 %v6537
  %v6675 = vunpack.c.l.b16 %v6538
  %v6676 = vunpack.c.h.b16 %v6538
  %v6677 = vunpack.c.l.b16 %v6539
  %v6678 = vunpack.c.l.b16 %v6540
  %v6679 = vunpack.c.h.b16 %v6540
  %v6680 = vunpack.c.l.b16 %v6541
  %v6681 = vunpack.c.l.b16 %v6542
  %v6682 = vunpack.c.h.b16 %v6542
  %v6683 = vunpack.c.l.b16 %v6543
  %v6684 = vunpack.c.l.b16 %v6544
  %v6685 = vunpack.c.h.b16 %v6544
  %v6686 = vunpack.c.l.b16 %v6545
  %v6687 = vunpack.c.l.b16 %v6546
  %v6688 = vunpack.c.h.b16 %v6546
  %v6689 = vunpack.c.l.b16 %v6547
  %v6690 = vunpack.c.l.b16 %v6548
  %v6691 = vunpack.c.h.b16 %v6548
  %v6692 = vunpack.c.l.b16 %v6549
  %v6693 = vunpack.c.l.b16 %v6550
  %v6694 = vunpack.c.h.b16 %v6550
  %v6695 = vunpack.c.l.b16 %v6551
  %v6696 = vpack.c.b16 %v6615, %v6612
  %v6697 = vpack.c.b16 %v6616, %v6613
  %v6698 = vpack.c.b16 %v6617, %v6614
  %v6699 = vpack.c.b16 %v6621, %v6618
  %v6700 = vpack.c.b16 %v6622, %v6619
  %v6701 = vpack.c.b16 %v6623, %v6620
  %v6702 = vpack.c.b16 %v6627, %v6624
  %v6703 = vpack.c.b16 %v6628, %v6625
  %v6704 = vpack.c.b16 %v6629, %v6626
  %v6705 = vpack.c.b16 %v6633, %v6630
  %v6706 = vpack.c.b16 %v6634, %v6631
  %v6707 = vpack.c.b16 %v6635, %v6632
  %v6708 = vpack.c.b16 %v6639, %v6636
  %v6709 = vpack.c.b16 %v6640, %v6637
  %v6710 = vpack.c.b16 %v6641, %v6638
  %v6711 = vpack.c.b16 %v6645, %v6642
  %v6712 = vpack.c.b16 %v6646, %v6643
  %v6713 = vpack.c.b16 %v6647, %v6644
  %v6714 = vpack.c.b16 %v6651, %v6648
  %v6715 = vpack.c.b16 %v6652, %v6649
  %v6716 = vpack.c.b16 %v6653, %v6650
  %v6717 = vpack.c.b16 %v6657, %v6654
  %v6718 = vpack.c.b16 %v6658, %v6655
  %v6719 = vpack.c.b16 %v6659, %v6656
  %v6720 = vpack.c.b16 %v6663, %v6660
  %v6721 = vpack.c.b16 %v6664, %v6661
  %v6722 = vpack.c.b16 %v6665, %v6662
  %v6723 = vpack.c.b16 %v6669, %v6666
  %v6724 = vpack.c.b16 %v6670, %v6667
  %v6725 = vpack.c.b16 %v6671, %v6668
  %v6726 = vpack.c.b16 %v6675, %v6672
  %v6727 = vpack.c.b16 %v6676, %v6673
  %v6728 = vpack.c.b16 %v6677, %v6674
  %v6729 = vpack.c.b16 %v6681, %v6678
  %v6730 = vpack.c.b16 %v6682, %v6679
  %v6731 = vpack.c.b16 %v6683, %v6680
  %v6732 = vpack.c.b16 %v6687, %v6684
  %v6733 = vpack.c.b16 %v6688, %v6685
  %v6734 = vpack.c.b16 %v6689, %v6686
  %v6735 = vpack.c.b16 %v6693, %v6690
  %v6736 = vpack.c.b16 %v6694, %v6691
  %v6737 = vpack.c.b16 %v6695, %v6692
  %vm6777 = vcmask 752640
  %v6779 = vsel %vm6777, %v6555, 0
  %vm6781 = vcmask 1045504
  %v6783 = vsel %vm6781, %v6735, 0
  %v6786 = vsel %vm6781, %v6736, 0
  %v6789 = vsel %vm6781, %v6737, 0
  %6791 = vmatprep.subr.bf16.mxu0 %v6697
  %6792 = vmatpush1.bf16.msra.mxu0 %v6696
  %6793 = vmatprep.subr.bf16.mxu0 %v6700
  %6794 = vmatpush1.bf16.msra.mxu0 %v6699
  %6795 = vmatprep.subr.bf16.mxu0 %v6703
  %6796 = vmatpush1.bf16.msra.mxu0 %v6702
  %6797 = vmatprep.subr.bf16.mxu0 %v6706
  %6798 = vmatpush1.bf16.msra.mxu0 %v6705
  %6799 = vmatprep.subr.bf16.mxu0 %v6709
  %6800 = vmatpush1.bf16.msra.mxu0 %v6708
  %6801 = vmatprep.subr.bf16.mxu0 %v6712
  %6802 = vmatpush1.bf16.msra.mxu0 %v6711
  %6803 = vmatprep.subr.bf16.mxu0 %v6715
  %6804 = vmatpush1.bf16.msra.mxu0 %v6714
  %6805 = vmatprep.subr.bf16.mxu0 %v6718
  %6806 = vmatpush1.bf16.msra.mxu0 %v6717
  %6807 = vmatprep.subr.bf16.mxu0 %v6721
  %6808 = vmatpush1.bf16.msra.mxu0 %v6720
  %6809 = vmatprep.subr.bf16.mxu0 %v6724
  %6810 = vmatpush1.bf16.msra.mxu0 %v6723
  %6811 = vmatprep.subr.bf16.mxu0 %v6727
  %6812 = vmatpush1.bf16.msra.mxu0 %v6726
  %6813 = vmatprep.subr.bf16.mxu0 %v6730
  %6814 = vmatpush1.bf16.msra.mxu0 %v6729
  %6815 = vmatprep.subr.bf16.mxu0 %v6733
  %6816 = vmatpush1.bf16.msra.mxu0 %v6732
  %6817 = vmatprep.subr.bf16.mxu0 %v6786
  %6818 = vmatpush1.bf16.msra.mxu0 %v6783
  %6819 = vmatprep.subr.bf16.mxu0 0
  %6820 = vmatpush1.bf16.msra.mxu0 0
  %6821 = vmatprep.subr.bf16.mxu0 0
  %6822 = vmatpush1.bf16.msra.mxu0 0
  %6823 = vmatprep.mubr.bf16.mxu0 %v6779
  %6824 = vmatmul.mubr.bf16.gmra.mrb[0].mxu0 %v6554
  %v6825 = vpop.f32.mrb[0].mxu0
  %v6826 = vadd.f32 0.0, %v6825
  %v6827 = vpop.f32.mrb[0].mxu0
  %v6828 = vadd.f32 0.0, %v6827
  %v6829 = vpop.f32.mrb[0].mxu0
  %v6830 = vadd.f32 0.0, %v6829
  %v6831 = vpop.f32.mrb[0].mxu0
  %v6832 = vadd.f32 0.0, %v6831
  %6833 = vdwg.mxu0
  %6834 = vmatprep.subr.bf16.mxu0 0
  %6835 = vmatpush1.bf16.msra.mxu0 %v6698
  %6836 = vmatprep.subr.bf16.mxu0 0
  %6837 = vmatpush1.bf16.msra.mxu0 %v6701
  %6838 = vmatprep.subr.bf16.mxu0 0
  %6839 = vmatpush1.bf16.msra.mxu0 %v6704
  %6840 = vmatprep.subr.bf16.mxu0 0
  %6841 = vmatpush1.bf16.msra.mxu0 %v6707
  %6842 = vmatprep.subr.bf16.mxu0 0
  %6843 = vmatpush1.bf16.msra.mxu0 %v6710
  %6844 = vmatprep.subr.bf16.mxu0 0
  %6845 = vmatpush1.bf16.msra.mxu0 %v6713
  %6846 = vmatprep.subr.bf16.mxu0 0
  %6847 = vmatpush1.bf16.msra.mxu0 %v6716
  %6848 = vmatprep.subr.bf16.mxu0 0
  %6849 = vmatpush1.bf16.msra.mxu0 %v6719
  %6850 = vmatprep.subr.bf16.mxu0 0
  %6851 = vmatpush1.bf16.msra.mxu0 %v6722
  %6852 = vmatprep.subr.bf16.mxu0 0
  %6853 = vmatpush1.bf16.msra.mxu0 %v6725
  %6854 = vmatprep.subr.bf16.mxu0 0
  %6855 = vmatpush1.bf16.msra.mxu0 %v6728
  %6856 = vmatprep.subr.bf16.mxu0 0
  %6857 = vmatpush1.bf16.msra.mxu0 %v6731
  %6858 = vmatprep.subr.bf16.mxu0 0
  %6859 = vmatpush1.bf16.msra.mxu0 %v6734
  %6860 = vmatprep.subr.bf16.mxu0 0
  %6861 = vmatpush1.bf16.msra.mxu0 %v6789
  %6862 = vmatprep.subr.bf16.mxu0 0
  %6863 = vmatpush1.bf16.msra.mxu0 0
  %6864 = vmatprep.subr.bf16.mxu0 0
  %6865 = vmatpush1.bf16.msra.mxu0 0
  %6866 = vmatprep.mubr.bf16.mxu0 %v6779
  %6867 = vmatmul.mubr.bf16.gmra.mrb[0].mxu0 %v6554
  %v6868 = vpop.f32.mrb[0].mxu0
  %v6869 = vadd.f32 0.0, %v6868
  %v6870 = vpop.f32.mrb[0].mxu0
  %v6871 = vpop.f32.mrb[0].mxu0
  %v6872 = vadd.f32 0.0, %v6871
  %v6873 = vpop.f32.mrb[0].mxu0
  %6874 = vdwg.mxu0
  %v6877 = vunpack.c.l.s4 1983009808
  %v6878 = vunpack.c.0.s8 %v6877
  %v6879 = vlaneseq
  %v6880 = vshrl.u32 %v6879, 7
  %v6881 = vsub.s32 %v6878, %v6880
  %v6882 = vrot.slane %v6552, %v6881
  %v6883 = vcombine.high %v6882, %v6882
  %v6886 = vsel %vm6777, %v6883, 0
  %6888 = vmatprep.subr.bf16.mxu0 %v6779
  %6889 = vmatpush1.bf16.xpose.msra.mxu0 %v6554
  %6890 = vmatprep.subr.bf16.mxu0 0
  %6891 = vmatpush1.bf16.xpose.msra.mxu0 0
  %6892 = vmatprep.subr.bf16.mxu0 0
  %6893 = vmatpush1.bf16.xpose.msra.mxu0 0
  %6894 = vmatprep.subr.bf16.mxu0 0
  %6895 = vmatpush1.bf16.xpose.msra.mxu0 0
  %6896 = vmatprep.subr.bf16.mxu0 0
  %6897 = vmatpush1.bf16.xpose.msra.mxu0 0
  %6898 = vmatprep.subr.bf16.mxu0 0
  %6899 = vmatpush1.bf16.xpose.msra.mxu0 0
  %6900 = vmatprep.subr.bf16.mxu0 0
  %6901 = vmatpush1.bf16.xpose.msra.mxu0 0
  %6902 = vmatprep.subr.bf16.mxu0 0
  %6903 = vmatpush1.bf16.xpose.msra.mxu0 0
  %6904 = vmatprep.subr.bf16.mxu0 0
  %6905 = vmatpush1.bf16.xpose.msra.mxu0 0
  %6906 = vmatprep.subr.bf16.mxu0 0
  %6907 = vmatpush1.bf16.xpose.msra.mxu0 0
  %6908 = vmatprep.subr.bf16.mxu0 0
  %6909 = vmatpush1.bf16.xpose.msra.mxu0 0
  %6910 = vmatprep.subr.bf16.mxu0 0
  %6911 = vmatpush1.bf16.xpose.msra.mxu0 0
  %6912 = vmatprep.subr.bf16.mxu0 0
  %6913 = vmatpush1.bf16.xpose.msra.mxu0 0
  %6914 = vmatprep.subr.bf16.mxu0 0
  %6915 = vmatpush1.bf16.xpose.msra.mxu0 0
  %6916 = vmatprep.subr.bf16.mxu0 0
  %6917 = vmatpush1.bf16.xpose.msra.mxu0 0
  %6918 = vmatprep.subr.bf16.mxu0 0
  %6919 = vmatpush1.bf16.xpose.msra.mxu0 0
  %6920 = vmatprep.mubr.bf16.mxu0 %v6886
  %6921 = vmatmul.mubr.bf16.gmra.mrb[0].mxu0 %v6882
  %v6922 = vpop.f32.mrb[0].mxu0
  %v6923 = vadd.f32 0.0, %v6922
  %v6924 = vpop.f32.mrb[0].mxu0
  %v6925 = vpop.f32.mrb[0].mxu0
  %v6926 = vpop.f32.mrb[0].mxu0
  %6927 = vdwg.mxu0
  %6929 = vset.pattern.permute.xlu0 74
  %6930 = vperm.xlu0 %6929, %v6869
  %v6931 = vpop.permute.xlu0 %6930
  %6934 = vset.pattern.permute.xlu0 74
  %6935 = vperm.xlu0 %6934, %v6872
  %v6936 = vpop.permute.xlu0 %6935
  %v6938 = vlaneseq
  %v6939 = vshrl.u32 %v6938, 7
  %v6940 = vsub.s32 0, %v6939
  %v6941 = vrot.slane %v6923, %v6940
  %v6942 = vadd.f32 %v6931, %v6941
  %v6943 = vadd.f32 %v6936, %v6941
  %vm6944 = vcmp.gt.f32.partialorder %v6942, 0.0
  %vm6945 = vcmp.gt.f32.partialorder %v6943, 0.0
  %v6946 = vmul.f32 %v6942, 0.2
  %v6947 = vmul.f32 %v6943, 0.2
  %v6948 = vsel %vm6944, %v6942, %v6946
  %v6949 = vsel %vm6945, %v6943, %v6947
  %v6950 = vsel %vm80, %v6948, -1e+30
  %v6951 = vsel %vm81, %v6949, -1e+30
  %v6952 = vsel %vm1091, %v6950, -inf
  %6953 = vmax.xlane.f32.xlu0 %v6952
  %v6954 = vpop.xlane.xlu0 %6953
  %v6955 = vsel %vm1091, %v6951, -inf
  %6956 = vmax.xlane.f32.xlu0 %v6955
  %v6957 = vpop.xlane.xlu0 %6956
  %v6958 = vsub.f32 %v6950, %v6954
  %v6959 = vsub.f32 %v6951, %v6957
  %v6960 = vmul.f32 %v6958, 1.442695
  %v6961 = vpow.pop %v6960
  %v6962 = vmul.f32 %v6959, 1.442695
  %v6963 = vpow.pop %v6962
  %v6964 = vsel %vm1091, %v6961, 0.0
  %6965 = vadd.xlane.f32.xlu0 %v6964
  %v6966 = vpop.xlane.xlu0 %6965
  %v6967 = vsel %vm1091, %v6963, 0.0
  %6968 = vadd.xlane.f32.xlu0 %v6967
  %v6969 = vpop.xlane.xlu0 %6968
  %v6970 = vrcp.pop %v6966
  %v6971 = vrcp.pop %v6969
  %v6972 = vmul.f32 %v6961, %v6970
  %v6973 = vmul.f32 %v6963, %v6971
  %v6974 = vpack.c.bf16 %v6973, %v6972
  %v6975 = vpack.c.bf16 %v6830, %v6826
  %v6977 = vsel %vm1091, %v6974, 0
  %6979 = vmatprep.subr.bf16.mxu0 0
  %6980 = vmatpush1.bf16.msra.mxu0 %v6975
  %6981 = vmatprep.subr.bf16.mxu0 0
  %6982 = vmatpush1.bf16.msra.mxu0 0
  %6983 = vmatprep.subr.bf16.mxu0 0
  %6984 = vmatpush1.bf16.msra.mxu0 0
  %6985 = vmatprep.subr.bf16.mxu0 0
  %6986 = vmatpush1.bf16.msra.mxu0 0
  %6987 = vmatprep.subr.bf16.mxu0 0
  %6988 = vmatpush1.bf16.msra.mxu0 0
  %6989 = vmatprep.subr.bf16.mxu0 0
  %6990 = vmatpush1.bf16.msra.mxu0 0
  %6991 = vmatprep.subr.bf16.mxu0 0
  %6992 = vmatpush1.bf16.msra.mxu0 0
  %6993 = vmatprep.subr.bf16.mxu0 0
  %6994 = vmatpush1.bf16.msra.mxu0 0
  %6995 = vmatprep.subr.bf16.mxu0 0
  %6996 = vmatpush1.bf16.msra.mxu0 0
  %6997 = vmatprep.subr.bf16.mxu0 0
  %6998 = vmatpush1.bf16.msra.mxu0 0
  %6999 = vmatprep.subr.bf16.mxu0 0
  %7000 = vmatpush1.bf16.msra.mxu0 0
  %7001 = vmatprep.subr.bf16.mxu0 0
  %7002 = vmatpush1.bf16.msra.mxu0 0
  %7003 = vmatprep.subr.bf16.mxu0 0
  %7004 = vmatpush1.bf16.msra.mxu0 0
  %7005 = vmatprep.subr.bf16.mxu0 0
  %7006 = vmatpush1.bf16.msra.mxu0 0
  %7007 = vmatprep.subr.bf16.mxu0 0
  %7008 = vmatpush1.bf16.msra.mxu0 0
  %7009 = vmatprep.subr.bf16.mxu0 0
  %7010 = vmatpush1.bf16.msra.mxu0 0
  %7011 = vmatprep.mubr.bf16.mxu0 0
  %7012 = vmatmul.mubr.bf16.gmra.mrb[0].mxu0 %v6977
  %v7013 = vpop.f32.mrb[0].mxu0
  %v7014 = vadd.f32 0.0, %v7013
  %v7015 = vpop.f32.mrb[0].mxu0
  %v7016 = vpop.f32.mrb[0].mxu0
  %v7017 = vadd.f32 0.0, %v7016
  %v7018 = vpop.f32.mrb[0].mxu0
  %7019 = vdwg.mxu0
  %7020 = vset.pattern.permute.xlu0 75
  %7021 = vperm.xlu0 %7020, %v6869
  %v7022 = vpop.permute.xlu0 %7021
  %7024 = vset.pattern.permute.xlu0 75
  %7025 = vperm.xlu0 %7024, %v6872
  %v7026 = vpop.permute.xlu0 %7025
  %v7028 = vlaneseq
  %v7029 = vshrl.u32 %v7028, 7
  %v7030 = vsub.s32 1, %v7029
  %v7031 = vrot.slane %v6923, %v7030
  %v7032 = vadd.f32 %v7022, %v7031
  %v7033 = vadd.f32 %v7026, %v7031
  %vm7034 = vcmp.gt.f32.partialorder %v7032, 0.0
  %vm7035 = vcmp.gt.f32.partialorder %v7033, 0.0
  %v7036 = vmul.f32 %v7032, 0.2
  %v7037 = vmul.f32 %v7033, 0.2
  %v7038 = vsel %vm7034, %v7032, %v7036
  %v7039 = vsel %vm7035, %v7033, %v7037
  %v7040 = vsel %vm80, %v7038, -1e+30
  %v7041 = vsel %vm81, %v7039, -1e+30
  %v7042 = vsel %vm1091, %v7040, -inf
  %7043 = vmax.xlane.f32.xlu0 %v7042
  %v7044 = vpop.xlane.xlu0 %7043
  %v7045 = vsel %vm1091, %v7041, -inf
  %7046 = vmax.xlane.f32.xlu0 %v7045
  %v7047 = vpop.xlane.xlu0 %7046
  %v7048 = vsub.f32 %v7040, %v7044
  %v7049 = vsub.f32 %v7041, %v7047
  %v7050 = vmul.f32 %v7048, 1.442695
  %v7051 = vpow.pop %v7050
  %v7052 = vmul.f32 %v7049, 1.442695
  %v7053 = vpow.pop %v7052
  %v7054 = vsel %vm1091, %v7051, 0.0
  %7055 = vadd.xlane.f32.xlu0 %v7054
  %v7056 = vpop.xlane.xlu0 %7055
  %v7057 = vsel %vm1091, %v7053, 0.0
  %7058 = vadd.xlane.f32.xlu0 %v7057
  %v7059 = vpop.xlane.xlu0 %7058
  %v7060 = vrcp.pop %v7056
  %v7061 = vrcp.pop %v7059
  %v7062 = vmul.f32 %v7051, %v7060
  %v7063 = vmul.f32 %v7053, %v7061
  %v7064 = vpack.c.bf16 %v7063, %v7062
  %v7065 = vpack.c.bf16 %v6832, %v6828
  %7068 = vrot.lane.b32.xlu0 %v6975, 18
  %v7069 = vpop.permute.xlu0 %7068
  %7070 = vrot.lane.b32.xlu0 %v7065, 18
  %v7071 = vpop.permute.xlu0 %7070
  %vm7072 = vcmask 146432
  %v7073 = vsel %vm7072, %v7069, %v7071
  %v7076 = vsel %vm1091, %v7064, 0
  %7078 = vmatprep.subr.bf16.mxu0 0
  %7079 = vmatpush1.bf16.msra.mxu0 %v7073
  %7080 = vmatprep.subr.bf16.mxu0 0
  %7081 = vmatpush1.bf16.msra.mxu0 0
  %7082 = vmatprep.subr.bf16.mxu0 0
  %7083 = vmatpush1.bf16.msra.mxu0 0
  %7084 = vmatprep.subr.bf16.mxu0 0
  %7085 = vmatpush1.bf16.msra.mxu0 0
  %7086 = vmatprep.subr.bf16.mxu0 0
  %7087 = vmatpush1.bf16.msra.mxu0 0
  %7088 = vmatprep.subr.bf16.mxu0 0
  %7089 = vmatpush1.bf16.msra.mxu0 0
  %7090 = vmatprep.subr.bf16.mxu0 0
  %7091 = vmatpush1.bf16.msra.mxu0 0
  %7092 = vmatprep.subr.bf16.mxu0 0
  %7093 = vmatpush1.bf16.msra.mxu0 0
  %7094 = vmatprep.subr.bf16.mxu0 0
  %7095 = vmatpush1.bf16.msra.mxu0 0
  %7096 = vmatprep.subr.bf16.mxu0 0
  %7097 = vmatpush1.bf16.msra.mxu0 0
  %7098 = vmatprep.subr.bf16.mxu0 0
  %7099 = vmatpush1.bf16.msra.mxu0 0
  %7100 = vmatprep.subr.bf16.mxu0 0
  %7101 = vmatpush1.bf16.msra.mxu0 0
  %7102 = vmatprep.subr.bf16.mxu0 0
  %7103 = vmatpush1.bf16.msra.mxu0 0
  %7104 = vmatprep.subr.bf16.mxu0 0
  %7105 = vmatpush1.bf16.msra.mxu0 0
  %7106 = vmatprep.subr.bf16.mxu0 0
  %7107 = vmatpush1.bf16.msra.mxu0 0
  %7108 = vmatprep.subr.bf16.mxu0 0
  %7109 = vmatpush1.bf16.msra.mxu0 0
  %7110 = vmatprep.mubr.bf16.mxu0 0
  %7111 = vmatmul.mubr.bf16.gmra.mrb[0].mxu0 %v7076
  %v7112 = vpop.f32.mrb[0].mxu0
  %v7113 = vadd.f32 0.0, %v7112
  %v7114 = vpop.f32.mrb[0].mxu0
  %v7115 = vpop.f32.mrb[0].mxu0
  %v7116 = vadd.f32 0.0, %v7115
  %v7117 = vpop.f32.mrb[0].mxu0
  %7118 = vdwg.mxu0
  %7119 = vset.pattern.permute.xlu0 76
  %7120 = vperm.xlu0 %7119, %v6869
  %v7121 = vpop.permute.xlu0 %7120
  %7123 = vset.pattern.permute.xlu0 76
  %7124 = vperm.xlu0 %7123, %v6872
  %v7125 = vpop.permute.xlu0 %7124
  %v7127 = vlaneseq
  %v7128 = vshrl.u32 %v7127, 7
  %v7129 = vsub.s32 2, %v7128
  %v7130 = vrot.slane %v6923, %v7129
  %v7131 = vadd.f32 %v7121, %v7130
  %v7132 = vadd.f32 %v7125, %v7130
  %vm7133 = vcmp.gt.f32.partialorder %v7131, 0.0
  %vm7134 = vcmp.gt.f32.partialorder %v7132, 0.0
  %v7135 = vmul.f32 %v7131, 0.2
  %v7136 = vmul.f32 %v7132, 0.2
  %v7137 = vsel %vm7133, %v7131, %v7135
  %v7138 = vsel %vm7134, %v7132, %v7136
  %v7139 = vsel %vm80, %v7137, -1e+30
  %v7140 = vsel %vm81, %v7138, -1e+30
  %v7141 = vsel %vm1091, %v7139, -inf
  %7142 = vmax.xlane.f32.xlu0 %v7141
  %v7143 = vpop.xlane.xlu0 %7142
  %v7144 = vsel %vm1091, %v7140, -inf
  %7145 = vmax.xlane.f32.xlu0 %v7144
  %v7146 = vpop.xlane.xlu0 %7145
  %v7147 = vsub.f32 %v7139, %v7143
  %v7148 = vsub.f32 %v7140, %v7146
  %v7149 = vmul.f32 %v7147, 1.442695
  %v7150 = vpow.pop %v7149
  %v7151 = vmul.f32 %v7148, 1.442695
  %v7152 = vpow.pop %v7151
  %v7153 = vsel %vm1091, %v7150, 0.0
  %7154 = vadd.xlane.f32.xlu0 %v7153
  %v7155 = vpop.xlane.xlu0 %7154
  %v7156 = vsel %vm1091, %v7152, 0.0
  %7157 = vadd.xlane.f32.xlu0 %v7156
  %v7158 = vpop.xlane.xlu0 %7157
  %v7159 = vrcp.pop %v7155
  %v7160 = vrcp.pop %v7158
  %v7161 = vmul.f32 %v7150, %v7159
  %v7162 = vmul.f32 %v7152, %v7160
  %v7163 = vpack.c.bf16 %v7162, %v7161
  %v7164 = vpack.c.bf16 %v6872, %v6869
  %7166 = vrot.lane.b32.xlu0 %v7065, 36
  %v7167 = vpop.permute.xlu0 %7166
  %7168 = vrot.lane.b32.xlu0 %v7164, 36
  %v7169 = vpop.permute.xlu0 %7168
  %vm7170 = vcmask 293888
  %v7171 = vsel %vm7170, %v7167, %v7169
  %v7174 = vsel %vm1091, %v7163, 0
  %7176 = vmatprep.subr.bf16.mxu0 0
  %7177 = vmatpush1.bf16.msra.mxu0 %v7171
  %7178 = vmatprep.subr.bf16.mxu0 0
  %7179 = vmatpush1.bf16.msra.mxu0 0
  %7180 = vmatprep.subr.bf16.mxu0 0
  %7181 = vmatpush1.bf16.msra.mxu0 0
  %7182 = vmatprep.subr.bf16.mxu0 0
  %7183 = vmatpush1.bf16.msra.mxu0 0
  %7184 = vmatprep.subr.bf16.mxu0 0
  %7185 = vmatpush1.bf16.msra.mxu0 0
  %7186 = vmatprep.subr.bf16.mxu0 0
  %7187 = vmatpush1.bf16.msra.mxu0 0
  %7188 = vmatprep.subr.bf16.mxu0 0
  %7189 = vmatpush1.bf16.msra.mxu0 0
  %7190 = vmatprep.subr.bf16.mxu0 0
  %7191 = vmatpush1.bf16.msra.mxu0 0
  %7192 = vmatprep.subr.bf16.mxu0 0
  %7193 = vmatpush1.bf16.msra.mxu0 0
  %7194 = vmatprep.subr.bf16.mxu0 0
  %7195 = vmatpush1.bf16.msra.mxu0 0
  %7196 = vmatprep.subr.bf16.mxu0 0
  %7197 = vmatpush1.bf16.msra.mxu0 0
  %7198 = vmatprep.subr.bf16.mxu0 0
  %7199 = vmatpush1.bf16.msra.mxu0 0
  %7200 = vmatprep.subr.bf16.mxu0 0
  %7201 = vmatpush1.bf16.msra.mxu0 0
  %7202 = vmatprep.subr.bf16.mxu0 0
  %7203 = vmatpush1.bf16.msra.mxu0 0
  %7204 = vmatprep.subr.bf16.mxu0 0
  %7205 = vmatpush1.bf16.msra.mxu0 0
  %7206 = vmatprep.subr.bf16.mxu0 0
  %7207 = vmatpush1.bf16.msra.mxu0 0
  %7208 = vmatprep.mubr.bf16.mxu0 0
  %7209 = vmatmul.mubr.bf16.gmra.mrb[0].mxu0 %v7174
  %v7210 = vpop.f32.mrb[0].mxu0
  %v7211 = vadd.f32 0.0, %v7210
  %v7212 = vpop.f32.mrb[0].mxu0
  %v7213 = vpop.f32.mrb[0].mxu0
  %v7214 = vadd.f32 0.0, %v7213
  %v7215 = vpop.f32.mrb[0].mxu0
  %7216 = vdwg.mxu0
  %7219 = vrot.lane.b32.xlu0 %v7113, 110
  %v7220 = vpop.permute.xlu0 %7219
  %7221 = vrot.lane.b32.xlu0 %v7116, 110
  %v7222 = vpop.permute.xlu0 %7221
  %7227 = vrot.lane.b32.xlu0 %v7211, 92
  %v7228 = vpop.permute.xlu0 %7227
  %7229 = vrot.lane.b32.xlu0 %v7214, 92
  %v7230 = vpop.permute.xlu0 %7229
  %vm7233 = vcmask 900096
  %v7234 = vsel %vm7233, %v7014, %v7220
  %v7235 = vsel %vm7233, %v7017, %v7222
  %v7236 = vsel %vm6777, %v7220, %v7228
  %v7237 = vsel %vm6777, %v7222, %v7230
  %v7239 = vlaneseq
  %v7240 = vshrl.u32 %v7239, 7
  %v7241 = vsub.s32 0, %v7240
  %v7242 = vrot.slane %v6553, %v7241
  %v7243 = vlaneseq
  %v7244 = vshrl.u32 %v7243, 7
  %v7245 = vsub.s32 1, %v7244
  %v7246 = vrot.slane %v6553, %v7245
  %v7247 = vlaneseq
  %v7248 = vshrl.u32 %v7247, 7
  %v7249 = vsub.s32 2, %v7248
  %v7250 = vrot.slane %v6553, %v7249
  %v7254 = vadd.f32 %v7234, %v7242
  %v7255 = vadd.f32 %v7236, %v7246
  %v7256 = vadd.f32 %v7228, %v7250
  %v7257 = vadd.f32 %v7235, %v7242
  %v7258 = vadd.f32 %v7237, %v7246
  %v7259 = vadd.f32 %v7230, %v7250
  %v7260 = vmax.f32 %v7254, 0.0
  %v7261 = vmax.f32 %v7255, 0.0
  %v7262 = vmax.f32 %v7256, 0.0
  %v7263 = vmax.f32 %v7257, 0.0
  %v7264 = vmax.f32 %v7258, 0.0
  %v7265 = vmax.f32 %v7259, 0.0
  %v7266 = vld [vmem:[%s15] sm:$0xf]
  %v7267 = vld [vmem:[%s15 + $0x4] sm:$0xf]
  %v7268 = vld [vmem:[%s15 + $0x8] sm:$0xf]
  %v7269 = vld [vmem:[%s15 + $0xc] sm:$0xf]
  %v7270 = vld [vmem:[%s15 + $0x10] sm:$0xf]
  %v7271 = vld [vmem:[%s15 + $0x14] sm:$0xf]
  %v7272 = vld [vmem:[%s15 + $0x18] sm:$0xf]
  %v7273 = vld [vmem:[%s15 + $0x1c] sm:$0xf]
  %v7274 = vld [vmem:[%s15 + $0x20] sm:$0xf]
  %v7275 = vld [vmem:[%s15 + $0x24] sm:$0xf]
  %v7276 = vld [vmem:[%s15 + $0x28] sm:$0xf]
  %v7277 = vld [vmem:[%s15 + $0x2c] sm:$0xf]
  %v7278 = vld [vmem:[%s15 + $0x30] sm:$0xf]
  %v7279 = vld [vmem:[%s15 + $0x34] sm:$0xf]
  %v7280 = vld [vmem:[%s15 + $0x38] sm:$0xf]
  %v7281 = vld [vmem:[%s15 + $0x3c] sm:$0xf]
  %v7282 = vld [vmem:[%s15 + $0x40] sm:$0xf]
  %v7283 = vld [vmem:[%s15 + $0x44] sm:$0xf]
  %v7284 = vld [vmem:[%s15 + $0x48] sm:$0xf]
  %v7285 = vld [vmem:[%s15 + $0x4c] sm:$0xf]
  %v7286 = vld [vmem:[%s15 + $0x50] sm:$0xf]
  %v7287 = vld [vmem:[%s15 + $0x54] sm:$0xf]
  %v7288 = vld [vmem:[%s15 + $0x58] sm:$0xf]
  %v7289 = vld [vmem:[%s15 + $0x5c] sm:$0xf]
  %v7290 = vld [vmem:[%s15 + $0x60] sm:$0xf]
  %v7291 = vld [vmem:[%s15 + $0x64] sm:$0xf]
  %v7292 = vld [vmem:[%s15 + $0x68] sm:$0xf]
  %v7293 = vld [vmem:[%s15 + $0x6c] sm:$0xf]
  %v7294 = vld [vmem:[%s15 + $0x70] sm:$0xf]
  %v7295 = vld [vmem:[%s15 + $0x74] sm:$0xf]
  %v7296 = vld [vmem:[%s15 + $0x78] sm:$0xf]
  %v7297 = vld [vmem:[%s15 + $0x7c] sm:$0xf]
  %v7298 = vld [vmem:[%s15 + $0x80] sm:$0xf]
  %v7299 = vld [vmem:[%s15 + $0x84] sm:$0xf]
  %v7300 = vld [vmem:[%s15 + $0x88] sm:$0xf]
  %v7301 = vld [vmem:[%s15 + $0x8c] sm:$0xf]
  %v7302 = vld [vmem:[%s15 + $0x90] sm:$0xf]
  %v7303 = vld [vmem:[%s15 + $0x94] sm:$0xf]
  %v7304 = vld [vmem:[%s15 + $0x98] sm:$0xf]
  %v7305 = vld [vmem:[%s15 + $0x9c] sm:$0xf]
  %v7306 = vld [vmem:[%s15 + $0xa0] sm:$0xf]
  %v7307 = vld [vmem:[%s15 + $0xa4] sm:$0x1]
  %v7308 = vld [vmem:[%s16] sm:$0x7]
  %v7309 = vld [vmem:[%s17] sm:$0x1]
  %v7310 = vpack.c.bf16 %v7263, %v7260
  %v7311 = vpack.c.bf16 %v7264, %v7261
  %v7312 = vpack.c.bf16 %v7265, %v7262
  %v7355 = vunpack.c.l.b16 %v7266
  %v7356 = vunpack.c.l.b16 %v7267
  %v7357 = vunpack.c.l.b16 %v7268
  %v7358 = vunpack.c.l.b16 %v7269
  %v7359 = vunpack.c.l.b16 %v7270
  %v7360 = vunpack.c.l.b16 %v7271
  %v7361 = vunpack.c.l.b16 %v7272
  %v7362 = vunpack.c.l.b16 %v7273
  %v7363 = vunpack.c.l.b16 %v7274
  %v7364 = vunpack.c.l.b16 %v7275
  %v7365 = vunpack.c.l.b16 %v7276
  %v7366 = vunpack.c.l.b16 %v7277
  %v7367 = vunpack.c.l.b16 %v7278
  %v7368 = vunpack.c.l.b16 %v7279
  %v7369 = vunpack.c.l.b16 %v7280
  %v7370 = vunpack.c.l.b16 %v7281
  %v7371 = vunpack.c.l.b16 %v7282
  %v7372 = vunpack.c.l.b16 %v7283
  %v7373 = vunpack.c.l.b16 %v7284
  %v7374 = vunpack.c.l.b16 %v7285
  %v7375 = vunpack.c.l.b16 %v7286
  %v7376 = vunpack.c.l.b16 %v7287
  %v7377 = vunpack.c.l.b16 %v7288
  %v7378 = vunpack.c.l.b16 %v7289
  %v7379 = vunpack.c.l.b16 %v7290
  %v7380 = vunpack.c.l.b16 %v7291
  %v7381 = vunpack.c.l.b16 %v7292
  %v7382 = vunpack.c.l.b16 %v7293
  %v7383 = vunpack.c.l.b16 %v7294
  %v7384 = vunpack.c.l.b16 %v7295
  %v7385 = vunpack.c.l.b16 %v7296
  %v7386 = vunpack.c.l.b16 %v7297
  %v7387 = vunpack.c.l.b16 %v7298
  %v7388 = vunpack.c.l.b16 %v7299
  %v7389 = vunpack.c.l.b16 %v7300
  %v7390 = vunpack.c.l.b16 %v7301
  %v7391 = vunpack.c.l.b16 %v7302
  %v7392 = vunpack.c.l.b16 %v7303
  %v7393 = vunpack.c.l.b16 %v7304
  %v7394 = vunpack.c.l.b16 %v7305
  %v7395 = vunpack.c.l.b16 %v7306
  %v7396 = vunpack.c.l.b16 %v7307
  %v7397 = vpack.c.b16 %v7356, %v7355
  %v7398 = vpack.c.b16 %v7358, %v7357
  %v7399 = vpack.c.b16 %v7360, %v7359
  %v7400 = vpack.c.b16 %v7362, %v7361
  %v7401 = vpack.c.b16 %v7364, %v7363
  %v7402 = vpack.c.b16 %v7366, %v7365
  %v7403 = vpack.c.b16 %v7368, %v7367
  %v7404 = vpack.c.b16 %v7370, %v7369
  %v7405 = vpack.c.b16 %v7372, %v7371
  %v7406 = vpack.c.b16 %v7374, %v7373
  %v7407 = vpack.c.b16 %v7376, %v7375
  %v7408 = vpack.c.b16 %v7378, %v7377
  %v7409 = vpack.c.b16 %v7380, %v7379
  %v7410 = vpack.c.b16 %v7382, %v7381
  %v7411 = vpack.c.b16 %v7384, %v7383
  %v7412 = vpack.c.b16 %v7386, %v7385
  %v7413 = vpack.c.b16 %v7388, %v7387
  %v7414 = vpack.c.b16 %v7390, %v7389
  %v7415 = vpack.c.b16 %v7392, %v7391
  %v7416 = vpack.c.b16 %v7394, %v7393
  %v7417 = vpack.c.b16 %v7396, %v7395
  %vm7438 = vcmask 605184
  %v7440 = vsel %vm7438, %v7312, 0
  %vm7442 = vcmask 1044480
  %v7444 = vsel %vm7442, %v7417, 0
  %7446 = vmatprep.subr.bf16.mxu0 0
  %7447 = vmatpush1.bf16.msra.mxu0 %v7397
  %7448 = vmatprep.subr.bf16.mxu0 0
  %7449 = vmatpush1.bf16.msra.mxu0 %v7398
  %7450 = vmatprep.subr.bf16.mxu0 0
  %7451 = vmatpush1.bf16.msra.mxu0 %v7399
  %7452 = vmatprep.subr.bf16.mxu0 0
  %7453 = vmatpush1.bf16.msra.mxu0 %v7400
  %7454 = vmatprep.subr.bf16.mxu0 0
  %7455 = vmatpush1.bf16.msra.mxu0 %v7401
  %7456 = vmatprep.subr.bf16.mxu0 0
  %7457 = vmatpush1.bf16.msra.mxu0 %v7402
  %7458 = vmatprep.subr.bf16.mxu0 0
  %7459 = vmatpush1.bf16.msra.mxu0 %v7403
  %7460 = vmatprep.subr.bf16.mxu0 0
  %7461 = vmatpush1.bf16.msra.mxu0 %v7404
  %7462 = vmatprep.subr.bf16.mxu0 0
  %7463 = vmatpush1.bf16.msra.mxu0 %v7405
  %7464 = vmatprep.subr.bf16.mxu0 0
  %7465 = vmatpush1.bf16.msra.mxu0 %v7406
  %7466 = vmatprep.subr.bf16.mxu0 0
  %7467 = vmatpush1.bf16.msra.mxu0 %v7407
  %7468 = vmatprep.subr.bf16.mxu0 0
  %7469 = vmatpush1.bf16.msra.mxu0 %v7408
  %7470 = vmatprep.subr.bf16.mxu0 0
  %7471 = vmatpush1.bf16.msra.mxu0 %v7409
  %7472 = vmatprep.subr.bf16.mxu0 0
  %7473 = vmatpush1.bf16.msra.mxu0 %v7410
  %7474 = vmatprep.subr.bf16.mxu0 0
  %7475 = vmatpush1.bf16.msra.mxu0 %v7411
  %7476 = vmatprep.subr.bf16.mxu0 0
  %7477 = vmatpush1.bf16.msra.mxu0 %v7412
  %7478 = vmatprep.mubr.bf16.mxu0 %v7311
  %7479 = vmatmul.mubr.bf16.gmra.mrb[0].mxu0 %v7310
  %v7480 = vpop.f32.mrb[0].mxu0
  %v7481 = vadd.f32 0.0, %v7480
  %v7482 = vpop.f32.mrb[0].mxu0
  %v7483 = vpop.f32.mrb[0].mxu0
  %v7484 = vadd.f32 0.0, %v7483
  %v7485 = vpop.f32.mrb[0].mxu0
  %7486 = vdwg.mxu0
  %7487 = vmatprep.subr.bf16.mxu0 0
  %7488 = vmatpush1.bf16.msra.mxu0 %v7413
  %7489 = vmatprep.subr.bf16.mxu0 0
  %7490 = vmatpush1.bf16.msra.mxu0 %v7414
  %7491 = vmatprep.subr.bf16.mxu0 0
  %7492 = vmatpush1.bf16.msra.mxu0 %v7415
  %7493 = vmatprep.subr.bf16.mxu0 0
  %7494 = vmatpush1.bf16.msra.mxu0 %v7416
  %7495 = vmatprep.subr.bf16.mxu0 0
  %7496 = vmatpush1.bf16.msra.mxu0 %v7444
  %7497 = vmatprep.subr.bf16.mxu0 0
  %7498 = vmatpush1.bf16.msra.mxu0 0
  %7499 = vmatprep.subr.bf16.mxu0 0
  %7500 = vmatpush1.bf16.msra.mxu0 0
  %7501 = vmatprep.subr.bf16.mxu0 0
  %7502 = vmatpush1.bf16.msra.mxu0 0
  %7503 = vmatprep.subr.bf16.mxu0 0
  %7504 = vmatpush1.bf16.msra.mxu0 0
  %7505 = vmatprep.subr.bf16.mxu0 0
  %7506 = vmatpush1.bf16.msra.mxu0 0
  %7507 = vmatprep.subr.bf16.mxu0 0
  %7508 = vmatpush1.bf16.msra.mxu0 0
  %7509 = vmatprep.subr.bf16.mxu0 0
  %7510 = vmatpush1.bf16.msra.mxu0 0
  %7511 = vmatprep.subr.bf16.mxu0 0
  %7512 = vmatpush1.bf16.msra.mxu0 0
  %7513 = vmatprep.subr.bf16.mxu0 0
  %7514 = vmatpush1.bf16.msra.mxu0 0
  %7515 = vmatprep.subr.bf16.mxu0 0
  %7516 = vmatpush1.bf16.msra.mxu0 0
  %7517 = vmatprep.subr.bf16.mxu0 0
  %7518 = vmatpush1.bf16.msra.mxu0 0
  %7519 = vmatprep.mubr.bf16.mxu0 0
  %7520 = vmatmul.mubr.bf16.gmra.mrb[0].mxu0 %v7440
  %v7521 = vpop.f32.mrb[0].mxu0
  %v7522 = vadd.f32 %v7481, %v7521
  %v7523 = vpop.f32.mrb[0].mxu0
  %v7524 = vpop.f32.mrb[0].mxu0
  %v7525 = vadd.f32 %v7484, %v7524
  %v7526 = vpop.f32.mrb[0].mxu0
  %7527 = vdwg.mxu0
  %v7530 = vunpack.c.l.s4 1966171168
  %v7531 = vunpack.c.0.s8 %v7530
  %v7532 = vlaneseq
  %v7533 = vshrl.u32 %v7532, 7
  %v7534 = vsub.s32 %v7531, %v7533
  %v7535 = vrot.slane %v7308, %v7534
  %v7536 = vcombine.high %v7535, %v7535
  %v7538 = vunpack.c.l.s4 1966171168
  %v7539 = vunpack.c.0.s8 %v7538
  %v7540 = vlaneseq
  %v7541 = vshrl.u32 %v7540, 7
  %v7542 = vsub.s32 %v7539, %v7541
  %v7543 = vrot.slane %v7535, %v7542
  %v7545 = vunpack.c.l.s4 1966171168
  %v7546 = vunpack.c.0.s8 %v7545
  %v7547 = vlaneseq
  %v7548 = vshrl.u32 %v7547, 7
  %v7549 = vsub.s32 %v7546, %v7548
  %v7550 = vrot.slane %v7536, %v7549
  %v7551 = vcombine.high %v7543, %v7543
  %v7555 = vsel %vm7438, %v7551, 0
  %7557 = vmatprep.subr.bf16.mxu0 %v7311
  %7558 = vmatpush1.bf16.xpose.msra.mxu0 %v7310
  %7559 = vmatprep.subr.bf16.mxu0 0
  %7560 = vmatpush1.bf16.xpose.msra.mxu0 0
  %7561 = vmatprep.subr.bf16.mxu0 0
  %7562 = vmatpush1.bf16.xpose.msra.mxu0 0
  %7563 = vmatprep.subr.bf16.mxu0 0
  %7564 = vmatpush1.bf16.xpose.msra.mxu0 0
  %7565 = vmatprep.subr.bf16.mxu0 0
  %7566 = vmatpush1.bf16.xpose.msra.mxu0 0
  %7567 = vmatprep.subr.bf16.mxu0 0
  %7568 = vmatpush1.bf16.xpose.msra.mxu0 0
  %7569 = vmatprep.subr.bf16.mxu0 0
  %7570 = vmatpush1.bf16.xpose.msra.mxu0 0
  %7571 = vmatprep.subr.bf16.mxu0 0
  %7572 = vmatpush1.bf16.xpose.msra.mxu0 0
  %7573 = vmatprep.subr.bf16.mxu0 0
  %7574 = vmatpush1.bf16.xpose.msra.mxu0 0
  %7575 = vmatprep.subr.bf16.mxu0 0
  %7576 = vmatpush1.bf16.xpose.msra.mxu0 0
  %7577 = vmatprep.subr.bf16.mxu0 0
  %7578 = vmatpush1.bf16.xpose.msra.mxu0 0
  %7579 = vmatprep.subr.bf16.mxu0 0
  %7580 = vmatpush1.bf16.xpose.msra.mxu0 0
  %7581 = vmatprep.subr.bf16.mxu0 0
  %7582 = vmatpush1.bf16.xpose.msra.mxu0 0
  %7583 = vmatprep.subr.bf16.mxu0 0
  %7584 = vmatpush1.bf16.xpose.msra.mxu0 0
  %7585 = vmatprep.subr.bf16.mxu0 0
  %7586 = vmatpush1.bf16.xpose.msra.mxu0 0
  %7587 = vmatprep.subr.bf16.mxu0 0
  %7588 = vmatpush1.bf16.xpose.msra.mxu0 0
  %7589 = vmatprep.mubr.bf16.mxu0 %v7550
  %7590 = vmatmul.mubr.bf16.gmra.mrb[0].mxu0 %v7543
  %v7591 = vpop.f32.mrb[0].mxu0
  %v7592 = vadd.f32 0.0, %v7591
  %v7593 = vpop.f32.mrb[0].mxu0
  %v7594 = vpop.f32.mrb[0].mxu0
  %v7595 = vpop.f32.mrb[0].mxu0
  %7596 = vdwg.mxu0
  %7597 = vmatprep.subr.bf16.mxu0 0
  %7598 = vmatpush1.bf16.xpose.msra.mxu0 %v7440
  %7599 = vmatprep.subr.bf16.mxu0 0
  %7600 = vmatpush1.bf16.xpose.msra.mxu0 0
  %7601 = vmatprep.subr.bf16.mxu0 0
  %7602 = vmatpush1.bf16.xpose.msra.mxu0 0
  %7603 = vmatprep.subr.bf16.mxu0 0
  %7604 = vmatpush1.bf16.xpose.msra.mxu0 0
  %7605 = vmatprep.subr.bf16.mxu0 0
  %7606 = vmatpush1.bf16.xpose.msra.mxu0 0
  %7607 = vmatprep.subr.bf16.mxu0 0
  %7608 = vmatpush1.bf16.xpose.msra.mxu0 0
  %7609 = vmatprep.subr.bf16.mxu0 0
  %7610 = vmatpush1.bf16.xpose.msra.mxu0 0
  %7611 = vmatprep.subr.bf16.mxu0 0
  %7612 = vmatpush1.bf16.xpose.msra.mxu0 0
  %7613 = vmatprep.subr.bf16.mxu0 0
  %7614 = vmatpush1.bf16.xpose.msra.mxu0 0
  %7615 = vmatprep.subr.bf16.mxu0 0
  %7616 = vmatpush1.bf16.xpose.msra.mxu0 0
  %7617 = vmatprep.subr.bf16.mxu0 0
  %7618 = vmatpush1.bf16.xpose.msra.mxu0 0
  %7619 = vmatprep.subr.bf16.mxu0 0
  %7620 = vmatpush1.bf16.xpose.msra.mxu0 0
  %7621 = vmatprep.subr.bf16.mxu0 0
  %7622 = vmatpush1.bf16.xpose.msra.mxu0 0
  %7623 = vmatprep.subr.bf16.mxu0 0
  %7624 = vmatpush1.bf16.xpose.msra.mxu0 0
  %7625 = vmatprep.subr.bf16.mxu0 0
  %7626 = vmatpush1.bf16.xpose.msra.mxu0 0
  %7627 = vmatprep.subr.bf16.mxu0 0
  %7628 = vmatpush1.bf16.xpose.msra.mxu0 0
  %7629 = vmatprep.mubr.bf16.mxu0 0
  %7630 = vmatmul.mubr.bf16.gmra.mrb[0].mxu0 %v7555
  %v7631 = vpop.f32.mrb[0].mxu0
  %v7632 = vadd.f32 %v7592, %v7631
  %v7633 = vpop.f32.mrb[0].mxu0
  %v7634 = vpop.f32.mrb[0].mxu0
  %v7635 = vpop.f32.mrb[0].mxu0
  %7636 = vdwg.mxu0
  %7638 = vset.pattern.permute.xlu0 110
  %7639 = vperm.xlu0 %7638, %v7522
  %v7640 = vpop.permute.xlu0 %7639
  %7643 = vset.pattern.permute.xlu0 110
  %7644 = vperm.xlu0 %7643, %v7525
  %v7645 = vpop.permute.xlu0 %7644
  %v7647 = vlaneseq
  %v7648 = vshrl.u32 %v7647, 7
  %v7649 = vsub.s32 0, %v7648
  %v7650 = vrot.slane %v7632, %v7649
  %v7651 = vadd.f32 %v7640, %v7650
  %v7652 = vadd.f32 %v7645, %v7650
  %vm7653 = vcmp.gt.f32.partialorder %v7651, 0.0
  %vm7654 = vcmp.gt.f32.partialorder %v7652, 0.0
  %v7655 = vmul.f32 %v7651, 0.2
  %v7656 = vmul.f32 %v7652, 0.2
  %v7657 = vsel %vm7653, %v7651, %v7655
  %v7658 = vsel %vm7654, %v7652, %v7656
  %v7659 = vsel %vm80, %v7657, -1e+30
  %v7660 = vsel %vm81, %v7658, -1e+30
  %v7661 = vsel %vm1091, %v7659, -inf
  %7662 = vmax.xlane.f32.xlu0 %v7661
  %v7663 = vpop.xlane.xlu0 %7662
  %v7664 = vsel %vm1091, %v7660, -inf
  %7665 = vmax.xlane.f32.xlu0 %v7664
  %v7666 = vpop.xlane.xlu0 %7665
  %v7667 = vsub.f32 %v7659, %v7663
  %v7668 = vsub.f32 %v7660, %v7666
  %v7669 = vmul.f32 %v7667, 1.442695
  %v7670 = vpow.pop %v7669
  %v7671 = vmul.f32 %v7668, 1.442695
  %v7672 = vpow.pop %v7671
  %v7673 = vsel %vm1091, %v7670, 0.0
  %7674 = vadd.xlane.f32.xlu0 %v7673
  %v7675 = vpop.xlane.xlu0 %7674
  %v7676 = vsel %vm1091, %v7672, 0.0
  %7677 = vadd.xlane.f32.xlu0 %v7676
  %v7678 = vpop.xlane.xlu0 %7677
  %v7679 = vrcp.pop %v7675
  %v7680 = vrcp.pop %v7678
  %v7681 = vmul.f32 %v7670, %v7679
  %v7682 = vmul.f32 %v7672, %v7680
  %v7683 = vpack.c.bf16 %v7682, %v7681
  %v7684 = vpack.c.bf16 %v7525, %v7522
  %v7686 = vlaneseq
  %v7687 = vshrl.u32 %v7686, 7
  %v7688 = vsub.s32 0, %v7687
  %v7689 = vrot.slane %v7309, %v7688
  %v7692 = vsel %vm1091, %v7683, 0
  %7694 = vmatprep.subr.bf16.mxu0 0
  %7695 = vmatpush1.bf16.msra.mxu0 %v7684
  %7696 = vmatprep.subr.bf16.mxu0 0
  %7697 = vmatpush1.bf16.msra.mxu0 0
  %7698 = vmatprep.subr.bf16.mxu0 0
  %7699 = vmatpush1.bf16.msra.mxu0 0
  %7700 = vmatprep.subr.bf16.mxu0 0
  %7701 = vmatpush1.bf16.msra.mxu0 0
  %7702 = vmatprep.subr.bf16.mxu0 0
  %7703 = vmatpush1.bf16.msra.mxu0 0
  %7704 = vmatprep.subr.bf16.mxu0 0
  %7705 = vmatpush1.bf16.msra.mxu0 0
  %7706 = vmatprep.subr.bf16.mxu0 0
  %7707 = vmatpush1.bf16.msra.mxu0 0
  %7708 = vmatprep.subr.bf16.mxu0 0
  %7709 = vmatpush1.bf16.msra.mxu0 0
  %7710 = vmatprep.subr.bf16.mxu0 0
  %7711 = vmatpush1.bf16.msra.mxu0 0
  %7712 = vmatprep.subr.bf16.mxu0 0
  %7713 = vmatpush1.bf16.msra.mxu0 0
  %7714 = vmatprep.subr.bf16.mxu0 0
  %7715 = vmatpush1.bf16.msra.mxu0 0
  %7716 = vmatprep.subr.bf16.mxu0 0
  %7717 = vmatpush1.bf16.msra.mxu0 0
  %7718 = vmatprep.subr.bf16.mxu0 0
  %7719 = vmatpush1.bf16.msra.mxu0 0
  %7720 = vmatprep.subr.bf16.mxu0 0
  %7721 = vmatpush1.bf16.msra.mxu0 0
  %7722 = vmatprep.subr.bf16.mxu0 0
  %7723 = vmatpush1.bf16.msra.mxu0 0
  %7724 = vmatprep.subr.bf16.mxu0 0
  %7725 = vmatpush1.bf16.msra.mxu0 0
  %7726 = vmatprep.mubr.bf16.mxu0 0
  %7727 = vmatmul.mubr.bf16.gmra.mrb[0].mxu0 %v7692
  %v7728 = vpop.f32.mrb[0].mxu0
  %v7729 = vadd.f32 %v7689, %v7728
  %v7730 = vpop.f32.mrb[0].mxu0
  %v7731 = vpop.f32.mrb[0].mxu0
  %v7732 = vadd.f32 %v7689, %v7731
  %v7733 = vpop.f32.mrb[0].mxu0
  %7734 = vdwg.mxu0
  %v7735 = vmax.f32 %v7729, 0.0
  %v7736 = vmax.f32 %v7732, 0.0
  %v7737 = vld [vmem:[%s18] sm:$0xf]
  %v7738 = vld [vmem:[%s18 + $0x4] sm:$0xf]
  %v7739 = vld [vmem:[%s18 + $0x8] sm:$0xf]
  %v7740 = vld [vmem:[%s18 + $0xc] sm:$0xf]
  %v7741 = vld [vmem:[%s18 + $0x10] sm:$0xf]
  %v7742 = vld [vmem:[%s18 + $0x14] sm:$0xf]
  %v7743 = vld [vmem:[%s18 + $0x18] sm:$0xf]
  %v7744 = vld [vmem:[%s18 + $0x1c] sm:$0xf]
  %v7745 = vld [vmem:[%s18 + $0x20] sm:$0xf]
  %v7746 = vld [vmem:[%s18 + $0x24] sm:$0xf]
  %v7747 = vld [vmem:[%s18 + $0x28] sm:$0xf]
  %v7748 = vld [vmem:[%s18 + $0x2c] sm:$0xf]
  %v7749 = vld [vmem:[%s18 + $0x30] sm:$0xf]
  %v7750 = vld [vmem:[%s18 + $0x34] sm:$0x7]
  %v7751 = vld [vmem:[%s19] sm:$0x1]
  %v7752 = vld [vmem:[%s20] sm:$0x1]
  %v7753 = vpack.c.bf16 %v7736, %v7735
  %v7768 = vunpack.c.l.b16 %v7737
  %v7769 = vunpack.c.l.b16 %v7738
  %v7770 = vunpack.c.l.b16 %v7739
  %v7771 = vunpack.c.l.b16 %v7740
  %v7772 = vunpack.c.l.b16 %v7741
  %v7773 = vunpack.c.l.b16 %v7742
  %v7774 = vunpack.c.l.b16 %v7743
  %v7775 = vunpack.c.l.b16 %v7744
  %v7776 = vunpack.c.l.b16 %v7745
  %v7777 = vunpack.c.l.b16 %v7746
  %v7778 = vunpack.c.l.b16 %v7747
  %v7779 = vunpack.c.l.b16 %v7748
  %v7780 = vunpack.c.l.b16 %v7749
  %v7781 = vunpack.c.l.b16 %v7750
  %v7782 = vpack.c.b16 %v7769, %v7768
  %v7783 = vpack.c.b16 %v7771, %v7770
  %v7784 = vpack.c.b16 %v7773, %v7772
  %v7785 = vpack.c.b16 %v7775, %v7774
  %v7786 = vpack.c.b16 %v7777, %v7776
  %v7787 = vpack.c.b16 %v7779, %v7778
  %v7788 = vpack.c.b16 %v7781, %v7780
  %v7796 = vsel %vm7233, %v7753, 0
  %vm7798 = vcmask 1046528
  %v7800 = vsel %vm7798, %v7788, 0
  %7802 = vmatprep.subr.bf16.mxu0 0
  %7803 = vmatpush1.bf16.msra.mxu0 %v7782
  %7804 = vmatprep.subr.bf16.mxu0 0
  %7805 = vmatpush1.bf16.msra.mxu0 %v7783
  %7806 = vmatprep.subr.bf16.mxu0 0
  %7807 = vmatpush1.bf16.msra.mxu0 %v7784
  %7808 = vmatprep.subr.bf16.mxu0 0
  %7809 = vmatpush1.bf16.msra.mxu0 %v7785
  %7810 = vmatprep.subr.bf16.mxu0 0
  %7811 = vmatpush1.bf16.msra.mxu0 %v7786
  %7812 = vmatprep.subr.bf16.mxu0 0
  %7813 = vmatpush1.bf16.msra.mxu0 %v7787
  %7814 = vmatprep.subr.bf16.mxu0 0
  %7815 = vmatpush1.bf16.msra.mxu0 %v7800
  %7816 = vmatprep.subr.bf16.mxu0 0
  %7817 = vmatpush1.bf16.msra.mxu0 0
  %7818 = vmatprep.subr.bf16.mxu0 0
  %7819 = vmatpush1.bf16.msra.mxu0 0
  %7820 = vmatprep.subr.bf16.mxu0 0
  %7821 = vmatpush1.bf16.msra.mxu0 0
  %7822 = vmatprep.subr.bf16.mxu0 0
  %7823 = vmatpush1.bf16.msra.mxu0 0
  %7824 = vmatprep.subr.bf16.mxu0 0
  %7825 = vmatpush1.bf16.msra.mxu0 0
  %7826 = vmatprep.subr.bf16.mxu0 0
  %7827 = vmatpush1.bf16.msra.mxu0 0
  %7828 = vmatprep.subr.bf16.mxu0 0
  %7829 = vmatpush1.bf16.msra.mxu0 0
  %7830 = vmatprep.subr.bf16.mxu0 0
  %7831 = vmatpush1.bf16.msra.mxu0 0
  %7832 = vmatprep.subr.bf16.mxu0 0
  %7833 = vmatpush1.bf16.msra.mxu0 0
  %7834 = vmatprep.mubr.bf16.mxu0 0
  %7835 = vmatmul.mubr.bf16.gmra.mrb[0].mxu0 %v7796
  %v7836 = vpop.f32.mrb[0].mxu0
  %v7837 = vadd.f32 0.0, %v7836
  %v7838 = vpop.f32.mrb[0].mxu0
  %v7839 = vpop.f32.mrb[0].mxu0
  %v7840 = vadd.f32 0.0, %v7839
  %v7841 = vpop.f32.mrb[0].mxu0
  %7842 = vdwg.mxu0
  %v7844 = vsel %vm7233, %v7751, 0
  %7846 = vmatprep.subr.bf16.mxu0 0
  %7847 = vmatpush1.bf16.xpose.msra.mxu0 %v7796
  %7848 = vmatprep.subr.bf16.mxu0 0
  %7849 = vmatpush1.bf16.xpose.msra.mxu0 0
  %7850 = vmatprep.subr.bf16.mxu0 0
  %7851 = vmatpush1.bf16.xpose.msra.mxu0 0
  %7852 = vmatprep.subr.bf16.mxu0 0
  %7853 = vmatpush1.bf16.xpose.msra.mxu0 0
  %7854 = vmatprep.subr.bf16.mxu0 0
  %7855 = vmatpush1.bf16.xpose.msra.mxu0 0
  %7856 = vmatprep.subr.bf16.mxu0 0
  %7857 = vmatpush1.bf16.xpose.msra.mxu0 0
  %7858 = vmatprep.subr.bf16.mxu0 0
  %7859 = vmatpush1.bf16.xpose.msra.mxu0 0
  %7860 = vmatprep.subr.bf16.mxu0 0
  %7861 = vmatpush1.bf16.xpose.msra.mxu0 0
  %7862 = vmatprep.subr.bf16.mxu0 0
  %7863 = vmatpush1.bf16.xpose.msra.mxu0 0
  %7864 = vmatprep.subr.bf16.mxu0 0
  %7865 = vmatpush1.bf16.xpose.msra.mxu0 0
  %7866 = vmatprep.subr.bf16.mxu0 0
  %7867 = vmatpush1.bf16.xpose.msra.mxu0 0
  %7868 = vmatprep.subr.bf16.mxu0 0
  %7869 = vmatpush1.bf16.xpose.msra.mxu0 0
  %7870 = vmatprep.subr.bf16.mxu0 0
  %7871 = vmatpush1.bf16.xpose.msra.mxu0 0
  %7872 = vmatprep.subr.bf16.mxu0 0
  %7873 = vmatpush1.bf16.xpose.msra.mxu0 0
  %7874 = vmatprep.subr.bf16.mxu0 0
  %7875 = vmatpush1.bf16.xpose.msra.mxu0 0
  %7876 = vmatprep.subr.bf16.mxu0 0
  %7877 = vmatpush1.bf16.xpose.msra.mxu0 0
  %7878 = vmatprep.mubr.bf16.mxu0 0
  %7879 = vmatmul.mubr.bf16.gmra.mrb[0].mxu0 %v7844
  %v7880 = vpop.f32.mrb[0].mxu0
  %v7881 = vadd.f32 0.0, %v7880
  %v7882 = vpop.f32.mrb[0].mxu0
  %v7883 = vpop.f32.mrb[0].mxu0
  %v7884 = vpop.f32.mrb[0].mxu0
  %7885 = vdwg.mxu0
  %7887 = vset.pattern.permute.xlu0 20
  %7888 = vperm.xlu0 %7887, %v7837
  %v7889 = vpop.permute.xlu0 %7888
  %7892 = vset.pattern.permute.xlu0 20
  %7893 = vperm.xlu0 %7892, %v7840
  %v7894 = vpop.permute.xlu0 %7893
  %v7896 = vlaneseq
  %v7897 = vshrl.u32 %v7896, 7
  %v7898 = vsub.s32 0, %v7897
  %v7899 = vrot.slane %v7881, %v7898
  %v7900 = vadd.f32 %v7889, %v7899
  %v7901 = vadd.f32 %v7894, %v7899
  %vm7902 = vcmp.gt.f32.partialorder %v7900, 0.0
  %vm7903 = vcmp.gt.f32.partialorder %v7901, 0.0
  %v7904 = vmul.f32 %v7900, 0.2
  %v7905 = vmul.f32 %v7901, 0.2
  %v7906 = vsel %vm7902, %v7900, %v7904
  %v7907 = vsel %vm7903, %v7901, %v7905
  %v7908 = vsel %vm80, %v7906, -1e+30
  %v7909 = vsel %vm81, %v7907, -1e+30
  %v7910 = vsel %vm1091, %v7908, -inf
  %7911 = vmax.xlane.f32.xlu0 %v7910
  %v7912 = vpop.xlane.xlu0 %7911
  %v7913 = vsel %vm1091, %v7909, -inf
  %7914 = vmax.xlane.f32.xlu0 %v7913
  %v7915 = vpop.xlane.xlu0 %7914
  %v7916 = vsub.f32 %v7908, %v7912
  %v7917 = vsub.f32 %v7909, %v7915
  %v7918 = vmul.f32 %v7916, 1.442695
  %v7919 = vpow.pop %v7918
  %v7920 = vmul.f32 %v7917, 1.442695
  %v7921 = vpow.pop %v7920
  %v7922 = vsel %vm1091, %v7919, 0.0
  %7923 = vadd.xlane.f32.xlu0 %v7922
  %v7924 = vpop.xlane.xlu0 %7923
  %v7925 = vsel %vm1091, %v7921, 0.0
  %7926 = vadd.xlane.f32.xlu0 %v7925
  %v7927 = vpop.xlane.xlu0 %7926
  %v7928 = vrcp.pop %v7924
  %v7929 = vrcp.pop %v7927
  %v7930 = vmul.f32 %v7919, %v7928
  %v7931 = vmul.f32 %v7921, %v7929
  %v7932 = vpack.c.bf16 %v7931, %v7930
  %v7933 = vpack.c.bf16 %v7840, %v7837
  %v7935 = vlaneseq
  %v7936 = vshrl.u32 %v7935, 7
  %v7937 = vsub.s32 0, %v7936
  %v7938 = vrot.slane %v7752, %v7937
  %v7941 = vsel %vm1091, %v7932, 0
  %7943 = vmatprep.subr.bf16.mxu0 0
  %7944 = vmatpush1.bf16.msra.mxu0 %v7933
  %7945 = vmatprep.subr.bf16.mxu0 0
  %7946 = vmatpush1.bf16.msra.mxu0 0
  %7947 = vmatprep.subr.bf16.mxu0 0
  %7948 = vmatpush1.bf16.msra.mxu0 0
  %7949 = vmatprep.subr.bf16.mxu0 0
  %7950 = vmatpush1.bf16.msra.mxu0 0
  %7951 = vmatprep.subr.bf16.mxu0 0
  %7952 = vmatpush1.bf16.msra.mxu0 0
  %7953 = vmatprep.subr.bf16.mxu0 0
  %7954 = vmatpush1.bf16.msra.mxu0 0
  %7955 = vmatprep.subr.bf16.mxu0 0
  %7956 = vmatpush1.bf16.msra.mxu0 0
  %7957 = vmatprep.subr.bf16.mxu0 0
  %7958 = vmatpush1.bf16.msra.mxu0 0
  %7959 = vmatprep.subr.bf16.mxu0 0
  %7960 = vmatpush1.bf16.msra.mxu0 0
  %7961 = vmatprep.subr.bf16.mxu0 0
  %7962 = vmatpush1.bf16.msra.mxu0 0
  %7963 = vmatprep.subr.bf16.mxu0 0
  %7964 = vmatpush1.bf16.msra.mxu0 0
  %7965 = vmatprep.subr.bf16.mxu0 0
  %7966 = vmatpush1.bf16.msra.mxu0 0
  %7967 = vmatprep.subr.bf16.mxu0 0
  %7968 = vmatpush1.bf16.msra.mxu0 0
  %7969 = vmatprep.subr.bf16.mxu0 0
  %7970 = vmatpush1.bf16.msra.mxu0 0
  %7971 = vmatprep.subr.bf16.mxu0 0
  %7972 = vmatpush1.bf16.msra.mxu0 0
  %7973 = vmatprep.subr.bf16.mxu0 0
  %7974 = vmatpush1.bf16.msra.mxu0 0
  %7975 = vmatprep.mubr.bf16.mxu0 0
  %7976 = vmatmul.mubr.bf16.gmra.mrb[0].mxu0 %v7941
  %v7977 = vpop.f32.mrb[0].mxu0
  %v7978 = vadd.f32 %v7938, %v7977
  %v7979 = vpop.f32.mrb[0].mxu0
  %v7980 = vpop.f32.mrb[0].mxu0
  %v7981 = vadd.f32 %v7938, %v7980
  %v7982 = vpop.f32.mrb[0].mxu0
  %7983 = vdwg.mxu0
  %v7984 = vmax.f32 %v7978, 0.0
  %v7985 = vmax.f32 %v7981, 0.0
  %7988 = vrot.lane.b32.xlu0 %v7984, 20
  %v7989 = vpop.permute.xlu0 %7988
  %7990 = vrot.lane.b32.xlu0 %v7985, 20
  %v7991 = vpop.permute.xlu0 %7990
  %vm7994 = vcmask 162816
  %v7995 = vsel %vm7994, %v6490, %v7989
  %v7996 = vsel %vm7994, %v6491, %v7991
  %v7997 = vld [vmem:[%s21] sm:$0xf]
  %v7998 = vld [vmem:[%s21 + $0x4] sm:$0xf]
  %v7999 = vld [vmem:[%s21 + $0x8] sm:$0xf]
  %v8000 = vld [vmem:[%s21 + $0xc] sm:$0xf]
  %v8001 = vld [vmem:[%s21 + $0x10] sm:$0xf]
  %v8002 = vld [vmem:[%s22] sm:$0x1]
  %v8003 = vld [vmem:[%s23] sm:$0x1]
  %v8004 = vpack.c.bf16 %v7996, %v7995
  %v8010 = vunpack.c.l.b16 %v7997
  %v8011 = vunpack.c.l.b16 %v7998
  %v8012 = vunpack.c.l.b16 %v7999
  %v8013 = vunpack.c.l.b16 %v8000
  %v8014 = vunpack.c.l.b16 %v8001
  %v8015 = vpack.c.b16 %v8011, %v8010
  %v8016 = vpack.c.b16 %v8013, %v8012
  %v8017 = vpack.c.b16 %v8014, %v8014
  %vm8020 = vcmask 326656
  %v8022 = vsel %vm8020, %v8004, 0
  %vm8024 = vcmask 1043456
  %v8026 = vsel %vm8024, %v8017, 0
  %8028 = vmatprep.subr.bf16.mxu0 0
  %8029 = vmatpush1.bf16.msra.mxu0 %v8015
  %8030 = vmatprep.subr.bf16.mxu0 0
  %8031 = vmatpush1.bf16.msra.mxu0 %v8016
  %8032 = vmatprep.subr.bf16.mxu0 0
  %8033 = vmatpush1.bf16.msra.mxu0 %v8026
  %8034 = vmatprep.subr.bf16.mxu0 0
  %8035 = vmatpush1.bf16.msra.mxu0 0
  %8036 = vmatprep.subr.bf16.mxu0 0
  %8037 = vmatpush1.bf16.msra.mxu0 0
  %8038 = vmatprep.subr.bf16.mxu0 0
  %8039 = vmatpush1.bf16.msra.mxu0 0
  %8040 = vmatprep.subr.bf16.mxu0 0
  %8041 = vmatpush1.bf16.msra.mxu0 0
  %8042 = vmatprep.subr.bf16.mxu0 0
  %8043 = vmatpush1.bf16.msra.mxu0 0
  %8044 = vmatprep.subr.bf16.mxu0 0
  %8045 = vmatpush1.bf16.msra.mxu0 0
  %8046 = vmatprep.subr.bf16.mxu0 0
  %8047 = vmatpush1.bf16.msra.mxu0 0
  %8048 = vmatprep.subr.bf16.mxu0 0
  %8049 = vmatpush1.bf16.msra.mxu0 0
  %8050 = vmatprep.subr.bf16.mxu0 0
  %8051 = vmatpush1.bf16.msra.mxu0 0
  %8052 = vmatprep.subr.bf16.mxu0 0
  %8053 = vmatpush1.bf16.msra.mxu0 0
  %8054 = vmatprep.subr.bf16.mxu0 0
  %8055 = vmatpush1.bf16.msra.mxu0 0
  %8056 = vmatprep.subr.bf16.mxu0 0
  %8057 = vmatpush1.bf16.msra.mxu0 0
  %8058 = vmatprep.subr.bf16.mxu0 0
  %8059 = vmatpush1.bf16.msra.mxu0 0
  %8060 = vmatprep.mubr.bf16.mxu0 0
  %8061 = vmatmul.mubr.bf16.gmra.mrb[0].mxu0 %v8022
  %v8062 = vpop.f32.mrb[0].mxu0
  %v8063 = vadd.f32 0.0, %v8062
  %v8064 = vpop.f32.mrb[0].mxu0
  %v8065 = vpop.f32.mrb[0].mxu0
  %v8066 = vadd.f32 0.0, %v8065
  %v8067 = vpop.f32.mrb[0].mxu0
  %8068 = vdwg.mxu0
  %v8070 = vsel %vm8020, %v8002, 0
  %8072 = vmatprep.subr.bf16.mxu0 0
  %8073 = vmatpush1.bf16.xpose.msra.mxu0 %v8022
  %8074 = vmatprep.subr.bf16.mxu0 0
  %8075 = vmatpush1.bf16.xpose.msra.mxu0 0
  %8076 = vmatprep.subr.bf16.mxu0 0
  %8077 = vmatpush1.bf16.xpose.msra.mxu0 0
  %8078 = vmatprep.subr.bf16.mxu0 0
  %8079 = vmatpush1.bf16.xpose.msra.mxu0 0
  %8080 = vmatprep.subr.bf16.mxu0 0
  %8081 = vmatpush1.bf16.xpose.msra.mxu0 0
  %8082 = vmatprep.subr.bf16.mxu0 0
  %8083 = vmatpush1.bf16.xpose.msra.mxu0 0
  %8084 = vmatprep.subr.bf16.mxu0 0
  %8085 = vmatpush1.bf16.xpose.msra.mxu0 0
  %8086 = vmatprep.subr.bf16.mxu0 0
  %8087 = vmatpush1.bf16.xpose.msra.mxu0 0
  %8088 = vmatprep.subr.bf16.mxu0 0
  %8089 = vmatpush1.bf16.xpose.msra.mxu0 0
  %8090 = vmatprep.subr.bf16.mxu0 0
  %8091 = vmatpush1.bf16.xpose.msra.mxu0 0
  %8092 = vmatprep.subr.bf16.mxu0 0
  %8093 = vmatpush1.bf16.xpose.msra.mxu0 0
  %8094 = vmatprep.subr.bf16.mxu0 0
  %8095 = vmatpush1.bf16.xpose.msra.mxu0 0
  %8096 = vmatprep.subr.bf16.mxu0 0
  %8097 = vmatpush1.bf16.xpose.msra.mxu0 0
  %8098 = vmatprep.subr.bf16.mxu0 0
  %8099 = vmatpush1.bf16.xpose.msra.mxu0 0
  %8100 = vmatprep.subr.bf16.mxu0 0
  %8101 = vmatpush1.bf16.xpose.msra.mxu0 0
  %8102 = vmatprep.subr.bf16.mxu0 0
  %8103 = vmatpush1.bf16.xpose.msra.mxu0 0
  %8104 = vmatprep.mubr.bf16.mxu0 0
  %8105 = vmatmul.mubr.bf16.gmra.mrb[0].mxu0 %v8070
  %v8106 = vpop.f32.mrb[0].mxu0
  %v8107 = vadd.f32 0.0, %v8106
  %v8108 = vpop.f32.mrb[0].mxu0
  %v8109 = vpop.f32.mrb[0].mxu0
  %v8110 = vpop.f32.mrb[0].mxu0
  %8111 = vdwg.mxu0
  %8113 = vset.pattern.permute.xlu0 40
  %8114 = vperm.xlu0 %8113, %v8063
  %v8115 = vpop.permute.xlu0 %8114
  %8118 = vset.pattern.permute.xlu0 40
  %8119 = vperm.xlu0 %8118, %v8066
  %v8120 = vpop.permute.xlu0 %8119
  %v8122 = vlaneseq
  %v8123 = vshrl.u32 %v8122, 7
  %v8124 = vsub.s32 0, %v8123
  %v8125 = vrot.slane %v8107, %v8124
  %v8126 = vadd.f32 %v8115, %v8125
  %v8127 = vadd.f32 %v8120, %v8125
  %vm8128 = vcmp.gt.f32.partialorder %v8126, 0.0
  %vm8129 = vcmp.gt.f32.partialorder %v8127, 0.0
  %v8130 = vmul.f32 %v8126, 0.2
  %v8131 = vmul.f32 %v8127, 0.2
  %v8132 = vsel %vm8128, %v8126, %v8130
  %v8133 = vsel %vm8129, %v8127, %v8131
  %v8134 = vsel %vm80, %v8132, -1e+30
  %v8135 = vsel %vm81, %v8133, -1e+30
  %v8136 = vsel %vm1091, %v8134, -inf
  %8137 = vmax.xlane.f32.xlu0 %v8136
  %v8138 = vpop.xlane.xlu0 %8137
  %v8139 = vsel %vm1091, %v8135, -inf
  %8140 = vmax.xlane.f32.xlu0 %v8139
  %v8141 = vpop.xlane.xlu0 %8140
  %v8142 = vsub.f32 %v8134, %v8138
  %v8143 = vsub.f32 %v8135, %v8141
  %v8144 = vmul.f32 %v8142, 1.442695
  %v8145 = vpow.pop %v8144
  %v8146 = vmul.f32 %v8143, 1.442695
  %v8147 = vpow.pop %v8146
  %v8148 = vsel %vm1091, %v8145, 0.0
  %8149 = vadd.xlane.f32.xlu0 %v8148
  %v8150 = vpop.xlane.xlu0 %8149
  %v8151 = vsel %vm1091, %v8147, 0.0
  %8152 = vadd.xlane.f32.xlu0 %v8151
  %v8153 = vpop.xlane.xlu0 %8152
  %v8154 = vrcp.pop %v8150
  %v8155 = vrcp.pop %v8153
  %v8156 = vmul.f32 %v8145, %v8154
  %v8157 = vmul.f32 %v8147, %v8155
  %v8158 = vpack.c.bf16 %v8157, %v8156
  %v8159 = vpack.c.bf16 %v8066, %v8063
  %v8161 = vsel %vm1091, %v8158, 0
  %8163 = vmatprep.subr.bf16.mxu0 0
  %8164 = vmatpush1.bf16.msra.mxu0 %v8159
  %8165 = vmatprep.subr.bf16.mxu0 0
  %8166 = vmatpush1.bf16.msra.mxu0 0
  %8167 = vmatprep.subr.bf16.mxu0 0
  %8168 = vmatpush1.bf16.msra.mxu0 0
  %8169 = vmatprep.subr.bf16.mxu0 0
  %8170 = vmatpush1.bf16.msra.mxu0 0
  %8171 = vmatprep.subr.bf16.mxu0 0
  %8172 = vmatpush1.bf16.msra.mxu0 0
  %8173 = vmatprep.subr.bf16.mxu0 0
  %8174 = vmatpush1.bf16.msra.mxu0 0
  %8175 = vmatprep.subr.bf16.mxu0 0
  %8176 = vmatpush1.bf16.msra.mxu0 0
  %8177 = vmatprep.subr.bf16.mxu0 0
  %8178 = vmatpush1.bf16.msra.mxu0 0
  %8179 = vmatprep.subr.bf16.mxu0 0
  %8180 = vmatpush1.bf16.msra.mxu0 0
  %8181 = vmatprep.subr.bf16.mxu0 0
  %8182 = vmatpush1.bf16.msra.mxu0 0
  %8183 = vmatprep.subr.bf16.mxu0 0
  %8184 = vmatpush1.bf16.msra.mxu0 0
  %8185 = vmatprep.subr.bf16.mxu0 0
  %8186 = vmatpush1.bf16.msra.mxu0 0
  %8187 = vmatprep.subr.bf16.mxu0 0
  %8188 = vmatpush1.bf16.msra.mxu0 0
  %8189 = vmatprep.subr.bf16.mxu0 0
  %8190 = vmatpush1.bf16.msra.mxu0 0
  %8191 = vmatprep.subr.bf16.mxu0 0
  %8192 = vmatpush1.bf16.msra.mxu0 0
  %8193 = vmatprep.subr.bf16.mxu0 0
  %8194 = vmatpush1.bf16.msra.mxu0 0
  %8195 = vmatprep.mubr.bf16.mxu0 0
  %8196 = vmatmul.mubr.bf16.gmra.mrb[0].mxu0 %v8161
  %v8197 = vpop.f32.mrb[0].mxu0
  %v8198 = vadd.f32 0.0, %v8197
  %v8199 = vpop.f32.mrb[0].mxu0
  %v8200 = vpop.f32.mrb[0].mxu0
  %v8201 = vadd.f32 0.0, %v8200
  %v8202 = vpop.f32.mrb[0].mxu0
  %8203 = vdwg.mxu0
  %8204 = vset.pattern.permute.xlu0 41
  %8205 = vperm.xlu0 %8204, %v8063
  %v8206 = vpop.permute.xlu0 %8205
  %8208 = vset.pattern.permute.xlu0 41
  %8209 = vperm.xlu0 %8208, %v8066
  %v8210 = vpop.permute.xlu0 %8209
  %v8212 = vlaneseq
  %v8213 = vshrl.u32 %v8212, 7
  %v8214 = vsub.s32 1, %v8213
  %v8215 = vrot.slane %v8107, %v8214
  %v8216 = vadd.f32 %v8206, %v8215
  %v8217 = vadd.f32 %v8210, %v8215
  %vm8218 = vcmp.gt.f32.partialorder %v8216, 0.0
  %vm8219 = vcmp.gt.f32.partialorder %v8217, 0.0
  %v8220 = vmul.f32 %v8216, 0.2
  %v8221 = vmul.f32 %v8217, 0.2
  %v8222 = vsel %vm8218, %v8216, %v8220
  %v8223 = vsel %vm8219, %v8217, %v8221
  %v8224 = vsel %vm80, %v8222, -1e+30
  %v8225 = vsel %vm81, %v8223, -1e+30
  %v8226 = vsel %vm1091, %v8224, -inf
  %8227 = vmax.xlane.f32.xlu0 %v8226
  %v8228 = vpop.xlane.xlu0 %8227
  %v8229 = vsel %vm1091, %v8225, -inf
  %8230 = vmax.xlane.f32.xlu0 %v8229
  %v8231 = vpop.xlane.xlu0 %8230
  %v8232 = vsub.f32 %v8224, %v8228
  %v8233 = vsub.f32 %v8225, %v8231
  %v8234 = vmul.f32 %v8232, 1.442695
  %v8235 = vpow.pop %v8234
  %v8236 = vmul.f32 %v8233, 1.442695
  %v8237 = vpow.pop %v8236
  %v8238 = vsel %vm1091, %v8235, 0.0
  %8239 = vadd.xlane.f32.xlu0 %v8238
  %v8240 = vpop.xlane.xlu0 %8239
  %v8241 = vsel %vm1091, %v8237, 0.0
  %8242 = vadd.xlane.f32.xlu0 %v8241
  %v8243 = vpop.xlane.xlu0 %8242
  %v8244 = vrcp.pop %v8240
  %v8245 = vrcp.pop %v8243
  %v8246 = vmul.f32 %v8235, %v8244
  %v8247 = vmul.f32 %v8237, %v8245
  %v8248 = vpack.c.bf16 %v8247, %v8246
  %8250 = vrot.lane.b32.xlu0 %v8159, 108
  %v8251 = vpop.permute.xlu0 %8250
  %v8254 = vsel %vm1091, %v8248, 0
  %8256 = vmatprep.subr.bf16.mxu0 0
  %8257 = vmatpush1.bf16.msra.mxu0 %v8251
  %8258 = vmatprep.subr.bf16.mxu0 0
  %8259 = vmatpush1.bf16.msra.mxu0 0
  %8260 = vmatprep.subr.bf16.mxu0 0
  %8261 = vmatpush1.bf16.msra.mxu0 0
  %8262 = vmatprep.subr.bf16.mxu0 0
  %8263 = vmatpush1.bf16.msra.mxu0 0
  %8264 = vmatprep.subr.bf16.mxu0 0
  %8265 = vmatpush1.bf16.msra.mxu0 0
  %8266 = vmatprep.subr.bf16.mxu0 0
  %8267 = vmatpush1.bf16.msra.mxu0 0
  %8268 = vmatprep.subr.bf16.mxu0 0
  %8269 = vmatpush1.bf16.msra.mxu0 0
  %8270 = vmatprep.subr.bf16.mxu0 0
  %8271 = vmatpush1.bf16.msra.mxu0 0
  %8272 = vmatprep.subr.bf16.mxu0 0
  %8273 = vmatpush1.bf16.msra.mxu0 0
  %8274 = vmatprep.subr.bf16.mxu0 0
  %8275 = vmatpush1.bf16.msra.mxu0 0
  %8276 = vmatprep.subr.bf16.mxu0 0
  %8277 = vmatpush1.bf16.msra.mxu0 0
  %8278 = vmatprep.subr.bf16.mxu0 0
  %8279 = vmatpush1.bf16.msra.mxu0 0
  %8280 = vmatprep.subr.bf16.mxu0 0
  %8281 = vmatpush1.bf16.msra.mxu0 0
  %8282 = vmatprep.subr.bf16.mxu0 0
  %8283 = vmatpush1.bf16.msra.mxu0 0
  %8284 = vmatprep.subr.bf16.mxu0 0
  %8285 = vmatpush1.bf16.msra.mxu0 0
  %8286 = vmatprep.subr.bf16.mxu0 0
  %8287 = vmatpush1.bf16.msra.mxu0 0
  %8288 = vmatprep.mubr.bf16.mxu0 0
  %8289 = vmatmul.mubr.bf16.gmra.mrb[0].mxu0 %v8254
  %v8290 = vpop.f32.mrb[0].mxu0
  %v8291 = vadd.f32 0.0, %v8290
  %v8292 = vpop.f32.mrb[0].mxu0
  %v8293 = vpop.f32.mrb[0].mxu0
  %v8294 = vadd.f32 0.0, %v8293
  %v8295 = vpop.f32.mrb[0].mxu0
  %8296 = vdwg.mxu0
  %8299 = vrot.lane.b32.xlu0 %v8291, 20
  %v8300 = vpop.permute.xlu0 %8299
  %8301 = vrot.lane.b32.xlu0 %v8294, 20
  %v8302 = vpop.permute.xlu0 %8301
  %v8305 = vsel %vm7994, %v8198, %v8300
  %v8306 = vsel %vm7994, %v8201, %v8302
  %v8308 = vlaneseq
  %v8309 = vshrl.u32 %v8308, 7
  %v8310 = vsub.s32 0, %v8309
  %v8311 = vrot.slane %v8003, %v8310
  %v8313 = vadd.f32 %v8305, %v8311
  %v8314 = vadd.f32 %v8306, %v8311
  %v8315 = vmax.f32 %v8313, 0.0
  %v8316 = vmax.f32 %v8314, 0.0
  %8317 = vst.msk [vmem:[%s24] sm:$0xff] %vm8020, %v8315
  %8318 = vst.msk [vmem:[%s24 + $0x8] sm:$0xff] %vm8020, %v8316
  // Predicated region
  $region98: #{_fgat_forward_impl.3} parent=0 // pred_check
    _
  $region99: #{_fgat_forward_impl.3} parent=0 // pred_check_branch
    %8320 = sbr.rel (0) target = $region101
  $region100: #{_fgat_forward_impl.3} parent=0 // pred_region
    _
  $region101: #{_fgat_forward_impl.3} parent=0 // pred_fallthru
    _
  // Predicated region
  $region102: #{_fgat_forward_impl.3} parent=0 // pred_check
    _
  $region103: #{_fgat_forward_impl.3} parent=0 // pred_check_branch
    %8322 = sbr.rel (0) target = $region105
  $region104: #{_fgat_forward_impl.3} parent=0 // pred_region
    _
  $region105: #{_fgat_forward_impl.3} parent=0 // pred_fallthru
    _

</llo_original>
